<compile_context>
chip_gen: v7x
topology: tpu7x:2x2x1
jax: 0.10.0
libtpu: 0.0.40
codegen_flags: <defaults>
</compile_context>

<pallas_src>
import functools

import jax
import jax.numpy as jnp
from jax.experimental import pallas as pl
from jax.experimental.pallas import tpu as pltpu

EPS = 1e-5       # nn.BatchNorm2d default eps
SLOPE = 0.01     # nn.LeakyReLU default negative_slope
VMEM_LIMIT = 32 * 1024 * 1024


# --------------------------------------------------------------------------
# Pallas kernels
# --------------------------------------------------------------------------

def _fused_conv_kernel(w_ref, p_ref, o_ref, *, m_valid, use_bn, use_act):
    """matmul + BatchNorm(batch stats, gamma=1/beta=0) + LeakyReLU, one tile.

    Bias is intentionally absent: every BN layer's per-channel bias cancels
    under the batch-mean subtraction.  Stats are masked to the m_valid real
    columns (lane axis is zero-padded to a multiple of 128).
    """
    z = jnp.dot(w_ref[...], p_ref[...], preferred_element_type=jnp.float32)
    if use_bn:
        lane = jax.lax.broadcasted_iota(jnp.int32, z.shape, 1)
        zm = jnp.where(lane < m_valid, z, 0.0)
        inv_n = 1.0 / float(m_valid)
        mean = jnp.sum(zm, axis=1, keepdims=True) * inv_n
        var = jnp.sum(zm * zm, axis=1, keepdims=True) * inv_n - mean * mean
        var = jnp.maximum(var, 0.0)
        z = (z - mean) * jax.lax.rsqrt(var + EPS)
        # gamma=1 / beta=0 (fresh nn.BatchNorm2d affine) -> elided.
    if use_act:
        z = jnp.maximum(z, SLOPE * z)          # LeakyReLU, 2 VPU ops
    o_ref[...] = z


def _matmul_bias_res_kernel(w_ref, p_ref, b_ref, r_ref, o_ref):
    """deconv5: matmul + bias + residual add fused into one epilogue."""
    o_ref[...] = (jnp.dot(w_ref[...], p_ref[...],
                          preferred_element_type=jnp.float32)
                  + b_ref[...] + r_ref[...])


def _maxpool_kernel(c_ref, v_ref, code_ref):
    """2x2/stride-2 max pool; c_ref holds the 4 window corners stacked on
    the leading (untiled) axis, ordered k = 2*row_in_window + col_in_window."""
    a, b, c, d = c_ref[0], c_ref[1], c_ref[2], c_ref[3]
    v = jnp.maximum(jnp.maximum(a, b), jnp.maximum(c, d))
    code_ref[...] = jnp.where(a == v, 0,
                    jnp.where(b == v, 1,
                    jnp.where(c == v, 2, 3))).astype(jnp.int32)
    v_ref[...] = v


def _maxunpool_kernel(v_ref, code_ref, o_ref):
    """Inverse 2x2 pool: one stacked (4, CN, Ho*Wo) output (corner k gets the
    value iff code == k), restitched with a single XLA transpose outside."""
    v = v_ref[...]
    code = code_ref[...]
    z = jnp.zeros_like(v)
    o_ref[0] = jnp.where(code == 0, v, z)
    o_ref[1] = jnp.where(code == 1, v, z)
    o_ref[2] = jnp.where(code == 2, v, z)
    o_ref[3] = jnp.where(code == 3, v, z)


# --------------------------------------------------------------------------
# pallas_call helpers
# --------------------------------------------------------------------------

def _cparams():
    return pltpu.CompilerParams(dimension_semantics=("arbitrary",),
                                vmem_limit_bytes=VMEM_LIMIT)


def _full_spec(shape):
    nd = len(shape)
    return pl.BlockSpec(shape, lambda *_: (0,) * nd)


def _round_up(x, m):
    return ((x + m - 1) // m) * m


# --------------------------------------------------------------------------
# Conv / deconv layers (internal activation layout: (C, N, H, W))
# --------------------------------------------------------------------------

def _patches_t(x_bf16, k):
    """x: (Cin, N, H, W) -> patches^T (Cin*k*k, N*Ho*Wo); K ordered (ci,di,dj).

    Single conv_general_dilated_patches HLO in the channel-major layout, so
    the (K, M) slab comes out transpose-free and lane-dense in M.
    """
    cin, n, h, w = x_bf16.shape
    ho, wo = h - k + 1, w - k + 1
    p = jax.lax.conv_general_dilated_patches(
        x_bf16, (k, k), (1, 1), "VALID",
        dimension_numbers=("CNHW", "OIHW", "CNHW"))
    return p.reshape(cin * k * k, n * ho * wo), (n, ho, wo)


def conv2d_layer(x, wmat, bias=None, use_bn=False, use_act=False, residual=None):
    """x: (Cin, N, H, W) f32; wmat: (Cout, Cin*k*k) bf16; stride=1, padding=0."""
    cin = x.shape[0]
    cout, kk = wmat.shape
    k = int(round((kk // cin) ** 0.5))
    pt, (n, ho, wo) = _patches_t(x.astype(jnp.bfloat16), k)
    m = pt.shape[1]
    mp = _round_up(m, 128)                       # single tile, lane-aligned only
    pt = jnp.pad(pt, ((0, 0), (0, mp - m)))

    if residual is not None:
        assert not use_bn and not use_act
        res = jnp.pad(residual.reshape(cout, m).astype(jnp.float32),
                      ((0, 0), (0, mp - m)))
        y = pl.pallas_call(
            _matmul_bias_res_kernel,
            grid=(1,),
            in_specs=[_full_spec((cout, kk)), _full_spec((kk, mp)),
                      _full_spec((cout, 1)), _full_spec((cout, mp))],
            out_specs=_full_spec((cout, mp)),
            out_shape=jax.ShapeDtypeStruct((cout, mp), jnp.float32),
            compiler_params=_cparams(),
        )(wmat, pt, bias, res)
    else:
        # Bias dropped: only valid because these layers are followed by BN.
        assert use_bn
        kern = functools.partial(_fused_conv_kernel, m_valid=m,
                                 use_bn=use_bn, use_act=use_act)
        y = pl.pallas_call(
            kern,
            grid=(1,),
            in_specs=[_full_spec((cout, kk)), _full_spec((kk, mp))],
            out_specs=_full_spec((cout, mp)),
            out_shape=jax.ShapeDtypeStruct((cout, mp), jnp.float32),
            compiler_params=_cparams(),
        )(wmat, pt)
    return y[:, :m].reshape(cout, n, ho, wo)


def conv_transpose2d_layer(x, wmat, bias=None, use_bn=False, use_act=False,
                           residual=None):
    """nn.ConvTranspose2d(stride=1, padding=0) == full conv with the flipped
    kernel; wmat is the precomputed conv-equivalent (Cout, Cin*k*k) weight."""
    cin = x.shape[0]
    k = int(round((wmat.shape[1] // cin) ** 0.5))
    pad = k - 1
    xp = jnp.pad(x, ((0, 0), (0, 0), (pad, pad), (pad, pad)))
    return conv2d_layer(xp, wmat, bias, use_bn, use_act, residual)


# --------------------------------------------------------------------------
# Max pool / unpool (lane-dense stacked-corner slabs)
# --------------------------------------------------------------------------

def maxpool2x2(x):
    """nn.MaxPool2d(2, return_indices=True); x: (C, N, H, W), even H, W."""
    c, n, h, w = x.shape
    ho, wo = h // 2, w // 2
    cn, m2 = c * n, ho * wo
    # One transpose builds the stacked (4, C*N, Ho, Wo) corner slab,
    # k = 2*row_in_window + col_in_window (self-consistent with the unpool;
    # PyTorch's exact tie-break index on equal corners is backend-dependent).
    corners = (x.reshape(cn, ho, 2, wo, 2)
                .transpose(2, 4, 0, 1, 3)
                .reshape(4, cn, ho, wo))
    if m2 < 128:
        # Tiny site (10x10 -> 5x5): 25-wide lane axis; a pallas_call is pure
        # launch overhead here, so compute it as one fused XLA op instead.
        val = corners.max(axis=0)
        code = jnp.where(corners[0] == val, 0,
               jnp.where(corners[1] == val, 1,
               jnp.where(corners[2] == val, 2, 3))).astype(jnp.int32)
    else:
        val, code = pl.pallas_call(
            _maxpool_kernel,
            grid=(1,),
            in_specs=[_full_spec((4, cn, m2))],
            out_specs=(_full_spec((cn, m2)), _full_spec((cn, m2))),
            out_shape=(jax.ShapeDtypeStruct((cn, m2), jnp.float32),
                       jax.ShapeDtypeStruct((cn, m2), jnp.int32)),
            compiler_params=_cparams(),
        )(corners.reshape(4, cn, m2))
    return val.reshape(c, n, ho, wo), code.reshape(c, n, ho, wo)


def maxunpool2x2(val, code, out_size):
    """nn.MaxUnpool2d(2) with explicit output_size (even dims here)."""
    c, n, ho, wo = val.shape
    _, _, h, w = out_size
    # TODO(synk): odd output sizes (extra zero rows/cols) unneeded for this net.
    assert h == 2 * ho and w == 2 * wo
    cn, m2 = c * n, ho * wo
    if m2 < 128:
        sel = jnp.arange(4).reshape(4, 1, 1, 1)
        corners = jnp.where(code.reshape(1, cn, ho, wo) == sel,
                            val.reshape(1, cn, ho, wo), 0.0)
    else:
        stacked = pl.pallas_call(
            _maxunpool_kernel,
            grid=(1,),
            in_specs=[_full_spec((cn, m2)), _full_spec((cn, m2))],
            out_specs=_full_spec((4, cn, m2)),
            out_shape=jax.ShapeDtypeStruct((4, cn, m2), jnp.float32),
            compiler_params=_cparams(),
        )(val.reshape(cn, m2), code.reshape(cn, m2))
        corners = stacked.reshape(4, cn, ho, wo)
    return (corners.reshape(2, 2, cn, ho, wo)
                   .transpose(2, 3, 0, 4, 1)
                   .reshape(c, n, h, w))


# --------------------------------------------------------------------------
# Parameters (deterministic, kaiming-normal like the PyTorch __init__)
# --------------------------------------------------------------------------

def init_params(key):
    def conv_p(k, cout, cin, ks):
        k1, k2 = jax.random.split(k)
        fan_in = cin * ks * ks
        w = jax.random.normal(k1, (cout, cin, ks, ks), jnp.float32) * jnp.sqrt(2.0 / fan_in)
        bound = 1.0 / jnp.sqrt(fan_in)
        b = jax.random.uniform(k2, (cout,), jnp.float32, -bound, bound)
        return w, b

    def deconv_p(k, cin, cout, ks):
        k1, k2 = jax.random.split(k)
        fan_in = cout * ks * ks                   # ConvTranspose2d fan_in
        w = jax.random.normal(k1, (cin, cout, ks, ks), jnp.float32) * jnp.sqrt(2.0 / fan_in)
        bound = 1.0 / jnp.sqrt(fan_in)
        b = jax.random.uniform(k2, (cout,), jnp.float32, -bound, bound)
        return w, b

    keys = jax.random.split(key, 10)
    return {
        'conv1':   conv_p(keys[0], 16, 4, 5),
        'conv2':   conv_p(keys[1], 32, 16, 5),
        'conv3':   conv_p(keys[2], 32, 32, 3),
        'conv4':   conv_p(keys[3], 64, 32, 3),
        'conv5':   conv_p(keys[4], 64, 64, 3),
        'deconv1': deconv_p(keys[5], 64, 64, 3),
        'deconv2': deconv_p(keys[6], 64, 32, 3),
        'deconv3': deconv_p(keys[7], 64, 32, 3),
        'deconv4': deconv_p(keys[8], 32, 16, 5),
        'deconv5': deconv_p(keys[9], 16, 3, 5),
    }


def prepare_params(params):
    """One-time (outside jit) weight prep: deconv kernel flip/transpose to the
    conv-equivalent, reshape to (Cout, Cin*k*k) bf16, biases to (Cout,1) f32.
    BN-layer biases are kept for fidelity but never used (BN cancels them)."""
    prepped = {}
    for name, (w, b) in params.items():
        if name.startswith('deconv'):
            w = jnp.transpose(w[:, :, ::-1, ::-1], (1, 0, 2, 3))
        cout = w.shape[0]
        prepped[name] = (w.reshape(cout, -1).astype(jnp.bfloat16),
                         b.reshape(cout, 1).astype(jnp.float32))
    return prepped


# --------------------------------------------------------------------------
# Forward pass (mirrors Conv_deconv.forward; BatchNorm in training mode)
# --------------------------------------------------------------------------

def conv_deconv_forward(params, x_nchw):
    x = jnp.transpose(x_nchw, (1, 0, 2, 3))        # internal layout (C, N, H, W)
    residual = x[0:3]                              # torch.narrow(x, 1, 0, 3)

    w, _ = params['conv1']
    out = conv2d_layer(x, w, use_bn=True, use_act=True)
    size1 = out.shape
    out, code1 = maxpool2x2(out)

    w, _ = params['conv2']
    out = conv2d_layer(out, w, use_bn=True, use_act=True)
    w, _ = params['conv3']
    skip = conv2d_layer(out, w, use_bn=True, use_act=True)
    size2 = skip.shape
    out, code2 = maxpool2x2(skip)

    w, _ = params['conv4']
    out = conv2d_layer(out, w, use_bn=True, use_act=True)
    w, _ = params['conv5']
    out = conv2d_layer(out, w, use_bn=True, use_act=True)

    w, _ = params['deconv1']
    out = conv_transpose2d_layer(out, w, use_bn=True, use_act=True)
    w, _ = params['deconv2']
    out = conv_transpose2d_layer(out, w, use_bn=True, use_act=True)

    out = maxunpool2x2(out, code2, size2)
    out = jnp.concatenate([out, skip], axis=0)     # channel axis (internal)

    w, _ = params['deconv3']
    out = conv_transpose2d_layer(out, w, use_bn=True, use_act=True)
    w, _ = params['deconv4']
    out = conv_transpose2d_layer(out, w, use_bn=True, use_act=True)

    out = maxunpool2x2(out, code1, size1)
    w, b = params['deconv5']
    out = conv_transpose2d_layer(out, w, b, use_bn=False, use_act=False,
                                 residual=residual)   # bias + residual fused

    return jnp.transpose(out, (1, 0, 2, 3))        # back to NCHW


if __name__ == "__main__":
    key = jax.random.PRNGKey(0)
    kp, kx = jax.random.split(key)
    params = prepare_params(init_params(kp))       # weight prep outside the jit
    # Smallest even spatial size surviving the conv/pool stack: 36x36 -> 36x36.
    x = jax.random.normal(kx, (2, 4, 36, 36), jnp.float32)

    fwd = jax.jit(conv_deconv_forward)
    out = jax.block_until_ready(fwd(params, x))
    assert out.shape == (2, 3, 36, 36), out.shape
    assert bool(jnp.all(jnp.isfinite(out)))
    print("KERNEL_OK")
</pallas_src>

<mosaic_0001>
module attributes {stable_mosaic.version = 11 : i64} {
  func.func @_fused_conv_kernel(%arg0: i32, %arg1: memref<16x100xbf16, #tpu.memory_space<vmem>>, %arg2: memref<100x2048xbf16, #tpu.memory_space<vmem>>, %arg3: memref<16x2048xf32, #tpu.memory_space<vmem>>) attributes {dimension_semantics = [#tpu.dimension_semantics<arbitrary>], iteration_bounds = array<i64: 1>, scalar_prefetch = 0 : i64, scratch_operands = 0 : i64, tpu.core_type = #tpu.core_type<tc>, window_params = [{pipeline_mode = #tpu.pipeline_mode<synchronous>, transform_indices = @transform_0, window_bounds = array<i64: 16, 100>}, {pipeline_mode = #tpu.pipeline_mode<synchronous>, transform_indices = @transform_1, window_bounds = array<i64: 100, 2048>}, {pipeline_mode = #tpu.pipeline_mode<synchronous>, transform_indices = @transform_2, window_bounds = array<i64: 16, 2048>}]} {
    %c0 = arith.constant 0 : index
    %c0_0 = arith.constant 0 : index
    %0 = vector.load %arg1[%c0, %c0_0] : memref<16x100xbf16, #tpu.memory_space<vmem>>, vector<16x100xbf16>
    %c0_1 = arith.constant 0 : index
    %c0_2 = arith.constant 0 : index
    %1 = vector.load %arg2[%c0_1, %c0_2] : memref<100x2048xbf16, #tpu.memory_space<vmem>>, vector<100x2048xbf16>
    %cst = arith.constant dense<0.000000e+00> : vector<16x2048xf32>
    %2 = tpu.matmul %0, %1, %cst {dimension_numbers = #tpu.dot_dimension_numbers<[1], [0], [0], [1], [0, 0, 1, 1], [], []>} : vector<16x100xbf16>, vector<100x2048xbf16>, vector<16x2048xf32> -> vector<16x2048xf32>
    %3 = tpu.iota {dimensions = array<i32: 1>} : vector<16x2048xi32>
    %c2048_i32 = arith.constant 2048 : i32
    %4 = vector.broadcast %c2048_i32 : i32 to vector<16x2048xi32>
    %5 = arith.cmpi slt, %3, %4 : vector<16x2048xi32>
    %cst_3 = arith.constant 0.000000e+00 : f32
    %6 = vector.broadcast %cst_3 : f32 to vector<16x2048xf32>
    %7 = arith.select %5, %2, %6 : vector<16x2048xi1>, vector<16x2048xf32>
    %cst_4 = arith.constant dense<0.000000e+00> : vector<16xf32>
    %8 = vector.multi_reduction <add>, %7, %cst_4 [1] : vector<16x2048xf32> to vector<16xf32>
    %9 = vector.shape_cast %8 : vector<16xf32> to vector<16x1xf32>
    %cst_5 = arith.constant 4.8828125E-4 : f32
    %10 = vector.broadcast %cst_5 : f32 to vector<16x1xf32>
    %11 = arith.mulf %9, %10 : vector<16x1xf32>
    %12 = arith.mulf %7, %7 : vector<16x2048xf32>
    %cst_6 = arith.constant dense<0.000000e+00> : vector<16xf32>
    %13 = vector.multi_reduction <add>, %12, %cst_6 [1] : vector<16x2048xf32> to vector<16xf32>
    %14 = vector.shape_cast %13 : vector<16xf32> to vector<16x1xf32>
    %cst_7 = arith.constant 4.8828125E-4 : f32
    %15 = vector.broadcast %cst_7 : f32 to vector<16x1xf32>
    %16 = arith.mulf %14, %15 : vector<16x1xf32>
    %17 = arith.mulf %11, %11 : vector<16x1xf32>
    %18 = arith.subf %16, %17 : vector<16x1xf32>
    %cst_8 = arith.constant 0.000000e+00 : f32
    %19 = vector.broadcast %cst_8 : f32 to vector<16x1xf32>
    %20 = arith.maximumf %18, %19 : vector<16x1xf32>
    %21 = vector.broadcast %11 : vector<16x1xf32> to vector<16x2048xf32>
    %22 = arith.subf %2, %21 : vector<16x2048xf32>
    %cst_9 = arith.constant 9.99999974E-6 : f32
    %23 = vector.broadcast %cst_9 : f32 to vector<16x1xf32>
    %24 = arith.addf %20, %23 : vector<16x1xf32>
    %25 = math.rsqrt %24 : vector<16x1xf32>
    %26 = vector.broadcast %25 : vector<16x1xf32> to vector<16x2048xf32>
    %27 = arith.mulf %22, %26 : vector<16x2048xf32>
    %cst_10 = arith.constant 0.00999999977 : f32
    %28 = vector.broadcast %cst_10 : f32 to vector<16x2048xf32>
    %29 = arith.mulf %28, %27 : vector<16x2048xf32>
    %30 = arith.maximumf %27, %29 : vector<16x2048xf32>
    %c0_11 = arith.constant 0 : index
    %c0_12 = arith.constant 0 : index
    %31 = vector.load %arg3[%c0_11, %c0_12] : memref<16x2048xf32, #tpu.memory_space<vmem>>, vector<16x2048xf32>
    tpu.vector_store %arg3[%c0_11, %c0_12], %30 {strides = array<i32>} : memref<16x2048xf32, #tpu.memory_space<vmem>>, vector<16x2048xf32>,
    return
  }
  func.func @transform_0(%arg0: i32) -> (i32, i32) {
    %c0_i32 = arith.constant 0 : i32
    %c0_i32_0 = arith.constant 0 : i32
    %c0_i32_1 = arith.constant 0 : i32
    return %c0_i32, %c0_i32_0 : i32, i32
  }
  func.func @transform_1(%arg0: i32) -> (i32, i32) {
    %c0_i32 = arith.constant 0 : i32
    %c0_i32_0 = arith.constant 0 : i32
    %c0_i32_1 = arith.constant 0 : i32
    return %c0_i32, %c0_i32_0 : i32, i32
  }
  func.func @transform_2(%arg0: i32) -> (i32, i32) {
    %c0_i32 = arith.constant 0 : i32
    %c0_i32_0 = arith.constant 0 : i32
    %c0_i32_1 = arith.constant 0 : i32
    return %c0_i32, %c0_i32_0 : i32, i32
  }
}

module attributes {stable_mosaic.version = 11 : i64} {
  func.func @_maxpool_kernel(%arg0: i32, %arg1: memref<4x32x256xf32, #tpu.memory_space<vmem>>, %arg2: memref<32x256xf32, #tpu.memory_space<vmem>>, %arg3: memref<32x256xi32, #tpu.memory_space<vmem>>) attributes {dimension_semantics = [#tpu.dimension_semantics<arbitrary>], iteration_bounds = array<i64: 1>, scalar_prefetch = 0 : i64, scratch_operands = 0 : i64, tpu.core_type = #tpu.core_type<tc>, window_params = [{pipeline_mode = #tpu.pipeline_mode<synchronous>, transform_indices = @transform_0, window_bounds = array<i64: 4, 32, 256>}, {pipeline_mode = #tpu.pipeline_mode<synchronous>, transform_indices = @transform_1, window_bounds = array<i64: 32, 256>}, {pipeline_mode = #tpu.pipeline_mode<synchronous>, transform_indices = @transform_2, window_bounds = array<i64: 32, 256>}]} {
    %c0 = arith.constant 0 : index
    %c0_0 = arith.constant 0 : index
    %c0_1 = arith.constant 0 : index
    %0 = vector.load %arg1[%c0, %c0_0, %c0_1] : memref<4x32x256xf32, #tpu.memory_space<vmem>>, vector<1x32x256xf32>
    %1 = vector.shape_cast %0 : vector<1x32x256xf32> to vector<32x256xf32>
    %c1 = arith.constant 1 : index
    %c0_2 = arith.constant 0 : index
    %c0_3 = arith.constant 0 : index
    %2 = vector.load %arg1[%c1, %c0_2, %c0_3] : memref<4x32x256xf32, #tpu.memory_space<vmem>>, vector<1x32x256xf32>
    %3 = vector.shape_cast %2 : vector<1x32x256xf32> to vector<32x256xf32>
    %c2 = arith.constant 2 : index
    %c0_4 = arith.constant 0 : index
    %c0_5 = arith.constant 0 : index
    %4 = vector.load %arg1[%c2, %c0_4, %c0_5] : memref<4x32x256xf32, #tpu.memory_space<vmem>>, vector<1x32x256xf32>
    %5 = vector.shape_cast %4 : vector<1x32x256xf32> to vector<32x256xf32>
    %c3 = arith.constant 3 : index
    %c0_6 = arith.constant 0 : index
    %c0_7 = arith.constant 0 : index
    %6 = vector.load %arg1[%c3, %c0_6, %c0_7] : memref<4x32x256xf32, #tpu.memory_space<vmem>>, vector<1x32x256xf32>
    %7 = vector.shape_cast %6 : vector<1x32x256xf32> to vector<32x256xf32>
    %8 = arith.maximumf %1, %3 : vector<32x256xf32>
    %9 = arith.maximumf %5, %7 : vector<32x256xf32>
    %10 = arith.maximumf %8, %9 : vector<32x256xf32>
    %11 = arith.cmpf oeq, %1, %10 : vector<32x256xf32>
    %12 = arith.cmpf oeq, %3, %10 : vector<32x256xf32>
    %13 = arith.cmpf oeq, %5, %10 : vector<32x256xf32>
    %c2_i32 = arith.constant 2 : i32
    %c3_i32 = arith.constant 3 : i32
    %14 = vector.broadcast %c2_i32 : i32 to vector<32x256xi32>
    %15 = vector.broadcast %c3_i32 : i32 to vector<32x256xi32>
    %16 = arith.select %13, %14, %15 : vector<32x256xi1>, vector<32x256xi32>
    %c1_i32 = arith.constant 1 : i32
    %17 = vector.broadcast %c1_i32 : i32 to vector<32x256xi32>
    %18 = arith.select %12, %17, %16 : vector<32x256xi1>, vector<32x256xi32>
    %c0_i32 = arith.constant 0 : i32
    %19 = vector.broadcast %c0_i32 : i32 to vector<32x256xi32>
    %20 = arith.select %11, %19, %18 : vector<32x256xi1>, vector<32x256xi32>
    %c0_8 = arith.constant 0 : index
    %c0_9 = arith.constant 0 : index
    %21 = vector.load %arg3[%c0_8, %c0_9] : memref<32x256xi32, #tpu.memory_space<vmem>>, vector<32x256xi32>
    tpu.vector_store %arg3[%c0_8, %c0_9], %20 {strides = array<i32>} : memref<32x256xi32, #tpu.memory_space<vmem>>, vector<32x256xi32>,
    %c0_10 = arith.constant 0 : index
    %c0_11 = arith.constant 0 : index
    %22 = vector.load %arg2[%c0_10, %c0_11] : memref<32x256xf32, #tpu.memory_space<vmem>>, vector<32x256xf32>
    tpu.vector_store %arg2[%c0_10, %c0_11], %10 {strides = array<i32>} : memref<32x256xf32, #tpu.memory_space<vmem>>, vector<32x256xf32>,
    return
  }
  func.func @transform_0(%arg0: i32) -> (i32, i32, i32) {
    %c0_i32 = arith.constant 0 : i32
    %c0_i32_0 = arith.constant 0 : i32
    %c0_i32_1 = arith.constant 0 : i32
    %c0_i32_2 = arith.constant 0 : i32
    return %c0_i32, %c0_i32_0, %c0_i32_1 : i32, i32, i32
  }
  func.func @transform_1(%arg0: i32) -> (i32, i32) {
    %c0_i32 = arith.constant 0 : i32
    %c0_i32_0 = arith.constant 0 : i32
    %c0_i32_1 = arith.constant 0 : i32
    return %c0_i32, %c0_i32_0 : i32, i32
  }
  func.func @transform_2(%arg0: i32) -> (i32, i32) {
    %c0_i32 = arith.constant 0 : i32
    %c0_i32_0 = arith.constant 0 : i32
    %c0_i32_1 = arith.constant 0 : i32
    return %c0_i32, %c0_i32_0 : i32, i32
  }
}

module attributes {stable_mosaic.version = 11 : i64} {
  func.func @_fused_conv_kernel(%arg0: i32, %arg1: memref<32x400xbf16, #tpu.memory_space<vmem>>, %arg2: memref<400x384xbf16, #tpu.memory_space<vmem>>, %arg3: memref<32x384xf32, #tpu.memory_space<vmem>>) attributes {dimension_semantics = [#tpu.dimension_semantics<arbitrary>], iteration_bounds = array<i64: 1>, scalar_prefetch = 0 : i64, scratch_operands = 0 : i64, tpu.core_type = #tpu.core_type<tc>, window_params = [{pipeline_mode = #tpu.pipeline_mode<synchronous>, transform_indices = @transform_0, window_bounds = array<i64: 32, 400>}, {pipeline_mode = #tpu.pipeline_mode<synchronous>, transform_indices = @transform_1, window_bounds = array<i64: 400, 384>}, {pipeline_mode = #tpu.pipeline_mode<synchronous>, transform_indices = @transform_2, window_bounds = array<i64: 32, 384>}]} {
    %c0 = arith.constant 0 : index
    %c0_0 = arith.constant 0 : index
    %0 = vector.load %arg1[%c0, %c0_0] : memref<32x400xbf16, #tpu.memory_space<vmem>>, vector<32x400xbf16>
    %c0_1 = arith.constant 0 : index
    %c0_2 = arith.constant 0 : index
    %1 = vector.load %arg2[%c0_1, %c0_2] : memref<400x384xbf16, #tpu.memory_space<vmem>>, vector<400x384xbf16>
    %cst = arith.constant dense<0.000000e+00> : vector<32x384xf32>
    %2 = tpu.matmul %0, %1, %cst {dimension_numbers = #tpu.dot_dimension_numbers<[1], [0], [0], [1], [0, 0, 1, 1], [], []>} : vector<32x400xbf16>, vector<400x384xbf16>, vector<32x384xf32> -> vector<32x384xf32>
    %3 = tpu.iota {dimensions = array<i32: 1>} : vector<32x384xi32>
    %c288_i32 = arith.constant 288 : i32
    %4 = vector.broadcast %c288_i32 : i32 to vector<32x384xi32>
    %5 = arith.cmpi slt, %3, %4 : vector<32x384xi32>
    %cst_3 = arith.constant 0.000000e+00 : f32
    %6 = vector.broadcast %cst_3 : f32 to vector<32x384xf32>
    %7 = arith.select %5, %2, %6 : vector<32x384xi1>, vector<32x384xf32>
    %cst_4 = arith.constant dense<0.000000e+00> : vector<32xf32>
    %8 = vector.multi_reduction <add>, %7, %cst_4 [1] : vector<32x384xf32> to vector<32xf32>
    %9 = vector.shape_cast %8 : vector<32xf32> to vector<32x1xf32>
    %cst_5 = arith.constant 0.00347222225 : f32
    %10 = vector.broadcast %cst_5 : f32 to vector<32x1xf32>
    %11 = arith.mulf %9, %10 : vector<32x1xf32>
    %12 = arith.mulf %7, %7 : vector<32x384xf32>
    %cst_6 = arith.constant dense<0.000000e+00> : vector<32xf32>
    %13 = vector.multi_reduction <add>, %12, %cst_6 [1] : vector<32x384xf32> to vector<32xf32>
    %14 = vector.shape_cast %13 : vector<32xf32> to vector<32x1xf32>
    %cst_7 = arith.constant 0.00347222225 : f32
    %15 = vector.broadcast %cst_7 : f32 to vector<32x1xf32>
    %16 = arith.mulf %14, %15 : vector<32x1xf32>
    %17 = arith.mulf %11, %11 : vector<32x1xf32>
    %18 = arith.subf %16, %17 : vector<32x1xf32>
    %cst_8 = arith.constant 0.000000e+00 : f32
    %19 = vector.broadcast %cst_8 : f32 to vector<32x1xf32>
    %20 = arith.maximumf %18, %19 : vector<32x1xf32>
    %21 = vector.broadcast %11 : vector<32x1xf32> to vector<32x384xf32>
    %22 = arith.subf %2, %21 : vector<32x384xf32>
    %cst_9 = arith.constant 9.99999974E-6 : f32
    %23 = vector.broadcast %cst_9 : f32 to vector<32x1xf32>
    %24 = arith.addf %20, %23 : vector<32x1xf32>
    %25 = math.rsqrt %24 : vector<32x1xf32>
    %26 = vector.broadcast %25 : vector<32x1xf32> to vector<32x384xf32>
    %27 = arith.mulf %22, %26 : vector<32x384xf32>
    %cst_10 = arith.constant 0.00999999977 : f32
    %28 = vector.broadcast %cst_10 : f32 to vector<32x384xf32>
    %29 = arith.mulf %28, %27 : vector<32x384xf32>
    %30 = arith.maximumf %27, %29 : vector<32x384xf32>
    %c0_11 = arith.constant 0 : index
    %c0_12 = arith.constant 0 : index
    %31 = vector.load %arg3[%c0_11, %c0_12] : memref<32x384xf32, #tpu.memory_space<vmem>>, vector<32x384xf32>
    tpu.vector_store %arg3[%c0_11, %c0_12], %30 {strides = array<i32>} : memref<32x384xf32, #tpu.memory_space<vmem>>, vector<32x384xf32>,
    return
  }
  func.func @transform_0(%arg0: i32) -> (i32, i32) {
    %c0_i32 = arith.constant 0 : i32
    %c0_i32_0 = arith.constant 0 : i32
    %c0_i32_1 = arith.constant 0 : i32
    return %c0_i32, %c0_i32_0 : i32, i32
  }
  func.func @transform_1(%arg0: i32) -> (i32, i32) {
    %c0_i32 = arith.constant 0 : i32
    %c0_i32_0 = arith.constant 0 : i32
    %c0_i32_1 = arith.constant 0 : i32
    return %c0_i32, %c0_i32_0 : i32, i32
  }
  func.func @transform_2(%arg0: i32) -> (i32, i32) {
    %c0_i32 = arith.constant 0 : i32
    %c0_i32_0 = arith.constant 0 : i32
    %c0_i32_1 = arith.constant 0 : i32
    return %c0_i32, %c0_i32_0 : i32, i32
  }
}

module attributes {stable_mosaic.version = 11 : i64} {
  func.func @_fused_conv_kernel(%arg0: i32, %arg1: memref<32x288xbf16, #tpu.memory_space<vmem>>, %arg2: memref<288x256xbf16, #tpu.memory_space<vmem>>, %arg3: memref<32x256xf32, #tpu.memory_space<vmem>>) attributes {dimension_semantics = [#tpu.dimension_semantics<arbitrary>], iteration_bounds = array<i64: 1>, scalar_prefetch = 0 : i64, scratch_operands = 0 : i64, tpu.core_type = #tpu.core_type<tc>, window_params = [{pipeline_mode = #tpu.pipeline_mode<synchronous>, transform_indices = @transform_0, window_bounds = array<i64: 32, 288>}, {pipeline_mode = #tpu.pipeline_mode<synchronous>, transform_indices = @transform_1, window_bounds = array<i64: 288, 256>}, {pipeline_mode = #tpu.pipeline_mode<synchronous>, transform_indices = @transform_2, window_bounds = array<i64: 32, 256>}]} {
    %c0 = arith.constant 0 : index
    %c0_0 = arith.constant 0 : index
    %0 = vector.load %arg1[%c0, %c0_0] : memref<32x288xbf16, #tpu.memory_space<vmem>>, vector<32x288xbf16>
    %c0_1 = arith.constant 0 : index
    %c0_2 = arith.constant 0 : index
    %1 = vector.load %arg2[%c0_1, %c0_2] : memref<288x256xbf16, #tpu.memory_space<vmem>>, vector<288x256xbf16>
    %cst = arith.constant dense<0.000000e+00> : vector<32x256xf32>
    %2 = tpu.matmul %0, %1, %cst {dimension_numbers = #tpu.dot_dimension_numbers<[1], [0], [0], [1], [0, 0, 1, 1], [], []>} : vector<32x288xbf16>, vector<288x256xbf16>, vector<32x256xf32> -> vector<32x256xf32>
    %3 = tpu.iota {dimensions = array<i32: 1>} : vector<32x256xi32>
    %c200_i32 = arith.constant 200 : i32
    %4 = vector.broadcast %c200_i32 : i32 to vector<32x256xi32>
    %5 = arith.cmpi slt, %3, %4 : vector<32x256xi32>
    %cst_3 = arith.constant 0.000000e+00 : f32
    %6 = vector.broadcast %cst_3 : f32 to vector<32x256xf32>
    %7 = arith.select %5, %2, %6 : vector<32x256xi1>, vector<32x256xf32>
    %cst_4 = arith.constant dense<0.000000e+00> : vector<32xf32>
    %8 = vector.multi_reduction <add>, %7, %cst_4 [1] : vector<32x256xf32> to vector<32xf32>
    %9 = vector.shape_cast %8 : vector<32xf32> to vector<32x1xf32>
    %cst_5 = arith.constant 5.000000e-03 : f32
    %10 = vector.broadcast %cst_5 : f32 to vector<32x1xf32>
    %11 = arith.mulf %9, %10 : vector<32x1xf32>
    %12 = arith.mulf %7, %7 : vector<32x256xf32>
    %cst_6 = arith.constant dense<0.000000e+00> : vector<32xf32>
    %13 = vector.multi_reduction <add>, %12, %cst_6 [1] : vector<32x256xf32> to vector<32xf32>
    %14 = vector.shape_cast %13 : vector<32xf32> to vector<32x1xf32>
    %cst_7 = arith.constant 5.000000e-03 : f32
    %15 = vector.broadcast %cst_7 : f32 to vector<32x1xf32>
    %16 = arith.mulf %14, %15 : vector<32x1xf32>
    %17 = arith.mulf %11, %11 : vector<32x1xf32>
    %18 = arith.subf %16, %17 : vector<32x1xf32>
    %cst_8 = arith.constant 0.000000e+00 : f32
    %19 = vector.broadcast %cst_8 : f32 to vector<32x1xf32>
    %20 = arith.maximumf %18, %19 : vector<32x1xf32>
    %21 = vector.broadcast %11 : vector<32x1xf32> to vector<32x256xf32>
    %22 = arith.subf %2, %21 : vector<32x256xf32>
    %cst_9 = arith.constant 9.99999974E-6 : f32
    %23 = vector.broadcast %cst_9 : f32 to vector<32x1xf32>
    %24 = arith.addf %20, %23 : vector<32x1xf32>
    %25 = math.rsqrt %24 : vector<32x1xf32>
    %26 = vector.broadcast %25 : vector<32x1xf32> to vector<32x256xf32>
    %27 = arith.mulf %22, %26 : vector<32x256xf32>
    %cst_10 = arith.constant 0.00999999977 : f32
    %28 = vector.broadcast %cst_10 : f32 to vector<32x256xf32>
    %29 = arith.mulf %28, %27 : vector<32x256xf32>
    %30 = arith.maximumf %27, %29 : vector<32x256xf32>
    %c0_11 = arith.constant 0 : index
    %c0_12 = arith.constant 0 : index
    %31 = vector.load %arg3[%c0_11, %c0_12] : memref<32x256xf32, #tpu.memory_space<vmem>>, vector<32x256xf32>
    tpu.vector_store %arg3[%c0_11, %c0_12], %30 {strides = array<i32>} : memref<32x256xf32, #tpu.memory_space<vmem>>, vector<32x256xf32>,
    return
  }
  func.func @transform_0(%arg0: i32) -> (i32, i32) {
    %c0_i32 = arith.constant 0 : i32
    %c0_i32_0 = arith.constant 0 : i32
    %c0_i32_1 = arith.constant 0 : i32
    return %c0_i32, %c0_i32_0 : i32, i32
  }
  func.func @transform_1(%arg0: i32) -> (i32, i32) {
    %c0_i32 = arith.constant 0 : i32
    %c0_i32_0 = arith.constant 0 : i32
    %c0_i32_1 = arith.constant 0 : i32
    return %c0_i32, %c0_i32_0 : i32, i32
  }
  func.func @transform_2(%arg0: i32) -> (i32, i32) {
    %c0_i32 = arith.constant 0 : i32
    %c0_i32_0 = arith.constant 0 : i32
    %c0_i32_1 = arith.constant 0 : i32
    return %c0_i32, %c0_i32_0 : i32, i32
  }
}

module attributes {stable_mosaic.version = 11 : i64} {
  func.func @_fused_conv_kernel(%arg0: i32, %arg1: memref<64x288xbf16, #tpu.memory_space<vmem>>, %arg2: memref<288x128xbf16, #tpu.memory_space<vmem>>, %arg3: memref<64x128xf32, #tpu.memory_space<vmem>>) attributes {dimension_semantics = [#tpu.dimension_semantics<arbitrary>], iteration_bounds = array<i64: 1>, scalar_prefetch = 0 : i64, scratch_operands = 0 : i64, tpu.core_type = #tpu.core_type<tc>, window_params = [{pipeline_mode = #tpu.pipeline_mode<synchronous>, transform_indices = @transform_0, window_bounds = array<i64: 64, 288>}, {pipeline_mode = #tpu.pipeline_mode<synchronous>, transform_indices = @transform_1, window_bounds = array<i64: 288, 128>}, {pipeline_mode = #tpu.pipeline_mode<synchronous>, transform_indices = @transform_2, window_bounds = array<i64: 64, 128>}]} {
    %c0 = arith.constant 0 : index
    %c0_0 = arith.constant 0 : index
    %0 = vector.load %arg1[%c0, %c0_0] : memref<64x288xbf16, #tpu.memory_space<vmem>>, vector<64x288xbf16>
    %c0_1 = arith.constant 0 : index
    %c0_2 = arith.constant 0 : index
    %1 = vector.load %arg2[%c0_1, %c0_2] : memref<288x128xbf16, #tpu.memory_space<vmem>>, vector<288x128xbf16>
    %cst = arith.constant dense<0.000000e+00> : vector<64x128xf32>
    %2 = tpu.matmul %0, %1, %cst {dimension_numbers = #tpu.dot_dimension_numbers<[1], [0], [0], [1], [0, 0, 1, 1], [], []>} : vector<64x288xbf16>, vector<288x128xbf16>, vector<64x128xf32> -> vector<64x128xf32>
    %3 = tpu.iota {dimensions = array<i32: 1>} : vector<64x128xi32>
    %c18_i32 = arith.constant 18 : i32
    %4 = vector.broadcast %c18_i32 : i32 to vector<64x128xi32>
    %5 = arith.cmpi slt, %3, %4 : vector<64x128xi32>
    %cst_3 = arith.constant 0.000000e+00 : f32
    %6 = vector.broadcast %cst_3 : f32 to vector<64x128xf32>
    %7 = arith.select %5, %2, %6 : vector<64x128xi1>, vector<64x128xf32>
    %cst_4 = arith.constant dense<0.000000e+00> : vector<64xf32>
    %8 = vector.multi_reduction <add>, %7, %cst_4 [1] : vector<64x128xf32> to vector<64xf32>
    %9 = vector.shape_cast %8 : vector<64xf32> to vector<64x1xf32>
    %cst_5 = arith.constant 0.055555556 : f32
    %10 = vector.broadcast %cst_5 : f32 to vector<64x1xf32>
    %11 = arith.mulf %9, %10 : vector<64x1xf32>
    %12 = arith.mulf %7, %7 : vector<64x128xf32>
    %cst_6 = arith.constant dense<0.000000e+00> : vector<64xf32>
    %13 = vector.multi_reduction <add>, %12, %cst_6 [1] : vector<64x128xf32> to vector<64xf32>
    %14 = vector.shape_cast %13 : vector<64xf32> to vector<64x1xf32>
    %cst_7 = arith.constant 0.055555556 : f32
    %15 = vector.broadcast %cst_7 : f32 to vector<64x1xf32>
    %16 = arith.mulf %14, %15 : vector<64x1xf32>
    %17 = arith.mulf %11, %11 : vector<64x1xf32>
    %18 = arith.subf %16, %17 : vector<64x1xf32>
    %cst_8 = arith.constant 0.000000e+00 : f32
    %19 = vector.broadcast %cst_8 : f32 to vector<64x1xf32>
    %20 = arith.maximumf %18, %19 : vector<64x1xf32>
    %21 = vector.broadcast %11 : vector<64x1xf32> to vector<64x128xf32>
    %22 = arith.subf %2, %21 : vector<64x128xf32>
    %cst_9 = arith.constant 9.99999974E-6 : f32
    %23 = vector.broadcast %cst_9 : f32 to vector<64x1xf32>
    %24 = arith.addf %20, %23 : vector<64x1xf32>
    %25 = math.rsqrt %24 : vector<64x1xf32>
    %26 = vector.broadcast %25 : vector<64x1xf32> to vector<64x128xf32>
    %27 = arith.mulf %22, %26 : vector<64x128xf32>
    %cst_10 = arith.constant 0.00999999977 : f32
    %28 = vector.broadcast %cst_10 : f32 to vector<64x128xf32>
    %29 = arith.mulf %28, %27 : vector<64x128xf32>
    %30 = arith.maximumf %27, %29 : vector<64x128xf32>
    %c0_11 = arith.constant 0 : index
    %c0_12 = arith.constant 0 : index
    %31 = vector.load %arg3[%c0_11, %c0_12] : memref<64x128xf32, #tpu.memory_space<vmem>>, vector<64x128xf32>
    tpu.vector_store %arg3[%c0_11, %c0_12], %30 {strides = array<i32>} : memref<64x128xf32, #tpu.memory_space<vmem>>, vector<64x128xf32>,
    return
  }
  func.func @transform_0(%arg0: i32) -> (i32, i32) {
    %c0_i32 = arith.constant 0 : i32
    %c0_i32_0 = arith.constant 0 : i32
    %c0_i32_1 = arith.constant 0 : i32
    return %c0_i32, %c0_i32_0 : i32, i32
  }
  func.func @transform_1(%arg0: i32) -> (i32, i32) {
    %c0_i32 = arith.constant 0 : i32
    %c0_i32_0 = arith.constant 0 : i32
    %c0_i32_1 = arith.constant 0 : i32
    return %c0_i32, %c0_i32_0 : i32, i32
  }
  func.func @transform_2(%arg0: i32) -> (i32, i32) {
    %c0_i32 = arith.constant 0 : i32
    %c0_i32_0 = arith.constant 0 : i32
    %c0_i32_1 = arith.constant 0 : i32
    return %c0_i32, %c0_i32_0 : i32, i32
  }
}

module attributes {stable_mosaic.version = 11 : i64} {
  func.func @_fused_conv_kernel(%arg0: i32, %arg1: memref<64x576xbf16, #tpu.memory_space<vmem>>, %arg2: memref<576x128xbf16, #tpu.memory_space<vmem>>, %arg3: memref<64x128xf32, #tpu.memory_space<vmem>>) attributes {dimension_semantics = [#tpu.dimension_semantics<arbitrary>], iteration_bounds = array<i64: 1>, scalar_prefetch = 0 : i64, scratch_operands = 0 : i64, tpu.core_type = #tpu.core_type<tc>, window_params = [{pipeline_mode = #tpu.pipeline_mode<synchronous>, transform_indices = @transform_0, window_bounds = array<i64: 64, 576>}, {pipeline_mode = #tpu.pipeline_mode<synchronous>, transform_indices = @transform_1, window_bounds = array<i64: 576, 128>}, {pipeline_mode = #tpu.pipeline_mode<synchronous>, transform_indices = @transform_2, window_bounds = array<i64: 64, 128>}]} {
    %c0 = arith.constant 0 : index
    %c0_0 = arith.constant 0 : index
    %0 = vector.load %arg1[%c0, %c0_0] : memref<64x576xbf16, #tpu.memory_space<vmem>>, vector<64x576xbf16>
    %c0_1 = arith.constant 0 : index
    %c0_2 = arith.constant 0 : index
    %1 = vector.load %arg2[%c0_1, %c0_2] : memref<576x128xbf16, #tpu.memory_space<vmem>>, vector<576x128xbf16>
    %cst = arith.constant dense<0.000000e+00> : vector<64x128xf32>
    %2 = tpu.matmul %0, %1, %cst {dimension_numbers = #tpu.dot_dimension_numbers<[1], [0], [0], [1], [0, 0, 1, 1], [], []>} : vector<64x576xbf16>, vector<576x128xbf16>, vector<64x128xf32> -> vector<64x128xf32>
    %3 = tpu.iota {dimensions = array<i32: 1>} : vector<64x128xi32>
    %c2_i32 = arith.constant 2 : i32
    %4 = vector.broadcast %c2_i32 : i32 to vector<64x128xi32>
    %5 = arith.cmpi slt, %3, %4 : vector<64x128xi32>
    %cst_3 = arith.constant 0.000000e+00 : f32
    %6 = vector.broadcast %cst_3 : f32 to vector<64x128xf32>
    %7 = arith.select %5, %2, %6 : vector<64x128xi1>, vector<64x128xf32>
    %cst_4 = arith.constant dense<0.000000e+00> : vector<64xf32>
    %8 = vector.multi_reduction <add>, %7, %cst_4 [1] : vector<64x128xf32> to vector<64xf32>
    %9 = vector.shape_cast %8 : vector<64xf32> to vector<64x1xf32>
    %cst_5 = arith.constant 5.000000e-01 : f32
    %10 = vector.broadcast %cst_5 : f32 to vector<64x1xf32>
    %11 = arith.mulf %9, %10 : vector<64x1xf32>
    %12 = arith.mulf %7, %7 : vector<64x128xf32>
    %cst_6 = arith.constant dense<0.000000e+00> : vector<64xf32>
    %13 = vector.multi_reduction <add>, %12, %cst_6 [1] : vector<64x128xf32> to vector<64xf32>
    %14 = vector.shape_cast %13 : vector<64xf32> to vector<64x1xf32>
    %cst_7 = arith.constant 5.000000e-01 : f32
    %15 = vector.broadcast %cst_7 : f32 to vector<64x1xf32>
    %16 = arith.mulf %14, %15 : vector<64x1xf32>
    %17 = arith.mulf %11, %11 : vector<64x1xf32>
    %18 = arith.subf %16, %17 : vector<64x1xf32>
    %cst_8 = arith.constant 0.000000e+00 : f32
    %19 = vector.broadcast %cst_8 : f32 to vector<64x1xf32>
    %20 = arith.maximumf %18, %19 : vector<64x1xf32>
    %21 = vector.broadcast %11 : vector<64x1xf32> to vector<64x128xf32>
    %22 = arith.subf %2, %21 : vector<64x128xf32>
    %cst_9 = arith.constant 9.99999974E-6 : f32
    %23 = vector.broadcast %cst_9 : f32 to vector<64x1xf32>
    %24 = arith.addf %20, %23 : vector<64x1xf32>
    %25 = math.rsqrt %24 : vector<64x1xf32>
    %26 = vector.broadcast %25 : vector<64x1xf32> to vector<64x128xf32>
    %27 = arith.mulf %22, %26 : vector<64x128xf32>
    %cst_10 = arith.constant 0.00999999977 : f32
    %28 = vector.broadcast %cst_10 : f32 to vector<64x128xf32>
    %29 = arith.mulf %28, %27 : vector<64x128xf32>
    %30 = arith.maximumf %27, %29 : vector<64x128xf32>
    %c0_11 = arith.constant 0 : index
    %c0_12 = arith.constant 0 : index
    %31 = vector.load %arg3[%c0_11, %c0_12] : memref<64x128xf32, #tpu.memory_space<vmem>>, vector<64x128xf32>
    tpu.vector_store %arg3[%c0_11, %c0_12], %30 {strides = array<i32>} : memref<64x128xf32, #tpu.memory_space<vmem>>, vector<64x128xf32>,
    return
  }
  func.func @transform_0(%arg0: i32) -> (i32, i32) {
    %c0_i32 = arith.constant 0 : i32
    %c0_i32_0 = arith.constant 0 : i32
    %c0_i32_1 = arith.constant 0 : i32
    return %c0_i32, %c0_i32_0 : i32, i32
  }
  func.func @transform_1(%arg0: i32) -> (i32, i32) {
    %c0_i32 = arith.constant 0 : i32
    %c0_i32_0 = arith.constant 0 : i32
    %c0_i32_1 = arith.constant 0 : i32
    return %c0_i32, %c0_i32_0 : i32, i32
  }
  func.func @transform_2(%arg0: i32) -> (i32, i32) {
    %c0_i32 = arith.constant 0 : i32
    %c0_i32_0 = arith.constant 0 : i32
    %c0_i32_1 = arith.constant 0 : i32
    return %c0_i32, %c0_i32_0 : i32, i32
  }
}

module attributes {stable_mosaic.version = 11 : i64} {
  func.func @_fused_conv_kernel(%arg0: i32, %arg1: memref<64x576xbf16, #tpu.memory_space<vmem>>, %arg2: memref<576x128xbf16, #tpu.memory_space<vmem>>, %arg3: memref<64x128xf32, #tpu.memory_space<vmem>>) attributes {dimension_semantics = [#tpu.dimension_semantics<arbitrary>], iteration_bounds = array<i64: 1>, scalar_prefetch = 0 : i64, scratch_operands = 0 : i64, tpu.core_type = #tpu.core_type<tc>, window_params = [{pipeline_mode = #tpu.pipeline_mode<synchronous>, transform_indices = @transform_0, window_bounds = array<i64: 64, 576>}, {pipeline_mode = #tpu.pipeline_mode<synchronous>, transform_indices = @transform_1, window_bounds = array<i64: 576, 128>}, {pipeline_mode = #tpu.pipeline_mode<synchronous>, transform_indices = @transform_2, window_bounds = array<i64: 64, 128>}]} {
    %c0 = arith.constant 0 : index
    %c0_0 = arith.constant 0 : index
    %0 = vector.load %arg1[%c0, %c0_0] : memref<64x576xbf16, #tpu.memory_space<vmem>>, vector<64x576xbf16>
    %c0_1 = arith.constant 0 : index
    %c0_2 = arith.constant 0 : index
    %1 = vector.load %arg2[%c0_1, %c0_2] : memref<576x128xbf16, #tpu.memory_space<vmem>>, vector<576x128xbf16>
    %cst = arith.constant dense<0.000000e+00> : vector<64x128xf32>
    %2 = tpu.matmul %0, %1, %cst {dimension_numbers = #tpu.dot_dimension_numbers<[1], [0], [0], [1], [0, 0, 1, 1], [], []>} : vector<64x576xbf16>, vector<576x128xbf16>, vector<64x128xf32> -> vector<64x128xf32>
    %3 = tpu.iota {dimensions = array<i32: 1>} : vector<64x128xi32>
    %c18_i32 = arith.constant 18 : i32
    %4 = vector.broadcast %c18_i32 : i32 to vector<64x128xi32>
    %5 = arith.cmpi slt, %3, %4 : vector<64x128xi32>
    %cst_3 = arith.constant 0.000000e+00 : f32
    %6 = vector.broadcast %cst_3 : f32 to vector<64x128xf32>
    %7 = arith.select %5, %2, %6 : vector<64x128xi1>, vector<64x128xf32>
    %cst_4 = arith.constant dense<0.000000e+00> : vector<64xf32>
    %8 = vector.multi_reduction <add>, %7, %cst_4 [1] : vector<64x128xf32> to vector<64xf32>
    %9 = vector.shape_cast %8 : vector<64xf32> to vector<64x1xf32>
    %cst_5 = arith.constant 0.055555556 : f32
    %10 = vector.broadcast %cst_5 : f32 to vector<64x1xf32>
    %11 = arith.mulf %9, %10 : vector<64x1xf32>
    %12 = arith.mulf %7, %7 : vector<64x128xf32>
    %cst_6 = arith.constant dense<0.000000e+00> : vector<64xf32>
    %13 = vector.multi_reduction <add>, %12, %cst_6 [1] : vector<64x128xf32> to vector<64xf32>
    %14 = vector.shape_cast %13 : vector<64xf32> to vector<64x1xf32>
    %cst_7 = arith.constant 0.055555556 : f32
    %15 = vector.broadcast %cst_7 : f32 to vector<64x1xf32>
    %16 = arith.mulf %14, %15 : vector<64x1xf32>
    %17 = arith.mulf %11, %11 : vector<64x1xf32>
    %18 = arith.subf %16, %17 : vector<64x1xf32>
    %cst_8 = arith.constant 0.000000e+00 : f32
    %19 = vector.broadcast %cst_8 : f32 to vector<64x1xf32>
    %20 = arith.maximumf %18, %19 : vector<64x1xf32>
    %21 = vector.broadcast %11 : vector<64x1xf32> to vector<64x128xf32>
    %22 = arith.subf %2, %21 : vector<64x128xf32>
    %cst_9 = arith.constant 9.99999974E-6 : f32
    %23 = vector.broadcast %cst_9 : f32 to vector<64x1xf32>
    %24 = arith.addf %20, %23 : vector<64x1xf32>
    %25 = math.rsqrt %24 : vector<64x1xf32>
    %26 = vector.broadcast %25 : vector<64x1xf32> to vector<64x128xf32>
    %27 = arith.mulf %22, %26 : vector<64x128xf32>
    %cst_10 = arith.constant 0.00999999977 : f32
    %28 = vector.broadcast %cst_10 : f32 to vector<64x128xf32>
    %29 = arith.mulf %28, %27 : vector<64x128xf32>
    %30 = arith.maximumf %27, %29 : vector<64x128xf32>
    %c0_11 = arith.constant 0 : index
    %c0_12 = arith.constant 0 : index
    %31 = vector.load %arg3[%c0_11, %c0_12] : memref<64x128xf32, #tpu.memory_space<vmem>>, vector<64x128xf32>
    tpu.vector_store %arg3[%c0_11, %c0_12], %30 {strides = array<i32>} : memref<64x128xf32, #tpu.memory_space<vmem>>, vector<64x128xf32>,
    return
  }
  func.func @transform_0(%arg0: i32) -> (i32, i32) {
    %c0_i32 = arith.constant 0 : i32
    %c0_i32_0 = arith.constant 0 : i32
    %c0_i32_1 = arith.constant 0 : i32
    return %c0_i32, %c0_i32_0 : i32, i32
  }
  func.func @transform_1(%arg0: i32) -> (i32, i32) {
    %c0_i32 = arith.constant 0 : i32
    %c0_i32_0 = arith.constant 0 : i32
    %c0_i32_1 = arith.constant 0 : i32
    return %c0_i32, %c0_i32_0 : i32, i32
  }
  func.func @transform_2(%arg0: i32) -> (i32, i32) {
    %c0_i32 = arith.constant 0 : i32
    %c0_i32_0 = arith.constant 0 : i32
    %c0_i32_1 = arith.constant 0 : i32
    return %c0_i32, %c0_i32_0 : i32, i32
  }
}

module attributes {stable_mosaic.version = 11 : i64} {
  func.func @_fused_conv_kernel(%arg0: i32, %arg1: memref<32x576xbf16, #tpu.memory_space<vmem>>, %arg2: memref<576x128xbf16, #tpu.memory_space<vmem>>, %arg3: memref<32x128xf32, #tpu.memory_space<vmem>>) attributes {dimension_semantics = [#tpu.dimension_semantics<arbitrary>], iteration_bounds = array<i64: 1>, scalar_prefetch = 0 : i64, scratch_operands = 0 : i64, tpu.core_type = #tpu.core_type<tc>, window_params = [{pipeline_mode = #tpu.pipeline_mode<synchronous>, transform_indices = @transform_0, window_bounds = array<i64: 32, 576>}, {pipeline_mode = #tpu.pipeline_mode<synchronous>, transform_indices = @transform_1, window_bounds = array<i64: 576, 128>}, {pipeline_mode = #tpu.pipeline_mode<synchronous>, transform_indices = @transform_2, window_bounds = array<i64: 32, 128>}]} {
    %c0 = arith.constant 0 : index
    %c0_0 = arith.constant 0 : index
    %0 = vector.load %arg1[%c0, %c0_0] : memref<32x576xbf16, #tpu.memory_space<vmem>>, vector<32x576xbf16>
    %c0_1 = arith.constant 0 : index
    %c0_2 = arith.constant 0 : index
    %1 = vector.load %arg2[%c0_1, %c0_2] : memref<576x128xbf16, #tpu.memory_space<vmem>>, vector<576x128xbf16>
    %cst = arith.constant dense<0.000000e+00> : vector<32x128xf32>
    %2 = tpu.matmul %0, %1, %cst {dimension_numbers = #tpu.dot_dimension_numbers<[1], [0], [0], [1], [0, 0, 1, 1], [], []>} : vector<32x576xbf16>, vector<576x128xbf16>, vector<32x128xf32> -> vector<32x128xf32>
    %3 = tpu.iota {dimensions = array<i32: 1>} : vector<32x128xi32>
    %c50_i32 = arith.constant 50 : i32
    %4 = vector.broadcast %c50_i32 : i32 to vector<32x128xi32>
    %5 = arith.cmpi slt, %3, %4 : vector<32x128xi32>
    %cst_3 = arith.constant 0.000000e+00 : f32
    %6 = vector.broadcast %cst_3 : f32 to vector<32x128xf32>
    %7 = arith.select %5, %2, %6 : vector<32x128xi1>, vector<32x128xf32>
    %cst_4 = arith.constant dense<0.000000e+00> : vector<32xf32>
    %8 = vector.multi_reduction <add>, %7, %cst_4 [1] : vector<32x128xf32> to vector<32xf32>
    %9 = vector.shape_cast %8 : vector<32xf32> to vector<32x1xf32>
    %cst_5 = arith.constant 2.000000e-02 : f32
    %10 = vector.broadcast %cst_5 : f32 to vector<32x1xf32>
    %11 = arith.mulf %9, %10 : vector<32x1xf32>
    %12 = arith.mulf %7, %7 : vector<32x128xf32>
    %cst_6 = arith.constant dense<0.000000e+00> : vector<32xf32>
    %13 = vector.multi_reduction <add>, %12, %cst_6 [1] : vector<32x128xf32> to vector<32xf32>
    %14 = vector.shape_cast %13 : vector<32xf32> to vector<32x1xf32>
    %cst_7 = arith.constant 2.000000e-02 : f32
    %15 = vector.broadcast %cst_7 : f32 to vector<32x1xf32>
    %16 = arith.mulf %14, %15 : vector<32x1xf32>
    %17 = arith.mulf %11, %11 : vector<32x1xf32>
    %18 = arith.subf %16, %17 : vector<32x1xf32>
    %cst_8 = arith.constant 0.000000e+00 : f32
    %19 = vector.broadcast %cst_8 : f32 to vector<32x1xf32>
    %20 = arith.maximumf %18, %19 : vector<32x1xf32>
    %21 = vector.broadcast %11 : vector<32x1xf32> to vector<32x128xf32>
    %22 = arith.subf %2, %21 : vector<32x128xf32>
    %cst_9 = arith.constant 9.99999974E-6 : f32
    %23 = vector.broadcast %cst_9 : f32 to vector<32x1xf32>
    %24 = arith.addf %20, %23 : vector<32x1xf32>
    %25 = math.rsqrt %24 : vector<32x1xf32>
    %26 = vector.broadcast %25 : vector<32x1xf32> to vector<32x128xf32>
    %27 = arith.mulf %22, %26 : vector<32x128xf32>
    %cst_10 = arith.constant 0.00999999977 : f32
    %28 = vector.broadcast %cst_10 : f32 to vector<32x128xf32>
    %29 = arith.mulf %28, %27 : vector<32x128xf32>
    %30 = arith.maximumf %27, %29 : vector<32x128xf32>
    %c0_11 = arith.constant 0 : index
    %c0_12 = arith.constant 0 : index
    %31 = vector.load %arg3[%c0_11, %c0_12] : memref<32x128xf32, #tpu.memory_space<vmem>>, vector<32x128xf32>
    tpu.vector_store %arg3[%c0_11, %c0_12], %30 {strides = array<i32>} : memref<32x128xf32, #tpu.memory_space<vmem>>, vector<32x128xf32>,
    return
  }
  func.func @transform_0(%arg0: i32) -> (i32, i32) {
    %c0_i32 = arith.constant 0 : i32
    %c0_i32_0 = arith.constant 0 : i32
    %c0_i32_1 = arith.constant 0 : i32
    return %c0_i32, %c0_i32_0 : i32, i32
  }
  func.func @transform_1(%arg0: i32) -> (i32, i32) {
    %c0_i32 = arith.constant 0 : i32
    %c0_i32_0 = arith.constant 0 : i32
    %c0_i32_1 = arith.constant 0 : i32
    return %c0_i32, %c0_i32_0 : i32, i32
  }
  func.func @transform_2(%arg0: i32) -> (i32, i32) {
    %c0_i32 = arith.constant 0 : i32
    %c0_i32_0 = arith.constant 0 : i32
    %c0_i32_1 = arith.constant 0 : i32
    return %c0_i32, %c0_i32_0 : i32, i32
  }
}

module attributes {stable_mosaic.version = 11 : i64} {
  func.func @_fused_conv_kernel(%arg0: i32, %arg1: memref<32x576xbf16, #tpu.memory_space<vmem>>, %arg2: memref<576x384xbf16, #tpu.memory_space<vmem>>, %arg3: memref<32x384xf32, #tpu.memory_space<vmem>>) attributes {dimension_semantics = [#tpu.dimension_semantics<arbitrary>], iteration_bounds = array<i64: 1>, scalar_prefetch = 0 : i64, scratch_operands = 0 : i64, tpu.core_type = #tpu.core_type<tc>, window_params = [{pipeline_mode = #tpu.pipeline_mode<synchronous>, transform_indices = @transform_0, window_bounds = array<i64: 32, 576>}, {pipeline_mode = #tpu.pipeline_mode<synchronous>, transform_indices = @transform_1, window_bounds = array<i64: 576, 384>}, {pipeline_mode = #tpu.pipeline_mode<synchronous>, transform_indices = @transform_2, window_bounds = array<i64: 32, 384>}]} {
    %c0 = arith.constant 0 : index
    %c0_0 = arith.constant 0 : index
    %0 = vector.load %arg1[%c0, %c0_0] : memref<32x576xbf16, #tpu.memory_space<vmem>>, vector<32x576xbf16>
    %c0_1 = arith.constant 0 : index
    %c0_2 = arith.constant 0 : index
    %1 = vector.load %arg2[%c0_1, %c0_2] : memref<576x384xbf16, #tpu.memory_space<vmem>>, vector<576x384xbf16>
    %cst = arith.constant dense<0.000000e+00> : vector<32x384xf32>
    %2 = tpu.matmul %0, %1, %cst {dimension_numbers = #tpu.dot_dimension_numbers<[1], [0], [0], [1], [0, 0, 1, 1], [], []>} : vector<32x576xbf16>, vector<576x384xbf16>, vector<32x384xf32> -> vector<32x384xf32>
    %3 = tpu.iota {dimensions = array<i32: 1>} : vector<32x384xi32>
    %c288_i32 = arith.constant 288 : i32
    %4 = vector.broadcast %c288_i32 : i32 to vector<32x384xi32>
    %5 = arith.cmpi slt, %3, %4 : vector<32x384xi32>
    %cst_3 = arith.constant 0.000000e+00 : f32
    %6 = vector.broadcast %cst_3 : f32 to vector<32x384xf32>
    %7 = arith.select %5, %2, %6 : vector<32x384xi1>, vector<32x384xf32>
    %cst_4 = arith.constant dense<0.000000e+00> : vector<32xf32>
    %8 = vector.multi_reduction <add>, %7, %cst_4 [1] : vector<32x384xf32> to vector<32xf32>
    %9 = vector.shape_cast %8 : vector<32xf32> to vector<32x1xf32>
    %cst_5 = arith.constant 0.00347222225 : f32
    %10 = vector.broadcast %cst_5 : f32 to vector<32x1xf32>
    %11 = arith.mulf %9, %10 : vector<32x1xf32>
    %12 = arith.mulf %7, %7 : vector<32x384xf32>
    %cst_6 = arith.constant dense<0.000000e+00> : vector<32xf32>
    %13 = vector.multi_reduction <add>, %12, %cst_6 [1] : vector<32x384xf32> to vector<32xf32>
    %14 = vector.shape_cast %13 : vector<32xf32> to vector<32x1xf32>
    %cst_7 = arith.constant 0.00347222225 : f32
    %15 = vector.broadcast %cst_7 : f32 to vector<32x1xf32>
    %16 = arith.mulf %14, %15 : vector<32x1xf32>
    %17 = arith.mulf %11, %11 : vector<32x1xf32>
    %18 = arith.subf %16, %17 : vector<32x1xf32>
    %cst_8 = arith.constant 0.000000e+00 : f32
    %19 = vector.broadcast %cst_8 : f32 to vector<32x1xf32>
    %20 = arith.maximumf %18, %19 : vector<32x1xf32>
    %21 = vector.broadcast %11 : vector<32x1xf32> to vector<32x384xf32>
    %22 = arith.subf %2, %21 : vector<32x384xf32>
    %cst_9 = arith.constant 9.99999974E-6 : f32
    %23 = vector.broadcast %cst_9 : f32 to vector<32x1xf32>
    %24 = arith.addf %20, %23 : vector<32x1xf32>
    %25 = math.rsqrt %24 : vector<32x1xf32>
    %26 = vector.broadcast %25 : vector<32x1xf32> to vector<32x384xf32>
    %27 = arith.mulf %22, %26 : vector<32x384xf32>
    %cst_10 = arith.constant 0.00999999977 : f32
    %28 = vector.broadcast %cst_10 : f32 to vector<32x384xf32>
    %29 = arith.mulf %28, %27 : vector<32x384xf32>
    %30 = arith.maximumf %27, %29 : vector<32x384xf32>
    %c0_11 = arith.constant 0 : index
    %c0_12 = arith.constant 0 : index
    %31 = vector.load %arg3[%c0_11, %c0_12] : memref<32x384xf32, #tpu.memory_space<vmem>>, vector<32x384xf32>
    tpu.vector_store %arg3[%c0_11, %c0_12], %30 {strides = array<i32>} : memref<32x384xf32, #tpu.memory_space<vmem>>, vector<32x384xf32>,
    return
  }
  func.func @transform_0(%arg0: i32) -> (i32, i32) {
    %c0_i32 = arith.constant 0 : i32
    %c0_i32_0 = arith.constant 0 : i32
    %c0_i32_1 = arith.constant 0 : i32
    return %c0_i32, %c0_i32_0 : i32, i32
  }
  func.func @transform_1(%arg0: i32) -> (i32, i32) {
    %c0_i32 = arith.constant 0 : i32
    %c0_i32_0 = arith.constant 0 : i32
    %c0_i32_1 = arith.constant 0 : i32
    return %c0_i32, %c0_i32_0 : i32, i32
  }
  func.func @transform_2(%arg0: i32) -> (i32, i32) {
    %c0_i32 = arith.constant 0 : i32
    %c0_i32_0 = arith.constant 0 : i32
    %c0_i32_1 = arith.constant 0 : i32
    return %c0_i32, %c0_i32_0 : i32, i32
  }
}

module attributes {stable_mosaic.version = 11 : i64} {
  func.func @_fused_conv_kernel(%arg0: i32, %arg1: memref<16x800xbf16, #tpu.memory_space<vmem>>, %arg2: memref<800x512xbf16, #tpu.memory_space<vmem>>, %arg3: memref<16x512xf32, #tpu.memory_space<vmem>>) attributes {dimension_semantics = [#tpu.dimension_semantics<arbitrary>], iteration_bounds = array<i64: 1>, scalar_prefetch = 0 : i64, scratch_operands = 0 : i64, tpu.core_type = #tpu.core_type<tc>, window_params = [{pipeline_mode = #tpu.pipeline_mode<synchronous>, transform_indices = @transform_0, window_bounds = array<i64: 16, 800>}, {pipeline_mode = #tpu.pipeline_mode<synchronous>, transform_indices = @transform_1, window_bounds = array<i64: 800, 512>}, {pipeline_mode = #tpu.pipeline_mode<synchronous>, transform_indices = @transform_2, window_bounds = array<i64: 16, 512>}]} {
    %c0 = arith.constant 0 : index
    %c0_0 = arith.constant 0 : index
    %0 = vector.load %arg1[%c0, %c0_0] : memref<16x800xbf16, #tpu.memory_space<vmem>>, vector<16x800xbf16>
    %c0_1 = arith.constant 0 : index
    %c0_2 = arith.constant 0 : index
    %1 = vector.load %arg2[%c0_1, %c0_2] : memref<800x512xbf16, #tpu.memory_space<vmem>>, vector<800x512xbf16>
    %cst = arith.constant dense<0.000000e+00> : vector<16x512xf32>
    %2 = tpu.matmul %0, %1, %cst {dimension_numbers = #tpu.dot_dimension_numbers<[1], [0], [0], [1], [0, 0, 1, 1], [], []>} : vector<16x800xbf16>, vector<800x512xbf16>, vector<16x512xf32> -> vector<16x512xf32>
    %3 = tpu.iota {dimensions = array<i32: 1>} : vector<16x512xi32>
    %c512_i32 = arith.constant 512 : i32
    %4 = vector.broadcast %c512_i32 : i32 to vector<16x512xi32>
    %5 = arith.cmpi slt, %3, %4 : vector<16x512xi32>
    %cst_3 = arith.constant 0.000000e+00 : f32
    %6 = vector.broadcast %cst_3 : f32 to vector<16x512xf32>
    %7 = arith.select %5, %2, %6 : vector<16x512xi1>, vector<16x512xf32>
    %cst_4 = arith.constant dense<0.000000e+00> : vector<16xf32>
    %8 = vector.multi_reduction <add>, %7, %cst_4 [1] : vector<16x512xf32> to vector<16xf32>
    %9 = vector.shape_cast %8 : vector<16xf32> to vector<16x1xf32>
    %cst_5 = arith.constant 0.001953125 : f32
    %10 = vector.broadcast %cst_5 : f32 to vector<16x1xf32>
    %11 = arith.mulf %9, %10 : vector<16x1xf32>
    %12 = arith.mulf %7, %7 : vector<16x512xf32>
    %cst_6 = arith.constant dense<0.000000e+00> : vector<16xf32>
    %13 = vector.multi_reduction <add>, %12, %cst_6 [1] : vector<16x512xf32> to vector<16xf32>
    %14 = vector.shape_cast %13 : vector<16xf32> to vector<16x1xf32>
    %cst_7 = arith.constant 0.001953125 : f32
    %15 = vector.broadcast %cst_7 : f32 to vector<16x1xf32>
    %16 = arith.mulf %14, %15 : vector<16x1xf32>
    %17 = arith.mulf %11, %11 : vector<16x1xf32>
    %18 = arith.subf %16, %17 : vector<16x1xf32>
    %cst_8 = arith.constant 0.000000e+00 : f32
    %19 = vector.broadcast %cst_8 : f32 to vector<16x1xf32>
    %20 = arith.maximumf %18, %19 : vector<16x1xf32>
    %21 = vector.broadcast %11 : vector<16x1xf32> to vector<16x512xf32>
    %22 = arith.subf %2, %21 : vector<16x512xf32>
    %cst_9 = arith.constant 9.99999974E-6 : f32
    %23 = vector.broadcast %cst_9 : f32 to vector<16x1xf32>
    %24 = arith.addf %20, %23 : vector<16x1xf32>
    %25 = math.rsqrt %24 : vector<16x1xf32>
    %26 = vector.broadcast %25 : vector<16x1xf32> to vector<16x512xf32>
    %27 = arith.mulf %22, %26 : vector<16x512xf32>
    %cst_10 = arith.constant 0.00999999977 : f32
    %28 = vector.broadcast %cst_10 : f32 to vector<16x512xf32>
    %29 = arith.mulf %28, %27 : vector<16x512xf32>
    %30 = arith.maximumf %27, %29 : vector<16x512xf32>
    %c0_11 = arith.constant 0 : index
    %c0_12 = arith.constant 0 : index
    %31 = vector.load %arg3[%c0_11, %c0_12] : memref<16x512xf32, #tpu.memory_space<vmem>>, vector<16x512xf32>
    tpu.vector_store %arg3[%c0_11, %c0_12], %30 {strides = array<i32>} : memref<16x512xf32, #tpu.memory_space<vmem>>, vector<16x512xf32>,
    return
  }
  func.func @transform_0(%arg0: i32) -> (i32, i32) {
    %c0_i32 = arith.constant 0 : i32
    %c0_i32_0 = arith.constant 0 : i32
    %c0_i32_1 = arith.constant 0 : i32
    return %c0_i32, %c0_i32_0 : i32, i32
  }
  func.func @transform_1(%arg0: i32) -> (i32, i32) {
    %c0_i32 = arith.constant 0 : i32
    %c0_i32_0 = arith.constant 0 : i32
    %c0_i32_1 = arith.constant 0 : i32
    return %c0_i32, %c0_i32_0 : i32, i32
  }
  func.func @transform_2(%arg0: i32) -> (i32, i32) {
    %c0_i32 = arith.constant 0 : i32
    %c0_i32_0 = arith.constant 0 : i32
    %c0_i32_1 = arith.constant 0 : i32
    return %c0_i32, %c0_i32_0 : i32, i32
  }
}

module attributes {stable_mosaic.version = 11 : i64} {
  func.func @_maxunpool_kernel(%arg0: i32, %arg1: memref<32x256xf32, #tpu.memory_space<vmem>>, %arg2: memref<32x256xi32, #tpu.memory_space<vmem>>, %arg3: memref<4x32x256xf32, #tpu.memory_space<vmem>>) attributes {dimension_semantics = [#tpu.dimension_semantics<arbitrary>], iteration_bounds = array<i64: 1>, scalar_prefetch = 0 : i64, scratch_operands = 0 : i64, tpu.core_type = #tpu.core_type<tc>, window_params = [{pipeline_mode = #tpu.pipeline_mode<synchronous>, transform_indices = @transform_0, window_bounds = array<i64: 32, 256>}, {pipeline_mode = #tpu.pipeline_mode<synchronous>, transform_indices = @transform_1, window_bounds = array<i64: 32, 256>}, {pipeline_mode = #tpu.pipeline_mode<synchronous>, transform_indices = @transform_2, window_bounds = array<i64: 4, 32, 256>}]} {
    %c0 = arith.constant 0 : index
    %c0_0 = arith.constant 0 : index
    %0 = vector.load %arg1[%c0, %c0_0] : memref<32x256xf32, #tpu.memory_space<vmem>>, vector<32x256xf32>
    %c0_1 = arith.constant 0 : index
    %c0_2 = arith.constant 0 : index
    %1 = vector.load %arg2[%c0_1, %c0_2] : memref<32x256xi32, #tpu.memory_space<vmem>>, vector<32x256xi32>
    %cst = arith.constant 0.000000e+00 : f32
    %2 = vector.broadcast %cst : f32 to vector<32x256xf32>
    %c0_i32 = arith.constant 0 : i32
    %3 = vector.broadcast %c0_i32 : i32 to vector<32x256xi32>
    %4 = arith.cmpi eq, %1, %3 : vector<32x256xi32>
    %5 = arith.select %4, %0, %2 : vector<32x256xi1>, vector<32x256xf32>
    %c0_3 = arith.constant 0 : index
    %c0_4 = arith.constant 0 : index
    %c0_5 = arith.constant 0 : index
    %6 = vector.load %arg3[%c0_3, %c0_4, %c0_5] : memref<4x32x256xf32, #tpu.memory_space<vmem>>, vector<1x32x256xf32>
    %7 = vector.shape_cast %6 : vector<1x32x256xf32> to vector<32x256xf32>
    %8 = vector.shape_cast %5 : vector<32x256xf32> to vector<1x32x256xf32>
    tpu.vector_store %arg3[%c0_3, %c0_4, %c0_5], %8 {strides = array<i32>} : memref<4x32x256xf32, #tpu.memory_space<vmem>>, vector<1x32x256xf32>,
    %c1_i32 = arith.constant 1 : i32
    %9 = vector.broadcast %c1_i32 : i32 to vector<32x256xi32>
    %10 = arith.cmpi eq, %1, %9 : vector<32x256xi32>
    %11 = arith.select %10, %0, %2 : vector<32x256xi1>, vector<32x256xf32>
    %c1 = arith.constant 1 : index
    %c0_6 = arith.constant 0 : index
    %c0_7 = arith.constant 0 : index
    %12 = vector.load %arg3[%c1, %c0_6, %c0_7] : memref<4x32x256xf32, #tpu.memory_space<vmem>>, vector<1x32x256xf32>
    %13 = vector.shape_cast %12 : vector<1x32x256xf32> to vector<32x256xf32>
    %14 = vector.shape_cast %11 : vector<32x256xf32> to vector<1x32x256xf32>
    tpu.vector_store %arg3[%c1, %c0_6, %c0_7], %14 {strides = array<i32>} : memref<4x32x256xf32, #tpu.memory_space<vmem>>, vector<1x32x256xf32>,
    %c2_i32 = arith.constant 2 : i32
    %15 = vector.broadcast %c2_i32 : i32 to vector<32x256xi32>
    %16 = arith.cmpi eq, %1, %15 : vector<32x256xi32>
    %17 = arith.select %16, %0, %2 : vector<32x256xi1>, vector<32x256xf32>
    %c2 = arith.constant 2 : index
    %c0_8 = arith.constant 0 : index
    %c0_9 = arith.constant 0 : index
    %18 = vector.load %arg3[%c2, %c0_8, %c0_9] : memref<4x32x256xf32, #tpu.memory_space<vmem>>, vector<1x32x256xf32>
    %19 = vector.shape_cast %18 : vector<1x32x256xf32> to vector<32x256xf32>
    %20 = vector.shape_cast %17 : vector<32x256xf32> to vector<1x32x256xf32>
    tpu.vector_store %arg3[%c2, %c0_8, %c0_9], %20 {strides = array<i32>} : memref<4x32x256xf32, #tpu.memory_space<vmem>>, vector<1x32x256xf32>,
    %c3_i32 = arith.constant 3 : i32
    %21 = vector.broadcast %c3_i32 : i32 to vector<32x256xi32>
    %22 = arith.cmpi eq, %1, %21 : vector<32x256xi32>
    %23 = arith.select %22, %0, %2 : vector<32x256xi1>, vector<32x256xf32>
    %c3 = arith.constant 3 : index
    %c0_10 = arith.constant 0 : index
    %c0_11 = arith.constant 0 : index
    %24 = vector.load %arg3[%c3, %c0_10, %c0_11] : memref<4x32x256xf32, #tpu.memory_space<vmem>>, vector<1x32x256xf32>
    %25 = vector.shape_cast %24 : vector<1x32x256xf32> to vector<32x256xf32>
    %26 = vector.shape_cast %23 : vector<32x256xf32> to vector<1x32x256xf32>
    tpu.vector_store %arg3[%c3, %c0_10, %c0_11], %26 {strides = array<i32>} : memref<4x32x256xf32, #tpu.memory_space<vmem>>, vector<1x32x256xf32>,
    return
  }
  func.func @transform_0(%arg0: i32) -> (i32, i32) {
    %c0_i32 = arith.constant 0 : i32
    %c0_i32_0 = arith.constant 0 : i32
    %c0_i32_1 = arith.constant 0 : i32
    return %c0_i32, %c0_i32_0 : i32, i32
  }
  func.func @transform_1(%arg0: i32) -> (i32, i32) {
    %c0_i32 = arith.constant 0 : i32
    %c0_i32_0 = arith.constant 0 : i32
    %c0_i32_1 = arith.constant 0 : i32
    return %c0_i32, %c0_i32_0 : i32, i32
  }
  func.func @transform_2(%arg0: i32) -> (i32, i32, i32) {
    %c0_i32 = arith.constant 0 : i32
    %c0_i32_0 = arith.constant 0 : i32
    %c0_i32_1 = arith.constant 0 : i32
    %c0_i32_2 = arith.constant 0 : i32
    return %c0_i32, %c0_i32_0, %c0_i32_1 : i32, i32, i32
  }
}

module attributes {stable_mosaic.version = 11 : i64} {
  func.func @_matmul_bias_res_kernel(%arg0: i32, %arg1: memref<3x400xbf16, #tpu.memory_space<vmem>>, %arg2: memref<400x2688xbf16, #tpu.memory_space<vmem>>, %arg3: memref<3x1xf32, #tpu.memory_space<vmem>>, %arg4: memref<3x2688xf32, #tpu.memory_space<vmem>>, %arg5: memref<3x2688xf32, #tpu.memory_space<vmem>>) attributes {dimension_semantics = [#tpu.dimension_semantics<arbitrary>], iteration_bounds = array<i64: 1>, scalar_prefetch = 0 : i64, scratch_operands = 0 : i64, tpu.core_type = #tpu.core_type<tc>, window_params = [{pipeline_mode = #tpu.pipeline_mode<synchronous>, transform_indices = @transform_0, window_bounds = array<i64: 3, 400>}, {pipeline_mode = #tpu.pipeline_mode<synchronous>, transform_indices = @transform_1, window_bounds = array<i64: 400, 2688>}, {pipeline_mode = #tpu.pipeline_mode<synchronous>, transform_indices = @transform_2, window_bounds = array<i64: 3, 1>}, {pipeline_mode = #tpu.pipeline_mode<synchronous>, transform_indices = @transform_3, window_bounds = array<i64: 3, 2688>}, {pipeline_mode = #tpu.pipeline_mode<synchronous>, transform_indices = @transform_4, window_bounds = array<i64: 3, 2688>}]} {
    %c0 = arith.constant 0 : index
    %c0_0 = arith.constant 0 : index
    %0 = vector.load %arg1[%c0, %c0_0] : memref<3x400xbf16, #tpu.memory_space<vmem>>, vector<3x400xbf16>
    %c0_1 = arith.constant 0 : index
    %c0_2 = arith.constant 0 : index
    %1 = vector.load %arg2[%c0_1, %c0_2] : memref<400x2688xbf16, #tpu.memory_space<vmem>>, vector<400x2688xbf16>
    %cst = arith.constant dense<0.000000e+00> : vector<3x2688xf32>
    %2 = tpu.matmul %0, %1, %cst {dimension_numbers = #tpu.dot_dimension_numbers<[1], [0], [0], [1], [0, 0, 1, 1], [], []>} : vector<3x400xbf16>, vector<400x2688xbf16>, vector<3x2688xf32> -> vector<3x2688xf32>
    %c0_3 = arith.constant 0 : index
    %c0_4 = arith.constant 0 : index
    %3 = vector.load %arg3[%c0_3, %c0_4] : memref<3x1xf32, #tpu.memory_space<vmem>>, vector<3x1xf32>
    %4 = vector.broadcast %3 : vector<3x1xf32> to vector<3x2688xf32>
    %5 = arith.addf %2, %4 : vector<3x2688xf32>
    %c0_5 = arith.constant 0 : index
    %c0_6 = arith.constant 0 : index
    %6 = vector.load %arg4[%c0_5, %c0_6] : memref<3x2688xf32, #tpu.memory_space<vmem>>, vector<3x2688xf32>
    %7 = arith.addf %5, %6 : vector<3x2688xf32>
    %c0_7 = arith.constant 0 : index
    %c0_8 = arith.constant 0 : index
    %8 = vector.load %arg5[%c0_7, %c0_8] : memref<3x2688xf32, #tpu.memory_space<vmem>>, vector<3x2688xf32>
    tpu.vector_store %arg5[%c0_7, %c0_8], %7 {strides = array<i32>} : memref<3x2688xf32, #tpu.memory_space<vmem>>, vector<3x2688xf32>,
    return
  }
  func.func @transform_0(%arg0: i32) -> (i32, i32) {
    %c0_i32 = arith.constant 0 : i32
    %c0_i32_0 = arith.constant 0 : i32
    %c0_i32_1 = arith.constant 0 : i32
    return %c0_i32, %c0_i32_0 : i32, i32
  }
  func.func @transform_1(%arg0: i32) -> (i32, i32) {
    %c0_i32 = arith.constant 0 : i32
    %c0_i32_0 = arith.constant 0 : i32
    %c0_i32_1 = arith.constant 0 : i32
    return %c0_i32, %c0_i32_0 : i32, i32
  }
  func.func @transform_2(%arg0: i32) -> (i32, i32) {
    %c0_i32 = arith.constant 0 : i32
    %c0_i32_0 = arith.constant 0 : i32
    %c0_i32_1 = arith.constant 0 : i32
    return %c0_i32, %c0_i32_0 : i32, i32
  }
  func.func @transform_3(%arg0: i32) -> (i32, i32) {
    %c0_i32 = arith.constant 0 : i32
    %c0_i32_0 = arith.constant 0 : i32
    %c0_i32_1 = arith.constant 0 : i32
    return %c0_i32, %c0_i32_0 : i32, i32
  }
  func.func @transform_4(%arg0: i32) -> (i32, i32) {
    %c0_i32 = arith.constant 0 : i32
    %c0_i32_0 = arith.constant 0 : i32
    %c0_i32_1 = arith.constant 0 : i32
    return %c0_i32, %c0_i32_0 : i32, i32
  }
}

</mosaic_0001>

<llo_original>
// kernel: conv_deconv_forward.12
$region0: #{conv_deconv_forward.12}
  #allocation0 [shape = 'u32[]', space=smem, size = 0x4, offset = 0x4, fixed_abs, tag = 'smem constant byte address 0x4 - core index']
  #allocation1 [shape = 'u32[144,128]{1,0:T(1,128)}', space=vmem, size = 0x12000, scoped, tag = 'internal scratch']
  %s0 = inlined_call_operand.vmem [shape: bf16[16,100], index: 0, kind: input, shape index: {}]
  %s1 = inlined_call_operand.vmem [shape: bf16[100,2048], index: 1, kind: input, shape index: {}]
  %s2 = inlined_call_operand.vmem [shape: f32[16,2048], index: 2, kind: output, shape index: {}]
  %s3 = sld [smem:[#allocation0]]
  $region18: #{conv_deconv_forward.12} parent=0
    _
  %s5 = ssub.s32 1, %s3
  %s6 = scalar_select 0, %s5, %s3
  // Predicated region
  $region2: #{conv_deconv_forward.12} parent=0 // pred_check
    _
  $region3: #{conv_deconv_forward.12} parent=0 // pred_check_branch
    %8 = sbr.rel (0) target = $region5
  $region4: #{conv_deconv_forward.12} parent=0 // pred_region
    _
  $region5: #{conv_deconv_forward.12} parent=0 // pred_fallthru
    _
  // Predicated region
  $region6: #{conv_deconv_forward.12} parent=0 // pred_check
    _
  $region7: #{conv_deconv_forward.12} parent=0 // pred_check_branch
    %10 = sbr.rel (0) target = $region9
  $region8: #{conv_deconv_forward.12} parent=0 // pred_region
    _
  $region9: #{conv_deconv_forward.12} parent=0 // pred_fallthru
    _
  %v12 = vld [vmem:[%s0] sm:$0xf]
  %v13 = vld [vmem:[%s0 + $0x4] sm:$0xf]
  %v14 = vld [vmem:[%s1] sm:$0xff]
  %v15 = vld [vmem:[%s1 + $0x8] sm:$0xff]
  %v16 = vld [vmem:[%s1 + $0x10] sm:$0xff]
  %v17 = vld [vmem:[%s1 + $0x18] sm:$0xff]
  %v18 = vld [vmem:[%s1 + $0x20] sm:$0xff]
  %v19 = vld [vmem:[%s1 + $0x28] sm:$0xff]
  %v20 = vld [vmem:[%s1 + $0x30] sm:$0xff]
  %v21 = vld [vmem:[%s1 + $0x38] sm:$0xff]
  %v22 = vld [vmem:[%s1 + $0x40] sm:$0xff]
  %v23 = vld [vmem:[%s1 + $0x48] sm:$0xff]
  %v24 = vld [vmem:[%s1 + $0x50] sm:$0xff]
  %v25 = vld [vmem:[%s1 + $0x58] sm:$0xff]
  %v26 = vld [vmem:[%s1 + $0x60] sm:$0xff]
  %v27 = vld [vmem:[%s1 + $0x68] sm:$0xff]
  %v28 = vld [vmem:[%s1 + $0x70] sm:$0xff]
  %v29 = vld [vmem:[%s1 + $0x78] sm:$0xff]
  %v30 = vld [vmem:[%s1 + $0x80] sm:$0xff]
  %v31 = vld [vmem:[%s1 + $0x88] sm:$0xff]
  %v32 = vld [vmem:[%s1 + $0x90] sm:$0xff]
  %v33 = vld [vmem:[%s1 + $0x98] sm:$0xff]
  %v34 = vld [vmem:[%s1 + $0xa0] sm:$0xff]
  %v35 = vld [vmem:[%s1 + $0xa8] sm:$0xff]
  %v36 = vld [vmem:[%s1 + $0xb0] sm:$0xff]
  %v37 = vld [vmem:[%s1 + $0xb8] sm:$0xff]
  %v38 = vld [vmem:[%s1 + $0xc0] sm:$0xff]
  %v39 = vld [vmem:[%s1 + $0xc8] sm:$0xff]
  %v40 = vld [vmem:[%s1 + $0xd0] sm:$0xff]
  %v41 = vld [vmem:[%s1 + $0xd8] sm:$0xff]
  %v42 = vld [vmem:[%s1 + $0xe0] sm:$0xff]
  %v43 = vld [vmem:[%s1 + $0xe8] sm:$0xff]
  %v44 = vld [vmem:[%s1 + $0xf0] sm:$0xff]
  %v45 = vld [vmem:[%s1 + $0xf8] sm:$0xff]
  %v46 = vld [vmem:[%s1 + $0x100] sm:$0xff]
  %v47 = vld [vmem:[%s1 + $0x108] sm:$0xff]
  %v48 = vld [vmem:[%s1 + $0x110] sm:$0xff]
  %v49 = vld [vmem:[%s1 + $0x118] sm:$0xff]
  %v50 = vld [vmem:[%s1 + $0x120] sm:$0xff]
  %v51 = vld [vmem:[%s1 + $0x128] sm:$0xff]
  %v52 = vld [vmem:[%s1 + $0x130] sm:$0xff]
  %v53 = vld [vmem:[%s1 + $0x138] sm:$0xff]
  %v54 = vld [vmem:[%s1 + $0x140] sm:$0xff]
  %v55 = vld [vmem:[%s1 + $0x148] sm:$0xff]
  %v56 = vld [vmem:[%s1 + $0x150] sm:$0xff]
  %v57 = vld [vmem:[%s1 + $0x158] sm:$0xff]
  %v58 = vld [vmem:[%s1 + $0x160] sm:$0xff]
  %v59 = vld [vmem:[%s1 + $0x168] sm:$0xff]
  %v60 = vld [vmem:[%s1 + $0x170] sm:$0xff]
  %v61 = vld [vmem:[%s1 + $0x178] sm:$0xff]
  %v62 = vld [vmem:[%s1 + $0x180] sm:$0xff]
  %v63 = vld [vmem:[%s1 + $0x188] sm:$0xff]
  %v64 = vld [vmem:[%s1 + $0x190] sm:$0xff]
  %v65 = vld [vmem:[%s1 + $0x198] sm:$0xff]
  %v66 = vld [vmem:[%s1 + $0x1a0] sm:$0xff]
  %v67 = vld [vmem:[%s1 + $0x1a8] sm:$0xff]
  %v68 = vld [vmem:[%s1 + $0x1b0] sm:$0xff]
  %v69 = vld [vmem:[%s1 + $0x1b8] sm:$0xff]
  %v70 = vld [vmem:[%s1 + $0x1c0] sm:$0xff]
  %v71 = vld [vmem:[%s1 + $0x1c8] sm:$0xff]
  %v72 = vld [vmem:[%s1 + $0x1d0] sm:$0xff]
  %v73 = vld [vmem:[%s1 + $0x1d8] sm:$0xff]
  %v74 = vld [vmem:[%s1 + $0x1e0] sm:$0xff]
  %v75 = vld [vmem:[%s1 + $0x1e8] sm:$0xff]
  %v76 = vld [vmem:[%s1 + $0x1f0] sm:$0xff]
  %v77 = vld [vmem:[%s1 + $0x1f8] sm:$0xff]
  %v78 = vld [vmem:[%s1 + $0x200] sm:$0xff]
  %v79 = vld [vmem:[%s1 + $0x208] sm:$0xff]
  %v80 = vld [vmem:[%s1 + $0x210] sm:$0xff]
  %v81 = vld [vmem:[%s1 + $0x218] sm:$0xff]
  %v82 = vld [vmem:[%s1 + $0x220] sm:$0xff]
  %v83 = vld [vmem:[%s1 + $0x228] sm:$0xff]
  %v84 = vld [vmem:[%s1 + $0x230] sm:$0xff]
  %v85 = vld [vmem:[%s1 + $0x238] sm:$0xff]
  %v86 = vld [vmem:[%s1 + $0x240] sm:$0xff]
  %v87 = vld [vmem:[%s1 + $0x248] sm:$0xff]
  %v88 = vld [vmem:[%s1 + $0x250] sm:$0xff]
  %v89 = vld [vmem:[%s1 + $0x258] sm:$0xff]
  %v90 = vld [vmem:[%s1 + $0x260] sm:$0xff]
  %v91 = vld [vmem:[%s1 + $0x268] sm:$0xff]
  %v92 = vld [vmem:[%s1 + $0x270] sm:$0xff]
  %v93 = vld [vmem:[%s1 + $0x278] sm:$0xff]
  %v94 = vld [vmem:[%s1 + $0x280] sm:$0xff]
  %v95 = vld [vmem:[%s1 + $0x288] sm:$0xff]
  %v96 = vld [vmem:[%s1 + $0x290] sm:$0xff]
  %v97 = vld [vmem:[%s1 + $0x298] sm:$0xff]
  %v98 = vld [vmem:[%s1 + $0x2a0] sm:$0xff]
  %v99 = vld [vmem:[%s1 + $0x2a8] sm:$0xff]
  %v100 = vld [vmem:[%s1 + $0x2b0] sm:$0xff]
  %v101 = vld [vmem:[%s1 + $0x2b8] sm:$0xff]
  %v102 = vld [vmem:[%s1 + $0x2c0] sm:$0xff]
  %v103 = vld [vmem:[%s1 + $0x2c8] sm:$0xff]
  %v104 = vld [vmem:[%s1 + $0x2d0] sm:$0xff]
  %v105 = vld [vmem:[%s1 + $0x2d8] sm:$0xff]
  %v106 = vld [vmem:[%s1 + $0x2e0] sm:$0xff]
  %v107 = vld [vmem:[%s1 + $0x2e8] sm:$0xff]
  %v108 = vld [vmem:[%s1 + $0x2f0] sm:$0xff]
  %v109 = vld [vmem:[%s1 + $0x2f8] sm:$0xff]
  %v110 = vld [vmem:[%s1 + $0x300] sm:$0x33]
  %v111 = vld [vmem:[%s1 + $0x308] sm:$0x33]
  %v112 = vld [vmem:[%s1 + $0x310] sm:$0x33]
  %v113 = vld [vmem:[%s1 + $0x318] sm:$0x33]
  %v114 = vld [vmem:[%s1 + $0x320] sm:$0x33]
  %v115 = vld [vmem:[%s1 + $0x328] sm:$0x33]
  %v116 = vld [vmem:[%s1 + $0x330] sm:$0x33]
  %v117 = vld [vmem:[%s1 + $0x338] sm:$0x33]
  %v120 = vunpack.c.l.b16 %v12
  %v121 = vunpack.c.l.b16 %v13
  %v122 = vpack.c.b16 %v121, %v120
  %v227 = vunpack.c.l.b16 %v14
  %v228 = vunpack.c.h.b16 %v14
  %v229 = vunpack.c.l.b16 %v15
  %v230 = vunpack.c.h.b16 %v15
  %v231 = vunpack.c.l.b16 %v16
  %v232 = vunpack.c.h.b16 %v16
  %v233 = vunpack.c.l.b16 %v17
  %v234 = vunpack.c.h.b16 %v17
  %v235 = vunpack.c.l.b16 %v18
  %v236 = vunpack.c.h.b16 %v18
  %v237 = vunpack.c.l.b16 %v19
  %v238 = vunpack.c.h.b16 %v19
  %v239 = vunpack.c.l.b16 %v20
  %v240 = vunpack.c.h.b16 %v20
  %v241 = vunpack.c.l.b16 %v21
  %v242 = vunpack.c.h.b16 %v21
  %v243 = vunpack.c.l.b16 %v22
  %v244 = vunpack.c.h.b16 %v22
  %v245 = vunpack.c.l.b16 %v23
  %v246 = vunpack.c.h.b16 %v23
  %v247 = vunpack.c.l.b16 %v24
  %v248 = vunpack.c.h.b16 %v24
  %v249 = vunpack.c.l.b16 %v25
  %v250 = vunpack.c.h.b16 %v25
  %v251 = vunpack.c.l.b16 %v26
  %v252 = vunpack.c.h.b16 %v26
  %v253 = vunpack.c.l.b16 %v27
  %v254 = vunpack.c.h.b16 %v27
  %v255 = vunpack.c.l.b16 %v28
  %v256 = vunpack.c.h.b16 %v28
  %v257 = vunpack.c.l.b16 %v29
  %v258 = vunpack.c.h.b16 %v29
  %v259 = vunpack.c.l.b16 %v30
  %v260 = vunpack.c.h.b16 %v30
  %v261 = vunpack.c.l.b16 %v31
  %v262 = vunpack.c.h.b16 %v31
  %v263 = vunpack.c.l.b16 %v32
  %v264 = vunpack.c.h.b16 %v32
  %v265 = vunpack.c.l.b16 %v33
  %v266 = vunpack.c.h.b16 %v33
  %v267 = vunpack.c.l.b16 %v34
  %v268 = vunpack.c.h.b16 %v34
  %v269 = vunpack.c.l.b16 %v35
  %v270 = vunpack.c.h.b16 %v35
  %v271 = vunpack.c.l.b16 %v36
  %v272 = vunpack.c.h.b16 %v36
  %v273 = vunpack.c.l.b16 %v37
  %v274 = vunpack.c.h.b16 %v37
  %v275 = vunpack.c.l.b16 %v38
  %v276 = vunpack.c.h.b16 %v38
  %v277 = vunpack.c.l.b16 %v39
  %v278 = vunpack.c.h.b16 %v39
  %v279 = vunpack.c.l.b16 %v40
  %v280 = vunpack.c.h.b16 %v40
  %v281 = vunpack.c.l.b16 %v41
  %v282 = vunpack.c.h.b16 %v41
  %v283 = vunpack.c.l.b16 %v42
  %v284 = vunpack.c.h.b16 %v42
  %v285 = vunpack.c.l.b16 %v43
  %v286 = vunpack.c.h.b16 %v43
  %v287 = vunpack.c.l.b16 %v44
  %v288 = vunpack.c.h.b16 %v44
  %v289 = vunpack.c.l.b16 %v45
  %v290 = vunpack.c.h.b16 %v45
  %v291 = vunpack.c.l.b16 %v46
  %v292 = vunpack.c.h.b16 %v46
  %v293 = vunpack.c.l.b16 %v47
  %v294 = vunpack.c.h.b16 %v47
  %v295 = vunpack.c.l.b16 %v48
  %v296 = vunpack.c.h.b16 %v48
  %v297 = vunpack.c.l.b16 %v49
  %v298 = vunpack.c.h.b16 %v49
  %v299 = vunpack.c.l.b16 %v50
  %v300 = vunpack.c.h.b16 %v50
  %v301 = vunpack.c.l.b16 %v51
  %v302 = vunpack.c.h.b16 %v51
  %v303 = vunpack.c.l.b16 %v52
  %v304 = vunpack.c.h.b16 %v52
  %v305 = vunpack.c.l.b16 %v53
  %v306 = vunpack.c.h.b16 %v53
  %v307 = vunpack.c.l.b16 %v54
  %v308 = vunpack.c.h.b16 %v54
  %v309 = vunpack.c.l.b16 %v55
  %v310 = vunpack.c.h.b16 %v55
  %v311 = vunpack.c.l.b16 %v56
  %v312 = vunpack.c.h.b16 %v56
  %v313 = vunpack.c.l.b16 %v57
  %v314 = vunpack.c.h.b16 %v57
  %v315 = vunpack.c.l.b16 %v58
  %v316 = vunpack.c.h.b16 %v58
  %v317 = vunpack.c.l.b16 %v59
  %v318 = vunpack.c.h.b16 %v59
  %v319 = vunpack.c.l.b16 %v60
  %v320 = vunpack.c.h.b16 %v60
  %v321 = vunpack.c.l.b16 %v61
  %v322 = vunpack.c.h.b16 %v61
  %v323 = vunpack.c.l.b16 %v62
  %v324 = vunpack.c.h.b16 %v62
  %v325 = vunpack.c.l.b16 %v63
  %v326 = vunpack.c.h.b16 %v63
  %v327 = vunpack.c.l.b16 %v64
  %v328 = vunpack.c.h.b16 %v64
  %v329 = vunpack.c.l.b16 %v65
  %v330 = vunpack.c.h.b16 %v65
  %v331 = vunpack.c.l.b16 %v66
  %v332 = vunpack.c.h.b16 %v66
  %v333 = vunpack.c.l.b16 %v67
  %v334 = vunpack.c.h.b16 %v67
  %v335 = vunpack.c.l.b16 %v68
  %v336 = vunpack.c.h.b16 %v68
  %v337 = vunpack.c.l.b16 %v69
  %v338 = vunpack.c.h.b16 %v69
  %v339 = vunpack.c.l.b16 %v70
  %v340 = vunpack.c.h.b16 %v70
  %v341 = vunpack.c.l.b16 %v71
  %v342 = vunpack.c.h.b16 %v71
  %v343 = vunpack.c.l.b16 %v72
  %v344 = vunpack.c.h.b16 %v72
  %v345 = vunpack.c.l.b16 %v73
  %v346 = vunpack.c.h.b16 %v73
  %v347 = vunpack.c.l.b16 %v74
  %v348 = vunpack.c.h.b16 %v74
  %v349 = vunpack.c.l.b16 %v75
  %v350 = vunpack.c.h.b16 %v75
  %v351 = vunpack.c.l.b16 %v76
  %v352 = vunpack.c.h.b16 %v76
  %v353 = vunpack.c.l.b16 %v77
  %v354 = vunpack.c.h.b16 %v77
  %v355 = vunpack.c.l.b16 %v78
  %v356 = vunpack.c.h.b16 %v78
  %v357 = vunpack.c.l.b16 %v79
  %v358 = vunpack.c.h.b16 %v79
  %v359 = vunpack.c.l.b16 %v80
  %v360 = vunpack.c.h.b16 %v80
  %v361 = vunpack.c.l.b16 %v81
  %v362 = vunpack.c.h.b16 %v81
  %v363 = vunpack.c.l.b16 %v82
  %v364 = vunpack.c.h.b16 %v82
  %v365 = vunpack.c.l.b16 %v83
  %v366 = vunpack.c.h.b16 %v83
  %v367 = vunpack.c.l.b16 %v84
  %v368 = vunpack.c.h.b16 %v84
  %v369 = vunpack.c.l.b16 %v85
  %v370 = vunpack.c.h.b16 %v85
  %v371 = vunpack.c.l.b16 %v86
  %v372 = vunpack.c.h.b16 %v86
  %v373 = vunpack.c.l.b16 %v87
  %v374 = vunpack.c.h.b16 %v87
  %v375 = vunpack.c.l.b16 %v88
  %v376 = vunpack.c.h.b16 %v88
  %v377 = vunpack.c.l.b16 %v89
  %v378 = vunpack.c.h.b16 %v89
  %v379 = vunpack.c.l.b16 %v90
  %v380 = vunpack.c.h.b16 %v90
  %v381 = vunpack.c.l.b16 %v91
  %v382 = vunpack.c.h.b16 %v91
  %v383 = vunpack.c.l.b16 %v92
  %v384 = vunpack.c.h.b16 %v92
  %v385 = vunpack.c.l.b16 %v93
  %v386 = vunpack.c.h.b16 %v93
  %v387 = vunpack.c.l.b16 %v94
  %v388 = vunpack.c.h.b16 %v94
  %v389 = vunpack.c.l.b16 %v95
  %v390 = vunpack.c.h.b16 %v95
  %v391 = vunpack.c.l.b16 %v96
  %v392 = vunpack.c.h.b16 %v96
  %v393 = vunpack.c.l.b16 %v97
  %v394 = vunpack.c.h.b16 %v97
  %v395 = vunpack.c.l.b16 %v98
  %v396 = vunpack.c.h.b16 %v98
  %v397 = vunpack.c.l.b16 %v99
  %v398 = vunpack.c.h.b16 %v99
  %v399 = vunpack.c.l.b16 %v100
  %v400 = vunpack.c.h.b16 %v100
  %v401 = vunpack.c.l.b16 %v101
  %v402 = vunpack.c.h.b16 %v101
  %v403 = vunpack.c.l.b16 %v102
  %v404 = vunpack.c.h.b16 %v102
  %v405 = vunpack.c.l.b16 %v103
  %v406 = vunpack.c.h.b16 %v103
  %v407 = vunpack.c.l.b16 %v104
  %v408 = vunpack.c.h.b16 %v104
  %v409 = vunpack.c.l.b16 %v105
  %v410 = vunpack.c.h.b16 %v105
  %v411 = vunpack.c.l.b16 %v106
  %v412 = vunpack.c.h.b16 %v106
  %v413 = vunpack.c.l.b16 %v107
  %v414 = vunpack.c.h.b16 %v107
  %v415 = vunpack.c.l.b16 %v108
  %v416 = vunpack.c.h.b16 %v108
  %v417 = vunpack.c.l.b16 %v109
  %v418 = vunpack.c.h.b16 %v109
  %v419 = vunpack.c.l.b16 %v110
  %v420 = vunpack.c.h.b16 %v110
  %v421 = vunpack.c.l.b16 %v111
  %v422 = vunpack.c.h.b16 %v111
  %v423 = vunpack.c.l.b16 %v112
  %v424 = vunpack.c.h.b16 %v112
  %v425 = vunpack.c.l.b16 %v113
  %v426 = vunpack.c.h.b16 %v113
  %v427 = vunpack.c.l.b16 %v114
  %v428 = vunpack.c.h.b16 %v114
  %v429 = vunpack.c.l.b16 %v115
  %v430 = vunpack.c.h.b16 %v115
  %v431 = vunpack.c.l.b16 %v116
  %v432 = vunpack.c.h.b16 %v116
  %v433 = vunpack.c.l.b16 %v117
  %v434 = vunpack.c.h.b16 %v117
  %v435 = vpack.c.b16 %v243, %v227
  %v436 = vpack.c.b16 %v244, %v228
  %v437 = vpack.c.b16 %v245, %v229
  %v438 = vpack.c.b16 %v246, %v230
  %v439 = vpack.c.b16 %v247, %v231
  %v440 = vpack.c.b16 %v248, %v232
  %v441 = vpack.c.b16 %v249, %v233
  %v442 = vpack.c.b16 %v250, %v234
  %v443 = vpack.c.b16 %v251, %v235
  %v444 = vpack.c.b16 %v252, %v236
  %v445 = vpack.c.b16 %v253, %v237
  %v446 = vpack.c.b16 %v254, %v238
  %v447 = vpack.c.b16 %v255, %v239
  %v448 = vpack.c.b16 %v256, %v240
  %v449 = vpack.c.b16 %v257, %v241
  %v450 = vpack.c.b16 %v258, %v242
  %v451 = vpack.c.b16 %v275, %v259
  %v452 = vpack.c.b16 %v276, %v260
  %v453 = vpack.c.b16 %v277, %v261
  %v454 = vpack.c.b16 %v278, %v262
  %v455 = vpack.c.b16 %v279, %v263
  %v456 = vpack.c.b16 %v280, %v264
  %v457 = vpack.c.b16 %v281, %v265
  %v458 = vpack.c.b16 %v282, %v266
  %v459 = vpack.c.b16 %v283, %v267
  %v460 = vpack.c.b16 %v284, %v268
  %v461 = vpack.c.b16 %v285, %v269
  %v462 = vpack.c.b16 %v286, %v270
  %v463 = vpack.c.b16 %v287, %v271
  %v464 = vpack.c.b16 %v288, %v272
  %v465 = vpack.c.b16 %v289, %v273
  %v466 = vpack.c.b16 %v290, %v274
  %v467 = vpack.c.b16 %v307, %v291
  %v468 = vpack.c.b16 %v308, %v292
  %v469 = vpack.c.b16 %v309, %v293
  %v470 = vpack.c.b16 %v310, %v294
  %v471 = vpack.c.b16 %v311, %v295
  %v472 = vpack.c.b16 %v312, %v296
  %v473 = vpack.c.b16 %v313, %v297
  %v474 = vpack.c.b16 %v314, %v298
  %v475 = vpack.c.b16 %v315, %v299
  %v476 = vpack.c.b16 %v316, %v300
  %v477 = vpack.c.b16 %v317, %v301
  %v478 = vpack.c.b16 %v318, %v302
  %v479 = vpack.c.b16 %v319, %v303
  %v480 = vpack.c.b16 %v320, %v304
  %v481 = vpack.c.b16 %v321, %v305
  %v482 = vpack.c.b16 %v322, %v306
  %v483 = vpack.c.b16 %v339, %v323
  %v484 = vpack.c.b16 %v340, %v324
  %v485 = vpack.c.b16 %v341, %v325
  %v486 = vpack.c.b16 %v342, %v326
  %v487 = vpack.c.b16 %v343, %v327
  %v488 = vpack.c.b16 %v344, %v328
  %v489 = vpack.c.b16 %v345, %v329
  %v490 = vpack.c.b16 %v346, %v330
  %v491 = vpack.c.b16 %v347, %v331
  %v492 = vpack.c.b16 %v348, %v332
  %v493 = vpack.c.b16 %v349, %v333
  %v494 = vpack.c.b16 %v350, %v334
  %v495 = vpack.c.b16 %v351, %v335
  %v496 = vpack.c.b16 %v352, %v336
  %v497 = vpack.c.b16 %v353, %v337
  %v498 = vpack.c.b16 %v354, %v338
  %v499 = vpack.c.b16 %v371, %v355
  %v500 = vpack.c.b16 %v372, %v356
  %v501 = vpack.c.b16 %v373, %v357
  %v502 = vpack.c.b16 %v374, %v358
  %v503 = vpack.c.b16 %v375, %v359
  %v504 = vpack.c.b16 %v376, %v360
  %v505 = vpack.c.b16 %v377, %v361
  %v506 = vpack.c.b16 %v378, %v362
  %v507 = vpack.c.b16 %v379, %v363
  %v508 = vpack.c.b16 %v380, %v364
  %v509 = vpack.c.b16 %v381, %v365
  %v510 = vpack.c.b16 %v382, %v366
  %v511 = vpack.c.b16 %v383, %v367
  %v512 = vpack.c.b16 %v384, %v368
  %v513 = vpack.c.b16 %v385, %v369
  %v514 = vpack.c.b16 %v386, %v370
  %v515 = vpack.c.b16 %v403, %v387
  %v516 = vpack.c.b16 %v404, %v388
  %v517 = vpack.c.b16 %v405, %v389
  %v518 = vpack.c.b16 %v406, %v390
  %v519 = vpack.c.b16 %v407, %v391
  %v520 = vpack.c.b16 %v408, %v392
  %v521 = vpack.c.b16 %v409, %v393
  %v522 = vpack.c.b16 %v410, %v394
  %v523 = vpack.c.b16 %v411, %v395
  %v524 = vpack.c.b16 %v412, %v396
  %v525 = vpack.c.b16 %v413, %v397
  %v526 = vpack.c.b16 %v414, %v398
  %v527 = vpack.c.b16 %v415, %v399
  %v528 = vpack.c.b16 %v416, %v400
  %v529 = vpack.c.b16 %v417, %v401
  %v530 = vpack.c.b16 %v418, %v402
  %v531 = vpack.c.b16 %v419, %v419
  %v532 = vpack.c.b16 %v420, %v420
  %v533 = vpack.c.b16 %v421, %v421
  %v534 = vpack.c.b16 %v422, %v422
  %v535 = vpack.c.b16 %v423, %v423
  %v536 = vpack.c.b16 %v424, %v424
  %v537 = vpack.c.b16 %v425, %v425
  %v538 = vpack.c.b16 %v426, %v426
  %v539 = vpack.c.b16 %v427, %v427
  %v540 = vpack.c.b16 %v428, %v428
  %v541 = vpack.c.b16 %v429, %v429
  %v542 = vpack.c.b16 %v430, %v430
  %v543 = vpack.c.b16 %v431, %v431
  %v544 = vpack.c.b16 %v432, %v432
  %v545 = vpack.c.b16 %v433, %v433
  %v546 = vpack.c.b16 %v434, %v434
  %vm643 = vcmask 818176
  %v645 = vsel %vm643, %v122, 0
  %vm647 = vcmask 1041408
  %v649 = vsel %vm647, %v531, 0
  %v652 = vsel %vm647, %v532, 0
  %v655 = vsel %vm647, %v533, 0
  %v658 = vsel %vm647, %v534, 0
  %v661 = vsel %vm647, %v535, 0
  %v664 = vsel %vm647, %v536, 0
  %v667 = vsel %vm647, %v537, 0
  %v670 = vsel %vm647, %v538, 0
  %v673 = vsel %vm647, %v539, 0
  %v676 = vsel %vm647, %v540, 0
  %v679 = vsel %vm647, %v541, 0
  %v682 = vsel %vm647, %v542, 0
  %v685 = vsel %vm647, %v543, 0
  %v688 = vsel %vm647, %v544, 0
  %v691 = vsel %vm647, %v545, 0
  %v694 = vsel %vm647, %v546, 0
  %696 = vmatprep.subr.bf16.mxu0 %v436
  %697 = vmatpush1.bf16.msra.mxu0 %v435
  %698 = vmatprep.subr.bf16.mxu0 %v452
  %699 = vmatpush1.bf16.msra.mxu0 %v451
  %700 = vmatprep.subr.bf16.mxu0 %v468
  %701 = vmatpush1.bf16.msra.mxu0 %v467
  %702 = vmatprep.subr.bf16.mxu0 %v484
  %703 = vmatpush1.bf16.msra.mxu0 %v483
  %704 = vmatprep.subr.bf16.mxu0 %v500
  %705 = vmatpush1.bf16.msra.mxu0 %v499
  %706 = vmatprep.subr.bf16.mxu0 %v516
  %707 = vmatpush1.bf16.msra.mxu0 %v515
  %708 = vmatprep.subr.bf16.mxu0 %v652
  %709 = vmatpush1.bf16.msra.mxu0 %v649
  %710 = vmatprep.subr.bf16.mxu0 0
  %711 = vmatpush1.bf16.msra.mxu0 0
  %712 = vmatprep.subr.bf16.mxu0 0
  %713 = vmatpush1.bf16.msra.mxu0 0
  %714 = vmatprep.subr.bf16.mxu0 0
  %715 = vmatpush1.bf16.msra.mxu0 0
  %716 = vmatprep.subr.bf16.mxu0 0
  %717 = vmatpush1.bf16.msra.mxu0 0
  %718 = vmatprep.subr.bf16.mxu0 0
  %719 = vmatpush1.bf16.msra.mxu0 0
  %720 = vmatprep.subr.bf16.mxu0 0
  %721 = vmatpush1.bf16.msra.mxu0 0
  %722 = vmatprep.subr.bf16.mxu0 0
  %723 = vmatpush1.bf16.msra.mxu0 0
  %724 = vmatprep.subr.bf16.mxu0 0
  %725 = vmatpush1.bf16.msra.mxu0 0
  %726 = vmatprep.subr.bf16.mxu0 0
  %727 = vmatpush1.bf16.msra.mxu0 0
  %728 = vmatprep.mubr.bf16.mxu0 0
  %729 = vmatmul.mubr.bf16.gmra.mrb[0].mxu0 %v645
  %v730 = vpop.f32.mrb[0].mxu0
  %v731 = vadd.f32 0.0, %v730
  %v732 = vpop.f32.mrb[0].mxu0
  %v733 = vadd.f32 0.0, %v732
  %v734 = vpop.f32.mrb[0].mxu0
  %v735 = vadd.f32 0.0, %v734
  %v736 = vpop.f32.mrb[0].mxu0
  %v737 = vadd.f32 0.0, %v736
  %738 = vdwg.mxu0
  %739 = vmatprep.subr.bf16.mxu0 %v438
  %740 = vmatpush1.bf16.msra.mxu0 %v437
  %741 = vmatprep.subr.bf16.mxu0 %v454
  %742 = vmatpush1.bf16.msra.mxu0 %v453
  %743 = vmatprep.subr.bf16.mxu0 %v470
  %744 = vmatpush1.bf16.msra.mxu0 %v469
  %745 = vmatprep.subr.bf16.mxu0 %v486
  %746 = vmatpush1.bf16.msra.mxu0 %v485
  %747 = vmatprep.subr.bf16.mxu0 %v502
  %748 = vmatpush1.bf16.msra.mxu0 %v501
  %749 = vmatprep.subr.bf16.mxu0 %v518
  %750 = vmatpush1.bf16.msra.mxu0 %v517
  %751 = vmatprep.subr.bf16.mxu0 %v658
  %752 = vmatpush1.bf16.msra.mxu0 %v655
  %753 = vmatprep.subr.bf16.mxu0 0
  %754 = vmatpush1.bf16.msra.mxu0 0
  %755 = vmatprep.subr.bf16.mxu0 0
  %756 = vmatpush1.bf16.msra.mxu0 0
  %757 = vmatprep.subr.bf16.mxu0 0
  %758 = vmatpush1.bf16.msra.mxu0 0
  %759 = vmatprep.subr.bf16.mxu0 0
  %760 = vmatpush1.bf16.msra.mxu0 0
  %761 = vmatprep.subr.bf16.mxu0 0
  %762 = vmatpush1.bf16.msra.mxu0 0
  %763 = vmatprep.subr.bf16.mxu0 0
  %764 = vmatpush1.bf16.msra.mxu0 0
  %765 = vmatprep.subr.bf16.mxu0 0
  %766 = vmatpush1.bf16.msra.mxu0 0
  %767 = vmatprep.subr.bf16.mxu0 0
  %768 = vmatpush1.bf16.msra.mxu0 0
  %769 = vmatprep.subr.bf16.mxu0 0
  %770 = vmatpush1.bf16.msra.mxu0 0
  %771 = vmatprep.mubr.bf16.mxu0 0
  %772 = vmatmul.mubr.bf16.gmra.mrb[0].mxu0 %v645
  %v773 = vpop.f32.mrb[0].mxu0
  %v774 = vadd.f32 0.0, %v773
  %v775 = vpop.f32.mrb[0].mxu0
  %v776 = vadd.f32 0.0, %v775
  %v777 = vpop.f32.mrb[0].mxu0
  %v778 = vadd.f32 0.0, %v777
  %v779 = vpop.f32.mrb[0].mxu0
  %v780 = vadd.f32 0.0, %v779
  %781 = vdwg.mxu0
  %782 = vmatprep.subr.bf16.mxu0 %v440
  %783 = vmatpush1.bf16.msra.mxu0 %v439
  %784 = vmatprep.subr.bf16.mxu0 %v456
  %785 = vmatpush1.bf16.msra.mxu0 %v455
  %786 = vmatprep.subr.bf16.mxu0 %v472
  %787 = vmatpush1.bf16.msra.mxu0 %v471
  %788 = vmatprep.subr.bf16.mxu0 %v488
  %789 = vmatpush1.bf16.msra.mxu0 %v487
  %790 = vmatprep.subr.bf16.mxu0 %v504
  %791 = vmatpush1.bf16.msra.mxu0 %v503
  %792 = vmatprep.subr.bf16.mxu0 %v520
  %793 = vmatpush1.bf16.msra.mxu0 %v519
  %794 = vmatprep.subr.bf16.mxu0 %v664
  %795 = vmatpush1.bf16.msra.mxu0 %v661
  %796 = vmatprep.subr.bf16.mxu0 0
  %797 = vmatpush1.bf16.msra.mxu0 0
  %798 = vmatprep.subr.bf16.mxu0 0
  %799 = vmatpush1.bf16.msra.mxu0 0
  %800 = vmatprep.subr.bf16.mxu0 0
  %801 = vmatpush1.bf16.msra.mxu0 0
  %802 = vmatprep.subr.bf16.mxu0 0
  %803 = vmatpush1.bf16.msra.mxu0 0
  %804 = vmatprep.subr.bf16.mxu0 0
  %805 = vmatpush1.bf16.msra.mxu0 0
  %806 = vmatprep.subr.bf16.mxu0 0
  %807 = vmatpush1.bf16.msra.mxu0 0
  %808 = vmatprep.subr.bf16.mxu0 0
  %809 = vmatpush1.bf16.msra.mxu0 0
  %810 = vmatprep.subr.bf16.mxu0 0
  %811 = vmatpush1.bf16.msra.mxu0 0
  %812 = vmatprep.subr.bf16.mxu0 0
  %813 = vmatpush1.bf16.msra.mxu0 0
  %814 = vmatprep.mubr.bf16.mxu0 0
  %815 = vmatmul.mubr.bf16.gmra.mrb[0].mxu0 %v645
  %v816 = vpop.f32.mrb[0].mxu0
  %v817 = vadd.f32 0.0, %v816
  %v818 = vpop.f32.mrb[0].mxu0
  %v819 = vadd.f32 0.0, %v818
  %v820 = vpop.f32.mrb[0].mxu0
  %v821 = vadd.f32 0.0, %v820
  %v822 = vpop.f32.mrb[0].mxu0
  %v823 = vadd.f32 0.0, %v822
  %824 = vdwg.mxu0
  %825 = vmatprep.subr.bf16.mxu0 %v442
  %826 = vmatpush1.bf16.msra.mxu0 %v441
  %827 = vmatprep.subr.bf16.mxu0 %v458
  %828 = vmatpush1.bf16.msra.mxu0 %v457
  %829 = vmatprep.subr.bf16.mxu0 %v474
  %830 = vmatpush1.bf16.msra.mxu0 %v473
  %831 = vmatprep.subr.bf16.mxu0 %v490
  %832 = vmatpush1.bf16.msra.mxu0 %v489
  %833 = vmatprep.subr.bf16.mxu0 %v506
  %834 = vmatpush1.bf16.msra.mxu0 %v505
  %835 = vmatprep.subr.bf16.mxu0 %v522
  %836 = vmatpush1.bf16.msra.mxu0 %v521
  %837 = vmatprep.subr.bf16.mxu0 %v670
  %838 = vmatpush1.bf16.msra.mxu0 %v667
  %839 = vmatprep.subr.bf16.mxu0 0
  %840 = vmatpush1.bf16.msra.mxu0 0
  %841 = vmatprep.subr.bf16.mxu0 0
  %842 = vmatpush1.bf16.msra.mxu0 0
  %843 = vmatprep.subr.bf16.mxu0 0
  %844 = vmatpush1.bf16.msra.mxu0 0
  %845 = vmatprep.subr.bf16.mxu0 0
  %846 = vmatpush1.bf16.msra.mxu0 0
  %847 = vmatprep.subr.bf16.mxu0 0
  %848 = vmatpush1.bf16.msra.mxu0 0
  %849 = vmatprep.subr.bf16.mxu0 0
  %850 = vmatpush1.bf16.msra.mxu0 0
  %851 = vmatprep.subr.bf16.mxu0 0
  %852 = vmatpush1.bf16.msra.mxu0 0
  %853 = vmatprep.subr.bf16.mxu0 0
  %854 = vmatpush1.bf16.msra.mxu0 0
  %855 = vmatprep.subr.bf16.mxu0 0
  %856 = vmatpush1.bf16.msra.mxu0 0
  %857 = vmatprep.mubr.bf16.mxu0 0
  %858 = vmatmul.mubr.bf16.gmra.mrb[0].mxu0 %v645
  %v859 = vpop.f32.mrb[0].mxu0
  %v860 = vadd.f32 0.0, %v859
  %v861 = vpop.f32.mrb[0].mxu0
  %v862 = vadd.f32 0.0, %v861
  %v863 = vpop.f32.mrb[0].mxu0
  %v864 = vadd.f32 0.0, %v863
  %v865 = vpop.f32.mrb[0].mxu0
  %v866 = vadd.f32 0.0, %v865
  %867 = vdwg.mxu0
  %868 = vmatprep.subr.bf16.mxu0 %v444
  %869 = vmatpush1.bf16.msra.mxu0 %v443
  %870 = vmatprep.subr.bf16.mxu0 %v460
  %871 = vmatpush1.bf16.msra.mxu0 %v459
  %872 = vmatprep.subr.bf16.mxu0 %v476
  %873 = vmatpush1.bf16.msra.mxu0 %v475
  %874 = vmatprep.subr.bf16.mxu0 %v492
  %875 = vmatpush1.bf16.msra.mxu0 %v491
  %876 = vmatprep.subr.bf16.mxu0 %v508
  %877 = vmatpush1.bf16.msra.mxu0 %v507
  %878 = vmatprep.subr.bf16.mxu0 %v524
  %879 = vmatpush1.bf16.msra.mxu0 %v523
  %880 = vmatprep.subr.bf16.mxu0 %v676
  %881 = vmatpush1.bf16.msra.mxu0 %v673
  %882 = vmatprep.subr.bf16.mxu0 0
  %883 = vmatpush1.bf16.msra.mxu0 0
  %884 = vmatprep.subr.bf16.mxu0 0
  %885 = vmatpush1.bf16.msra.mxu0 0
  %886 = vmatprep.subr.bf16.mxu0 0
  %887 = vmatpush1.bf16.msra.mxu0 0
  %888 = vmatprep.subr.bf16.mxu0 0
  %889 = vmatpush1.bf16.msra.mxu0 0
  %890 = vmatprep.subr.bf16.mxu0 0
  %891 = vmatpush1.bf16.msra.mxu0 0
  %892 = vmatprep.subr.bf16.mxu0 0
  %893 = vmatpush1.bf16.msra.mxu0 0
  %894 = vmatprep.subr.bf16.mxu0 0
  %895 = vmatpush1.bf16.msra.mxu0 0
  %896 = vmatprep.subr.bf16.mxu0 0
  %897 = vmatpush1.bf16.msra.mxu0 0
  %898 = vmatprep.subr.bf16.mxu0 0
  %899 = vmatpush1.bf16.msra.mxu0 0
  %900 = vmatprep.mubr.bf16.mxu0 0
  %901 = vmatmul.mubr.bf16.gmra.mrb[0].mxu0 %v645
  %v902 = vpop.f32.mrb[0].mxu0
  %v903 = vadd.f32 0.0, %v902
  %v904 = vpop.f32.mrb[0].mxu0
  %v905 = vadd.f32 0.0, %v904
  %v906 = vpop.f32.mrb[0].mxu0
  %v907 = vadd.f32 0.0, %v906
  %v908 = vpop.f32.mrb[0].mxu0
  %v909 = vadd.f32 0.0, %v908
  %910 = vdwg.mxu0
  %911 = vmatprep.subr.bf16.mxu0 %v446
  %912 = vmatpush1.bf16.msra.mxu0 %v445
  %913 = vmatprep.subr.bf16.mxu0 %v462
  %914 = vmatpush1.bf16.msra.mxu0 %v461
  %915 = vmatprep.subr.bf16.mxu0 %v478
  %916 = vmatpush1.bf16.msra.mxu0 %v477
  %917 = vmatprep.subr.bf16.mxu0 %v494
  %918 = vmatpush1.bf16.msra.mxu0 %v493
  %919 = vmatprep.subr.bf16.mxu0 %v510
  %920 = vmatpush1.bf16.msra.mxu0 %v509
  %921 = vmatprep.subr.bf16.mxu0 %v526
  %922 = vmatpush1.bf16.msra.mxu0 %v525
  %923 = vmatprep.subr.bf16.mxu0 %v682
  %924 = vmatpush1.bf16.msra.mxu0 %v679
  %925 = vmatprep.subr.bf16.mxu0 0
  %926 = vmatpush1.bf16.msra.mxu0 0
  %927 = vmatprep.subr.bf16.mxu0 0
  %928 = vmatpush1.bf16.msra.mxu0 0
  %929 = vmatprep.subr.bf16.mxu0 0
  %930 = vmatpush1.bf16.msra.mxu0 0
  %931 = vmatprep.subr.bf16.mxu0 0
  %932 = vmatpush1.bf16.msra.mxu0 0
  %933 = vmatprep.subr.bf16.mxu0 0
  %934 = vmatpush1.bf16.msra.mxu0 0
  %935 = vmatprep.subr.bf16.mxu0 0
  %936 = vmatpush1.bf16.msra.mxu0 0
  %937 = vmatprep.subr.bf16.mxu0 0
  %938 = vmatpush1.bf16.msra.mxu0 0
  %939 = vmatprep.subr.bf16.mxu0 0
  %940 = vmatpush1.bf16.msra.mxu0 0
  %941 = vmatprep.subr.bf16.mxu0 0
  %942 = vmatpush1.bf16.msra.mxu0 0
  %943 = vmatprep.mubr.bf16.mxu0 0
  %944 = vmatmul.mubr.bf16.gmra.mrb[0].mxu0 %v645
  %v945 = vpop.f32.mrb[0].mxu0
  %v946 = vadd.f32 0.0, %v945
  %v947 = vpop.f32.mrb[0].mxu0
  %v948 = vadd.f32 0.0, %v947
  %v949 = vpop.f32.mrb[0].mxu0
  %v950 = vadd.f32 0.0, %v949
  %v951 = vpop.f32.mrb[0].mxu0
  %v952 = vadd.f32 0.0, %v951
  %953 = vdwg.mxu0
  %954 = vmatprep.subr.bf16.mxu0 %v448
  %955 = vmatpush1.bf16.msra.mxu0 %v447
  %956 = vmatprep.subr.bf16.mxu0 %v464
  %957 = vmatpush1.bf16.msra.mxu0 %v463
  %958 = vmatprep.subr.bf16.mxu0 %v480
  %959 = vmatpush1.bf16.msra.mxu0 %v479
  %960 = vmatprep.subr.bf16.mxu0 %v496
  %961 = vmatpush1.bf16.msra.mxu0 %v495
  %962 = vmatprep.subr.bf16.mxu0 %v512
  %963 = vmatpush1.bf16.msra.mxu0 %v511
  %964 = vmatprep.subr.bf16.mxu0 %v528
  %965 = vmatpush1.bf16.msra.mxu0 %v527
  %966 = vmatprep.subr.bf16.mxu0 %v688
  %967 = vmatpush1.bf16.msra.mxu0 %v685
  %968 = vmatprep.subr.bf16.mxu0 0
  %969 = vmatpush1.bf16.msra.mxu0 0
  %970 = vmatprep.subr.bf16.mxu0 0
  %971 = vmatpush1.bf16.msra.mxu0 0
  %972 = vmatprep.subr.bf16.mxu0 0
  %973 = vmatpush1.bf16.msra.mxu0 0
  %974 = vmatprep.subr.bf16.mxu0 0
  %975 = vmatpush1.bf16.msra.mxu0 0
  %976 = vmatprep.subr.bf16.mxu0 0
  %977 = vmatpush1.bf16.msra.mxu0 0
  %978 = vmatprep.subr.bf16.mxu0 0
  %979 = vmatpush1.bf16.msra.mxu0 0
  %980 = vmatprep.subr.bf16.mxu0 0
  %981 = vmatpush1.bf16.msra.mxu0 0
  %982 = vmatprep.subr.bf16.mxu0 0
  %983 = vmatpush1.bf16.msra.mxu0 0
  %984 = vmatprep.subr.bf16.mxu0 0
  %985 = vmatpush1.bf16.msra.mxu0 0
  %986 = vmatprep.mubr.bf16.mxu0 0
  %987 = vmatmul.mubr.bf16.gmra.mrb[0].mxu0 %v645
  %v988 = vpop.f32.mrb[0].mxu0
  %v989 = vadd.f32 0.0, %v988
  %v990 = vpop.f32.mrb[0].mxu0
  %v991 = vadd.f32 0.0, %v990
  %v992 = vpop.f32.mrb[0].mxu0
  %v993 = vadd.f32 0.0, %v992
  %v994 = vpop.f32.mrb[0].mxu0
  %v995 = vadd.f32 0.0, %v994
  %996 = vdwg.mxu0
  %997 = vmatprep.subr.bf16.mxu0 %v450
  %998 = vmatpush1.bf16.msra.mxu0 %v449
  %999 = vmatprep.subr.bf16.mxu0 %v466
  %1000 = vmatpush1.bf16.msra.mxu0 %v465
  %1001 = vmatprep.subr.bf16.mxu0 %v482
  %1002 = vmatpush1.bf16.msra.mxu0 %v481
  %1003 = vmatprep.subr.bf16.mxu0 %v498
  %1004 = vmatpush1.bf16.msra.mxu0 %v497
  %1005 = vmatprep.subr.bf16.mxu0 %v514
  %1006 = vmatpush1.bf16.msra.mxu0 %v513
  %1007 = vmatprep.subr.bf16.mxu0 %v530
  %1008 = vmatpush1.bf16.msra.mxu0 %v529
  %1009 = vmatprep.subr.bf16.mxu0 %v694
  %1010 = vmatpush1.bf16.msra.mxu0 %v691
  %1011 = vmatprep.subr.bf16.mxu0 0
  %1012 = vmatpush1.bf16.msra.mxu0 0
  %1013 = vmatprep.subr.bf16.mxu0 0
  %1014 = vmatpush1.bf16.msra.mxu0 0
  %1015 = vmatprep.subr.bf16.mxu0 0
  %1016 = vmatpush1.bf16.msra.mxu0 0
  %1017 = vmatprep.subr.bf16.mxu0 0
  %1018 = vmatpush1.bf16.msra.mxu0 0
  %1019 = vmatprep.subr.bf16.mxu0 0
  %1020 = vmatpush1.bf16.msra.mxu0 0
  %1021 = vmatprep.subr.bf16.mxu0 0
  %1022 = vmatpush1.bf16.msra.mxu0 0
  %1023 = vmatprep.subr.bf16.mxu0 0
  %1024 = vmatpush1.bf16.msra.mxu0 0
  %1025 = vmatprep.subr.bf16.mxu0 0
  %1026 = vmatpush1.bf16.msra.mxu0 0
  %1027 = vmatprep.subr.bf16.mxu0 0
  %1028 = vmatpush1.bf16.msra.mxu0 0
  %1029 = vmatprep.mubr.bf16.mxu0 0
  %1030 = vmatmul.mubr.bf16.gmra.mrb[0].mxu0 %v645
  %v1031 = vpop.f32.mrb[0].mxu0
  %v1032 = vadd.f32 0.0, %v1031
  %v1033 = vpop.f32.mrb[0].mxu0
  %v1034 = vadd.f32 0.0, %v1033
  %v1035 = vpop.f32.mrb[0].mxu0
  %v1036 = vadd.f32 0.0, %v1035
  %v1037 = vpop.f32.mrb[0].mxu0
  %v1038 = vadd.f32 0.0, %v1037
  %1039 = vdwg.mxu0
  %v1040 = vlaneseq
  %v1041 = vand.u32 %v1040, 127
  %v1042 = vadd.s32 %v1041, 128
  %v1043 = vadd.s32 %v1041, 256
  %v1044 = vadd.s32 %v1041, 384
  %v1045 = vadd.s32 %v1041, 512
  %v1046 = vadd.s32 %v1041, 640
  %v1047 = vadd.s32 %v1041, 768
  %v1048 = vadd.s32 %v1041, 896
  %v1049 = vadd.s32 %v1041, 1024
  %v1050 = vadd.s32 %v1041, 1152
  %v1051 = vadd.s32 %v1041, 1280
  %v1052 = vadd.s32 %v1041, 1408
  %v1053 = vadd.s32 %v1041, 1536
  %v1054 = vadd.s32 %v1041, 1664
  %v1055 = vadd.s32 %v1041, 1792
  %v1056 = vadd.s32 %v1041, 1920
  %vm1057 = vcmp.lt.s32.totalorder %v1041, 2048
  %vm1058 = vcmp.lt.s32.totalorder %v1042, 2048
  %vm1059 = vcmp.lt.s32.totalorder %v1043, 2048
  %vm1060 = vcmp.lt.s32.totalorder %v1044, 2048
  %vm1061 = vcmp.lt.s32.totalorder %v1045, 2048
  %vm1062 = vcmp.lt.s32.totalorder %v1046, 2048
  %vm1063 = vcmp.lt.s32.totalorder %v1047, 2048
  %vm1064 = vcmp.lt.s32.totalorder %v1048, 2048
  %vm1065 = vcmp.lt.s32.totalorder %v1049, 2048
  %vm1066 = vcmp.lt.s32.totalorder %v1050, 2048
  %vm1067 = vcmp.lt.s32.totalorder %v1051, 2048
  %vm1068 = vcmp.lt.s32.totalorder %v1052, 2048
  %vm1069 = vcmp.lt.s32.totalorder %v1053, 2048
  %vm1070 = vcmp.lt.s32.totalorder %v1054, 2048
  %vm1071 = vcmp.lt.s32.totalorder %v1055, 2048
  %vm1072 = vcmp.lt.s32.totalorder %v1056, 2048
  %v1073 = vsel %vm1057, %v731, 0.0
  %v1074 = vsel %vm1058, %v733, 0.0
  %v1075 = vsel %vm1059, %v774, 0.0
  %v1076 = vsel %vm1060, %v776, 0.0
  %v1077 = vsel %vm1061, %v817, 0.0
  %v1078 = vsel %vm1062, %v819, 0.0
  %v1079 = vsel %vm1063, %v860, 0.0
  %v1080 = vsel %vm1064, %v862, 0.0
  %v1081 = vsel %vm1065, %v903, 0.0
  %v1082 = vsel %vm1066, %v905, 0.0
  %v1083 = vsel %vm1067, %v946, 0.0
  %v1084 = vsel %vm1068, %v948, 0.0
  %v1085 = vsel %vm1069, %v989, 0.0
  %v1086 = vsel %vm1070, %v991, 0.0
  %v1087 = vsel %vm1071, %v1032, 0.0
  %v1088 = vsel %vm1072, %v1034, 0.0
  %v1089 = vsel %vm1057, %v735, 0.0
  %v1090 = vsel %vm1058, %v737, 0.0
  %v1091 = vsel %vm1059, %v778, 0.0
  %v1092 = vsel %vm1060, %v780, 0.0
  %v1093 = vsel %vm1061, %v821, 0.0
  %v1094 = vsel %vm1062, %v823, 0.0
  %v1095 = vsel %vm1063, %v864, 0.0
  %v1096 = vsel %vm1064, %v866, 0.0
  %v1097 = vsel %vm1065, %v907, 0.0
  %v1098 = vsel %vm1066, %v909, 0.0
  %v1099 = vsel %vm1067, %v950, 0.0
  %v1100 = vsel %vm1068, %v952, 0.0
  %v1101 = vsel %vm1069, %v993, 0.0
  %v1102 = vsel %vm1070, %v995, 0.0
  %v1103 = vsel %vm1071, %v1036, 0.0
  %v1104 = vsel %vm1072, %v1038, 0.0
  %v1105 = vadd.f32 %v1073, %v1074
  %v1106 = vadd.f32 %v1105, %v1075
  %v1107 = vadd.f32 %v1106, %v1076
  %v1108 = vadd.f32 %v1107, %v1077
  %v1109 = vadd.f32 %v1108, %v1078
  %v1110 = vadd.f32 %v1109, %v1079
  %v1111 = vadd.f32 %v1110, %v1080
  %v1112 = vadd.f32 %v1111, %v1081
  %v1113 = vadd.f32 %v1112, %v1082
  %v1114 = vadd.f32 %v1113, %v1083
  %v1115 = vadd.f32 %v1114, %v1084
  %v1116 = vadd.f32 %v1115, %v1085
  %v1117 = vadd.f32 %v1116, %v1086
  %v1118 = vadd.f32 %v1117, %v1087
  %v1119 = vadd.f32 %v1118, %v1088
  %1120 = vadd.xlane.f32.xlu0 %v1119
  %v1121 = vpop.xlane.xlu0 %1120
  %v1122 = vadd.f32 %v1089, %v1090
  %v1123 = vadd.f32 %v1122, %v1091
  %v1124 = vadd.f32 %v1123, %v1092
  %v1125 = vadd.f32 %v1124, %v1093
  %v1126 = vadd.f32 %v1125, %v1094
  %v1127 = vadd.f32 %v1126, %v1095
  %v1128 = vadd.f32 %v1127, %v1096
  %v1129 = vadd.f32 %v1128, %v1097
  %v1130 = vadd.f32 %v1129, %v1098
  %v1131 = vadd.f32 %v1130, %v1099
  %v1132 = vadd.f32 %v1131, %v1100
  %v1133 = vadd.f32 %v1132, %v1101
  %v1134 = vadd.f32 %v1133, %v1102
  %v1135 = vadd.f32 %v1134, %v1103
  %v1136 = vadd.f32 %v1135, %v1104
  %1137 = vadd.xlane.f32.xlu0 %v1136
  %v1138 = vpop.xlane.xlu0 %1137
  %v1139 = vmul.f32 %v1121, 0.00048828125
  %v1140 = vmul.f32 %v1138, 0.00048828125
  %v1141 = vmul.f32 %v1073, %v1073
  %v1142 = vmul.f32 %v1074, %v1074
  %v1143 = vmul.f32 %v1075, %v1075
  %v1144 = vmul.f32 %v1076, %v1076
  %v1145 = vmul.f32 %v1077, %v1077
  %v1146 = vmul.f32 %v1078, %v1078
  %v1147 = vmul.f32 %v1079, %v1079
  %v1148 = vmul.f32 %v1080, %v1080
  %v1149 = vmul.f32 %v1081, %v1081
  %v1150 = vmul.f32 %v1082, %v1082
  %v1151 = vmul.f32 %v1083, %v1083
  %v1152 = vmul.f32 %v1084, %v1084
  %v1153 = vmul.f32 %v1085, %v1085
  %v1154 = vmul.f32 %v1086, %v1086
  %v1155 = vmul.f32 %v1087, %v1087
  %v1156 = vmul.f32 %v1088, %v1088
  %v1157 = vmul.f32 %v1089, %v1089
  %v1158 = vmul.f32 %v1090, %v1090
  %v1159 = vmul.f32 %v1091, %v1091
  %v1160 = vmul.f32 %v1092, %v1092
  %v1161 = vmul.f32 %v1093, %v1093
  %v1162 = vmul.f32 %v1094, %v1094
  %v1163 = vmul.f32 %v1095, %v1095
  %v1164 = vmul.f32 %v1096, %v1096
  %v1165 = vmul.f32 %v1097, %v1097
  %v1166 = vmul.f32 %v1098, %v1098
  %v1167 = vmul.f32 %v1099, %v1099
  %v1168 = vmul.f32 %v1100, %v1100
  %v1169 = vmul.f32 %v1101, %v1101
  %v1170 = vmul.f32 %v1102, %v1102
  %v1171 = vmul.f32 %v1103, %v1103
  %v1172 = vmul.f32 %v1104, %v1104
  %v1173 = vadd.f32 %v1141, %v1142
  %v1174 = vadd.f32 %v1173, %v1143
  %v1175 = vadd.f32 %v1174, %v1144
  %v1176 = vadd.f32 %v1175, %v1145
  %v1177 = vadd.f32 %v1176, %v1146
  %v1178 = vadd.f32 %v1177, %v1147
  %v1179 = vadd.f32 %v1178, %v1148
  %v1180 = vadd.f32 %v1179, %v1149
  %v1181 = vadd.f32 %v1180, %v1150
  %v1182 = vadd.f32 %v1181, %v1151
  %v1183 = vadd.f32 %v1182, %v1152
  %v1184 = vadd.f32 %v1183, %v1153
  %v1185 = vadd.f32 %v1184, %v1154
  %v1186 = vadd.f32 %v1185, %v1155
  %v1187 = vadd.f32 %v1186, %v1156
  %1188 = vadd.xlane.f32.xlu0 %v1187
  %v1189 = vpop.xlane.xlu0 %1188
  %v1190 = vadd.f32 %v1157, %v1158
  %v1191 = vadd.f32 %v1190, %v1159
  %v1192 = vadd.f32 %v1191, %v1160
  %v1193 = vadd.f32 %v1192, %v1161
  %v1194 = vadd.f32 %v1193, %v1162
  %v1195 = vadd.f32 %v1194, %v1163
  %v1196 = vadd.f32 %v1195, %v1164
  %v1197 = vadd.f32 %v1196, %v1165
  %v1198 = vadd.f32 %v1197, %v1166
  %v1199 = vadd.f32 %v1198, %v1167
  %v1200 = vadd.f32 %v1199, %v1168
  %v1201 = vadd.f32 %v1200, %v1169
  %v1202 = vadd.f32 %v1201, %v1170
  %v1203 = vadd.f32 %v1202, %v1171
  %v1204 = vadd.f32 %v1203, %v1172
  %1205 = vadd.xlane.f32.xlu0 %v1204
  %v1206 = vpop.xlane.xlu0 %1205
  %v1207 = vmul.f32 %v1189, 0.00048828125
  %v1208 = vmul.f32 %v1206, 0.00048828125
  %v1209 = vmul.f32 %v1139, %v1139
  %v1210 = vmul.f32 %v1140, %v1140
  %v1211 = vsub.f32 %v1207, %v1209
  %v1212 = vsub.f32 %v1208, %v1210
  %v1213 = vmax.f32 %v1211, 0.0
  %v1214 = vmax.f32 %v1212, 0.0
  %v1215 = vsub.f32 %v731, %v1139
  %v1216 = vsub.f32 %v733, %v1139
  %v1217 = vsub.f32 %v774, %v1139
  %v1218 = vsub.f32 %v776, %v1139
  %v1219 = vsub.f32 %v817, %v1139
  %v1220 = vsub.f32 %v819, %v1139
  %v1221 = vsub.f32 %v860, %v1139
  %v1222 = vsub.f32 %v862, %v1139
  %v1223 = vsub.f32 %v903, %v1139
  %v1224 = vsub.f32 %v905, %v1139
  %v1225 = vsub.f32 %v946, %v1139
  %v1226 = vsub.f32 %v948, %v1139
  %v1227 = vsub.f32 %v989, %v1139
  %v1228 = vsub.f32 %v991, %v1139
  %v1229 = vsub.f32 %v1032, %v1139
  %v1230 = vsub.f32 %v1034, %v1139
  %v1231 = vsub.f32 %v735, %v1140
  %v1232 = vsub.f32 %v737, %v1140
  %v1233 = vsub.f32 %v778, %v1140
  %v1234 = vsub.f32 %v780, %v1140
  %v1235 = vsub.f32 %v821, %v1140
  %v1236 = vsub.f32 %v823, %v1140
  %v1237 = vsub.f32 %v864, %v1140
  %v1238 = vsub.f32 %v866, %v1140
  %v1239 = vsub.f32 %v907, %v1140
  %v1240 = vsub.f32 %v909, %v1140
  %v1241 = vsub.f32 %v950, %v1140
  %v1242 = vsub.f32 %v952, %v1140
  %v1243 = vsub.f32 %v993, %v1140
  %v1244 = vsub.f32 %v995, %v1140
  %v1245 = vsub.f32 %v1036, %v1140
  %v1246 = vsub.f32 %v1038, %v1140
  %v1247 = vadd.f32 %v1213, 1e-05
  %v1248 = vadd.f32 %v1214, 1e-05
  %v1249 = vrsqrt.pop %v1247
  %v1250 = vrsqrt.pop %v1248
  %v1251 = vmul.f32 %v1215, %v1249
  %v1252 = vmul.f32 %v1216, %v1249
  %v1253 = vmul.f32 %v1217, %v1249
  %v1254 = vmul.f32 %v1218, %v1249
  %v1255 = vmul.f32 %v1219, %v1249
  %v1256 = vmul.f32 %v1220, %v1249
  %v1257 = vmul.f32 %v1221, %v1249
  %v1258 = vmul.f32 %v1222, %v1249
  %v1259 = vmul.f32 %v1223, %v1249
  %v1260 = vmul.f32 %v1224, %v1249
  %v1261 = vmul.f32 %v1225, %v1249
  %v1262 = vmul.f32 %v1226, %v1249
  %v1263 = vmul.f32 %v1227, %v1249
  %v1264 = vmul.f32 %v1228, %v1249
  %v1265 = vmul.f32 %v1229, %v1249
  %v1266 = vmul.f32 %v1230, %v1249
  %v1267 = vmul.f32 %v1231, %v1250
  %v1268 = vmul.f32 %v1232, %v1250
  %v1269 = vmul.f32 %v1233, %v1250
  %v1270 = vmul.f32 %v1234, %v1250
  %v1271 = vmul.f32 %v1235, %v1250
  %v1272 = vmul.f32 %v1236, %v1250
  %v1273 = vmul.f32 %v1237, %v1250
  %v1274 = vmul.f32 %v1238, %v1250
  %v1275 = vmul.f32 %v1239, %v1250
  %v1276 = vmul.f32 %v1240, %v1250
  %v1277 = vmul.f32 %v1241, %v1250
  %v1278 = vmul.f32 %v1242, %v1250
  %v1279 = vmul.f32 %v1243, %v1250
  %v1280 = vmul.f32 %v1244, %v1250
  %v1281 = vmul.f32 %v1245, %v1250
  %v1282 = vmul.f32 %v1246, %v1250
  %v1283 = vmul.f32 %v1251, 0.01
  %v1284 = vmul.f32 %v1252, 0.01
  %v1285 = vmul.f32 %v1253, 0.01
  %v1286 = vmul.f32 %v1254, 0.01
  %v1287 = vmul.f32 %v1255, 0.01
  %v1288 = vmul.f32 %v1256, 0.01
  %v1289 = vmul.f32 %v1257, 0.01
  %v1290 = vmul.f32 %v1258, 0.01
  %v1291 = vmul.f32 %v1259, 0.01
  %v1292 = vmul.f32 %v1260, 0.01
  %v1293 = vmul.f32 %v1261, 0.01
  %v1294 = vmul.f32 %v1262, 0.01
  %v1295 = vmul.f32 %v1263, 0.01
  %v1296 = vmul.f32 %v1264, 0.01
  %v1297 = vmul.f32 %v1265, 0.01
  %v1298 = vmul.f32 %v1266, 0.01
  %v1299 = vmul.f32 %v1267, 0.01
  %v1300 = vmul.f32 %v1268, 0.01
  %v1301 = vmul.f32 %v1269, 0.01
  %v1302 = vmul.f32 %v1270, 0.01
  %v1303 = vmul.f32 %v1271, 0.01
  %v1304 = vmul.f32 %v1272, 0.01
  %v1305 = vmul.f32 %v1273, 0.01
  %v1306 = vmul.f32 %v1274, 0.01
  %v1307 = vmul.f32 %v1275, 0.01
  %v1308 = vmul.f32 %v1276, 0.01
  %v1309 = vmul.f32 %v1277, 0.01
  %v1310 = vmul.f32 %v1278, 0.01
  %v1311 = vmul.f32 %v1279, 0.01
  %v1312 = vmul.f32 %v1280, 0.01
  %v1313 = vmul.f32 %v1281, 0.01
  %v1314 = vmul.f32 %v1282, 0.01
  %v1315 = vmax.f32 %v1251, %v1283
  %v1316 = vmax.f32 %v1252, %v1284
  %v1317 = vmax.f32 %v1253, %v1285
  %v1318 = vmax.f32 %v1254, %v1286
  %v1319 = vmax.f32 %v1255, %v1287
  %v1320 = vmax.f32 %v1256, %v1288
  %v1321 = vmax.f32 %v1257, %v1289
  %v1322 = vmax.f32 %v1258, %v1290
  %v1323 = vmax.f32 %v1259, %v1291
  %v1324 = vmax.f32 %v1260, %v1292
  %v1325 = vmax.f32 %v1261, %v1293
  %v1326 = vmax.f32 %v1262, %v1294
  %v1327 = vmax.f32 %v1263, %v1295
  %v1328 = vmax.f32 %v1264, %v1296
  %v1329 = vmax.f32 %v1265, %v1297
  %v1330 = vmax.f32 %v1266, %v1298
  %v1331 = vmax.f32 %v1267, %v1299
  %v1332 = vmax.f32 %v1268, %v1300
  %v1333 = vmax.f32 %v1269, %v1301
  %v1334 = vmax.f32 %v1270, %v1302
  %v1335 = vmax.f32 %v1271, %v1303
  %v1336 = vmax.f32 %v1272, %v1304
  %v1337 = vmax.f32 %v1273, %v1305
  %v1338 = vmax.f32 %v1274, %v1306
  %v1339 = vmax.f32 %v1275, %v1307
  %v1340 = vmax.f32 %v1276, %v1308
  %v1341 = vmax.f32 %v1277, %v1309
  %v1342 = vmax.f32 %v1278, %v1310
  %v1343 = vmax.f32 %v1279, %v1311
  %v1344 = vmax.f32 %v1280, %v1312
  %v1345 = vmax.f32 %v1281, %v1313
  %v1346 = vmax.f32 %v1282, %v1314
  %1347 = vst [vmem:[%s2] sm:$0xff] %v1315
  %1348 = vst [vmem:[%s2 + $0x8] sm:$0xff] %v1316
  %1349 = vst [vmem:[%s2 + $0x10] sm:$0xff] %v1317
  %1350 = vst [vmem:[%s2 + $0x18] sm:$0xff] %v1318
  %1351 = vst [vmem:[%s2 + $0x20] sm:$0xff] %v1319
  %1352 = vst [vmem:[%s2 + $0x28] sm:$0xff] %v1320
  %1353 = vst [vmem:[%s2 + $0x30] sm:$0xff] %v1321
  %1354 = vst [vmem:[%s2 + $0x38] sm:$0xff] %v1322
  %1355 = vst [vmem:[%s2 + $0x40] sm:$0xff] %v1323
  %1356 = vst [vmem:[%s2 + $0x48] sm:$0xff] %v1324
  %1357 = vst [vmem:[%s2 + $0x50] sm:$0xff] %v1325
  %1358 = vst [vmem:[%s2 + $0x58] sm:$0xff] %v1326
  %1359 = vst [vmem:[%s2 + $0x60] sm:$0xff] %v1327
  %1360 = vst [vmem:[%s2 + $0x68] sm:$0xff] %v1328
  %1361 = vst [vmem:[%s2 + $0x70] sm:$0xff] %v1329
  %1362 = vst [vmem:[%s2 + $0x78] sm:$0xff] %v1330
  %1363 = vst [vmem:[%s2 + $0x80] sm:$0xff] %v1331
  %1364 = vst [vmem:[%s2 + $0x88] sm:$0xff] %v1332
  %1365 = vst [vmem:[%s2 + $0x90] sm:$0xff] %v1333
  %1366 = vst [vmem:[%s2 + $0x98] sm:$0xff] %v1334
  %1367 = vst [vmem:[%s2 + $0xa0] sm:$0xff] %v1335
  %1368 = vst [vmem:[%s2 + $0xa8] sm:$0xff] %v1336
  %1369 = vst [vmem:[%s2 + $0xb0] sm:$0xff] %v1337
  %1370 = vst [vmem:[%s2 + $0xb8] sm:$0xff] %v1338
  %1371 = vst [vmem:[%s2 + $0xc0] sm:$0xff] %v1339
  %1372 = vst [vmem:[%s2 + $0xc8] sm:$0xff] %v1340
  %1373 = vst [vmem:[%s2 + $0xd0] sm:$0xff] %v1341
  %1374 = vst [vmem:[%s2 + $0xd8] sm:$0xff] %v1342
  %1375 = vst [vmem:[%s2 + $0xe0] sm:$0xff] %v1343
  %1376 = vst [vmem:[%s2 + $0xe8] sm:$0xff] %v1344
  %1377 = vst [vmem:[%s2 + $0xf0] sm:$0xff] %v1345
  %1378 = vst [vmem:[%s2 + $0xf8] sm:$0xff] %v1346
  // Predicated region
  $region10: #{conv_deconv_forward.12} parent=0 // pred_check
    _
  $region11: #{conv_deconv_forward.12} parent=0 // pred_check_branch
    %1380 = sbr.rel (0) target = $region13
  $region12: #{conv_deconv_forward.12} parent=0 // pred_region
    _
  $region13: #{conv_deconv_forward.12} parent=0 // pred_fallthru
    _
  // Predicated region
  $region14: #{conv_deconv_forward.12} parent=0 // pred_check
    _
  $region15: #{conv_deconv_forward.12} parent=0 // pred_check_branch
    %1382 = sbr.rel (0) target = $region17
  $region16: #{conv_deconv_forward.12} parent=0 // pred_region
    _
  $region17: #{conv_deconv_forward.12} parent=0 // pred_fallthru
    _

// kernel: conv_deconv_forward.13
$region0: #{conv_deconv_forward.13}
  #allocation0 [shape = 'u32[]', space=smem, size = 0x4, offset = 0x4, fixed_abs, tag = 'smem constant byte address 0x4 - core index']
  #allocation1 [shape = 'u32[144,128]{1,0:T(1,128)}', space=vmem, size = 0x12000, scoped, tag = 'internal scratch']
  %s0 = inlined_call_operand.vmem [shape: f32[4,32,256], index: 0, kind: input, shape index: {}]
  %s1 = inlined_call_operand.vmem [shape: f32[32,256], index: 1, kind: output, shape index: {0}]
  %s2 = inlined_call_operand.vmem [shape: s32[32,256], index: 2, kind: output, shape index: {1}]
  %3 = xla_tuple %s1, %s2
  %s4 = sld [smem:[#allocation0]]
  $region22: #{conv_deconv_forward.13} parent=0
    _
  %s6 = ssub.s32 1, %s4
  %s7 = scalar_select 0, %s6, %s4
  // Predicated region
  $region2: #{conv_deconv_forward.13} parent=0 // pred_check
    _
  $region3: #{conv_deconv_forward.13} parent=0 // pred_check_branch
    %9 = sbr.rel (0) target = $region5
  $region4: #{conv_deconv_forward.13} parent=0 // pred_region
    _
  $region5: #{conv_deconv_forward.13} parent=0 // pred_fallthru
    _
  %v10 = vld [vmem:[%s0] sm:$0xff]
  %v11 = vld [vmem:[%s0 + $0x8] sm:$0xff]
  %v12 = vld [vmem:[%s0 + $0x10] sm:$0xff]
  %v13 = vld [vmem:[%s0 + $0x18] sm:$0xff]
  %v14 = vld [vmem:[%s0 + $0x20] sm:$0xff]
  %v15 = vld [vmem:[%s0 + $0x28] sm:$0xff]
  %v16 = vld [vmem:[%s0 + $0x30] sm:$0xff]
  %v17 = vld [vmem:[%s0 + $0x38] sm:$0xff]
  %s18 = scalar_lea.vmem %s0, 64
  %v19 = vld [vmem:[%s18] sm:$0xff]
  %v20 = vld [vmem:[%s18 + $0x8] sm:$0xff]
  %v21 = vld [vmem:[%s18 + $0x10] sm:$0xff]
  %v22 = vld [vmem:[%s18 + $0x18] sm:$0xff]
  %v23 = vld [vmem:[%s18 + $0x20] sm:$0xff]
  %v24 = vld [vmem:[%s18 + $0x28] sm:$0xff]
  %v25 = vld [vmem:[%s18 + $0x30] sm:$0xff]
  %v26 = vld [vmem:[%s18 + $0x38] sm:$0xff]
  %s27 = scalar_lea.vmem %s0, 128
  %v28 = vld [vmem:[%s27] sm:$0xff]
  %v29 = vld [vmem:[%s27 + $0x8] sm:$0xff]
  %v30 = vld [vmem:[%s27 + $0x10] sm:$0xff]
  %v31 = vld [vmem:[%s27 + $0x18] sm:$0xff]
  %v32 = vld [vmem:[%s27 + $0x20] sm:$0xff]
  %v33 = vld [vmem:[%s27 + $0x28] sm:$0xff]
  %v34 = vld [vmem:[%s27 + $0x30] sm:$0xff]
  %v35 = vld [vmem:[%s27 + $0x38] sm:$0xff]
  %s36 = scalar_lea.vmem %s0, 192
  %v37 = vld [vmem:[%s36] sm:$0xff]
  %v38 = vld [vmem:[%s36 + $0x8] sm:$0xff]
  %v39 = vld [vmem:[%s36 + $0x10] sm:$0xff]
  %v40 = vld [vmem:[%s36 + $0x18] sm:$0xff]
  %v41 = vld [vmem:[%s36 + $0x20] sm:$0xff]
  %v42 = vld [vmem:[%s36 + $0x28] sm:$0xff]
  %v43 = vld [vmem:[%s36 + $0x30] sm:$0xff]
  %v44 = vld [vmem:[%s36 + $0x38] sm:$0xff]
  %v45 = vmax.f32 %v10, %v19
  %v46 = vmax.f32 %v11, %v20
  %v47 = vmax.f32 %v12, %v21
  %v48 = vmax.f32 %v13, %v22
  %v49 = vmax.f32 %v14, %v23
  %v50 = vmax.f32 %v15, %v24
  %v51 = vmax.f32 %v16, %v25
  %v52 = vmax.f32 %v17, %v26
  %v53 = vmax.f32 %v28, %v37
  %v54 = vmax.f32 %v29, %v38
  %v55 = vmax.f32 %v30, %v39
  %v56 = vmax.f32 %v31, %v40
  %v57 = vmax.f32 %v32, %v41
  %v58 = vmax.f32 %v33, %v42
  %v59 = vmax.f32 %v34, %v43
  %v60 = vmax.f32 %v35, %v44
  %v61 = vmax.f32 %v45, %v53
  %v62 = vmax.f32 %v46, %v54
  %v63 = vmax.f32 %v47, %v55
  %v64 = vmax.f32 %v48, %v56
  %v65 = vmax.f32 %v49, %v57
  %v66 = vmax.f32 %v50, %v58
  %v67 = vmax.f32 %v51, %v59
  %v68 = vmax.f32 %v52, %v60
  %vm69 = vcmp.eq.f32.partialorder %v10, %v61
  %vm70 = vcmp.eq.f32.partialorder %v11, %v62
  %vm71 = vcmp.eq.f32.partialorder %v12, %v63
  %vm72 = vcmp.eq.f32.partialorder %v13, %v64
  %vm73 = vcmp.eq.f32.partialorder %v14, %v65
  %vm74 = vcmp.eq.f32.partialorder %v15, %v66
  %vm75 = vcmp.eq.f32.partialorder %v16, %v67
  %vm76 = vcmp.eq.f32.partialorder %v17, %v68
  %vm77 = vcmp.eq.f32.partialorder %v19, %v61
  %vm78 = vcmp.eq.f32.partialorder %v20, %v62
  %vm79 = vcmp.eq.f32.partialorder %v21, %v63
  %vm80 = vcmp.eq.f32.partialorder %v22, %v64
  %vm81 = vcmp.eq.f32.partialorder %v23, %v65
  %vm82 = vcmp.eq.f32.partialorder %v24, %v66
  %vm83 = vcmp.eq.f32.partialorder %v25, %v67
  %vm84 = vcmp.eq.f32.partialorder %v26, %v68
  %vm85 = vcmp.eq.f32.partialorder %v28, %v61
  %vm86 = vcmp.eq.f32.partialorder %v29, %v62
  %vm87 = vcmp.eq.f32.partialorder %v30, %v63
  %vm88 = vcmp.eq.f32.partialorder %v31, %v64
  %vm89 = vcmp.eq.f32.partialorder %v32, %v65
  %vm90 = vcmp.eq.f32.partialorder %v33, %v66
  %vm91 = vcmp.eq.f32.partialorder %v34, %v67
  %vm92 = vcmp.eq.f32.partialorder %v35, %v68
  %v93 = vsel %vm85, 2, 3
  %v94 = vsel %vm86, 2, 3
  %v95 = vsel %vm87, 2, 3
  %v96 = vsel %vm88, 2, 3
  %v97 = vsel %vm89, 2, 3
  %v98 = vsel %vm90, 2, 3
  %v99 = vsel %vm91, 2, 3
  %v100 = vsel %vm92, 2, 3
  %v101 = vsel %vm77, 1, %v93
  %v102 = vsel %vm78, 1, %v94
  %v103 = vsel %vm79, 1, %v95
  %v104 = vsel %vm80, 1, %v96
  %v105 = vsel %vm81, 1, %v97
  %v106 = vsel %vm82, 1, %v98
  %v107 = vsel %vm83, 1, %v99
  %v108 = vsel %vm84, 1, %v100
  %v109 = vsel %vm69, 0, %v101
  %v110 = vsel %vm70, 0, %v102
  %v111 = vsel %vm71, 0, %v103
  %v112 = vsel %vm72, 0, %v104
  %v113 = vsel %vm73, 0, %v105
  %v114 = vsel %vm74, 0, %v106
  %v115 = vsel %vm75, 0, %v107
  %v116 = vsel %vm76, 0, %v108
  %117 = vst [vmem:[%s2] sm:$0xff] %v109
  %118 = vst [vmem:[%s2 + $0x8] sm:$0xff] %v110
  %119 = vst [vmem:[%s2 + $0x10] sm:$0xff] %v111
  %120 = vst [vmem:[%s2 + $0x18] sm:$0xff] %v112
  %121 = vst [vmem:[%s2 + $0x20] sm:$0xff] %v113
  %122 = vst [vmem:[%s2 + $0x28] sm:$0xff] %v114
  %123 = vst [vmem:[%s2 + $0x30] sm:$0xff] %v115
  %124 = vst [vmem:[%s2 + $0x38] sm:$0xff] %v116
  %125 = vst [vmem:[%s1] sm:$0xff] %v61
  %126 = vst [vmem:[%s1 + $0x8] sm:$0xff] %v62
  %127 = vst [vmem:[%s1 + $0x10] sm:$0xff] %v63
  %128 = vst [vmem:[%s1 + $0x18] sm:$0xff] %v64
  %129 = vst [vmem:[%s1 + $0x20] sm:$0xff] %v65
  %130 = vst [vmem:[%s1 + $0x28] sm:$0xff] %v66
  %131 = vst [vmem:[%s1 + $0x30] sm:$0xff] %v67
  %132 = vst [vmem:[%s1 + $0x38] sm:$0xff] %v68
  // Predicated region
  $region6: #{conv_deconv_forward.13} parent=0 // pred_check
    _
  $region7: #{conv_deconv_forward.13} parent=0 // pred_check_branch
    %134 = sbr.rel (0) target = $region9
  $region8: #{conv_deconv_forward.13} parent=0 // pred_region
    _
  $region9: #{conv_deconv_forward.13} parent=0 // pred_fallthru
    _
  // Predicated region
  $region10: #{conv_deconv_forward.13} parent=0 // pred_check
    _
  $region11: #{conv_deconv_forward.13} parent=0 // pred_check_branch
    %136 = sbr.rel (0) target = $region13
  $region12: #{conv_deconv_forward.13} parent=0 // pred_region
    _
  $region13: #{conv_deconv_forward.13} parent=0 // pred_fallthru
    _
  // Predicated region
  $region14: #{conv_deconv_forward.13} parent=0 // pred_check
    _
  $region15: #{conv_deconv_forward.13} parent=0 // pred_check_branch
    %138 = sbr.rel (0) target = $region17
  $region16: #{conv_deconv_forward.13} parent=0 // pred_region
    _
  $region17: #{conv_deconv_forward.13} parent=0 // pred_fallthru
    _
  // Predicated region
  $region18: #{conv_deconv_forward.13} parent=0 // pred_check
    _
  $region19: #{conv_deconv_forward.13} parent=0 // pred_check_branch
    %140 = sbr.rel (0) target = $region21
  $region20: #{conv_deconv_forward.13} parent=0 // pred_region
    _
  $region21: #{conv_deconv_forward.13} parent=0 // pred_fallthru
    _

// kernel: conv_deconv_forward.14
$region0: #{conv_deconv_forward.14}
  #allocation0 [shape = 'u32[]', space=smem, size = 0x4, offset = 0x4, fixed_abs, tag = 'smem constant byte address 0x4 - core index']
  #allocation1 [shape = 'u32[144,128]{1,0:T(1,128)}', space=vmem, size = 0x12000, scoped, tag = 'internal scratch']
  %s0 = inlined_call_operand.vmem [shape: bf16[32,400], index: 0, kind: input, shape index: {}]
  %s1 = inlined_call_operand.vmem [shape: bf16[400,384], index: 1, kind: input, shape index: {}]
  %s2 = inlined_call_operand.vmem [shape: f32[32,384], index: 2, kind: output, shape index: {}]
  %s3 = sld [smem:[#allocation0]]
  $region18: #{conv_deconv_forward.14} parent=0
    _
  %s5 = ssub.s32 1, %s3
  %s6 = scalar_select 0, %s5, %s3
  // Predicated region
  $region2: #{conv_deconv_forward.14} parent=0 // pred_check
    _
  $region3: #{conv_deconv_forward.14} parent=0 // pred_check_branch
    %8 = sbr.rel (0) target = $region5
  $region4: #{conv_deconv_forward.14} parent=0 // pred_region
    _
  $region5: #{conv_deconv_forward.14} parent=0 // pred_fallthru
    _
  // Predicated region
  $region6: #{conv_deconv_forward.14} parent=0 // pred_check
    _
  $region7: #{conv_deconv_forward.14} parent=0 // pred_check_branch
    %10 = sbr.rel (0) target = $region9
  $region8: #{conv_deconv_forward.14} parent=0 // pred_region
    _
  $region9: #{conv_deconv_forward.14} parent=0 // pred_fallthru
    _
  %v12 = vld [vmem:[%s0] sm:$0xff]
  %v13 = vld [vmem:[%s0 + $0x8] sm:$0xff]
  %v14 = vld [vmem:[%s0 + $0x10] sm:$0xff]
  %v15 = vld [vmem:[%s0 + $0x18] sm:$0xff]
  %v16 = vld [vmem:[%s0 + $0x20] sm:$0xff]
  %v17 = vld [vmem:[%s0 + $0x28] sm:$0xff]
  %v18 = vld [vmem:[%s0 + $0x30] sm:$0xff]
  %v19 = vld [vmem:[%s0 + $0x38] sm:$0xff]
  %v20 = vld [vmem:[%s1] sm:$0xff]
  %v21 = vld [vmem:[%s1 + $0x8] sm:$0xf]
  %v22 = vld [vmem:[%s1 + $0xc] sm:$0xff]
  %v23 = vld [vmem:[%s1 + $0x14] sm:$0xf]
  %v24 = vld [vmem:[%s1 + $0x18] sm:$0xff]
  %v25 = vld [vmem:[%s1 + $0x20] sm:$0xf]
  %v26 = vld [vmem:[%s1 + $0x24] sm:$0xff]
  %v27 = vld [vmem:[%s1 + $0x2c] sm:$0xf]
  %v28 = vld [vmem:[%s1 + $0x30] sm:$0xff]
  %v29 = vld [vmem:[%s1 + $0x38] sm:$0xf]
  %v30 = vld [vmem:[%s1 + $0x3c] sm:$0xff]
  %v31 = vld [vmem:[%s1 + $0x44] sm:$0xf]
  %v32 = vld [vmem:[%s1 + $0x48] sm:$0xff]
  %v33 = vld [vmem:[%s1 + $0x50] sm:$0xf]
  %v34 = vld [vmem:[%s1 + $0x54] sm:$0xff]
  %v35 = vld [vmem:[%s1 + $0x5c] sm:$0xf]
  %v36 = vld [vmem:[%s1 + $0x60] sm:$0xff]
  %v37 = vld [vmem:[%s1 + $0x68] sm:$0xf]
  %v38 = vld [vmem:[%s1 + $0x6c] sm:$0xff]
  %v39 = vld [vmem:[%s1 + $0x74] sm:$0xf]
  %v40 = vld [vmem:[%s1 + $0x78] sm:$0xff]
  %v41 = vld [vmem:[%s1 + $0x80] sm:$0xf]
  %v42 = vld [vmem:[%s1 + $0x84] sm:$0xff]
  %v43 = vld [vmem:[%s1 + $0x8c] sm:$0xf]
  %v44 = vld [vmem:[%s1 + $0x90] sm:$0xff]
  %v45 = vld [vmem:[%s1 + $0x98] sm:$0xf]
  %v46 = vld [vmem:[%s1 + $0x9c] sm:$0xff]
  %v47 = vld [vmem:[%s1 + $0xa4] sm:$0xf]
  %v48 = vld [vmem:[%s1 + $0xa8] sm:$0xff]
  %v49 = vld [vmem:[%s1 + $0xb0] sm:$0xf]
  %v50 = vld [vmem:[%s1 + $0xb4] sm:$0xff]
  %v51 = vld [vmem:[%s1 + $0xbc] sm:$0xf]
  %v52 = vld [vmem:[%s1 + $0xc0] sm:$0xff]
  %v53 = vld [vmem:[%s1 + $0xc8] sm:$0xf]
  %v54 = vld [vmem:[%s1 + $0xcc] sm:$0xff]
  %v55 = vld [vmem:[%s1 + $0xd4] sm:$0xf]
  %v56 = vld [vmem:[%s1 + $0xd8] sm:$0xff]
  %v57 = vld [vmem:[%s1 + $0xe0] sm:$0xf]
  %v58 = vld [vmem:[%s1 + $0xe4] sm:$0xff]
  %v59 = vld [vmem:[%s1 + $0xec] sm:$0xf]
  %v60 = vld [vmem:[%s1 + $0xf0] sm:$0xff]
  %v61 = vld [vmem:[%s1 + $0xf8] sm:$0xf]
  %v62 = vld [vmem:[%s1 + $0xfc] sm:$0xff]
  %v63 = vld [vmem:[%s1 + $0x104] sm:$0xf]
  %v64 = vld [vmem:[%s1 + $0x108] sm:$0xff]
  %v65 = vld [vmem:[%s1 + $0x110] sm:$0xf]
  %v66 = vld [vmem:[%s1 + $0x114] sm:$0xff]
  %v67 = vld [vmem:[%s1 + $0x11c] sm:$0xf]
  %v68 = vld [vmem:[%s1 + $0x120] sm:$0xff]
  %v69 = vld [vmem:[%s1 + $0x128] sm:$0xf]
  %v70 = vld [vmem:[%s1 + $0x12c] sm:$0xff]
  %v71 = vld [vmem:[%s1 + $0x134] sm:$0xf]
  %v72 = vld [vmem:[%s1 + $0x138] sm:$0xff]
  %v73 = vld [vmem:[%s1 + $0x140] sm:$0xf]
  %v74 = vld [vmem:[%s1 + $0x144] sm:$0xff]
  %v75 = vld [vmem:[%s1 + $0x14c] sm:$0xf]
  %v76 = vld [vmem:[%s1 + $0x150] sm:$0xff]
  %v77 = vld [vmem:[%s1 + $0x158] sm:$0xf]
  %v78 = vld [vmem:[%s1 + $0x15c] sm:$0xff]
  %v79 = vld [vmem:[%s1 + $0x164] sm:$0xf]
  %v80 = vld [vmem:[%s1 + $0x168] sm:$0xff]
  %v81 = vld [vmem:[%s1 + $0x170] sm:$0xf]
  %v82 = vld [vmem:[%s1 + $0x174] sm:$0xff]
  %v83 = vld [vmem:[%s1 + $0x17c] sm:$0xf]
  %v84 = vld [vmem:[%s1 + $0x180] sm:$0xff]
  %v85 = vld [vmem:[%s1 + $0x188] sm:$0xf]
  %v86 = vld [vmem:[%s1 + $0x18c] sm:$0xff]
  %v87 = vld [vmem:[%s1 + $0x194] sm:$0xf]
  %v88 = vld [vmem:[%s1 + $0x198] sm:$0xff]
  %v89 = vld [vmem:[%s1 + $0x1a0] sm:$0xf]
  %v90 = vld [vmem:[%s1 + $0x1a4] sm:$0xff]
  %v91 = vld [vmem:[%s1 + $0x1ac] sm:$0xf]
  %v92 = vld [vmem:[%s1 + $0x1b0] sm:$0xff]
  %v93 = vld [vmem:[%s1 + $0x1b8] sm:$0xf]
  %v94 = vld [vmem:[%s1 + $0x1bc] sm:$0xff]
  %v95 = vld [vmem:[%s1 + $0x1c4] sm:$0xf]
  %v96 = vld [vmem:[%s1 + $0x1c8] sm:$0xff]
  %v97 = vld [vmem:[%s1 + $0x1d0] sm:$0xf]
  %v98 = vld [vmem:[%s1 + $0x1d4] sm:$0xff]
  %v99 = vld [vmem:[%s1 + $0x1dc] sm:$0xf]
  %v100 = vld [vmem:[%s1 + $0x1e0] sm:$0xff]
  %v101 = vld [vmem:[%s1 + $0x1e8] sm:$0xf]
  %v102 = vld [vmem:[%s1 + $0x1ec] sm:$0xff]
  %v103 = vld [vmem:[%s1 + $0x1f4] sm:$0xf]
  %v104 = vld [vmem:[%s1 + $0x1f8] sm:$0xff]
  %v105 = vld [vmem:[%s1 + $0x200] sm:$0xf]
  %v106 = vld [vmem:[%s1 + $0x204] sm:$0xff]
  %v107 = vld [vmem:[%s1 + $0x20c] sm:$0xf]
  %v108 = vld [vmem:[%s1 + $0x210] sm:$0xff]
  %v109 = vld [vmem:[%s1 + $0x218] sm:$0xf]
  %v110 = vld [vmem:[%s1 + $0x21c] sm:$0xff]
  %v111 = vld [vmem:[%s1 + $0x224] sm:$0xf]
  %v112 = vld [vmem:[%s1 + $0x228] sm:$0xff]
  %v113 = vld [vmem:[%s1 + $0x230] sm:$0xf]
  %v114 = vld [vmem:[%s1 + $0x234] sm:$0xff]
  %v115 = vld [vmem:[%s1 + $0x23c] sm:$0xf]
  %v116 = vld [vmem:[%s1 + $0x240] sm:$0xff]
  %v117 = vld [vmem:[%s1 + $0x248] sm:$0xf]
  %v118 = vld [vmem:[%s1 + $0x24c] sm:$0xff]
  %v119 = vld [vmem:[%s1 + $0x254] sm:$0xf]
  %v128 = vunpack.c.l.b16 %v12
  %v129 = vunpack.c.h.b16 %v12
  %v130 = vunpack.c.l.b16 %v13
  %v131 = vunpack.c.h.b16 %v13
  %v132 = vunpack.c.l.b16 %v14
  %v133 = vunpack.c.h.b16 %v14
  %v134 = vunpack.c.l.b16 %v15
  %v135 = vunpack.c.h.b16 %v15
  %v136 = vunpack.c.l.b16 %v16
  %v137 = vunpack.c.h.b16 %v16
  %v138 = vunpack.c.l.b16 %v17
  %v139 = vunpack.c.h.b16 %v17
  %v140 = vunpack.c.l.b16 %v18
  %v141 = vunpack.c.h.b16 %v18
  %v142 = vunpack.c.l.b16 %v19
  %v143 = vunpack.c.h.b16 %v19
  %v144 = vpack.c.b16 %v132, %v128
  %v145 = vpack.c.b16 %v133, %v129
  %v146 = vpack.c.b16 %v134, %v130
  %v147 = vpack.c.b16 %v135, %v131
  %v148 = vpack.c.b16 %v140, %v136
  %v149 = vpack.c.b16 %v141, %v137
  %v150 = vpack.c.b16 %v142, %v138
  %v151 = vpack.c.b16 %v143, %v139
  %v258 = vunpack.c.l.b16 %v20
  %v259 = vunpack.c.h.b16 %v20
  %v260 = vunpack.c.l.b16 %v21
  %v261 = vunpack.c.l.b16 %v22
  %v262 = vunpack.c.h.b16 %v22
  %v263 = vunpack.c.l.b16 %v23
  %v264 = vunpack.c.l.b16 %v24
  %v265 = vunpack.c.h.b16 %v24
  %v266 = vunpack.c.l.b16 %v25
  %v267 = vunpack.c.l.b16 %v26
  %v268 = vunpack.c.h.b16 %v26
  %v269 = vunpack.c.l.b16 %v27
  %v270 = vunpack.c.l.b16 %v28
  %v271 = vunpack.c.h.b16 %v28
  %v272 = vunpack.c.l.b16 %v29
  %v273 = vunpack.c.l.b16 %v30
  %v274 = vunpack.c.h.b16 %v30
  %v275 = vunpack.c.l.b16 %v31
  %v276 = vunpack.c.l.b16 %v32
  %v277 = vunpack.c.h.b16 %v32
  %v278 = vunpack.c.l.b16 %v33
  %v279 = vunpack.c.l.b16 %v34
  %v280 = vunpack.c.h.b16 %v34
  %v281 = vunpack.c.l.b16 %v35
  %v282 = vunpack.c.l.b16 %v36
  %v283 = vunpack.c.h.b16 %v36
  %v284 = vunpack.c.l.b16 %v37
  %v285 = vunpack.c.l.b16 %v38
  %v286 = vunpack.c.h.b16 %v38
  %v287 = vunpack.c.l.b16 %v39
  %v288 = vunpack.c.l.b16 %v40
  %v289 = vunpack.c.h.b16 %v40
  %v290 = vunpack.c.l.b16 %v41
  %v291 = vunpack.c.l.b16 %v42
  %v292 = vunpack.c.h.b16 %v42
  %v293 = vunpack.c.l.b16 %v43
  %v294 = vunpack.c.l.b16 %v44
  %v295 = vunpack.c.h.b16 %v44
  %v296 = vunpack.c.l.b16 %v45
  %v297 = vunpack.c.l.b16 %v46
  %v298 = vunpack.c.h.b16 %v46
  %v299 = vunpack.c.l.b16 %v47
  %v300 = vunpack.c.l.b16 %v48
  %v301 = vunpack.c.h.b16 %v48
  %v302 = vunpack.c.l.b16 %v49
  %v303 = vunpack.c.l.b16 %v50
  %v304 = vunpack.c.h.b16 %v50
  %v305 = vunpack.c.l.b16 %v51
  %v306 = vunpack.c.l.b16 %v52
  %v307 = vunpack.c.h.b16 %v52
  %v308 = vunpack.c.l.b16 %v53
  %v309 = vunpack.c.l.b16 %v54
  %v310 = vunpack.c.h.b16 %v54
  %v311 = vunpack.c.l.b16 %v55
  %v312 = vunpack.c.l.b16 %v56
  %v313 = vunpack.c.h.b16 %v56
  %v314 = vunpack.c.l.b16 %v57
  %v315 = vunpack.c.l.b16 %v58
  %v316 = vunpack.c.h.b16 %v58
  %v317 = vunpack.c.l.b16 %v59
  %v318 = vunpack.c.l.b16 %v60
  %v319 = vunpack.c.h.b16 %v60
  %v320 = vunpack.c.l.b16 %v61
  %v321 = vunpack.c.l.b16 %v62
  %v322 = vunpack.c.h.b16 %v62
  %v323 = vunpack.c.l.b16 %v63
  %v324 = vunpack.c.l.b16 %v64
  %v325 = vunpack.c.h.b16 %v64
  %v326 = vunpack.c.l.b16 %v65
  %v327 = vunpack.c.l.b16 %v66
  %v328 = vunpack.c.h.b16 %v66
  %v329 = vunpack.c.l.b16 %v67
  %v330 = vunpack.c.l.b16 %v68
  %v331 = vunpack.c.h.b16 %v68
  %v332 = vunpack.c.l.b16 %v69
  %v333 = vunpack.c.l.b16 %v70
  %v334 = vunpack.c.h.b16 %v70
  %v335 = vunpack.c.l.b16 %v71
  %v336 = vunpack.c.l.b16 %v72
  %v337 = vunpack.c.h.b16 %v72
  %v338 = vunpack.c.l.b16 %v73
  %v339 = vunpack.c.l.b16 %v74
  %v340 = vunpack.c.h.b16 %v74
  %v341 = vunpack.c.l.b16 %v75
  %v342 = vunpack.c.l.b16 %v76
  %v343 = vunpack.c.h.b16 %v76
  %v344 = vunpack.c.l.b16 %v77
  %v345 = vunpack.c.l.b16 %v78
  %v346 = vunpack.c.h.b16 %v78
  %v347 = vunpack.c.l.b16 %v79
  %v348 = vunpack.c.l.b16 %v80
  %v349 = vunpack.c.h.b16 %v80
  %v350 = vunpack.c.l.b16 %v81
  %v351 = vunpack.c.l.b16 %v82
  %v352 = vunpack.c.h.b16 %v82
  %v353 = vunpack.c.l.b16 %v83
  %v354 = vunpack.c.l.b16 %v84
  %v355 = vunpack.c.h.b16 %v84
  %v356 = vunpack.c.l.b16 %v85
  %v357 = vunpack.c.l.b16 %v86
  %v358 = vunpack.c.h.b16 %v86
  %v359 = vunpack.c.l.b16 %v87
  %v360 = vunpack.c.l.b16 %v88
  %v361 = vunpack.c.h.b16 %v88
  %v362 = vunpack.c.l.b16 %v89
  %v363 = vunpack.c.l.b16 %v90
  %v364 = vunpack.c.h.b16 %v90
  %v365 = vunpack.c.l.b16 %v91
  %v366 = vunpack.c.l.b16 %v92
  %v367 = vunpack.c.h.b16 %v92
  %v368 = vunpack.c.l.b16 %v93
  %v369 = vunpack.c.l.b16 %v94
  %v370 = vunpack.c.h.b16 %v94
  %v371 = vunpack.c.l.b16 %v95
  %v372 = vunpack.c.l.b16 %v96
  %v373 = vunpack.c.h.b16 %v96
  %v374 = vunpack.c.l.b16 %v97
  %v375 = vunpack.c.l.b16 %v98
  %v376 = vunpack.c.h.b16 %v98
  %v377 = vunpack.c.l.b16 %v99
  %v378 = vunpack.c.l.b16 %v100
  %v379 = vunpack.c.h.b16 %v100
  %v380 = vunpack.c.l.b16 %v101
  %v381 = vunpack.c.l.b16 %v102
  %v382 = vunpack.c.h.b16 %v102
  %v383 = vunpack.c.l.b16 %v103
  %v384 = vunpack.c.l.b16 %v104
  %v385 = vunpack.c.h.b16 %v104
  %v386 = vunpack.c.l.b16 %v105
  %v387 = vunpack.c.l.b16 %v106
  %v388 = vunpack.c.h.b16 %v106
  %v389 = vunpack.c.l.b16 %v107
  %v390 = vunpack.c.l.b16 %v108
  %v391 = vunpack.c.h.b16 %v108
  %v392 = vunpack.c.l.b16 %v109
  %v393 = vunpack.c.l.b16 %v110
  %v394 = vunpack.c.h.b16 %v110
  %v395 = vunpack.c.l.b16 %v111
  %v396 = vunpack.c.l.b16 %v112
  %v397 = vunpack.c.h.b16 %v112
  %v398 = vunpack.c.l.b16 %v113
  %v399 = vunpack.c.l.b16 %v114
  %v400 = vunpack.c.h.b16 %v114
  %v401 = vunpack.c.l.b16 %v115
  %v402 = vunpack.c.l.b16 %v116
  %v403 = vunpack.c.h.b16 %v116
  %v404 = vunpack.c.l.b16 %v117
  %v405 = vunpack.c.l.b16 %v118
  %v406 = vunpack.c.h.b16 %v118
  %v407 = vunpack.c.l.b16 %v119
  %v408 = vpack.c.b16 %v261, %v258
  %v409 = vpack.c.b16 %v262, %v259
  %v410 = vpack.c.b16 %v263, %v260
  %v411 = vpack.c.b16 %v267, %v264
  %v412 = vpack.c.b16 %v268, %v265
  %v413 = vpack.c.b16 %v269, %v266
  %v414 = vpack.c.b16 %v273, %v270
  %v415 = vpack.c.b16 %v274, %v271
  %v416 = vpack.c.b16 %v275, %v272
  %v417 = vpack.c.b16 %v279, %v276
  %v418 = vpack.c.b16 %v280, %v277
  %v419 = vpack.c.b16 %v281, %v278
  %v420 = vpack.c.b16 %v285, %v282
  %v421 = vpack.c.b16 %v286, %v283
  %v422 = vpack.c.b16 %v287, %v284
  %v423 = vpack.c.b16 %v291, %v288
  %v424 = vpack.c.b16 %v292, %v289
  %v425 = vpack.c.b16 %v293, %v290
  %v426 = vpack.c.b16 %v297, %v294
  %v427 = vpack.c.b16 %v298, %v295
  %v428 = vpack.c.b16 %v299, %v296
  %v429 = vpack.c.b16 %v303, %v300
  %v430 = vpack.c.b16 %v304, %v301
  %v431 = vpack.c.b16 %v305, %v302
  %v432 = vpack.c.b16 %v309, %v306
  %v433 = vpack.c.b16 %v310, %v307
  %v434 = vpack.c.b16 %v311, %v308
  %v435 = vpack.c.b16 %v315, %v312
  %v436 = vpack.c.b16 %v316, %v313
  %v437 = vpack.c.b16 %v317, %v314
  %v438 = vpack.c.b16 %v321, %v318
  %v439 = vpack.c.b16 %v322, %v319
  %v440 = vpack.c.b16 %v323, %v320
  %v441 = vpack.c.b16 %v327, %v324
  %v442 = vpack.c.b16 %v328, %v325
  %v443 = vpack.c.b16 %v329, %v326
  %v444 = vpack.c.b16 %v333, %v330
  %v445 = vpack.c.b16 %v334, %v331
  %v446 = vpack.c.b16 %v335, %v332
  %v447 = vpack.c.b16 %v339, %v336
  %v448 = vpack.c.b16 %v340, %v337
  %v449 = vpack.c.b16 %v341, %v338
  %v450 = vpack.c.b16 %v345, %v342
  %v451 = vpack.c.b16 %v346, %v343
  %v452 = vpack.c.b16 %v347, %v344
  %v453 = vpack.c.b16 %v351, %v348
  %v454 = vpack.c.b16 %v352, %v349
  %v455 = vpack.c.b16 %v353, %v350
  %v456 = vpack.c.b16 %v357, %v354
  %v457 = vpack.c.b16 %v358, %v355
  %v458 = vpack.c.b16 %v359, %v356
  %v459 = vpack.c.b16 %v363, %v360
  %v460 = vpack.c.b16 %v364, %v361
  %v461 = vpack.c.b16 %v365, %v362
  %v462 = vpack.c.b16 %v369, %v366
  %v463 = vpack.c.b16 %v370, %v367
  %v464 = vpack.c.b16 %v371, %v368
  %v465 = vpack.c.b16 %v375, %v372
  %v466 = vpack.c.b16 %v376, %v373
  %v467 = vpack.c.b16 %v377, %v374
  %v468 = vpack.c.b16 %v381, %v378
  %v469 = vpack.c.b16 %v382, %v379
  %v470 = vpack.c.b16 %v383, %v380
  %v471 = vpack.c.b16 %v387, %v384
  %v472 = vpack.c.b16 %v388, %v385
  %v473 = vpack.c.b16 %v389, %v386
  %v474 = vpack.c.b16 %v393, %v390
  %v475 = vpack.c.b16 %v394, %v391
  %v476 = vpack.c.b16 %v395, %v392
  %v477 = vpack.c.b16 %v399, %v396
  %v478 = vpack.c.b16 %v400, %v397
  %v479 = vpack.c.b16 %v401, %v398
  %v480 = vpack.c.b16 %v405, %v402
  %v481 = vpack.c.b16 %v406, %v403
  %v482 = vpack.c.b16 %v407, %v404
  %vm558 = vcmask 130048
  %v560 = vsel %vm558, %v147, 0
  %v563 = vsel %vm558, %v151, 0
  %565 = vmatprep.subr.bf16.mxu0 %v409
  %566 = vmatpush1.bf16.msra.mxu0 %v408
  %567 = vmatprep.subr.bf16.mxu0 %v412
  %568 = vmatpush1.bf16.msra.mxu0 %v411
  %569 = vmatprep.subr.bf16.mxu0 %v415
  %570 = vmatpush1.bf16.msra.mxu0 %v414
  %571 = vmatprep.subr.bf16.mxu0 %v418
  %572 = vmatpush1.bf16.msra.mxu0 %v417
  %573 = vmatprep.subr.bf16.mxu0 %v421
  %574 = vmatpush1.bf16.msra.mxu0 %v420
  %575 = vmatprep.subr.bf16.mxu0 %v424
  %576 = vmatpush1.bf16.msra.mxu0 %v423
  %577 = vmatprep.subr.bf16.mxu0 %v427
  %578 = vmatpush1.bf16.msra.mxu0 %v426
  %579 = vmatprep.subr.bf16.mxu0 %v430
  %580 = vmatpush1.bf16.msra.mxu0 %v429
  %581 = vmatprep.subr.bf16.mxu0 %v433
  %582 = vmatpush1.bf16.msra.mxu0 %v432
  %583 = vmatprep.subr.bf16.mxu0 %v436
  %584 = vmatpush1.bf16.msra.mxu0 %v435
  %585 = vmatprep.subr.bf16.mxu0 %v439
  %586 = vmatpush1.bf16.msra.mxu0 %v438
  %587 = vmatprep.subr.bf16.mxu0 %v442
  %588 = vmatpush1.bf16.msra.mxu0 %v441
  %589 = vmatprep.subr.bf16.mxu0 %v445
  %590 = vmatpush1.bf16.msra.mxu0 %v444
  %591 = vmatprep.subr.bf16.mxu0 %v448
  %592 = vmatpush1.bf16.msra.mxu0 %v447
  %593 = vmatprep.subr.bf16.mxu0 %v451
  %594 = vmatpush1.bf16.msra.mxu0 %v450
  %595 = vmatprep.subr.bf16.mxu0 %v454
  %596 = vmatpush1.bf16.msra.mxu0 %v453
  %597 = vmatprep.mubr.bf16.mxu0 %v145
  %598 = vmatmul.mubr.bf16.gmra.mrb[0].mxu0 %v144
  %v599 = vpop.f32.mrb[0].mxu0
  %v600 = vadd.f32 0.0, %v599
  %v601 = vpop.f32.mrb[0].mxu0
  %v602 = vadd.f32 0.0, %v601
  %v603 = vpop.f32.mrb[0].mxu0
  %v604 = vadd.f32 0.0, %v603
  %v605 = vpop.f32.mrb[0].mxu0
  %v606 = vadd.f32 0.0, %v605
  %607 = vmatprep.mubr.bf16.mxu0 %v149
  %608 = vmatmul.mubr.bf16.gmra.mrb[0].mxu0 %v148
  %v609 = vpop.f32.mrb[0].mxu0
  %v610 = vadd.f32 0.0, %v609
  %v611 = vpop.f32.mrb[0].mxu0
  %v612 = vadd.f32 0.0, %v611
  %v613 = vpop.f32.mrb[0].mxu0
  %v614 = vadd.f32 0.0, %v613
  %v615 = vpop.f32.mrb[0].mxu0
  %v616 = vadd.f32 0.0, %v615
  %617 = vdwg.mxu0
  %618 = vmatprep.subr.bf16.mxu0 %v457
  %619 = vmatpush1.bf16.msra.mxu0 %v456
  %620 = vmatprep.subr.bf16.mxu0 %v460
  %621 = vmatpush1.bf16.msra.mxu0 %v459
  %622 = vmatprep.subr.bf16.mxu0 %v463
  %623 = vmatpush1.bf16.msra.mxu0 %v462
  %624 = vmatprep.subr.bf16.mxu0 %v466
  %625 = vmatpush1.bf16.msra.mxu0 %v465
  %626 = vmatprep.subr.bf16.mxu0 %v469
  %627 = vmatpush1.bf16.msra.mxu0 %v468
  %628 = vmatprep.subr.bf16.mxu0 %v472
  %629 = vmatpush1.bf16.msra.mxu0 %v471
  %630 = vmatprep.subr.bf16.mxu0 %v475
  %631 = vmatpush1.bf16.msra.mxu0 %v474
  %632 = vmatprep.subr.bf16.mxu0 %v478
  %633 = vmatpush1.bf16.msra.mxu0 %v477
  %634 = vmatprep.subr.bf16.mxu0 %v481
  %635 = vmatpush1.bf16.msra.mxu0 %v480
  %636 = vmatprep.subr.bf16.mxu0 0
  %637 = vmatpush1.bf16.msra.mxu0 0
  %638 = vmatprep.subr.bf16.mxu0 0
  %639 = vmatpush1.bf16.msra.mxu0 0
  %640 = vmatprep.subr.bf16.mxu0 0
  %641 = vmatpush1.bf16.msra.mxu0 0
  %642 = vmatprep.subr.bf16.mxu0 0
  %643 = vmatpush1.bf16.msra.mxu0 0
  %644 = vmatprep.subr.bf16.mxu0 0
  %645 = vmatpush1.bf16.msra.mxu0 0
  %646 = vmatprep.subr.bf16.mxu0 0
  %647 = vmatpush1.bf16.msra.mxu0 0
  %648 = vmatprep.subr.bf16.mxu0 0
  %649 = vmatpush1.bf16.msra.mxu0 0
  %650 = vmatprep.mubr.bf16.mxu0 %v560
  %651 = vmatmul.mubr.bf16.gmra.mrb[0].mxu0 %v146
  %v652 = vpop.f32.mrb[0].mxu0
  %v653 = vadd.f32 %v600, %v652
  %v654 = vpop.f32.mrb[0].mxu0
  %v655 = vadd.f32 %v602, %v654
  %v656 = vpop.f32.mrb[0].mxu0
  %v657 = vadd.f32 %v604, %v656
  %v658 = vpop.f32.mrb[0].mxu0
  %v659 = vadd.f32 %v606, %v658
  %660 = vmatprep.mubr.bf16.mxu0 %v563
  %661 = vmatmul.mubr.bf16.gmra.mrb[0].mxu0 %v150
  %v662 = vpop.f32.mrb[0].mxu0
  %v663 = vadd.f32 %v610, %v662
  %v664 = vpop.f32.mrb[0].mxu0
  %v665 = vadd.f32 %v612, %v664
  %v666 = vpop.f32.mrb[0].mxu0
  %v667 = vadd.f32 %v614, %v666
  %v668 = vpop.f32.mrb[0].mxu0
  %v669 = vadd.f32 %v616, %v668
  %670 = vdwg.mxu0
  %671 = vmatprep.subr.bf16.mxu0 0
  %672 = vmatpush1.bf16.msra.mxu0 %v410
  %673 = vmatprep.subr.bf16.mxu0 0
  %674 = vmatpush1.bf16.msra.mxu0 %v413
  %675 = vmatprep.subr.bf16.mxu0 0
  %676 = vmatpush1.bf16.msra.mxu0 %v416
  %677 = vmatprep.subr.bf16.mxu0 0
  %678 = vmatpush1.bf16.msra.mxu0 %v419
  %679 = vmatprep.subr.bf16.mxu0 0
  %680 = vmatpush1.bf16.msra.mxu0 %v422
  %681 = vmatprep.subr.bf16.mxu0 0
  %682 = vmatpush1.bf16.msra.mxu0 %v425
  %683 = vmatprep.subr.bf16.mxu0 0
  %684 = vmatpush1.bf16.msra.mxu0 %v428
  %685 = vmatprep.subr.bf16.mxu0 0
  %686 = vmatpush1.bf16.msra.mxu0 %v431
  %687 = vmatprep.subr.bf16.mxu0 0
  %688 = vmatpush1.bf16.msra.mxu0 %v434
  %689 = vmatprep.subr.bf16.mxu0 0
  %690 = vmatpush1.bf16.msra.mxu0 %v437
  %691 = vmatprep.subr.bf16.mxu0 0
  %692 = vmatpush1.bf16.msra.mxu0 %v440
  %693 = vmatprep.subr.bf16.mxu0 0
  %694 = vmatpush1.bf16.msra.mxu0 %v443
  %695 = vmatprep.subr.bf16.mxu0 0
  %696 = vmatpush1.bf16.msra.mxu0 %v446
  %697 = vmatprep.subr.bf16.mxu0 0
  %698 = vmatpush1.bf16.msra.mxu0 %v449
  %699 = vmatprep.subr.bf16.mxu0 0
  %700 = vmatpush1.bf16.msra.mxu0 %v452
  %701 = vmatprep.subr.bf16.mxu0 0
  %702 = vmatpush1.bf16.msra.mxu0 %v455
  %703 = vmatprep.mubr.bf16.mxu0 %v145
  %704 = vmatmul.mubr.bf16.gmra.mrb[0].mxu0 %v144
  %v705 = vpop.f32.mrb[0].mxu0
  %v706 = vadd.f32 0.0, %v705
  %v707 = vpop.f32.mrb[0].mxu0
  %v708 = vpop.f32.mrb[0].mxu0
  %v709 = vadd.f32 0.0, %v708
  %v710 = vpop.f32.mrb[0].mxu0
  %711 = vmatprep.mubr.bf16.mxu0 %v149
  %712 = vmatmul.mubr.bf16.gmra.mrb[0].mxu0 %v148
  %v713 = vpop.f32.mrb[0].mxu0
  %v714 = vadd.f32 0.0, %v713
  %v715 = vpop.f32.mrb[0].mxu0
  %v716 = vpop.f32.mrb[0].mxu0
  %v717 = vadd.f32 0.0, %v716
  %v718 = vpop.f32.mrb[0].mxu0
  %719 = vdwg.mxu0
  %720 = vmatprep.subr.bf16.mxu0 0
  %721 = vmatpush1.bf16.msra.mxu0 %v458
  %722 = vmatprep.subr.bf16.mxu0 0
  %723 = vmatpush1.bf16.msra.mxu0 %v461
  %724 = vmatprep.subr.bf16.mxu0 0
  %725 = vmatpush1.bf16.msra.mxu0 %v464
  %726 = vmatprep.subr.bf16.mxu0 0
  %727 = vmatpush1.bf16.msra.mxu0 %v467
  %728 = vmatprep.subr.bf16.mxu0 0
  %729 = vmatpush1.bf16.msra.mxu0 %v470
  %730 = vmatprep.subr.bf16.mxu0 0
  %731 = vmatpush1.bf16.msra.mxu0 %v473
  %732 = vmatprep.subr.bf16.mxu0 0
  %733 = vmatpush1.bf16.msra.mxu0 %v476
  %734 = vmatprep.subr.bf16.mxu0 0
  %735 = vmatpush1.bf16.msra.mxu0 %v479
  %736 = vmatprep.subr.bf16.mxu0 0
  %737 = vmatpush1.bf16.msra.mxu0 %v482
  %738 = vmatprep.subr.bf16.mxu0 0
  %739 = vmatpush1.bf16.msra.mxu0 0
  %740 = vmatprep.subr.bf16.mxu0 0
  %741 = vmatpush1.bf16.msra.mxu0 0
  %742 = vmatprep.subr.bf16.mxu0 0
  %743 = vmatpush1.bf16.msra.mxu0 0
  %744 = vmatprep.subr.bf16.mxu0 0
  %745 = vmatpush1.bf16.msra.mxu0 0
  %746 = vmatprep.subr.bf16.mxu0 0
  %747 = vmatpush1.bf16.msra.mxu0 0
  %748 = vmatprep.subr.bf16.mxu0 0
  %749 = vmatpush1.bf16.msra.mxu0 0
  %750 = vmatprep.subr.bf16.mxu0 0
  %751 = vmatpush1.bf16.msra.mxu0 0
  %752 = vmatprep.mubr.bf16.mxu0 %v560
  %753 = vmatmul.mubr.bf16.gmra.mrb[0].mxu0 %v146
  %v754 = vpop.f32.mrb[0].mxu0
  %v755 = vadd.f32 %v706, %v754
  %v756 = vpop.f32.mrb[0].mxu0
  %v757 = vpop.f32.mrb[0].mxu0
  %v758 = vadd.f32 %v709, %v757
  %v759 = vpop.f32.mrb[0].mxu0
  %760 = vmatprep.mubr.bf16.mxu0 %v563
  %761 = vmatmul.mubr.bf16.gmra.mrb[0].mxu0 %v150
  %v762 = vpop.f32.mrb[0].mxu0
  %v763 = vadd.f32 %v714, %v762
  %v764 = vpop.f32.mrb[0].mxu0
  %v765 = vpop.f32.mrb[0].mxu0
  %v766 = vadd.f32 %v717, %v765
  %v767 = vpop.f32.mrb[0].mxu0
  %768 = vdwg.mxu0
  %v769 = vlaneseq
  %v770 = vand.u32 %v769, 127
  %v771 = vadd.s32 %v770, 128
  %v772 = vadd.s32 %v770, 256
  %vm773 = vcmp.lt.s32.totalorder %v770, 288
  %vm774 = vcmp.lt.s32.totalorder %v771, 288
  %vm775 = vcmp.lt.s32.totalorder %v772, 288
  %v776 = vsel %vm773, %v653, 0.0
  %v777 = vsel %vm774, %v655, 0.0
  %v778 = vsel %vm775, %v755, 0.0
  %v779 = vsel %vm773, %v657, 0.0
  %v780 = vsel %vm774, %v659, 0.0
  %v781 = vsel %vm775, %v758, 0.0
  %v782 = vsel %vm773, %v663, 0.0
  %v783 = vsel %vm774, %v665, 0.0
  %v784 = vsel %vm775, %v763, 0.0
  %v785 = vsel %vm773, %v667, 0.0
  %v786 = vsel %vm774, %v669, 0.0
  %v787 = vsel %vm775, %v766, 0.0
  %v788 = vadd.f32 %v776, %v777
  %v789 = vadd.f32 %v788, %v778
  %790 = vadd.xlane.f32.xlu0 %v789
  %v791 = vpop.xlane.xlu0 %790
  %v792 = vadd.f32 %v779, %v780
  %v793 = vadd.f32 %v792, %v781
  %794 = vadd.xlane.f32.xlu0 %v793
  %v795 = vpop.xlane.xlu0 %794
  %v796 = vadd.f32 %v782, %v783
  %v797 = vadd.f32 %v796, %v784
  %798 = vadd.xlane.f32.xlu0 %v797
  %v799 = vpop.xlane.xlu0 %798
  %v800 = vadd.f32 %v785, %v786
  %v801 = vadd.f32 %v800, %v787
  %802 = vadd.xlane.f32.xlu0 %v801
  %v803 = vpop.xlane.xlu0 %802
  %v804 = vmul.f32 %v791, 0.0034722222
  %v805 = vmul.f32 %v795, 0.0034722222
  %v806 = vmul.f32 %v799, 0.0034722222
  %v807 = vmul.f32 %v803, 0.0034722222
  %v808 = vmul.f32 %v776, %v776
  %v809 = vmul.f32 %v777, %v777
  %v810 = vmul.f32 %v778, %v778
  %v811 = vmul.f32 %v779, %v779
  %v812 = vmul.f32 %v780, %v780
  %v813 = vmul.f32 %v781, %v781
  %v814 = vmul.f32 %v782, %v782
  %v815 = vmul.f32 %v783, %v783
  %v816 = vmul.f32 %v784, %v784
  %v817 = vmul.f32 %v785, %v785
  %v818 = vmul.f32 %v786, %v786
  %v819 = vmul.f32 %v787, %v787
  %v820 = vadd.f32 %v808, %v809
  %v821 = vadd.f32 %v820, %v810
  %822 = vadd.xlane.f32.xlu0 %v821
  %v823 = vpop.xlane.xlu0 %822
  %v824 = vadd.f32 %v811, %v812
  %v825 = vadd.f32 %v824, %v813
  %826 = vadd.xlane.f32.xlu0 %v825
  %v827 = vpop.xlane.xlu0 %826
  %v828 = vadd.f32 %v814, %v815
  %v829 = vadd.f32 %v828, %v816
  %830 = vadd.xlane.f32.xlu0 %v829
  %v831 = vpop.xlane.xlu0 %830
  %v832 = vadd.f32 %v817, %v818
  %v833 = vadd.f32 %v832, %v819
  %834 = vadd.xlane.f32.xlu0 %v833
  %v835 = vpop.xlane.xlu0 %834
  %v836 = vmul.f32 %v823, 0.0034722222
  %v837 = vmul.f32 %v827, 0.0034722222
  %v838 = vmul.f32 %v831, 0.0034722222
  %v839 = vmul.f32 %v835, 0.0034722222
  %v840 = vmul.f32 %v804, %v804
  %v841 = vmul.f32 %v805, %v805
  %v842 = vmul.f32 %v806, %v806
  %v843 = vmul.f32 %v807, %v807
  %v844 = vsub.f32 %v836, %v840
  %v845 = vsub.f32 %v837, %v841
  %v846 = vsub.f32 %v838, %v842
  %v847 = vsub.f32 %v839, %v843
  %v848 = vmax.f32 %v844, 0.0
  %v849 = vmax.f32 %v845, 0.0
  %v850 = vmax.f32 %v846, 0.0
  %v851 = vmax.f32 %v847, 0.0
  %v852 = vsub.f32 %v653, %v804
  %v853 = vsub.f32 %v655, %v804
  %v854 = vsub.f32 %v755, %v804
  %v855 = vsub.f32 %v657, %v805
  %v856 = vsub.f32 %v659, %v805
  %v857 = vsub.f32 %v758, %v805
  %v858 = vsub.f32 %v663, %v806
  %v859 = vsub.f32 %v665, %v806
  %v860 = vsub.f32 %v763, %v806
  %v861 = vsub.f32 %v667, %v807
  %v862 = vsub.f32 %v669, %v807
  %v863 = vsub.f32 %v766, %v807
  %v864 = vadd.f32 %v848, 1e-05
  %v865 = vadd.f32 %v849, 1e-05
  %v866 = vadd.f32 %v850, 1e-05
  %v867 = vadd.f32 %v851, 1e-05
  %v868 = vrsqrt.pop %v864
  %v869 = vrsqrt.pop %v865
  %v870 = vrsqrt.pop %v866
  %v871 = vrsqrt.pop %v867
  %v872 = vmul.f32 %v852, %v868
  %v873 = vmul.f32 %v853, %v868
  %v874 = vmul.f32 %v854, %v868
  %v875 = vmul.f32 %v855, %v869
  %v876 = vmul.f32 %v856, %v869
  %v877 = vmul.f32 %v857, %v869
  %v878 = vmul.f32 %v858, %v870
  %v879 = vmul.f32 %v859, %v870
  %v880 = vmul.f32 %v860, %v870
  %v881 = vmul.f32 %v861, %v871
  %v882 = vmul.f32 %v862, %v871
  %v883 = vmul.f32 %v863, %v871
  %v884 = vmul.f32 %v872, 0.01
  %v885 = vmul.f32 %v873, 0.01
  %v886 = vmul.f32 %v874, 0.01
  %v887 = vmul.f32 %v875, 0.01
  %v888 = vmul.f32 %v876, 0.01
  %v889 = vmul.f32 %v877, 0.01
  %v890 = vmul.f32 %v878, 0.01
  %v891 = vmul.f32 %v879, 0.01
  %v892 = vmul.f32 %v880, 0.01
  %v893 = vmul.f32 %v881, 0.01
  %v894 = vmul.f32 %v882, 0.01
  %v895 = vmul.f32 %v883, 0.01
  %v896 = vmax.f32 %v872, %v884
  %v897 = vmax.f32 %v873, %v885
  %v898 = vmax.f32 %v874, %v886
  %v899 = vmax.f32 %v875, %v887
  %v900 = vmax.f32 %v876, %v888
  %v901 = vmax.f32 %v877, %v889
  %v902 = vmax.f32 %v878, %v890
  %v903 = vmax.f32 %v879, %v891
  %v904 = vmax.f32 %v880, %v892
  %v905 = vmax.f32 %v881, %v893
  %v906 = vmax.f32 %v882, %v894
  %v907 = vmax.f32 %v883, %v895
  %908 = vst [vmem:[%s2] sm:$0xff] %v896
  %909 = vst [vmem:[%s2 + $0x8] sm:$0xff] %v897
  %910 = vst [vmem:[%s2 + $0x10] sm:$0xff] %v898
  %911 = vst [vmem:[%s2 + $0x18] sm:$0xff] %v899
  %912 = vst [vmem:[%s2 + $0x20] sm:$0xff] %v900
  %913 = vst [vmem:[%s2 + $0x28] sm:$0xff] %v901
  %914 = vst [vmem:[%s2 + $0x30] sm:$0xff] %v902
  %915 = vst [vmem:[%s2 + $0x38] sm:$0xff] %v903
  %916 = vst [vmem:[%s2 + $0x40] sm:$0xff] %v904
  %917 = vst [vmem:[%s2 + $0x48] sm:$0xff] %v905
  %918 = vst [vmem:[%s2 + $0x50] sm:$0xff] %v906
  %919 = vst [vmem:[%s2 + $0x58] sm:$0xff] %v907
  // Predicated region
  $region10: #{conv_deconv_forward.14} parent=0 // pred_check
    _
  $region11: #{conv_deconv_forward.14} parent=0 // pred_check_branch
    %921 = sbr.rel (0) target = $region13
  $region12: #{conv_deconv_forward.14} parent=0 // pred_region
    _
  $region13: #{conv_deconv_forward.14} parent=0 // pred_fallthru
    _
  // Predicated region
  $region14: #{conv_deconv_forward.14} parent=0 // pred_check
    _
  $region15: #{conv_deconv_forward.14} parent=0 // pred_check_branch
    %923 = sbr.rel (0) target = $region17
  $region16: #{conv_deconv_forward.14} parent=0 // pred_region
    _
  $region17: #{conv_deconv_forward.14} parent=0 // pred_fallthru
    _

// kernel: conv_deconv_forward.15
$region0: #{conv_deconv_forward.15}
  #allocation0 [shape = 'u32[]', space=smem, size = 0x4, offset = 0x4, fixed_abs, tag = 'smem constant byte address 0x4 - core index']
  #allocation1 [shape = 'u32[144,128]{1,0:T(1,128)}', space=vmem, size = 0x12000, scoped, tag = 'internal scratch']
  %s0 = inlined_call_operand.vmem [shape: bf16[32,288], index: 0, kind: input, shape index: {}]
  %s1 = inlined_call_operand.vmem [shape: bf16[288,256], index: 1, kind: input, shape index: {}]
  %s2 = inlined_call_operand.vmem [shape: f32[32,256], index: 2, kind: output, shape index: {}]
  %s3 = sld [smem:[#allocation0]]
  $region18: #{conv_deconv_forward.15} parent=0
    _
  %s5 = ssub.s32 1, %s3
  %s6 = scalar_select 0, %s5, %s3
  // Predicated region
  $region2: #{conv_deconv_forward.15} parent=0 // pred_check
    _
  $region3: #{conv_deconv_forward.15} parent=0 // pred_check_branch
    %8 = sbr.rel (0) target = $region5
  $region4: #{conv_deconv_forward.15} parent=0 // pred_region
    _
  $region5: #{conv_deconv_forward.15} parent=0 // pred_fallthru
    _
  // Predicated region
  $region6: #{conv_deconv_forward.15} parent=0 // pred_check
    _
  $region7: #{conv_deconv_forward.15} parent=0 // pred_check_branch
    %10 = sbr.rel (0) target = $region9
  $region8: #{conv_deconv_forward.15} parent=0 // pred_region
    _
  $region9: #{conv_deconv_forward.15} parent=0 // pred_fallthru
    _
  %v12 = vld [vmem:[%s0] sm:$0xff]
  %v13 = vld [vmem:[%s0 + $0x8] sm:$0xf]
  %v14 = vld [vmem:[%s0 + $0xc] sm:$0xff]
  %v15 = vld [vmem:[%s0 + $0x14] sm:$0xf]
  %v16 = vld [vmem:[%s0 + $0x18] sm:$0xff]
  %v17 = vld [vmem:[%s0 + $0x20] sm:$0xf]
  %v18 = vld [vmem:[%s0 + $0x24] sm:$0xff]
  %v19 = vld [vmem:[%s0 + $0x2c] sm:$0xf]
  %v20 = vld [vmem:[%s1] sm:$0xff]
  %v21 = vld [vmem:[%s1 + $0x8] sm:$0xff]
  %v22 = vld [vmem:[%s1 + $0x10] sm:$0xff]
  %v23 = vld [vmem:[%s1 + $0x18] sm:$0xff]
  %v24 = vld [vmem:[%s1 + $0x20] sm:$0xff]
  %v25 = vld [vmem:[%s1 + $0x28] sm:$0xff]
  %v26 = vld [vmem:[%s1 + $0x30] sm:$0xff]
  %v27 = vld [vmem:[%s1 + $0x38] sm:$0xff]
  %v28 = vld [vmem:[%s1 + $0x40] sm:$0xff]
  %v29 = vld [vmem:[%s1 + $0x48] sm:$0xff]
  %v30 = vld [vmem:[%s1 + $0x50] sm:$0xff]
  %v31 = vld [vmem:[%s1 + $0x58] sm:$0xff]
  %v32 = vld [vmem:[%s1 + $0x60] sm:$0xff]
  %v33 = vld [vmem:[%s1 + $0x68] sm:$0xff]
  %v34 = vld [vmem:[%s1 + $0x70] sm:$0xff]
  %v35 = vld [vmem:[%s1 + $0x78] sm:$0xff]
  %v36 = vld [vmem:[%s1 + $0x80] sm:$0xff]
  %v37 = vld [vmem:[%s1 + $0x88] sm:$0xff]
  %v38 = vld [vmem:[%s1 + $0x90] sm:$0xff]
  %v39 = vld [vmem:[%s1 + $0x98] sm:$0xff]
  %v40 = vld [vmem:[%s1 + $0xa0] sm:$0xff]
  %v41 = vld [vmem:[%s1 + $0xa8] sm:$0xff]
  %v42 = vld [vmem:[%s1 + $0xb0] sm:$0xff]
  %v43 = vld [vmem:[%s1 + $0xb8] sm:$0xff]
  %v44 = vld [vmem:[%s1 + $0xc0] sm:$0xff]
  %v45 = vld [vmem:[%s1 + $0xc8] sm:$0xff]
  %v46 = vld [vmem:[%s1 + $0xd0] sm:$0xff]
  %v47 = vld [vmem:[%s1 + $0xd8] sm:$0xff]
  %v48 = vld [vmem:[%s1 + $0xe0] sm:$0xff]
  %v49 = vld [vmem:[%s1 + $0xe8] sm:$0xff]
  %v50 = vld [vmem:[%s1 + $0xf0] sm:$0xff]
  %v51 = vld [vmem:[%s1 + $0xf8] sm:$0xff]
  %v52 = vld [vmem:[%s1 + $0x100] sm:$0xff]
  %v53 = vld [vmem:[%s1 + $0x108] sm:$0xff]
  %v54 = vld [vmem:[%s1 + $0x110] sm:$0xff]
  %v55 = vld [vmem:[%s1 + $0x118] sm:$0xff]
  %v64 = vunpack.c.l.b16 %v12
  %v65 = vunpack.c.h.b16 %v12
  %v66 = vunpack.c.l.b16 %v13
  %v67 = vunpack.c.l.b16 %v14
  %v68 = vunpack.c.h.b16 %v14
  %v69 = vunpack.c.l.b16 %v15
  %v70 = vunpack.c.l.b16 %v16
  %v71 = vunpack.c.h.b16 %v16
  %v72 = vunpack.c.l.b16 %v17
  %v73 = vunpack.c.l.b16 %v18
  %v74 = vunpack.c.h.b16 %v18
  %v75 = vunpack.c.l.b16 %v19
  %v76 = vpack.c.b16 %v67, %v64
  %v77 = vpack.c.b16 %v68, %v65
  %v78 = vpack.c.b16 %v69, %v66
  %v79 = vpack.c.b16 %v73, %v70
  %v80 = vpack.c.b16 %v74, %v71
  %v81 = vpack.c.b16 %v75, %v72
  %v122 = vunpack.c.l.b16 %v20
  %v123 = vunpack.c.h.b16 %v20
  %v124 = vunpack.c.l.b16 %v21
  %v125 = vunpack.c.h.b16 %v21
  %v126 = vunpack.c.l.b16 %v22
  %v127 = vunpack.c.h.b16 %v22
  %v128 = vunpack.c.l.b16 %v23
  %v129 = vunpack.c.h.b16 %v23
  %v130 = vunpack.c.l.b16 %v24
  %v131 = vunpack.c.h.b16 %v24
  %v132 = vunpack.c.l.b16 %v25
  %v133 = vunpack.c.h.b16 %v25
  %v134 = vunpack.c.l.b16 %v26
  %v135 = vunpack.c.h.b16 %v26
  %v136 = vunpack.c.l.b16 %v27
  %v137 = vunpack.c.h.b16 %v27
  %v138 = vunpack.c.l.b16 %v28
  %v139 = vunpack.c.h.b16 %v28
  %v140 = vunpack.c.l.b16 %v29
  %v141 = vunpack.c.h.b16 %v29
  %v142 = vunpack.c.l.b16 %v30
  %v143 = vunpack.c.h.b16 %v30
  %v144 = vunpack.c.l.b16 %v31
  %v145 = vunpack.c.h.b16 %v31
  %v146 = vunpack.c.l.b16 %v32
  %v147 = vunpack.c.h.b16 %v32
  %v148 = vunpack.c.l.b16 %v33
  %v149 = vunpack.c.h.b16 %v33
  %v150 = vunpack.c.l.b16 %v34
  %v151 = vunpack.c.h.b16 %v34
  %v152 = vunpack.c.l.b16 %v35
  %v153 = vunpack.c.h.b16 %v35
  %v154 = vunpack.c.l.b16 %v36
  %v155 = vunpack.c.h.b16 %v36
  %v156 = vunpack.c.l.b16 %v37
  %v157 = vunpack.c.h.b16 %v37
  %v158 = vunpack.c.l.b16 %v38
  %v159 = vunpack.c.h.b16 %v38
  %v160 = vunpack.c.l.b16 %v39
  %v161 = vunpack.c.h.b16 %v39
  %v162 = vunpack.c.l.b16 %v40
  %v163 = vunpack.c.h.b16 %v40
  %v164 = vunpack.c.l.b16 %v41
  %v165 = vunpack.c.h.b16 %v41
  %v166 = vunpack.c.l.b16 %v42
  %v167 = vunpack.c.h.b16 %v42
  %v168 = vunpack.c.l.b16 %v43
  %v169 = vunpack.c.h.b16 %v43
  %v170 = vunpack.c.l.b16 %v44
  %v171 = vunpack.c.h.b16 %v44
  %v172 = vunpack.c.l.b16 %v45
  %v173 = vunpack.c.h.b16 %v45
  %v174 = vunpack.c.l.b16 %v46
  %v175 = vunpack.c.h.b16 %v46
  %v176 = vunpack.c.l.b16 %v47
  %v177 = vunpack.c.h.b16 %v47
  %v178 = vunpack.c.l.b16 %v48
  %v179 = vunpack.c.h.b16 %v48
  %v180 = vunpack.c.l.b16 %v49
  %v181 = vunpack.c.h.b16 %v49
  %v182 = vunpack.c.l.b16 %v50
  %v183 = vunpack.c.h.b16 %v50
  %v184 = vunpack.c.l.b16 %v51
  %v185 = vunpack.c.h.b16 %v51
  %v186 = vunpack.c.l.b16 %v52
  %v187 = vunpack.c.h.b16 %v52
  %v188 = vunpack.c.l.b16 %v53
  %v189 = vunpack.c.h.b16 %v53
  %v190 = vunpack.c.l.b16 %v54
  %v191 = vunpack.c.h.b16 %v54
  %v192 = vunpack.c.l.b16 %v55
  %v193 = vunpack.c.h.b16 %v55
  %v194 = vpack.c.b16 %v124, %v122
  %v195 = vpack.c.b16 %v125, %v123
  %v196 = vpack.c.b16 %v128, %v126
  %v197 = vpack.c.b16 %v129, %v127
  %v198 = vpack.c.b16 %v132, %v130
  %v199 = vpack.c.b16 %v133, %v131
  %v200 = vpack.c.b16 %v136, %v134
  %v201 = vpack.c.b16 %v137, %v135
  %v202 = vpack.c.b16 %v140, %v138
  %v203 = vpack.c.b16 %v141, %v139
  %v204 = vpack.c.b16 %v144, %v142
  %v205 = vpack.c.b16 %v145, %v143
  %v206 = vpack.c.b16 %v148, %v146
  %v207 = vpack.c.b16 %v149, %v147
  %v208 = vpack.c.b16 %v152, %v150
  %v209 = vpack.c.b16 %v153, %v151
  %v210 = vpack.c.b16 %v156, %v154
  %v211 = vpack.c.b16 %v157, %v155
  %v212 = vpack.c.b16 %v160, %v158
  %v213 = vpack.c.b16 %v161, %v159
  %v214 = vpack.c.b16 %v164, %v162
  %v215 = vpack.c.b16 %v165, %v163
  %v216 = vpack.c.b16 %v168, %v166
  %v217 = vpack.c.b16 %v169, %v167
  %v218 = vpack.c.b16 %v172, %v170
  %v219 = vpack.c.b16 %v173, %v171
  %v220 = vpack.c.b16 %v176, %v174
  %v221 = vpack.c.b16 %v177, %v175
  %v222 = vpack.c.b16 %v180, %v178
  %v223 = vpack.c.b16 %v181, %v179
  %v224 = vpack.c.b16 %v184, %v182
  %v225 = vpack.c.b16 %v185, %v183
  %v226 = vpack.c.b16 %v188, %v186
  %v227 = vpack.c.b16 %v189, %v187
  %v228 = vpack.c.b16 %v192, %v190
  %v229 = vpack.c.b16 %v193, %v191
  %vm266 = vcmask 261120
  %v268 = vsel %vm266, %v78, 0
  %v271 = vsel %vm266, %v81, 0
  %273 = vmatprep.subr.bf16.mxu0 %v195
  %274 = vmatpush1.bf16.msra.mxu0 %v194
  %275 = vmatprep.subr.bf16.mxu0 %v197
  %276 = vmatpush1.bf16.msra.mxu0 %v196
  %277 = vmatprep.subr.bf16.mxu0 %v199
  %278 = vmatpush1.bf16.msra.mxu0 %v198
  %279 = vmatprep.subr.bf16.mxu0 %v201
  %280 = vmatpush1.bf16.msra.mxu0 %v200
  %281 = vmatprep.subr.bf16.mxu0 %v203
  %282 = vmatpush1.bf16.msra.mxu0 %v202
  %283 = vmatprep.subr.bf16.mxu0 %v205
  %284 = vmatpush1.bf16.msra.mxu0 %v204
  %285 = vmatprep.subr.bf16.mxu0 %v207
  %286 = vmatpush1.bf16.msra.mxu0 %v206
  %287 = vmatprep.subr.bf16.mxu0 %v209
  %288 = vmatpush1.bf16.msra.mxu0 %v208
  %289 = vmatprep.subr.bf16.mxu0 %v211
  %290 = vmatpush1.bf16.msra.mxu0 %v210
  %291 = vmatprep.subr.bf16.mxu0 %v213
  %292 = vmatpush1.bf16.msra.mxu0 %v212
  %293 = vmatprep.subr.bf16.mxu0 %v215
  %294 = vmatpush1.bf16.msra.mxu0 %v214
  %295 = vmatprep.subr.bf16.mxu0 %v217
  %296 = vmatpush1.bf16.msra.mxu0 %v216
  %297 = vmatprep.subr.bf16.mxu0 %v219
  %298 = vmatpush1.bf16.msra.mxu0 %v218
  %299 = vmatprep.subr.bf16.mxu0 %v221
  %300 = vmatpush1.bf16.msra.mxu0 %v220
  %301 = vmatprep.subr.bf16.mxu0 %v223
  %302 = vmatpush1.bf16.msra.mxu0 %v222
  %303 = vmatprep.subr.bf16.mxu0 %v225
  %304 = vmatpush1.bf16.msra.mxu0 %v224
  %305 = vmatprep.mubr.bf16.mxu0 %v77
  %306 = vmatmul.mubr.bf16.gmra.mrb[0].mxu0 %v76
  %v307 = vpop.f32.mrb[0].mxu0
  %v308 = vadd.f32 0.0, %v307
  %v309 = vpop.f32.mrb[0].mxu0
  %v310 = vadd.f32 0.0, %v309
  %v311 = vpop.f32.mrb[0].mxu0
  %v312 = vadd.f32 0.0, %v311
  %v313 = vpop.f32.mrb[0].mxu0
  %v314 = vadd.f32 0.0, %v313
  %315 = vmatprep.mubr.bf16.mxu0 %v80
  %316 = vmatmul.mubr.bf16.gmra.mrb[0].mxu0 %v79
  %v317 = vpop.f32.mrb[0].mxu0
  %v318 = vadd.f32 0.0, %v317
  %v319 = vpop.f32.mrb[0].mxu0
  %v320 = vadd.f32 0.0, %v319
  %v321 = vpop.f32.mrb[0].mxu0
  %v322 = vadd.f32 0.0, %v321
  %v323 = vpop.f32.mrb[0].mxu0
  %v324 = vadd.f32 0.0, %v323
  %325 = vdwg.mxu0
  %326 = vmatprep.subr.bf16.mxu0 %v227
  %327 = vmatpush1.bf16.msra.mxu0 %v226
  %328 = vmatprep.subr.bf16.mxu0 %v229
  %329 = vmatpush1.bf16.msra.mxu0 %v228
  %330 = vmatprep.subr.bf16.mxu0 0
  %331 = vmatpush1.bf16.msra.mxu0 0
  %332 = vmatprep.subr.bf16.mxu0 0
  %333 = vmatpush1.bf16.msra.mxu0 0
  %334 = vmatprep.subr.bf16.mxu0 0
  %335 = vmatpush1.bf16.msra.mxu0 0
  %336 = vmatprep.subr.bf16.mxu0 0
  %337 = vmatpush1.bf16.msra.mxu0 0
  %338 = vmatprep.subr.bf16.mxu0 0
  %339 = vmatpush1.bf16.msra.mxu0 0
  %340 = vmatprep.subr.bf16.mxu0 0
  %341 = vmatpush1.bf16.msra.mxu0 0
  %342 = vmatprep.subr.bf16.mxu0 0
  %343 = vmatpush1.bf16.msra.mxu0 0
  %344 = vmatprep.subr.bf16.mxu0 0
  %345 = vmatpush1.bf16.msra.mxu0 0
  %346 = vmatprep.subr.bf16.mxu0 0
  %347 = vmatpush1.bf16.msra.mxu0 0
  %348 = vmatprep.subr.bf16.mxu0 0
  %349 = vmatpush1.bf16.msra.mxu0 0
  %350 = vmatprep.subr.bf16.mxu0 0
  %351 = vmatpush1.bf16.msra.mxu0 0
  %352 = vmatprep.subr.bf16.mxu0 0
  %353 = vmatpush1.bf16.msra.mxu0 0
  %354 = vmatprep.subr.bf16.mxu0 0
  %355 = vmatpush1.bf16.msra.mxu0 0
  %356 = vmatprep.subr.bf16.mxu0 0
  %357 = vmatpush1.bf16.msra.mxu0 0
  %358 = vmatprep.mubr.bf16.mxu0 0
  %359 = vmatmul.mubr.bf16.gmra.mrb[0].mxu0 %v268
  %v360 = vpop.f32.mrb[0].mxu0
  %v361 = vadd.f32 %v308, %v360
  %v362 = vpop.f32.mrb[0].mxu0
  %v363 = vadd.f32 %v310, %v362
  %v364 = vpop.f32.mrb[0].mxu0
  %v365 = vadd.f32 %v312, %v364
  %v366 = vpop.f32.mrb[0].mxu0
  %v367 = vadd.f32 %v314, %v366
  %368 = vmatprep.mubr.bf16.mxu0 0
  %369 = vmatmul.mubr.bf16.gmra.mrb[0].mxu0 %v271
  %v370 = vpop.f32.mrb[0].mxu0
  %v371 = vadd.f32 %v318, %v370
  %v372 = vpop.f32.mrb[0].mxu0
  %v373 = vadd.f32 %v320, %v372
  %v374 = vpop.f32.mrb[0].mxu0
  %v375 = vadd.f32 %v322, %v374
  %v376 = vpop.f32.mrb[0].mxu0
  %v377 = vadd.f32 %v324, %v376
  %378 = vdwg.mxu0
  %v379 = vlaneseq
  %v380 = vand.u32 %v379, 127
  %v381 = vadd.s32 %v380, 128
  %vm382 = vcmp.lt.s32.totalorder %v380, 200
  %vm383 = vcmp.lt.s32.totalorder %v381, 200
  %v384 = vsel %vm382, %v361, 0.0
  %v385 = vsel %vm383, %v363, 0.0
  %v386 = vsel %vm382, %v365, 0.0
  %v387 = vsel %vm383, %v367, 0.0
  %v388 = vsel %vm382, %v371, 0.0
  %v389 = vsel %vm383, %v373, 0.0
  %v390 = vsel %vm382, %v375, 0.0
  %v391 = vsel %vm383, %v377, 0.0
  %v392 = vadd.f32 %v384, %v385
  %393 = vadd.xlane.f32.xlu0 %v392
  %v394 = vpop.xlane.xlu0 %393
  %v395 = vadd.f32 %v386, %v387
  %396 = vadd.xlane.f32.xlu0 %v395
  %v397 = vpop.xlane.xlu0 %396
  %v398 = vadd.f32 %v388, %v389
  %399 = vadd.xlane.f32.xlu0 %v398
  %v400 = vpop.xlane.xlu0 %399
  %v401 = vadd.f32 %v390, %v391
  %402 = vadd.xlane.f32.xlu0 %v401
  %v403 = vpop.xlane.xlu0 %402
  %v404 = vmul.f32 %v394, 0.005
  %v405 = vmul.f32 %v397, 0.005
  %v406 = vmul.f32 %v400, 0.005
  %v407 = vmul.f32 %v403, 0.005
  %v408 = vmul.f32 %v384, %v384
  %v409 = vmul.f32 %v385, %v385
  %v410 = vmul.f32 %v386, %v386
  %v411 = vmul.f32 %v387, %v387
  %v412 = vmul.f32 %v388, %v388
  %v413 = vmul.f32 %v389, %v389
  %v414 = vmul.f32 %v390, %v390
  %v415 = vmul.f32 %v391, %v391
  %v416 = vadd.f32 %v408, %v409
  %417 = vadd.xlane.f32.xlu0 %v416
  %v418 = vpop.xlane.xlu0 %417
  %v419 = vadd.f32 %v410, %v411
  %420 = vadd.xlane.f32.xlu0 %v419
  %v421 = vpop.xlane.xlu0 %420
  %v422 = vadd.f32 %v412, %v413
  %423 = vadd.xlane.f32.xlu0 %v422
  %v424 = vpop.xlane.xlu0 %423
  %v425 = vadd.f32 %v414, %v415
  %426 = vadd.xlane.f32.xlu0 %v425
  %v427 = vpop.xlane.xlu0 %426
  %v428 = vmul.f32 %v418, 0.005
  %v429 = vmul.f32 %v421, 0.005
  %v430 = vmul.f32 %v424, 0.005
  %v431 = vmul.f32 %v427, 0.005
  %v432 = vmul.f32 %v404, %v404
  %v433 = vmul.f32 %v405, %v405
  %v434 = vmul.f32 %v406, %v406
  %v435 = vmul.f32 %v407, %v407
  %v436 = vsub.f32 %v428, %v432
  %v437 = vsub.f32 %v429, %v433
  %v438 = vsub.f32 %v430, %v434
  %v439 = vsub.f32 %v431, %v435
  %v440 = vmax.f32 %v436, 0.0
  %v441 = vmax.f32 %v437, 0.0
  %v442 = vmax.f32 %v438, 0.0
  %v443 = vmax.f32 %v439, 0.0
  %v444 = vsub.f32 %v361, %v404
  %v445 = vsub.f32 %v363, %v404
  %v446 = vsub.f32 %v365, %v405
  %v447 = vsub.f32 %v367, %v405
  %v448 = vsub.f32 %v371, %v406
  %v449 = vsub.f32 %v373, %v406
  %v450 = vsub.f32 %v375, %v407
  %v451 = vsub.f32 %v377, %v407
  %v452 = vadd.f32 %v440, 1e-05
  %v453 = vadd.f32 %v441, 1e-05
  %v454 = vadd.f32 %v442, 1e-05
  %v455 = vadd.f32 %v443, 1e-05
  %v456 = vrsqrt.pop %v452
  %v457 = vrsqrt.pop %v453
  %v458 = vrsqrt.pop %v454
  %v459 = vrsqrt.pop %v455
  %v460 = vmul.f32 %v444, %v456
  %v461 = vmul.f32 %v445, %v456
  %v462 = vmul.f32 %v446, %v457
  %v463 = vmul.f32 %v447, %v457
  %v464 = vmul.f32 %v448, %v458
  %v465 = vmul.f32 %v449, %v458
  %v466 = vmul.f32 %v450, %v459
  %v467 = vmul.f32 %v451, %v459
  %v468 = vmul.f32 %v460, 0.01
  %v469 = vmul.f32 %v461, 0.01
  %v470 = vmul.f32 %v462, 0.01
  %v471 = vmul.f32 %v463, 0.01
  %v472 = vmul.f32 %v464, 0.01
  %v473 = vmul.f32 %v465, 0.01
  %v474 = vmul.f32 %v466, 0.01
  %v475 = vmul.f32 %v467, 0.01
  %v476 = vmax.f32 %v460, %v468
  %v477 = vmax.f32 %v461, %v469
  %v478 = vmax.f32 %v462, %v470
  %v479 = vmax.f32 %v463, %v471
  %v480 = vmax.f32 %v464, %v472
  %v481 = vmax.f32 %v465, %v473
  %v482 = vmax.f32 %v466, %v474
  %v483 = vmax.f32 %v467, %v475
  %484 = vst [vmem:[%s2] sm:$0xff] %v476
  %485 = vst [vmem:[%s2 + $0x8] sm:$0xff] %v477
  %486 = vst [vmem:[%s2 + $0x10] sm:$0xff] %v478
  %487 = vst [vmem:[%s2 + $0x18] sm:$0xff] %v479
  %488 = vst [vmem:[%s2 + $0x20] sm:$0xff] %v480
  %489 = vst [vmem:[%s2 + $0x28] sm:$0xff] %v481
  %490 = vst [vmem:[%s2 + $0x30] sm:$0xff] %v482
  %491 = vst [vmem:[%s2 + $0x38] sm:$0xff] %v483
  // Predicated region
  $region10: #{conv_deconv_forward.15} parent=0 // pred_check
    _
  $region11: #{conv_deconv_forward.15} parent=0 // pred_check_branch
    %493 = sbr.rel (0) target = $region13
  $region12: #{conv_deconv_forward.15} parent=0 // pred_region
    _
  $region13: #{conv_deconv_forward.15} parent=0 // pred_fallthru
    _
  // Predicated region
  $region14: #{conv_deconv_forward.15} parent=0 // pred_check
    _
  $region15: #{conv_deconv_forward.15} parent=0 // pred_check_branch
    %495 = sbr.rel (0) target = $region17
  $region16: #{conv_deconv_forward.15} parent=0 // pred_region
    _
  $region17: #{conv_deconv_forward.15} parent=0 // pred_fallthru
    _

// kernel: conv_deconv_forward.16
$region0: #{conv_deconv_forward.16}
  #allocation0 [shape = 'u32[]', space=smem, size = 0x4, offset = 0x4, fixed_abs, tag = 'smem constant byte address 0x4 - core index']
  #allocation1 [shape = 'u32[144,128]{1,0:T(1,128)}', space=vmem, size = 0x12000, scoped, tag = 'internal scratch']
  %s0 = inlined_call_operand.vmem [shape: bf16[64,288], index: 0, kind: input, shape index: {}]
  %s1 = inlined_call_operand.vmem [shape: bf16[288,128], index: 1, kind: input, shape index: {}]
  %s2 = inlined_call_operand.vmem [shape: f32[64,128], index: 2, kind: output, shape index: {}]
  %s3 = sld [smem:[#allocation0]]
  $region18: #{conv_deconv_forward.16} parent=0
    _
  %s5 = ssub.s32 1, %s3
  %s6 = scalar_select 0, %s5, %s3
  // Predicated region
  $region2: #{conv_deconv_forward.16} parent=0 // pred_check
    _
  $region3: #{conv_deconv_forward.16} parent=0 // pred_check_branch
    %8 = sbr.rel (0) target = $region5
  $region4: #{conv_deconv_forward.16} parent=0 // pred_region
    _
  $region5: #{conv_deconv_forward.16} parent=0 // pred_fallthru
    _
  // Predicated region
  $region6: #{conv_deconv_forward.16} parent=0 // pred_check
    _
  $region7: #{conv_deconv_forward.16} parent=0 // pred_check_branch
    %10 = sbr.rel (0) target = $region9
  $region8: #{conv_deconv_forward.16} parent=0 // pred_region
    _
  $region9: #{conv_deconv_forward.16} parent=0 // pred_fallthru
    _
  %v12 = vld [vmem:[%s0] sm:$0xff]
  %v13 = vld [vmem:[%s0 + $0x8] sm:$0xf]
  %v14 = vld [vmem:[%s0 + $0xc] sm:$0xff]
  %v15 = vld [vmem:[%s0 + $0x14] sm:$0xf]
  %v16 = vld [vmem:[%s0 + $0x18] sm:$0xff]
  %v17 = vld [vmem:[%s0 + $0x20] sm:$0xf]
  %v18 = vld [vmem:[%s0 + $0x24] sm:$0xff]
  %v19 = vld [vmem:[%s0 + $0x2c] sm:$0xf]
  %v20 = vld [vmem:[%s0 + $0x30] sm:$0xff]
  %v21 = vld [vmem:[%s0 + $0x38] sm:$0xf]
  %v22 = vld [vmem:[%s0 + $0x3c] sm:$0xff]
  %v23 = vld [vmem:[%s0 + $0x44] sm:$0xf]
  %v24 = vld [vmem:[%s0 + $0x48] sm:$0xff]
  %v25 = vld [vmem:[%s0 + $0x50] sm:$0xf]
  %v26 = vld [vmem:[%s0 + $0x54] sm:$0xff]
  %v27 = vld [vmem:[%s0 + $0x5c] sm:$0xf]
  %v28 = vld [vmem:[%s1] sm:$0xf]
  %v29 = vld [vmem:[%s1 + $0x4] sm:$0xf]
  %v30 = vld [vmem:[%s1 + $0x8] sm:$0xf]
  %v31 = vld [vmem:[%s1 + $0xc] sm:$0xf]
  %v32 = vld [vmem:[%s1 + $0x10] sm:$0xf]
  %v33 = vld [vmem:[%s1 + $0x14] sm:$0xf]
  %v34 = vld [vmem:[%s1 + $0x18] sm:$0xf]
  %v35 = vld [vmem:[%s1 + $0x1c] sm:$0xf]
  %v36 = vld [vmem:[%s1 + $0x20] sm:$0xf]
  %v37 = vld [vmem:[%s1 + $0x24] sm:$0xf]
  %v38 = vld [vmem:[%s1 + $0x28] sm:$0xf]
  %v39 = vld [vmem:[%s1 + $0x2c] sm:$0xf]
  %v40 = vld [vmem:[%s1 + $0x30] sm:$0xf]
  %v41 = vld [vmem:[%s1 + $0x34] sm:$0xf]
  %v42 = vld [vmem:[%s1 + $0x38] sm:$0xf]
  %v43 = vld [vmem:[%s1 + $0x3c] sm:$0xf]
  %v44 = vld [vmem:[%s1 + $0x40] sm:$0xf]
  %v45 = vld [vmem:[%s1 + $0x44] sm:$0xf]
  %v46 = vld [vmem:[%s1 + $0x48] sm:$0xf]
  %v47 = vld [vmem:[%s1 + $0x4c] sm:$0xf]
  %v48 = vld [vmem:[%s1 + $0x50] sm:$0xf]
  %v49 = vld [vmem:[%s1 + $0x54] sm:$0xf]
  %v50 = vld [vmem:[%s1 + $0x58] sm:$0xf]
  %v51 = vld [vmem:[%s1 + $0x5c] sm:$0xf]
  %v52 = vld [vmem:[%s1 + $0x60] sm:$0xf]
  %v53 = vld [vmem:[%s1 + $0x64] sm:$0xf]
  %v54 = vld [vmem:[%s1 + $0x68] sm:$0xf]
  %v55 = vld [vmem:[%s1 + $0x6c] sm:$0xf]
  %v56 = vld [vmem:[%s1 + $0x70] sm:$0xf]
  %v57 = vld [vmem:[%s1 + $0x74] sm:$0xf]
  %v58 = vld [vmem:[%s1 + $0x78] sm:$0xf]
  %v59 = vld [vmem:[%s1 + $0x7c] sm:$0xf]
  %v60 = vld [vmem:[%s1 + $0x80] sm:$0xf]
  %v61 = vld [vmem:[%s1 + $0x84] sm:$0xf]
  %v62 = vld [vmem:[%s1 + $0x88] sm:$0xf]
  %v63 = vld [vmem:[%s1 + $0x8c] sm:$0xf]
  %v80 = vunpack.c.l.b16 %v12
  %v81 = vunpack.c.h.b16 %v12
  %v82 = vunpack.c.l.b16 %v13
  %v83 = vunpack.c.l.b16 %v14
  %v84 = vunpack.c.h.b16 %v14
  %v85 = vunpack.c.l.b16 %v15
  %v86 = vunpack.c.l.b16 %v16
  %v87 = vunpack.c.h.b16 %v16
  %v88 = vunpack.c.l.b16 %v17
  %v89 = vunpack.c.l.b16 %v18
  %v90 = vunpack.c.h.b16 %v18
  %v91 = vunpack.c.l.b16 %v19
  %v92 = vunpack.c.l.b16 %v20
  %v93 = vunpack.c.h.b16 %v20
  %v94 = vunpack.c.l.b16 %v21
  %v95 = vunpack.c.l.b16 %v22
  %v96 = vunpack.c.h.b16 %v22
  %v97 = vunpack.c.l.b16 %v23
  %v98 = vunpack.c.l.b16 %v24
  %v99 = vunpack.c.h.b16 %v24
  %v100 = vunpack.c.l.b16 %v25
  %v101 = vunpack.c.l.b16 %v26
  %v102 = vunpack.c.h.b16 %v26
  %v103 = vunpack.c.l.b16 %v27
  %v104 = vpack.c.b16 %v83, %v80
  %v105 = vpack.c.b16 %v84, %v81
  %v106 = vpack.c.b16 %v85, %v82
  %v107 = vpack.c.b16 %v89, %v86
  %v108 = vpack.c.b16 %v90, %v87
  %v109 = vpack.c.b16 %v91, %v88
  %v110 = vpack.c.b16 %v95, %v92
  %v111 = vpack.c.b16 %v96, %v93
  %v112 = vpack.c.b16 %v97, %v94
  %v113 = vpack.c.b16 %v101, %v98
  %v114 = vpack.c.b16 %v102, %v99
  %v115 = vpack.c.b16 %v103, %v100
  %v160 = vunpack.c.l.b16 %v28
  %v161 = vunpack.c.l.b16 %v29
  %v162 = vunpack.c.l.b16 %v30
  %v163 = vunpack.c.l.b16 %v31
  %v164 = vunpack.c.l.b16 %v32
  %v165 = vunpack.c.l.b16 %v33
  %v166 = vunpack.c.l.b16 %v34
  %v167 = vunpack.c.l.b16 %v35
  %v168 = vunpack.c.l.b16 %v36
  %v169 = vunpack.c.l.b16 %v37
  %v170 = vunpack.c.l.b16 %v38
  %v171 = vunpack.c.l.b16 %v39
  %v172 = vunpack.c.l.b16 %v40
  %v173 = vunpack.c.l.b16 %v41
  %v174 = vunpack.c.l.b16 %v42
  %v175 = vunpack.c.l.b16 %v43
  %v176 = vunpack.c.l.b16 %v44
  %v177 = vunpack.c.l.b16 %v45
  %v178 = vunpack.c.l.b16 %v46
  %v179 = vunpack.c.l.b16 %v47
  %v180 = vunpack.c.l.b16 %v48
  %v181 = vunpack.c.l.b16 %v49
  %v182 = vunpack.c.l.b16 %v50
  %v183 = vunpack.c.l.b16 %v51
  %v184 = vunpack.c.l.b16 %v52
  %v185 = vunpack.c.l.b16 %v53
  %v186 = vunpack.c.l.b16 %v54
  %v187 = vunpack.c.l.b16 %v55
  %v188 = vunpack.c.l.b16 %v56
  %v189 = vunpack.c.l.b16 %v57
  %v190 = vunpack.c.l.b16 %v58
  %v191 = vunpack.c.l.b16 %v59
  %v192 = vunpack.c.l.b16 %v60
  %v193 = vunpack.c.l.b16 %v61
  %v194 = vunpack.c.l.b16 %v62
  %v195 = vunpack.c.l.b16 %v63
  %v196 = vpack.c.b16 %v161, %v160
  %v197 = vpack.c.b16 %v163, %v162
  %v198 = vpack.c.b16 %v165, %v164
  %v199 = vpack.c.b16 %v167, %v166
  %v200 = vpack.c.b16 %v169, %v168
  %v201 = vpack.c.b16 %v171, %v170
  %v202 = vpack.c.b16 %v173, %v172
  %v203 = vpack.c.b16 %v175, %v174
  %v204 = vpack.c.b16 %v177, %v176
  %v205 = vpack.c.b16 %v179, %v178
  %v206 = vpack.c.b16 %v181, %v180
  %v207 = vpack.c.b16 %v183, %v182
  %v208 = vpack.c.b16 %v185, %v184
  %v209 = vpack.c.b16 %v187, %v186
  %v210 = vpack.c.b16 %v189, %v188
  %v211 = vpack.c.b16 %v191, %v190
  %v212 = vpack.c.b16 %v193, %v192
  %v213 = vpack.c.b16 %v195, %v194
  %vm232 = vcmask 261120
  %v234 = vsel %vm232, %v106, 0
  %v237 = vsel %vm232, %v109, 0
  %v240 = vsel %vm232, %v112, 0
  %v243 = vsel %vm232, %v115, 0
  %245 = vmatprep.subr.bf16.mxu0 0
  %246 = vmatpush1.bf16.msra.mxu0 %v196
  %247 = vmatprep.subr.bf16.mxu0 0
  %248 = vmatpush1.bf16.msra.mxu0 %v197
  %249 = vmatprep.subr.bf16.mxu0 0
  %250 = vmatpush1.bf16.msra.mxu0 %v198
  %251 = vmatprep.subr.bf16.mxu0 0
  %252 = vmatpush1.bf16.msra.mxu0 %v199
  %253 = vmatprep.subr.bf16.mxu0 0
  %254 = vmatpush1.bf16.msra.mxu0 %v200
  %255 = vmatprep.subr.bf16.mxu0 0
  %256 = vmatpush1.bf16.msra.mxu0 %v201
  %257 = vmatprep.subr.bf16.mxu0 0
  %258 = vmatpush1.bf16.msra.mxu0 %v202
  %259 = vmatprep.subr.bf16.mxu0 0
  %260 = vmatpush1.bf16.msra.mxu0 %v203
  %261 = vmatprep.subr.bf16.mxu0 0
  %262 = vmatpush1.bf16.msra.mxu0 %v204
  %263 = vmatprep.subr.bf16.mxu0 0
  %264 = vmatpush1.bf16.msra.mxu0 %v205
  %265 = vmatprep.subr.bf16.mxu0 0
  %266 = vmatpush1.bf16.msra.mxu0 %v206
  %267 = vmatprep.subr.bf16.mxu0 0
  %268 = vmatpush1.bf16.msra.mxu0 %v207
  %269 = vmatprep.subr.bf16.mxu0 0
  %270 = vmatpush1.bf16.msra.mxu0 %v208
  %271 = vmatprep.subr.bf16.mxu0 0
  %272 = vmatpush1.bf16.msra.mxu0 %v209
  %273 = vmatprep.subr.bf16.mxu0 0
  %274 = vmatpush1.bf16.msra.mxu0 %v210
  %275 = vmatprep.subr.bf16.mxu0 0
  %276 = vmatpush1.bf16.msra.mxu0 %v211
  %277 = vmatprep.mubr.bf16.mxu0 %v105
  %278 = vmatmul.mubr.bf16.gmra.mrb[0].mxu0 %v104
  %v279 = vpop.f32.mrb[0].mxu0
  %v280 = vadd.f32 0.0, %v279
  %v281 = vpop.f32.mrb[0].mxu0
  %v282 = vpop.f32.mrb[0].mxu0
  %v283 = vadd.f32 0.0, %v282
  %v284 = vpop.f32.mrb[0].mxu0
  %285 = vmatprep.mubr.bf16.mxu0 %v108
  %286 = vmatmul.mubr.bf16.gmra.mrb[0].mxu0 %v107
  %v287 = vpop.f32.mrb[0].mxu0
  %v288 = vadd.f32 0.0, %v287
  %v289 = vpop.f32.mrb[0].mxu0
  %v290 = vpop.f32.mrb[0].mxu0
  %v291 = vadd.f32 0.0, %v290
  %v292 = vpop.f32.mrb[0].mxu0
  %293 = vmatprep.mubr.bf16.mxu0 %v111
  %294 = vmatmul.mubr.bf16.gmra.mrb[0].mxu0 %v110
  %v295 = vpop.f32.mrb[0].mxu0
  %v296 = vadd.f32 0.0, %v295
  %v297 = vpop.f32.mrb[0].mxu0
  %v298 = vpop.f32.mrb[0].mxu0
  %v299 = vadd.f32 0.0, %v298
  %v300 = vpop.f32.mrb[0].mxu0
  %301 = vmatprep.mubr.bf16.mxu0 %v114
  %302 = vmatmul.mubr.bf16.gmra.mrb[0].mxu0 %v113
  %v303 = vpop.f32.mrb[0].mxu0
  %v304 = vadd.f32 0.0, %v303
  %v305 = vpop.f32.mrb[0].mxu0
  %v306 = vpop.f32.mrb[0].mxu0
  %v307 = vadd.f32 0.0, %v306
  %v308 = vpop.f32.mrb[0].mxu0
  %309 = vdwg.mxu0
  %310 = vmatprep.subr.bf16.mxu0 0
  %311 = vmatpush1.bf16.msra.mxu0 %v212
  %312 = vmatprep.subr.bf16.mxu0 0
  %313 = vmatpush1.bf16.msra.mxu0 %v213
  %314 = vmatprep.subr.bf16.mxu0 0
  %315 = vmatpush1.bf16.msra.mxu0 0
  %316 = vmatprep.subr.bf16.mxu0 0
  %317 = vmatpush1.bf16.msra.mxu0 0
  %318 = vmatprep.subr.bf16.mxu0 0
  %319 = vmatpush1.bf16.msra.mxu0 0
  %320 = vmatprep.subr.bf16.mxu0 0
  %321 = vmatpush1.bf16.msra.mxu0 0
  %322 = vmatprep.subr.bf16.mxu0 0
  %323 = vmatpush1.bf16.msra.mxu0 0
  %324 = vmatprep.subr.bf16.mxu0 0
  %325 = vmatpush1.bf16.msra.mxu0 0
  %326 = vmatprep.subr.bf16.mxu0 0
  %327 = vmatpush1.bf16.msra.mxu0 0
  %328 = vmatprep.subr.bf16.mxu0 0
  %329 = vmatpush1.bf16.msra.mxu0 0
  %330 = vmatprep.subr.bf16.mxu0 0
  %331 = vmatpush1.bf16.msra.mxu0 0
  %332 = vmatprep.subr.bf16.mxu0 0
  %333 = vmatpush1.bf16.msra.mxu0 0
  %334 = vmatprep.subr.bf16.mxu0 0
  %335 = vmatpush1.bf16.msra.mxu0 0
  %336 = vmatprep.subr.bf16.mxu0 0
  %337 = vmatpush1.bf16.msra.mxu0 0
  %338 = vmatprep.subr.bf16.mxu0 0
  %339 = vmatpush1.bf16.msra.mxu0 0
  %340 = vmatprep.subr.bf16.mxu0 0
  %341 = vmatpush1.bf16.msra.mxu0 0
  %342 = vmatprep.mubr.bf16.mxu0 0
  %343 = vmatmul.mubr.bf16.gmra.mrb[0].mxu0 %v234
  %v344 = vpop.f32.mrb[0].mxu0
  %v345 = vadd.f32 %v280, %v344
  %v346 = vpop.f32.mrb[0].mxu0
  %v347 = vpop.f32.mrb[0].mxu0
  %v348 = vadd.f32 %v283, %v347
  %v349 = vpop.f32.mrb[0].mxu0
  %350 = vmatprep.mubr.bf16.mxu0 0
  %351 = vmatmul.mubr.bf16.gmra.mrb[0].mxu0 %v237
  %v352 = vpop.f32.mrb[0].mxu0
  %v353 = vadd.f32 %v288, %v352
  %v354 = vpop.f32.mrb[0].mxu0
  %v355 = vpop.f32.mrb[0].mxu0
  %v356 = vadd.f32 %v291, %v355
  %v357 = vpop.f32.mrb[0].mxu0
  %358 = vmatprep.mubr.bf16.mxu0 0
  %359 = vmatmul.mubr.bf16.gmra.mrb[0].mxu0 %v240
  %v360 = vpop.f32.mrb[0].mxu0
  %v361 = vadd.f32 %v296, %v360
  %v362 = vpop.f32.mrb[0].mxu0
  %v363 = vpop.f32.mrb[0].mxu0
  %v364 = vadd.f32 %v299, %v363
  %v365 = vpop.f32.mrb[0].mxu0
  %366 = vmatprep.mubr.bf16.mxu0 0
  %367 = vmatmul.mubr.bf16.gmra.mrb[0].mxu0 %v243
  %v368 = vpop.f32.mrb[0].mxu0
  %v369 = vadd.f32 %v304, %v368
  %v370 = vpop.f32.mrb[0].mxu0
  %v371 = vpop.f32.mrb[0].mxu0
  %v372 = vadd.f32 %v307, %v371
  %v373 = vpop.f32.mrb[0].mxu0
  %374 = vdwg.mxu0
  %v375 = vlaneseq
  %v376 = vand.u32 %v375, 127
  %vm377 = vcmp.lt.s32.totalorder %v376, 18
  %v378 = vsel %vm377, %v345, 0.0
  %v379 = vsel %vm377, %v348, 0.0
  %v380 = vsel %vm377, %v353, 0.0
  %v381 = vsel %vm377, %v356, 0.0
  %v382 = vsel %vm377, %v361, 0.0
  %v383 = vsel %vm377, %v364, 0.0
  %v384 = vsel %vm377, %v369, 0.0
  %v385 = vsel %vm377, %v372, 0.0
  %386 = vadd.xlane.f32.xlu0 %v378
  %v387 = vpop.xlane.xlu0 %386
  %388 = vadd.xlane.f32.xlu0 %v379
  %v389 = vpop.xlane.xlu0 %388
  %390 = vadd.xlane.f32.xlu0 %v380
  %v391 = vpop.xlane.xlu0 %390
  %392 = vadd.xlane.f32.xlu0 %v381
  %v393 = vpop.xlane.xlu0 %392
  %394 = vadd.xlane.f32.xlu0 %v382
  %v395 = vpop.xlane.xlu0 %394
  %396 = vadd.xlane.f32.xlu0 %v383
  %v397 = vpop.xlane.xlu0 %396
  %398 = vadd.xlane.f32.xlu0 %v384
  %v399 = vpop.xlane.xlu0 %398
  %400 = vadd.xlane.f32.xlu0 %v385
  %v401 = vpop.xlane.xlu0 %400
  %v402 = vmul.f32 %v387, 0.055555556
  %v403 = vmul.f32 %v389, 0.055555556
  %v404 = vmul.f32 %v391, 0.055555556
  %v405 = vmul.f32 %v393, 0.055555556
  %v406 = vmul.f32 %v395, 0.055555556
  %v407 = vmul.f32 %v397, 0.055555556
  %v408 = vmul.f32 %v399, 0.055555556
  %v409 = vmul.f32 %v401, 0.055555556
  %v410 = vmul.f32 %v378, %v378
  %v411 = vmul.f32 %v379, %v379
  %v412 = vmul.f32 %v380, %v380
  %v413 = vmul.f32 %v381, %v381
  %v414 = vmul.f32 %v382, %v382
  %v415 = vmul.f32 %v383, %v383
  %v416 = vmul.f32 %v384, %v384
  %v417 = vmul.f32 %v385, %v385
  %418 = vadd.xlane.f32.xlu0 %v410
  %v419 = vpop.xlane.xlu0 %418
  %420 = vadd.xlane.f32.xlu0 %v411
  %v421 = vpop.xlane.xlu0 %420
  %422 = vadd.xlane.f32.xlu0 %v412
  %v423 = vpop.xlane.xlu0 %422
  %424 = vadd.xlane.f32.xlu0 %v413
  %v425 = vpop.xlane.xlu0 %424
  %426 = vadd.xlane.f32.xlu0 %v414
  %v427 = vpop.xlane.xlu0 %426
  %428 = vadd.xlane.f32.xlu0 %v415
  %v429 = vpop.xlane.xlu0 %428
  %430 = vadd.xlane.f32.xlu0 %v416
  %v431 = vpop.xlane.xlu0 %430
  %432 = vadd.xlane.f32.xlu0 %v417
  %v433 = vpop.xlane.xlu0 %432
  %v434 = vmul.f32 %v419, 0.055555556
  %v435 = vmul.f32 %v421, 0.055555556
  %v436 = vmul.f32 %v423, 0.055555556
  %v437 = vmul.f32 %v425, 0.055555556
  %v438 = vmul.f32 %v427, 0.055555556
  %v439 = vmul.f32 %v429, 0.055555556
  %v440 = vmul.f32 %v431, 0.055555556
  %v441 = vmul.f32 %v433, 0.055555556
  %v442 = vmul.f32 %v402, %v402
  %v443 = vmul.f32 %v403, %v403
  %v444 = vmul.f32 %v404, %v404
  %v445 = vmul.f32 %v405, %v405
  %v446 = vmul.f32 %v406, %v406
  %v447 = vmul.f32 %v407, %v407
  %v448 = vmul.f32 %v408, %v408
  %v449 = vmul.f32 %v409, %v409
  %v450 = vsub.f32 %v434, %v442
  %v451 = vsub.f32 %v435, %v443
  %v452 = vsub.f32 %v436, %v444
  %v453 = vsub.f32 %v437, %v445
  %v454 = vsub.f32 %v438, %v446
  %v455 = vsub.f32 %v439, %v447
  %v456 = vsub.f32 %v440, %v448
  %v457 = vsub.f32 %v441, %v449
  %v458 = vmax.f32 %v450, 0.0
  %v459 = vmax.f32 %v451, 0.0
  %v460 = vmax.f32 %v452, 0.0
  %v461 = vmax.f32 %v453, 0.0
  %v462 = vmax.f32 %v454, 0.0
  %v463 = vmax.f32 %v455, 0.0
  %v464 = vmax.f32 %v456, 0.0
  %v465 = vmax.f32 %v457, 0.0
  %v466 = vsub.f32 %v345, %v402
  %v467 = vsub.f32 %v348, %v403
  %v468 = vsub.f32 %v353, %v404
  %v469 = vsub.f32 %v356, %v405
  %v470 = vsub.f32 %v361, %v406
  %v471 = vsub.f32 %v364, %v407
  %v472 = vsub.f32 %v369, %v408
  %v473 = vsub.f32 %v372, %v409
  %v474 = vadd.f32 %v458, 1e-05
  %v475 = vadd.f32 %v459, 1e-05
  %v476 = vadd.f32 %v460, 1e-05
  %v477 = vadd.f32 %v461, 1e-05
  %v478 = vadd.f32 %v462, 1e-05
  %v479 = vadd.f32 %v463, 1e-05
  %v480 = vadd.f32 %v464, 1e-05
  %v481 = vadd.f32 %v465, 1e-05
  %v482 = vrsqrt.pop %v474
  %v483 = vrsqrt.pop %v475
  %v484 = vrsqrt.pop %v476
  %v485 = vrsqrt.pop %v477
  %v486 = vrsqrt.pop %v478
  %v487 = vrsqrt.pop %v479
  %v488 = vrsqrt.pop %v480
  %v489 = vrsqrt.pop %v481
  %v490 = vmul.f32 %v466, %v482
  %v491 = vmul.f32 %v467, %v483
  %v492 = vmul.f32 %v468, %v484
  %v493 = vmul.f32 %v469, %v485
  %v494 = vmul.f32 %v470, %v486
  %v495 = vmul.f32 %v471, %v487
  %v496 = vmul.f32 %v472, %v488
  %v497 = vmul.f32 %v473, %v489
  %v498 = vmul.f32 %v490, 0.01
  %v499 = vmul.f32 %v491, 0.01
  %v500 = vmul.f32 %v492, 0.01
  %v501 = vmul.f32 %v493, 0.01
  %v502 = vmul.f32 %v494, 0.01
  %v503 = vmul.f32 %v495, 0.01
  %v504 = vmul.f32 %v496, 0.01
  %v505 = vmul.f32 %v497, 0.01
  %v506 = vmax.f32 %v490, %v498
  %v507 = vmax.f32 %v491, %v499
  %v508 = vmax.f32 %v492, %v500
  %v509 = vmax.f32 %v493, %v501
  %v510 = vmax.f32 %v494, %v502
  %v511 = vmax.f32 %v495, %v503
  %v512 = vmax.f32 %v496, %v504
  %v513 = vmax.f32 %v497, %v505
  %514 = vst [vmem:[%s2] sm:$0xff] %v506
  %515 = vst [vmem:[%s2 + $0x8] sm:$0xff] %v507
  %516 = vst [vmem:[%s2 + $0x10] sm:$0xff] %v508
  %517 = vst [vmem:[%s2 + $0x18] sm:$0xff] %v509
  %518 = vst [vmem:[%s2 + $0x20] sm:$0xff] %v510
  %519 = vst [vmem:[%s2 + $0x28] sm:$0xff] %v511
  %520 = vst [vmem:[%s2 + $0x30] sm:$0xff] %v512
  %521 = vst [vmem:[%s2 + $0x38] sm:$0xff] %v513
  // Predicated region
  $region10: #{conv_deconv_forward.16} parent=0 // pred_check
    _
  $region11: #{conv_deconv_forward.16} parent=0 // pred_check_branch
    %523 = sbr.rel (0) target = $region13
  $region12: #{conv_deconv_forward.16} parent=0 // pred_region
    _
  $region13: #{conv_deconv_forward.16} parent=0 // pred_fallthru
    _
  // Predicated region
  $region14: #{conv_deconv_forward.16} parent=0 // pred_check
    _
  $region15: #{conv_deconv_forward.16} parent=0 // pred_check_branch
    %525 = sbr.rel (0) target = $region17
  $region16: #{conv_deconv_forward.16} parent=0 // pred_region
    _
  $region17: #{conv_deconv_forward.16} parent=0 // pred_fallthru
    _

// kernel: conv_deconv_forward.17
$region0: #{conv_deconv_forward.17}
  #allocation0 [shape = 'u32[]', space=smem, size = 0x4, offset = 0x4, fixed_abs, tag = 'smem constant byte address 0x4 - core index']
  #allocation1 [shape = 'u32[144,128]{1,0:T(1,128)}', space=vmem, size = 0x12000, scoped, tag = 'internal scratch']
  %s0 = inlined_call_operand.vmem [shape: bf16[64,576], index: 0, kind: input, shape index: {}]
  %s1 = inlined_call_operand.vmem [shape: bf16[576,128], index: 1, kind: input, shape index: {}]
  %s2 = inlined_call_operand.vmem [shape: f32[64,128], index: 2, kind: output, shape index: {}]
  %s3 = sld [smem:[#allocation0]]
  $region18: #{conv_deconv_forward.17} parent=0
    _
  %s5 = ssub.s32 1, %s3
  %s6 = scalar_select 0, %s5, %s3
  // Predicated region
  $region2: #{conv_deconv_forward.17} parent=0 // pred_check
    _
  $region3: #{conv_deconv_forward.17} parent=0 // pred_check_branch
    %8 = sbr.rel (0) target = $region5
  $region4: #{conv_deconv_forward.17} parent=0 // pred_region
    _
  $region5: #{conv_deconv_forward.17} parent=0 // pred_fallthru
    _
  // Predicated region
  $region6: #{conv_deconv_forward.17} parent=0 // pred_check
    _
  $region7: #{conv_deconv_forward.17} parent=0 // pred_check_branch
    %10 = sbr.rel (0) target = $region9
  $region8: #{conv_deconv_forward.17} parent=0 // pred_region
    _
  $region9: #{conv_deconv_forward.17} parent=0 // pred_fallthru
    _
  %v12 = vld [vmem:[%s0] sm:$0xff]
  %v13 = vld [vmem:[%s0 + $0x8] sm:$0xff]
  %v14 = vld [vmem:[%s0 + $0x10] sm:$0xf]
  %v15 = vld [vmem:[%s0 + $0x14] sm:$0xff]
  %v16 = vld [vmem:[%s0 + $0x1c] sm:$0xff]
  %v17 = vld [vmem:[%s0 + $0x24] sm:$0xf]
  %v18 = vld [vmem:[%s0 + $0x28] sm:$0xff]
  %v19 = vld [vmem:[%s0 + $0x30] sm:$0xff]
  %v20 = vld [vmem:[%s0 + $0x38] sm:$0xf]
  %v21 = vld [vmem:[%s0 + $0x3c] sm:$0xff]
  %v22 = vld [vmem:[%s0 + $0x44] sm:$0xff]
  %v23 = vld [vmem:[%s0 + $0x4c] sm:$0xf]
  %v24 = vld [vmem:[%s0 + $0x50] sm:$0xff]
  %v25 = vld [vmem:[%s0 + $0x58] sm:$0xff]
  %v26 = vld [vmem:[%s0 + $0x60] sm:$0xf]
  %v27 = vld [vmem:[%s0 + $0x64] sm:$0xff]
  %v28 = vld [vmem:[%s0 + $0x6c] sm:$0xff]
  %v29 = vld [vmem:[%s0 + $0x74] sm:$0xf]
  %v30 = vld [vmem:[%s0 + $0x78] sm:$0xff]
  %v31 = vld [vmem:[%s0 + $0x80] sm:$0xff]
  %v32 = vld [vmem:[%s0 + $0x88] sm:$0xf]
  %v33 = vld [vmem:[%s0 + $0x8c] sm:$0xff]
  %v34 = vld [vmem:[%s0 + $0x94] sm:$0xff]
  %v35 = vld [vmem:[%s0 + $0x9c] sm:$0xf]
  %v36 = vld [vmem:[%s1] sm:$0xf]
  %v37 = vld [vmem:[%s1 + $0x4] sm:$0xf]
  %v38 = vld [vmem:[%s1 + $0x8] sm:$0xf]
  %v39 = vld [vmem:[%s1 + $0xc] sm:$0xf]
  %v40 = vld [vmem:[%s1 + $0x10] sm:$0xf]
  %v41 = vld [vmem:[%s1 + $0x14] sm:$0xf]
  %v42 = vld [vmem:[%s1 + $0x18] sm:$0xf]
  %v43 = vld [vmem:[%s1 + $0x1c] sm:$0xf]
  %v44 = vld [vmem:[%s1 + $0x20] sm:$0xf]
  %v45 = vld [vmem:[%s1 + $0x24] sm:$0xf]
  %v46 = vld [vmem:[%s1 + $0x28] sm:$0xf]
  %v47 = vld [vmem:[%s1 + $0x2c] sm:$0xf]
  %v48 = vld [vmem:[%s1 + $0x30] sm:$0xf]
  %v49 = vld [vmem:[%s1 + $0x34] sm:$0xf]
  %v50 = vld [vmem:[%s1 + $0x38] sm:$0xf]
  %v51 = vld [vmem:[%s1 + $0x3c] sm:$0xf]
  %v52 = vld [vmem:[%s1 + $0x40] sm:$0xf]
  %v53 = vld [vmem:[%s1 + $0x44] sm:$0xf]
  %v54 = vld [vmem:[%s1 + $0x48] sm:$0xf]
  %v55 = vld [vmem:[%s1 + $0x4c] sm:$0xf]
  %v56 = vld [vmem:[%s1 + $0x50] sm:$0xf]
  %v57 = vld [vmem:[%s1 + $0x54] sm:$0xf]
  %v58 = vld [vmem:[%s1 + $0x58] sm:$0xf]
  %v59 = vld [vmem:[%s1 + $0x5c] sm:$0xf]
  %v60 = vld [vmem:[%s1 + $0x60] sm:$0xf]
  %v61 = vld [vmem:[%s1 + $0x64] sm:$0xf]
  %v62 = vld [vmem:[%s1 + $0x68] sm:$0xf]
  %v63 = vld [vmem:[%s1 + $0x6c] sm:$0xf]
  %v64 = vld [vmem:[%s1 + $0x70] sm:$0xf]
  %v65 = vld [vmem:[%s1 + $0x74] sm:$0xf]
  %v66 = vld [vmem:[%s1 + $0x78] sm:$0xf]
  %v67 = vld [vmem:[%s1 + $0x7c] sm:$0xf]
  %v68 = vld [vmem:[%s1 + $0x80] sm:$0xf]
  %v69 = vld [vmem:[%s1 + $0x84] sm:$0xf]
  %v70 = vld [vmem:[%s1 + $0x88] sm:$0xf]
  %v71 = vld [vmem:[%s1 + $0x8c] sm:$0xf]
  %v72 = vld [vmem:[%s1 + $0x90] sm:$0xf]
  %v73 = vld [vmem:[%s1 + $0x94] sm:$0xf]
  %v74 = vld [vmem:[%s1 + $0x98] sm:$0xf]
  %v75 = vld [vmem:[%s1 + $0x9c] sm:$0xf]
  %v76 = vld [vmem:[%s1 + $0xa0] sm:$0xf]
  %v77 = vld [vmem:[%s1 + $0xa4] sm:$0xf]
  %v78 = vld [vmem:[%s1 + $0xa8] sm:$0xf]
  %v79 = vld [vmem:[%s1 + $0xac] sm:$0xf]
  %v80 = vld [vmem:[%s1 + $0xb0] sm:$0xf]
  %v81 = vld [vmem:[%s1 + $0xb4] sm:$0xf]
  %v82 = vld [vmem:[%s1 + $0xb8] sm:$0xf]
  %v83 = vld [vmem:[%s1 + $0xbc] sm:$0xf]
  %v84 = vld [vmem:[%s1 + $0xc0] sm:$0xf]
  %v85 = vld [vmem:[%s1 + $0xc4] sm:$0xf]
  %v86 = vld [vmem:[%s1 + $0xc8] sm:$0xf]
  %v87 = vld [vmem:[%s1 + $0xcc] sm:$0xf]
  %v88 = vld [vmem:[%s1 + $0xd0] sm:$0xf]
  %v89 = vld [vmem:[%s1 + $0xd4] sm:$0xf]
  %v90 = vld [vmem:[%s1 + $0xd8] sm:$0xf]
  %v91 = vld [vmem:[%s1 + $0xdc] sm:$0xf]
  %v92 = vld [vmem:[%s1 + $0xe0] sm:$0xf]
  %v93 = vld [vmem:[%s1 + $0xe4] sm:$0xf]
  %v94 = vld [vmem:[%s1 + $0xe8] sm:$0xf]
  %v95 = vld [vmem:[%s1 + $0xec] sm:$0xf]
  %v96 = vld [vmem:[%s1 + $0xf0] sm:$0xf]
  %v97 = vld [vmem:[%s1 + $0xf4] sm:$0xf]
  %v98 = vld [vmem:[%s1 + $0xf8] sm:$0xf]
  %v99 = vld [vmem:[%s1 + $0xfc] sm:$0xf]
  %v100 = vld [vmem:[%s1 + $0x100] sm:$0xf]
  %v101 = vld [vmem:[%s1 + $0x104] sm:$0xf]
  %v102 = vld [vmem:[%s1 + $0x108] sm:$0xf]
  %v103 = vld [vmem:[%s1 + $0x10c] sm:$0xf]
  %v104 = vld [vmem:[%s1 + $0x110] sm:$0xf]
  %v105 = vld [vmem:[%s1 + $0x114] sm:$0xf]
  %v106 = vld [vmem:[%s1 + $0x118] sm:$0xf]
  %v107 = vld [vmem:[%s1 + $0x11c] sm:$0xf]
  %v132 = vunpack.c.l.b16 %v12
  %v133 = vunpack.c.h.b16 %v12
  %v134 = vunpack.c.l.b16 %v13
  %v135 = vunpack.c.h.b16 %v13
  %v136 = vunpack.c.l.b16 %v14
  %v137 = vunpack.c.l.b16 %v15
  %v138 = vunpack.c.h.b16 %v15
  %v139 = vunpack.c.l.b16 %v16
  %v140 = vunpack.c.h.b16 %v16
  %v141 = vunpack.c.l.b16 %v17
  %v142 = vunpack.c.l.b16 %v18
  %v143 = vunpack.c.h.b16 %v18
  %v144 = vunpack.c.l.b16 %v19
  %v145 = vunpack.c.h.b16 %v19
  %v146 = vunpack.c.l.b16 %v20
  %v147 = vunpack.c.l.b16 %v21
  %v148 = vunpack.c.h.b16 %v21
  %v149 = vunpack.c.l.b16 %v22
  %v150 = vunpack.c.h.b16 %v22
  %v151 = vunpack.c.l.b16 %v23
  %v152 = vunpack.c.l.b16 %v24
  %v153 = vunpack.c.h.b16 %v24
  %v154 = vunpack.c.l.b16 %v25
  %v155 = vunpack.c.h.b16 %v25
  %v156 = vunpack.c.l.b16 %v26
  %v157 = vunpack.c.l.b16 %v27
  %v158 = vunpack.c.h.b16 %v27
  %v159 = vunpack.c.l.b16 %v28
  %v160 = vunpack.c.h.b16 %v28
  %v161 = vunpack.c.l.b16 %v29
  %v162 = vunpack.c.l.b16 %v30
  %v163 = vunpack.c.h.b16 %v30
  %v164 = vunpack.c.l.b16 %v31
  %v165 = vunpack.c.h.b16 %v31
  %v166 = vunpack.c.l.b16 %v32
  %v167 = vunpack.c.l.b16 %v33
  %v168 = vunpack.c.h.b16 %v33
  %v169 = vunpack.c.l.b16 %v34
  %v170 = vunpack.c.h.b16 %v34
  %v171 = vunpack.c.l.b16 %v35
  %v172 = vpack.c.b16 %v137, %v132
  %v173 = vpack.c.b16 %v138, %v133
  %v174 = vpack.c.b16 %v139, %v134
  %v175 = vpack.c.b16 %v140, %v135
  %v176 = vpack.c.b16 %v141, %v136
  %v177 = vpack.c.b16 %v147, %v142
  %v178 = vpack.c.b16 %v148, %v143
  %v179 = vpack.c.b16 %v149, %v144
  %v180 = vpack.c.b16 %v150, %v145
  %v181 = vpack.c.b16 %v151, %v146
  %v182 = vpack.c.b16 %v157, %v152
  %v183 = vpack.c.b16 %v158, %v153
  %v184 = vpack.c.b16 %v159, %v154
  %v185 = vpack.c.b16 %v160, %v155
  %v186 = vpack.c.b16 %v161, %v156
  %v187 = vpack.c.b16 %v167, %v162
  %v188 = vpack.c.b16 %v168, %v163
  %v189 = vpack.c.b16 %v169, %v164
  %v190 = vpack.c.b16 %v170, %v165
  %v191 = vpack.c.b16 %v171, %v166
  %v280 = vunpack.c.l.b16 %v36
  %v281 = vunpack.c.l.b16 %v37
  %v282 = vunpack.c.l.b16 %v38
  %v283 = vunpack.c.l.b16 %v39
  %v284 = vunpack.c.l.b16 %v40
  %v285 = vunpack.c.l.b16 %v41
  %v286 = vunpack.c.l.b16 %v42
  %v287 = vunpack.c.l.b16 %v43
  %v288 = vunpack.c.l.b16 %v44
  %v289 = vunpack.c.l.b16 %v45
  %v290 = vunpack.c.l.b16 %v46
  %v291 = vunpack.c.l.b16 %v47
  %v292 = vunpack.c.l.b16 %v48
  %v293 = vunpack.c.l.b16 %v49
  %v294 = vunpack.c.l.b16 %v50
  %v295 = vunpack.c.l.b16 %v51
  %v296 = vunpack.c.l.b16 %v52
  %v297 = vunpack.c.l.b16 %v53
  %v298 = vunpack.c.l.b16 %v54
  %v299 = vunpack.c.l.b16 %v55
  %v300 = vunpack.c.l.b16 %v56
  %v301 = vunpack.c.l.b16 %v57
  %v302 = vunpack.c.l.b16 %v58
  %v303 = vunpack.c.l.b16 %v59
  %v304 = vunpack.c.l.b16 %v60
  %v305 = vunpack.c.l.b16 %v61
  %v306 = vunpack.c.l.b16 %v62
  %v307 = vunpack.c.l.b16 %v63
  %v308 = vunpack.c.l.b16 %v64
  %v309 = vunpack.c.l.b16 %v65
  %v310 = vunpack.c.l.b16 %v66
  %v311 = vunpack.c.l.b16 %v67
  %v312 = vunpack.c.l.b16 %v68
  %v313 = vunpack.c.l.b16 %v69
  %v314 = vunpack.c.l.b16 %v70
  %v315 = vunpack.c.l.b16 %v71
  %v316 = vunpack.c.l.b16 %v72
  %v317 = vunpack.c.l.b16 %v73
  %v318 = vunpack.c.l.b16 %v74
  %v319 = vunpack.c.l.b16 %v75
  %v320 = vunpack.c.l.b16 %v76
  %v321 = vunpack.c.l.b16 %v77
  %v322 = vunpack.c.l.b16 %v78
  %v323 = vunpack.c.l.b16 %v79
  %v324 = vunpack.c.l.b16 %v80
  %v325 = vunpack.c.l.b16 %v81
  %v326 = vunpack.c.l.b16 %v82
  %v327 = vunpack.c.l.b16 %v83
  %v328 = vunpack.c.l.b16 %v84
  %v329 = vunpack.c.l.b16 %v85
  %v330 = vunpack.c.l.b16 %v86
  %v331 = vunpack.c.l.b16 %v87
  %v332 = vunpack.c.l.b16 %v88
  %v333 = vunpack.c.l.b16 %v89
  %v334 = vunpack.c.l.b16 %v90
  %v335 = vunpack.c.l.b16 %v91
  %v336 = vunpack.c.l.b16 %v92
  %v337 = vunpack.c.l.b16 %v93
  %v338 = vunpack.c.l.b16 %v94
  %v339 = vunpack.c.l.b16 %v95
  %v340 = vunpack.c.l.b16 %v96
  %v341 = vunpack.c.l.b16 %v97
  %v342 = vunpack.c.l.b16 %v98
  %v343 = vunpack.c.l.b16 %v99
  %v344 = vunpack.c.l.b16 %v100
  %v345 = vunpack.c.l.b16 %v101
  %v346 = vunpack.c.l.b16 %v102
  %v347 = vunpack.c.l.b16 %v103
  %v348 = vunpack.c.l.b16 %v104
  %v349 = vunpack.c.l.b16 %v105
  %v350 = vunpack.c.l.b16 %v106
  %v351 = vunpack.c.l.b16 %v107
  %v352 = vpack.c.b16 %v281, %v280
  %v353 = vpack.c.b16 %v283, %v282
  %v354 = vpack.c.b16 %v285, %v284
  %v355 = vpack.c.b16 %v287, %v286
  %v356 = vpack.c.b16 %v289, %v288
  %v357 = vpack.c.b16 %v291, %v290
  %v358 = vpack.c.b16 %v293, %v292
  %v359 = vpack.c.b16 %v295, %v294
  %v360 = vpack.c.b16 %v297, %v296
  %v361 = vpack.c.b16 %v299, %v298
  %v362 = vpack.c.b16 %v301, %v300
  %v363 = vpack.c.b16 %v303, %v302
  %v364 = vpack.c.b16 %v305, %v304
  %v365 = vpack.c.b16 %v307, %v306
  %v366 = vpack.c.b16 %v309, %v308
  %v367 = vpack.c.b16 %v311, %v310
  %v368 = vpack.c.b16 %v313, %v312
  %v369 = vpack.c.b16 %v315, %v314
  %v370 = vpack.c.b16 %v317, %v316
  %v371 = vpack.c.b16 %v319, %v318
  %v372 = vpack.c.b16 %v321, %v320
  %v373 = vpack.c.b16 %v323, %v322
  %v374 = vpack.c.b16 %v325, %v324
  %v375 = vpack.c.b16 %v327, %v326
  %v376 = vpack.c.b16 %v329, %v328
  %v377 = vpack.c.b16 %v331, %v330
  %v378 = vpack.c.b16 %v333, %v332
  %v379 = vpack.c.b16 %v335, %v334
  %v380 = vpack.c.b16 %v337, %v336
  %v381 = vpack.c.b16 %v339, %v338
  %v382 = vpack.c.b16 %v341, %v340
  %v383 = vpack.c.b16 %v343, %v342
  %v384 = vpack.c.b16 %v345, %v344
  %v385 = vpack.c.b16 %v347, %v346
  %v386 = vpack.c.b16 %v349, %v348
  %v387 = vpack.c.b16 %v351, %v350
  %vm424 = vcmask 523264
  %v426 = vsel %vm424, %v176, 0
  %v429 = vsel %vm424, %v181, 0
  %v432 = vsel %vm424, %v186, 0
  %v435 = vsel %vm424, %v191, 0
  %437 = vmatprep.subr.bf16.mxu0 0
  %438 = vmatpush1.bf16.msra.mxu0 %v352
  %439 = vmatprep.subr.bf16.mxu0 0
  %440 = vmatpush1.bf16.msra.mxu0 %v353
  %441 = vmatprep.subr.bf16.mxu0 0
  %442 = vmatpush1.bf16.msra.mxu0 %v354
  %443 = vmatprep.subr.bf16.mxu0 0
  %444 = vmatpush1.bf16.msra.mxu0 %v355
  %445 = vmatprep.subr.bf16.mxu0 0
  %446 = vmatpush1.bf16.msra.mxu0 %v356
  %447 = vmatprep.subr.bf16.mxu0 0
  %448 = vmatpush1.bf16.msra.mxu0 %v357
  %449 = vmatprep.subr.bf16.mxu0 0
  %450 = vmatpush1.bf16.msra.mxu0 %v358
  %451 = vmatprep.subr.bf16.mxu0 0
  %452 = vmatpush1.bf16.msra.mxu0 %v359
  %453 = vmatprep.subr.bf16.mxu0 0
  %454 = vmatpush1.bf16.msra.mxu0 %v360
  %455 = vmatprep.subr.bf16.mxu0 0
  %456 = vmatpush1.bf16.msra.mxu0 %v361
  %457 = vmatprep.subr.bf16.mxu0 0
  %458 = vmatpush1.bf16.msra.mxu0 %v362
  %459 = vmatprep.subr.bf16.mxu0 0
  %460 = vmatpush1.bf16.msra.mxu0 %v363
  %461 = vmatprep.subr.bf16.mxu0 0
  %462 = vmatpush1.bf16.msra.mxu0 %v364
  %463 = vmatprep.subr.bf16.mxu0 0
  %464 = vmatpush1.bf16.msra.mxu0 %v365
  %465 = vmatprep.subr.bf16.mxu0 0
  %466 = vmatpush1.bf16.msra.mxu0 %v366
  %467 = vmatprep.subr.bf16.mxu0 0
  %468 = vmatpush1.bf16.msra.mxu0 %v367
  %469 = vmatprep.mubr.bf16.mxu0 %v173
  %470 = vmatmul.mubr.bf16.gmra.mrb[0].mxu0 %v172
  %v471 = vpop.f32.mrb[0].mxu0
  %v472 = vadd.f32 0.0, %v471
  %v473 = vpop.f32.mrb[0].mxu0
  %v474 = vpop.f32.mrb[0].mxu0
  %v475 = vadd.f32 0.0, %v474
  %v476 = vpop.f32.mrb[0].mxu0
  %477 = vmatprep.mubr.bf16.mxu0 %v178
  %478 = vmatmul.mubr.bf16.gmra.mrb[0].mxu0 %v177
  %v479 = vpop.f32.mrb[0].mxu0
  %v480 = vadd.f32 0.0, %v479
  %v481 = vpop.f32.mrb[0].mxu0
  %v482 = vpop.f32.mrb[0].mxu0
  %v483 = vadd.f32 0.0, %v482
  %v484 = vpop.f32.mrb[0].mxu0
  %485 = vmatprep.mubr.bf16.mxu0 %v183
  %486 = vmatmul.mubr.bf16.gmra.mrb[0].mxu0 %v182
  %v487 = vpop.f32.mrb[0].mxu0
  %v488 = vadd.f32 0.0, %v487
  %v489 = vpop.f32.mrb[0].mxu0
  %v490 = vpop.f32.mrb[0].mxu0
  %v491 = vadd.f32 0.0, %v490
  %v492 = vpop.f32.mrb[0].mxu0
  %493 = vmatprep.mubr.bf16.mxu0 %v188
  %494 = vmatmul.mubr.bf16.gmra.mrb[0].mxu0 %v187
  %v495 = vpop.f32.mrb[0].mxu0
  %v496 = vadd.f32 0.0, %v495
  %v497 = vpop.f32.mrb[0].mxu0
  %v498 = vpop.f32.mrb[0].mxu0
  %v499 = vadd.f32 0.0, %v498
  %v500 = vpop.f32.mrb[0].mxu0
  %501 = vdwg.mxu0
  %502 = vmatprep.subr.bf16.mxu0 0
  %503 = vmatpush1.bf16.msra.mxu0 %v368
  %504 = vmatprep.subr.bf16.mxu0 0
  %505 = vmatpush1.bf16.msra.mxu0 %v369
  %506 = vmatprep.subr.bf16.mxu0 0
  %507 = vmatpush1.bf16.msra.mxu0 %v370
  %508 = vmatprep.subr.bf16.mxu0 0
  %509 = vmatpush1.bf16.msra.mxu0 %v371
  %510 = vmatprep.subr.bf16.mxu0 0
  %511 = vmatpush1.bf16.msra.mxu0 %v372
  %512 = vmatprep.subr.bf16.mxu0 0
  %513 = vmatpush1.bf16.msra.mxu0 %v373
  %514 = vmatprep.subr.bf16.mxu0 0
  %515 = vmatpush1.bf16.msra.mxu0 %v374
  %516 = vmatprep.subr.bf16.mxu0 0
  %517 = vmatpush1.bf16.msra.mxu0 %v375
  %518 = vmatprep.subr.bf16.mxu0 0
  %519 = vmatpush1.bf16.msra.mxu0 %v376
  %520 = vmatprep.subr.bf16.mxu0 0
  %521 = vmatpush1.bf16.msra.mxu0 %v377
  %522 = vmatprep.subr.bf16.mxu0 0
  %523 = vmatpush1.bf16.msra.mxu0 %v378
  %524 = vmatprep.subr.bf16.mxu0 0
  %525 = vmatpush1.bf16.msra.mxu0 %v379
  %526 = vmatprep.subr.bf16.mxu0 0
  %527 = vmatpush1.bf16.msra.mxu0 %v380
  %528 = vmatprep.subr.bf16.mxu0 0
  %529 = vmatpush1.bf16.msra.mxu0 %v381
  %530 = vmatprep.subr.bf16.mxu0 0
  %531 = vmatpush1.bf16.msra.mxu0 %v382
  %532 = vmatprep.subr.bf16.mxu0 0
  %533 = vmatpush1.bf16.msra.mxu0 %v383
  %534 = vmatprep.mubr.bf16.mxu0 %v175
  %535 = vmatmul.mubr.bf16.gmra.mrb[0].mxu0 %v174
  %v536 = vpop.f32.mrb[0].mxu0
  %v537 = vadd.f32 %v472, %v536
  %v538 = vpop.f32.mrb[0].mxu0
  %v539 = vpop.f32.mrb[0].mxu0
  %v540 = vadd.f32 %v475, %v539
  %v541 = vpop.f32.mrb[0].mxu0
  %542 = vmatprep.mubr.bf16.mxu0 %v180
  %543 = vmatmul.mubr.bf16.gmra.mrb[0].mxu0 %v179
  %v544 = vpop.f32.mrb[0].mxu0
  %v545 = vadd.f32 %v480, %v544
  %v546 = vpop.f32.mrb[0].mxu0
  %v547 = vpop.f32.mrb[0].mxu0
  %v548 = vadd.f32 %v483, %v547
  %v549 = vpop.f32.mrb[0].mxu0
  %550 = vmatprep.mubr.bf16.mxu0 %v185
  %551 = vmatmul.mubr.bf16.gmra.mrb[0].mxu0 %v184
  %v552 = vpop.f32.mrb[0].mxu0
  %v553 = vadd.f32 %v488, %v552
  %v554 = vpop.f32.mrb[0].mxu0
  %v555 = vpop.f32.mrb[0].mxu0
  %v556 = vadd.f32 %v491, %v555
  %v557 = vpop.f32.mrb[0].mxu0
  %558 = vmatprep.mubr.bf16.mxu0 %v190
  %559 = vmatmul.mubr.bf16.gmra.mrb[0].mxu0 %v189
  %v560 = vpop.f32.mrb[0].mxu0
  %v561 = vadd.f32 %v496, %v560
  %v562 = vpop.f32.mrb[0].mxu0
  %v563 = vpop.f32.mrb[0].mxu0
  %v564 = vadd.f32 %v499, %v563
  %v565 = vpop.f32.mrb[0].mxu0
  %566 = vdwg.mxu0
  %567 = vmatprep.subr.bf16.mxu0 0
  %568 = vmatpush1.bf16.msra.mxu0 %v384
  %569 = vmatprep.subr.bf16.mxu0 0
  %570 = vmatpush1.bf16.msra.mxu0 %v385
  %571 = vmatprep.subr.bf16.mxu0 0
  %572 = vmatpush1.bf16.msra.mxu0 %v386
  %573 = vmatprep.subr.bf16.mxu0 0
  %574 = vmatpush1.bf16.msra.mxu0 %v387
  %575 = vmatprep.subr.bf16.mxu0 0
  %576 = vmatpush1.bf16.msra.mxu0 0
  %577 = vmatprep.subr.bf16.mxu0 0
  %578 = vmatpush1.bf16.msra.mxu0 0
  %579 = vmatprep.subr.bf16.mxu0 0
  %580 = vmatpush1.bf16.msra.mxu0 0
  %581 = vmatprep.subr.bf16.mxu0 0
  %582 = vmatpush1.bf16.msra.mxu0 0
  %583 = vmatprep.subr.bf16.mxu0 0
  %584 = vmatpush1.bf16.msra.mxu0 0
  %585 = vmatprep.subr.bf16.mxu0 0
  %586 = vmatpush1.bf16.msra.mxu0 0
  %587 = vmatprep.subr.bf16.mxu0 0
  %588 = vmatpush1.bf16.msra.mxu0 0
  %589 = vmatprep.subr.bf16.mxu0 0
  %590 = vmatpush1.bf16.msra.mxu0 0
  %591 = vmatprep.subr.bf16.mxu0 0
  %592 = vmatpush1.bf16.msra.mxu0 0
  %593 = vmatprep.subr.bf16.mxu0 0
  %594 = vmatpush1.bf16.msra.mxu0 0
  %595 = vmatprep.subr.bf16.mxu0 0
  %596 = vmatpush1.bf16.msra.mxu0 0
  %597 = vmatprep.subr.bf16.mxu0 0
  %598 = vmatpush1.bf16.msra.mxu0 0
  %599 = vmatprep.mubr.bf16.mxu0 0
  %600 = vmatmul.mubr.bf16.gmra.mrb[0].mxu0 %v426
  %v601 = vpop.f32.mrb[0].mxu0
  %v602 = vadd.f32 %v537, %v601
  %v603 = vpop.f32.mrb[0].mxu0
  %v604 = vpop.f32.mrb[0].mxu0
  %v605 = vadd.f32 %v540, %v604
  %v606 = vpop.f32.mrb[0].mxu0
  %607 = vmatprep.mubr.bf16.mxu0 0
  %608 = vmatmul.mubr.bf16.gmra.mrb[0].mxu0 %v429
  %v609 = vpop.f32.mrb[0].mxu0
  %v610 = vadd.f32 %v545, %v609
  %v611 = vpop.f32.mrb[0].mxu0
  %v612 = vpop.f32.mrb[0].mxu0
  %v613 = vadd.f32 %v548, %v612
  %v614 = vpop.f32.mrb[0].mxu0
  %615 = vmatprep.mubr.bf16.mxu0 0
  %616 = vmatmul.mubr.bf16.gmra.mrb[0].mxu0 %v432
  %v617 = vpop.f32.mrb[0].mxu0
  %v618 = vadd.f32 %v553, %v617
  %v619 = vpop.f32.mrb[0].mxu0
  %v620 = vpop.f32.mrb[0].mxu0
  %v621 = vadd.f32 %v556, %v620
  %v622 = vpop.f32.mrb[0].mxu0
  %623 = vmatprep.mubr.bf16.mxu0 0
  %624 = vmatmul.mubr.bf16.gmra.mrb[0].mxu0 %v435
  %v625 = vpop.f32.mrb[0].mxu0
  %v626 = vadd.f32 %v561, %v625
  %v627 = vpop.f32.mrb[0].mxu0
  %v628 = vpop.f32.mrb[0].mxu0
  %v629 = vadd.f32 %v564, %v628
  %v630 = vpop.f32.mrb[0].mxu0
  %631 = vdwg.mxu0
  %v632 = vlaneseq
  %v633 = vand.u32 %v632, 127
  %vm634 = vcmp.lt.s32.totalorder %v633, 2
  %v635 = vsel %vm634, %v602, 0.0
  %v636 = vsel %vm634, %v605, 0.0
  %v637 = vsel %vm634, %v610, 0.0
  %v638 = vsel %vm634, %v613, 0.0
  %v639 = vsel %vm634, %v618, 0.0
  %v640 = vsel %vm634, %v621, 0.0
  %v641 = vsel %vm634, %v626, 0.0
  %v642 = vsel %vm634, %v629, 0.0
  %643 = vadd.xlane.f32.xlu0 %v635
  %v644 = vpop.xlane.xlu0 %643
  %645 = vadd.xlane.f32.xlu0 %v636
  %v646 = vpop.xlane.xlu0 %645
  %647 = vadd.xlane.f32.xlu0 %v637
  %v648 = vpop.xlane.xlu0 %647
  %649 = vadd.xlane.f32.xlu0 %v638
  %v650 = vpop.xlane.xlu0 %649
  %651 = vadd.xlane.f32.xlu0 %v639
  %v652 = vpop.xlane.xlu0 %651
  %653 = vadd.xlane.f32.xlu0 %v640
  %v654 = vpop.xlane.xlu0 %653
  %655 = vadd.xlane.f32.xlu0 %v641
  %v656 = vpop.xlane.xlu0 %655
  %657 = vadd.xlane.f32.xlu0 %v642
  %v658 = vpop.xlane.xlu0 %657
  %v659 = vmul.f32 %v644, 0.5
  %v660 = vmul.f32 %v646, 0.5
  %v661 = vmul.f32 %v648, 0.5
  %v662 = vmul.f32 %v650, 0.5
  %v663 = vmul.f32 %v652, 0.5
  %v664 = vmul.f32 %v654, 0.5
  %v665 = vmul.f32 %v656, 0.5
  %v666 = vmul.f32 %v658, 0.5
  %v667 = vmul.f32 %v635, %v635
  %v668 = vmul.f32 %v636, %v636
  %v669 = vmul.f32 %v637, %v637
  %v670 = vmul.f32 %v638, %v638
  %v671 = vmul.f32 %v639, %v639
  %v672 = vmul.f32 %v640, %v640
  %v673 = vmul.f32 %v641, %v641
  %v674 = vmul.f32 %v642, %v642
  %675 = vadd.xlane.f32.xlu0 %v667
  %v676 = vpop.xlane.xlu0 %675
  %677 = vadd.xlane.f32.xlu0 %v668
  %v678 = vpop.xlane.xlu0 %677
  %679 = vadd.xlane.f32.xlu0 %v669
  %v680 = vpop.xlane.xlu0 %679
  %681 = vadd.xlane.f32.xlu0 %v670
  %v682 = vpop.xlane.xlu0 %681
  %683 = vadd.xlane.f32.xlu0 %v671
  %v684 = vpop.xlane.xlu0 %683
  %685 = vadd.xlane.f32.xlu0 %v672
  %v686 = vpop.xlane.xlu0 %685
  %687 = vadd.xlane.f32.xlu0 %v673
  %v688 = vpop.xlane.xlu0 %687
  %689 = vadd.xlane.f32.xlu0 %v674
  %v690 = vpop.xlane.xlu0 %689
  %v691 = vmul.f32 %v676, 0.5
  %v692 = vmul.f32 %v678, 0.5
  %v693 = vmul.f32 %v680, 0.5
  %v694 = vmul.f32 %v682, 0.5
  %v695 = vmul.f32 %v684, 0.5
  %v696 = vmul.f32 %v686, 0.5
  %v697 = vmul.f32 %v688, 0.5
  %v698 = vmul.f32 %v690, 0.5
  %v699 = vmul.f32 %v659, %v659
  %v700 = vmul.f32 %v660, %v660
  %v701 = vmul.f32 %v661, %v661
  %v702 = vmul.f32 %v662, %v662
  %v703 = vmul.f32 %v663, %v663
  %v704 = vmul.f32 %v664, %v664
  %v705 = vmul.f32 %v665, %v665
  %v706 = vmul.f32 %v666, %v666
  %v707 = vsub.f32 %v691, %v699
  %v708 = vsub.f32 %v692, %v700
  %v709 = vsub.f32 %v693, %v701
  %v710 = vsub.f32 %v694, %v702
  %v711 = vsub.f32 %v695, %v703
  %v712 = vsub.f32 %v696, %v704
  %v713 = vsub.f32 %v697, %v705
  %v714 = vsub.f32 %v698, %v706
  %v715 = vmax.f32 %v707, 0.0
  %v716 = vmax.f32 %v708, 0.0
  %v717 = vmax.f32 %v709, 0.0
  %v718 = vmax.f32 %v710, 0.0
  %v719 = vmax.f32 %v711, 0.0
  %v720 = vmax.f32 %v712, 0.0
  %v721 = vmax.f32 %v713, 0.0
  %v722 = vmax.f32 %v714, 0.0
  %v723 = vsub.f32 %v602, %v659
  %v724 = vsub.f32 %v605, %v660
  %v725 = vsub.f32 %v610, %v661
  %v726 = vsub.f32 %v613, %v662
  %v727 = vsub.f32 %v618, %v663
  %v728 = vsub.f32 %v621, %v664
  %v729 = vsub.f32 %v626, %v665
  %v730 = vsub.f32 %v629, %v666
  %v731 = vadd.f32 %v715, 1e-05
  %v732 = vadd.f32 %v716, 1e-05
  %v733 = vadd.f32 %v717, 1e-05
  %v734 = vadd.f32 %v718, 1e-05
  %v735 = vadd.f32 %v719, 1e-05
  %v736 = vadd.f32 %v720, 1e-05
  %v737 = vadd.f32 %v721, 1e-05
  %v738 = vadd.f32 %v722, 1e-05
  %v739 = vrsqrt.pop %v731
  %v740 = vrsqrt.pop %v732
  %v741 = vrsqrt.pop %v733
  %v742 = vrsqrt.pop %v734
  %v743 = vrsqrt.pop %v735
  %v744 = vrsqrt.pop %v736
  %v745 = vrsqrt.pop %v737
  %v746 = vrsqrt.pop %v738
  %v747 = vmul.f32 %v723, %v739
  %v748 = vmul.f32 %v724, %v740
  %v749 = vmul.f32 %v725, %v741
  %v750 = vmul.f32 %v726, %v742
  %v751 = vmul.f32 %v727, %v743
  %v752 = vmul.f32 %v728, %v744
  %v753 = vmul.f32 %v729, %v745
  %v754 = vmul.f32 %v730, %v746
  %v755 = vmul.f32 %v747, 0.01
  %v756 = vmul.f32 %v748, 0.01
  %v757 = vmul.f32 %v749, 0.01
  %v758 = vmul.f32 %v750, 0.01
  %v759 = vmul.f32 %v751, 0.01
  %v760 = vmul.f32 %v752, 0.01
  %v761 = vmul.f32 %v753, 0.01
  %v762 = vmul.f32 %v754, 0.01
  %v763 = vmax.f32 %v747, %v755
  %v764 = vmax.f32 %v748, %v756
  %v765 = vmax.f32 %v749, %v757
  %v766 = vmax.f32 %v750, %v758
  %v767 = vmax.f32 %v751, %v759
  %v768 = vmax.f32 %v752, %v760
  %v769 = vmax.f32 %v753, %v761
  %v770 = vmax.f32 %v754, %v762
  %771 = vst [vmem:[%s2] sm:$0xff] %v763
  %772 = vst [vmem:[%s2 + $0x8] sm:$0xff] %v764
  %773 = vst [vmem:[%s2 + $0x10] sm:$0xff] %v765
  %774 = vst [vmem:[%s2 + $0x18] sm:$0xff] %v766
  %775 = vst [vmem:[%s2 + $0x20] sm:$0xff] %v767
  %776 = vst [vmem:[%s2 + $0x28] sm:$0xff] %v768
  %777 = vst [vmem:[%s2 + $0x30] sm:$0xff] %v769
  %778 = vst [vmem:[%s2 + $0x38] sm:$0xff] %v770
  // Predicated region
  $region10: #{conv_deconv_forward.17} parent=0 // pred_check
    _
  $region11: #{conv_deconv_forward.17} parent=0 // pred_check_branch
    %780 = sbr.rel (0) target = $region13
  $region12: #{conv_deconv_forward.17} parent=0 // pred_region
    _
  $region13: #{conv_deconv_forward.17} parent=0 // pred_fallthru
    _
  // Predicated region
  $region14: #{conv_deconv_forward.17} parent=0 // pred_check
    _
  $region15: #{conv_deconv_forward.17} parent=0 // pred_check_branch
    %782 = sbr.rel (0) target = $region17
  $region16: #{conv_deconv_forward.17} parent=0 // pred_region
    _
  $region17: #{conv_deconv_forward.17} parent=0 // pred_fallthru
    _

// kernel: conv_deconv_forward.18
$region0: #{conv_deconv_forward.18}
  #allocation0 [shape = 'u32[]', space=smem, size = 0x4, offset = 0x4, fixed_abs, tag = 'smem constant byte address 0x4 - core index']
  #allocation1 [shape = 'u32[144,128]{1,0:T(1,128)}', space=vmem, size = 0x12000, scoped, tag = 'internal scratch']
  %s0 = inlined_call_operand.vmem [shape: bf16[64,576], index: 0, kind: input, shape index: {}]
  %s1 = inlined_call_operand.vmem [shape: bf16[576,128], index: 1, kind: input, shape index: {}]
  %s2 = inlined_call_operand.vmem [shape: f32[64,128], index: 2, kind: output, shape index: {}]
  %s3 = sld [smem:[#allocation0]]
  $region18: #{conv_deconv_forward.18} parent=0
    _
  %s5 = ssub.s32 1, %s3
  %s6 = scalar_select 0, %s5, %s3
  // Predicated region
  $region2: #{conv_deconv_forward.18} parent=0 // pred_check
    _
  $region3: #{conv_deconv_forward.18} parent=0 // pred_check_branch
    %8 = sbr.rel (0) target = $region5
  $region4: #{conv_deconv_forward.18} parent=0 // pred_region
    _
  $region5: #{conv_deconv_forward.18} parent=0 // pred_fallthru
    _
  // Predicated region
  $region6: #{conv_deconv_forward.18} parent=0 // pred_check
    _
  $region7: #{conv_deconv_forward.18} parent=0 // pred_check_branch
    %10 = sbr.rel (0) target = $region9
  $region8: #{conv_deconv_forward.18} parent=0 // pred_region
    _
  $region9: #{conv_deconv_forward.18} parent=0 // pred_fallthru
    _
  %v12 = vld [vmem:[%s0] sm:$0xff]
  %v13 = vld [vmem:[%s0 + $0x8] sm:$0xff]
  %v14 = vld [vmem:[%s0 + $0x10] sm:$0xf]
  %v15 = vld [vmem:[%s0 + $0x14] sm:$0xff]
  %v16 = vld [vmem:[%s0 + $0x1c] sm:$0xff]
  %v17 = vld [vmem:[%s0 + $0x24] sm:$0xf]
  %v18 = vld [vmem:[%s0 + $0x28] sm:$0xff]
  %v19 = vld [vmem:[%s0 + $0x30] sm:$0xff]
  %v20 = vld [vmem:[%s0 + $0x38] sm:$0xf]
  %v21 = vld [vmem:[%s0 + $0x3c] sm:$0xff]
  %v22 = vld [vmem:[%s0 + $0x44] sm:$0xff]
  %v23 = vld [vmem:[%s0 + $0x4c] sm:$0xf]
  %v24 = vld [vmem:[%s0 + $0x50] sm:$0xff]
  %v25 = vld [vmem:[%s0 + $0x58] sm:$0xff]
  %v26 = vld [vmem:[%s0 + $0x60] sm:$0xf]
  %v27 = vld [vmem:[%s0 + $0x64] sm:$0xff]
  %v28 = vld [vmem:[%s0 + $0x6c] sm:$0xff]
  %v29 = vld [vmem:[%s0 + $0x74] sm:$0xf]
  %v30 = vld [vmem:[%s0 + $0x78] sm:$0xff]
  %v31 = vld [vmem:[%s0 + $0x80] sm:$0xff]
  %v32 = vld [vmem:[%s0 + $0x88] sm:$0xf]
  %v33 = vld [vmem:[%s0 + $0x8c] sm:$0xff]
  %v34 = vld [vmem:[%s0 + $0x94] sm:$0xff]
  %v35 = vld [vmem:[%s0 + $0x9c] sm:$0xf]
  %v36 = vld [vmem:[%s1] sm:$0xf]
  %v37 = vld [vmem:[%s1 + $0x4] sm:$0xf]
  %v38 = vld [vmem:[%s1 + $0x8] sm:$0xf]
  %v39 = vld [vmem:[%s1 + $0xc] sm:$0xf]
  %v40 = vld [vmem:[%s1 + $0x10] sm:$0xf]
  %v41 = vld [vmem:[%s1 + $0x14] sm:$0xf]
  %v42 = vld [vmem:[%s1 + $0x18] sm:$0xf]
  %v43 = vld [vmem:[%s1 + $0x1c] sm:$0xf]
  %v44 = vld [vmem:[%s1 + $0x20] sm:$0xf]
  %v45 = vld [vmem:[%s1 + $0x24] sm:$0xf]
  %v46 = vld [vmem:[%s1 + $0x28] sm:$0xf]
  %v47 = vld [vmem:[%s1 + $0x2c] sm:$0xf]
  %v48 = vld [vmem:[%s1 + $0x30] sm:$0xf]
  %v49 = vld [vmem:[%s1 + $0x34] sm:$0xf]
  %v50 = vld [vmem:[%s1 + $0x38] sm:$0xf]
  %v51 = vld [vmem:[%s1 + $0x3c] sm:$0xf]
  %v52 = vld [vmem:[%s1 + $0x40] sm:$0xf]
  %v53 = vld [vmem:[%s1 + $0x44] sm:$0xf]
  %v54 = vld [vmem:[%s1 + $0x48] sm:$0xf]
  %v55 = vld [vmem:[%s1 + $0x4c] sm:$0xf]
  %v56 = vld [vmem:[%s1 + $0x50] sm:$0xf]
  %v57 = vld [vmem:[%s1 + $0x54] sm:$0xf]
  %v58 = vld [vmem:[%s1 + $0x58] sm:$0xf]
  %v59 = vld [vmem:[%s1 + $0x5c] sm:$0xf]
  %v60 = vld [vmem:[%s1 + $0x60] sm:$0xf]
  %v61 = vld [vmem:[%s1 + $0x64] sm:$0xf]
  %v62 = vld [vmem:[%s1 + $0x68] sm:$0xf]
  %v63 = vld [vmem:[%s1 + $0x6c] sm:$0xf]
  %v64 = vld [vmem:[%s1 + $0x70] sm:$0xf]
  %v65 = vld [vmem:[%s1 + $0x74] sm:$0xf]
  %v66 = vld [vmem:[%s1 + $0x78] sm:$0xf]
  %v67 = vld [vmem:[%s1 + $0x7c] sm:$0xf]
  %v68 = vld [vmem:[%s1 + $0x80] sm:$0xf]
  %v69 = vld [vmem:[%s1 + $0x84] sm:$0xf]
  %v70 = vld [vmem:[%s1 + $0x88] sm:$0xf]
  %v71 = vld [vmem:[%s1 + $0x8c] sm:$0xf]
  %v72 = vld [vmem:[%s1 + $0x90] sm:$0xf]
  %v73 = vld [vmem:[%s1 + $0x94] sm:$0xf]
  %v74 = vld [vmem:[%s1 + $0x98] sm:$0xf]
  %v75 = vld [vmem:[%s1 + $0x9c] sm:$0xf]
  %v76 = vld [vmem:[%s1 + $0xa0] sm:$0xf]
  %v77 = vld [vmem:[%s1 + $0xa4] sm:$0xf]
  %v78 = vld [vmem:[%s1 + $0xa8] sm:$0xf]
  %v79 = vld [vmem:[%s1 + $0xac] sm:$0xf]
  %v80 = vld [vmem:[%s1 + $0xb0] sm:$0xf]
  %v81 = vld [vmem:[%s1 + $0xb4] sm:$0xf]
  %v82 = vld [vmem:[%s1 + $0xb8] sm:$0xf]
  %v83 = vld [vmem:[%s1 + $0xbc] sm:$0xf]
  %v84 = vld [vmem:[%s1 + $0xc0] sm:$0xf]
  %v85 = vld [vmem:[%s1 + $0xc4] sm:$0xf]
  %v86 = vld [vmem:[%s1 + $0xc8] sm:$0xf]
  %v87 = vld [vmem:[%s1 + $0xcc] sm:$0xf]
  %v88 = vld [vmem:[%s1 + $0xd0] sm:$0xf]
  %v89 = vld [vmem:[%s1 + $0xd4] sm:$0xf]
  %v90 = vld [vmem:[%s1 + $0xd8] sm:$0xf]
  %v91 = vld [vmem:[%s1 + $0xdc] sm:$0xf]
  %v92 = vld [vmem:[%s1 + $0xe0] sm:$0xf]
  %v93 = vld [vmem:[%s1 + $0xe4] sm:$0xf]
  %v94 = vld [vmem:[%s1 + $0xe8] sm:$0xf]
  %v95 = vld [vmem:[%s1 + $0xec] sm:$0xf]
  %v96 = vld [vmem:[%s1 + $0xf0] sm:$0xf]
  %v97 = vld [vmem:[%s1 + $0xf4] sm:$0xf]
  %v98 = vld [vmem:[%s1 + $0xf8] sm:$0xf]
  %v99 = vld [vmem:[%s1 + $0xfc] sm:$0xf]
  %v100 = vld [vmem:[%s1 + $0x100] sm:$0xf]
  %v101 = vld [vmem:[%s1 + $0x104] sm:$0xf]
  %v102 = vld [vmem:[%s1 + $0x108] sm:$0xf]
  %v103 = vld [vmem:[%s1 + $0x10c] sm:$0xf]
  %v104 = vld [vmem:[%s1 + $0x110] sm:$0xf]
  %v105 = vld [vmem:[%s1 + $0x114] sm:$0xf]
  %v106 = vld [vmem:[%s1 + $0x118] sm:$0xf]
  %v107 = vld [vmem:[%s1 + $0x11c] sm:$0xf]
  %v132 = vunpack.c.l.b16 %v12
  %v133 = vunpack.c.h.b16 %v12
  %v134 = vunpack.c.l.b16 %v13
  %v135 = vunpack.c.h.b16 %v13
  %v136 = vunpack.c.l.b16 %v14
  %v137 = vunpack.c.l.b16 %v15
  %v138 = vunpack.c.h.b16 %v15
  %v139 = vunpack.c.l.b16 %v16
  %v140 = vunpack.c.h.b16 %v16
  %v141 = vunpack.c.l.b16 %v17
  %v142 = vunpack.c.l.b16 %v18
  %v143 = vunpack.c.h.b16 %v18
  %v144 = vunpack.c.l.b16 %v19
  %v145 = vunpack.c.h.b16 %v19
  %v146 = vunpack.c.l.b16 %v20
  %v147 = vunpack.c.l.b16 %v21
  %v148 = vunpack.c.h.b16 %v21
  %v149 = vunpack.c.l.b16 %v22
  %v150 = vunpack.c.h.b16 %v22
  %v151 = vunpack.c.l.b16 %v23
  %v152 = vunpack.c.l.b16 %v24
  %v153 = vunpack.c.h.b16 %v24
  %v154 = vunpack.c.l.b16 %v25
  %v155 = vunpack.c.h.b16 %v25
  %v156 = vunpack.c.l.b16 %v26
  %v157 = vunpack.c.l.b16 %v27
  %v158 = vunpack.c.h.b16 %v27
  %v159 = vunpack.c.l.b16 %v28
  %v160 = vunpack.c.h.b16 %v28
  %v161 = vunpack.c.l.b16 %v29
  %v162 = vunpack.c.l.b16 %v30
  %v163 = vunpack.c.h.b16 %v30
  %v164 = vunpack.c.l.b16 %v31
  %v165 = vunpack.c.h.b16 %v31
  %v166 = vunpack.c.l.b16 %v32
  %v167 = vunpack.c.l.b16 %v33
  %v168 = vunpack.c.h.b16 %v33
  %v169 = vunpack.c.l.b16 %v34
  %v170 = vunpack.c.h.b16 %v34
  %v171 = vunpack.c.l.b16 %v35
  %v172 = vpack.c.b16 %v137, %v132
  %v173 = vpack.c.b16 %v138, %v133
  %v174 = vpack.c.b16 %v139, %v134
  %v175 = vpack.c.b16 %v140, %v135
  %v176 = vpack.c.b16 %v141, %v136
  %v177 = vpack.c.b16 %v147, %v142
  %v178 = vpack.c.b16 %v148, %v143
  %v179 = vpack.c.b16 %v149, %v144
  %v180 = vpack.c.b16 %v150, %v145
  %v181 = vpack.c.b16 %v151, %v146
  %v182 = vpack.c.b16 %v157, %v152
  %v183 = vpack.c.b16 %v158, %v153
  %v184 = vpack.c.b16 %v159, %v154
  %v185 = vpack.c.b16 %v160, %v155
  %v186 = vpack.c.b16 %v161, %v156
  %v187 = vpack.c.b16 %v167, %v162
  %v188 = vpack.c.b16 %v168, %v163
  %v189 = vpack.c.b16 %v169, %v164
  %v190 = vpack.c.b16 %v170, %v165
  %v191 = vpack.c.b16 %v171, %v166
  %v280 = vunpack.c.l.b16 %v36
  %v281 = vunpack.c.l.b16 %v37
  %v282 = vunpack.c.l.b16 %v38
  %v283 = vunpack.c.l.b16 %v39
  %v284 = vunpack.c.l.b16 %v40
  %v285 = vunpack.c.l.b16 %v41
  %v286 = vunpack.c.l.b16 %v42
  %v287 = vunpack.c.l.b16 %v43
  %v288 = vunpack.c.l.b16 %v44
  %v289 = vunpack.c.l.b16 %v45
  %v290 = vunpack.c.l.b16 %v46
  %v291 = vunpack.c.l.b16 %v47
  %v292 = vunpack.c.l.b16 %v48
  %v293 = vunpack.c.l.b16 %v49
  %v294 = vunpack.c.l.b16 %v50
  %v295 = vunpack.c.l.b16 %v51
  %v296 = vunpack.c.l.b16 %v52
  %v297 = vunpack.c.l.b16 %v53
  %v298 = vunpack.c.l.b16 %v54
  %v299 = vunpack.c.l.b16 %v55
  %v300 = vunpack.c.l.b16 %v56
  %v301 = vunpack.c.l.b16 %v57
  %v302 = vunpack.c.l.b16 %v58
  %v303 = vunpack.c.l.b16 %v59
  %v304 = vunpack.c.l.b16 %v60
  %v305 = vunpack.c.l.b16 %v61
  %v306 = vunpack.c.l.b16 %v62
  %v307 = vunpack.c.l.b16 %v63
  %v308 = vunpack.c.l.b16 %v64
  %v309 = vunpack.c.l.b16 %v65
  %v310 = vunpack.c.l.b16 %v66
  %v311 = vunpack.c.l.b16 %v67
  %v312 = vunpack.c.l.b16 %v68
  %v313 = vunpack.c.l.b16 %v69
  %v314 = vunpack.c.l.b16 %v70
  %v315 = vunpack.c.l.b16 %v71
  %v316 = vunpack.c.l.b16 %v72
  %v317 = vunpack.c.l.b16 %v73
  %v318 = vunpack.c.l.b16 %v74
  %v319 = vunpack.c.l.b16 %v75
  %v320 = vunpack.c.l.b16 %v76
  %v321 = vunpack.c.l.b16 %v77
  %v322 = vunpack.c.l.b16 %v78
  %v323 = vunpack.c.l.b16 %v79
  %v324 = vunpack.c.l.b16 %v80
  %v325 = vunpack.c.l.b16 %v81
  %v326 = vunpack.c.l.b16 %v82
  %v327 = vunpack.c.l.b16 %v83
  %v328 = vunpack.c.l.b16 %v84
  %v329 = vunpack.c.l.b16 %v85
  %v330 = vunpack.c.l.b16 %v86
  %v331 = vunpack.c.l.b16 %v87
  %v332 = vunpack.c.l.b16 %v88
  %v333 = vunpack.c.l.b16 %v89
  %v334 = vunpack.c.l.b16 %v90
  %v335 = vunpack.c.l.b16 %v91
  %v336 = vunpack.c.l.b16 %v92
  %v337 = vunpack.c.l.b16 %v93
  %v338 = vunpack.c.l.b16 %v94
  %v339 = vunpack.c.l.b16 %v95
  %v340 = vunpack.c.l.b16 %v96
  %v341 = vunpack.c.l.b16 %v97
  %v342 = vunpack.c.l.b16 %v98
  %v343 = vunpack.c.l.b16 %v99
  %v344 = vunpack.c.l.b16 %v100
  %v345 = vunpack.c.l.b16 %v101
  %v346 = vunpack.c.l.b16 %v102
  %v347 = vunpack.c.l.b16 %v103
  %v348 = vunpack.c.l.b16 %v104
  %v349 = vunpack.c.l.b16 %v105
  %v350 = vunpack.c.l.b16 %v106
  %v351 = vunpack.c.l.b16 %v107
  %v352 = vpack.c.b16 %v281, %v280
  %v353 = vpack.c.b16 %v283, %v282
  %v354 = vpack.c.b16 %v285, %v284
  %v355 = vpack.c.b16 %v287, %v286
  %v356 = vpack.c.b16 %v289, %v288
  %v357 = vpack.c.b16 %v291, %v290
  %v358 = vpack.c.b16 %v293, %v292
  %v359 = vpack.c.b16 %v295, %v294
  %v360 = vpack.c.b16 %v297, %v296
  %v361 = vpack.c.b16 %v299, %v298
  %v362 = vpack.c.b16 %v301, %v300
  %v363 = vpack.c.b16 %v303, %v302
  %v364 = vpack.c.b16 %v305, %v304
  %v365 = vpack.c.b16 %v307, %v306
  %v366 = vpack.c.b16 %v309, %v308
  %v367 = vpack.c.b16 %v311, %v310
  %v368 = vpack.c.b16 %v313, %v312
  %v369 = vpack.c.b16 %v315, %v314
  %v370 = vpack.c.b16 %v317, %v316
  %v371 = vpack.c.b16 %v319, %v318
  %v372 = vpack.c.b16 %v321, %v320
  %v373 = vpack.c.b16 %v323, %v322
  %v374 = vpack.c.b16 %v325, %v324
  %v375 = vpack.c.b16 %v327, %v326
  %v376 = vpack.c.b16 %v329, %v328
  %v377 = vpack.c.b16 %v331, %v330
  %v378 = vpack.c.b16 %v333, %v332
  %v379 = vpack.c.b16 %v335, %v334
  %v380 = vpack.c.b16 %v337, %v336
  %v381 = vpack.c.b16 %v339, %v338
  %v382 = vpack.c.b16 %v341, %v340
  %v383 = vpack.c.b16 %v343, %v342
  %v384 = vpack.c.b16 %v345, %v344
  %v385 = vpack.c.b16 %v347, %v346
  %v386 = vpack.c.b16 %v349, %v348
  %v387 = vpack.c.b16 %v351, %v350
  %vm424 = vcmask 523264
  %v426 = vsel %vm424, %v176, 0
  %v429 = vsel %vm424, %v181, 0
  %v432 = vsel %vm424, %v186, 0
  %v435 = vsel %vm424, %v191, 0
  %437 = vmatprep.subr.bf16.mxu0 0
  %438 = vmatpush1.bf16.msra.mxu0 %v352
  %439 = vmatprep.subr.bf16.mxu0 0
  %440 = vmatpush1.bf16.msra.mxu0 %v353
  %441 = vmatprep.subr.bf16.mxu0 0
  %442 = vmatpush1.bf16.msra.mxu0 %v354
  %443 = vmatprep.subr.bf16.mxu0 0
  %444 = vmatpush1.bf16.msra.mxu0 %v355
  %445 = vmatprep.subr.bf16.mxu0 0
  %446 = vmatpush1.bf16.msra.mxu0 %v356
  %447 = vmatprep.subr.bf16.mxu0 0
  %448 = vmatpush1.bf16.msra.mxu0 %v357
  %449 = vmatprep.subr.bf16.mxu0 0
  %450 = vmatpush1.bf16.msra.mxu0 %v358
  %451 = vmatprep.subr.bf16.mxu0 0
  %452 = vmatpush1.bf16.msra.mxu0 %v359
  %453 = vmatprep.subr.bf16.mxu0 0
  %454 = vmatpush1.bf16.msra.mxu0 %v360
  %455 = vmatprep.subr.bf16.mxu0 0
  %456 = vmatpush1.bf16.msra.mxu0 %v361
  %457 = vmatprep.subr.bf16.mxu0 0
  %458 = vmatpush1.bf16.msra.mxu0 %v362
  %459 = vmatprep.subr.bf16.mxu0 0
  %460 = vmatpush1.bf16.msra.mxu0 %v363
  %461 = vmatprep.subr.bf16.mxu0 0
  %462 = vmatpush1.bf16.msra.mxu0 %v364
  %463 = vmatprep.subr.bf16.mxu0 0
  %464 = vmatpush1.bf16.msra.mxu0 %v365
  %465 = vmatprep.subr.bf16.mxu0 0
  %466 = vmatpush1.bf16.msra.mxu0 %v366
  %467 = vmatprep.subr.bf16.mxu0 0
  %468 = vmatpush1.bf16.msra.mxu0 %v367
  %469 = vmatprep.mubr.bf16.mxu0 %v173
  %470 = vmatmul.mubr.bf16.gmra.mrb[0].mxu0 %v172
  %v471 = vpop.f32.mrb[0].mxu0
  %v472 = vadd.f32 0.0, %v471
  %v473 = vpop.f32.mrb[0].mxu0
  %v474 = vpop.f32.mrb[0].mxu0
  %v475 = vadd.f32 0.0, %v474
  %v476 = vpop.f32.mrb[0].mxu0
  %477 = vmatprep.mubr.bf16.mxu0 %v178
  %478 = vmatmul.mubr.bf16.gmra.mrb[0].mxu0 %v177
  %v479 = vpop.f32.mrb[0].mxu0
  %v480 = vadd.f32 0.0, %v479
  %v481 = vpop.f32.mrb[0].mxu0
  %v482 = vpop.f32.mrb[0].mxu0
  %v483 = vadd.f32 0.0, %v482
  %v484 = vpop.f32.mrb[0].mxu0
  %485 = vmatprep.mubr.bf16.mxu0 %v183
  %486 = vmatmul.mubr.bf16.gmra.mrb[0].mxu0 %v182
  %v487 = vpop.f32.mrb[0].mxu0
  %v488 = vadd.f32 0.0, %v487
  %v489 = vpop.f32.mrb[0].mxu0
  %v490 = vpop.f32.mrb[0].mxu0
  %v491 = vadd.f32 0.0, %v490
  %v492 = vpop.f32.mrb[0].mxu0
  %493 = vmatprep.mubr.bf16.mxu0 %v188
  %494 = vmatmul.mubr.bf16.gmra.mrb[0].mxu0 %v187
  %v495 = vpop.f32.mrb[0].mxu0
  %v496 = vadd.f32 0.0, %v495
  %v497 = vpop.f32.mrb[0].mxu0
  %v498 = vpop.f32.mrb[0].mxu0
  %v499 = vadd.f32 0.0, %v498
  %v500 = vpop.f32.mrb[0].mxu0
  %501 = vdwg.mxu0
  %502 = vmatprep.subr.bf16.mxu0 0
  %503 = vmatpush1.bf16.msra.mxu0 %v368
  %504 = vmatprep.subr.bf16.mxu0 0
  %505 = vmatpush1.bf16.msra.mxu0 %v369
  %506 = vmatprep.subr.bf16.mxu0 0
  %507 = vmatpush1.bf16.msra.mxu0 %v370
  %508 = vmatprep.subr.bf16.mxu0 0
  %509 = vmatpush1.bf16.msra.mxu0 %v371
  %510 = vmatprep.subr.bf16.mxu0 0
  %511 = vmatpush1.bf16.msra.mxu0 %v372
  %512 = vmatprep.subr.bf16.mxu0 0
  %513 = vmatpush1.bf16.msra.mxu0 %v373
  %514 = vmatprep.subr.bf16.mxu0 0
  %515 = vmatpush1.bf16.msra.mxu0 %v374
  %516 = vmatprep.subr.bf16.mxu0 0
  %517 = vmatpush1.bf16.msra.mxu0 %v375
  %518 = vmatprep.subr.bf16.mxu0 0
  %519 = vmatpush1.bf16.msra.mxu0 %v376
  %520 = vmatprep.subr.bf16.mxu0 0
  %521 = vmatpush1.bf16.msra.mxu0 %v377
  %522 = vmatprep.subr.bf16.mxu0 0
  %523 = vmatpush1.bf16.msra.mxu0 %v378
  %524 = vmatprep.subr.bf16.mxu0 0
  %525 = vmatpush1.bf16.msra.mxu0 %v379
  %526 = vmatprep.subr.bf16.mxu0 0
  %527 = vmatpush1.bf16.msra.mxu0 %v380
  %528 = vmatprep.subr.bf16.mxu0 0
  %529 = vmatpush1.bf16.msra.mxu0 %v381
  %530 = vmatprep.subr.bf16.mxu0 0
  %531 = vmatpush1.bf16.msra.mxu0 %v382
  %532 = vmatprep.subr.bf16.mxu0 0
  %533 = vmatpush1.bf16.msra.mxu0 %v383
  %534 = vmatprep.mubr.bf16.mxu0 %v175
  %535 = vmatmul.mubr.bf16.gmra.mrb[0].mxu0 %v174
  %v536 = vpop.f32.mrb[0].mxu0
  %v537 = vadd.f32 %v472, %v536
  %v538 = vpop.f32.mrb[0].mxu0
  %v539 = vpop.f32.mrb[0].mxu0
  %v540 = vadd.f32 %v475, %v539
  %v541 = vpop.f32.mrb[0].mxu0
  %542 = vmatprep.mubr.bf16.mxu0 %v180
  %543 = vmatmul.mubr.bf16.gmra.mrb[0].mxu0 %v179
  %v544 = vpop.f32.mrb[0].mxu0
  %v545 = vadd.f32 %v480, %v544
  %v546 = vpop.f32.mrb[0].mxu0
  %v547 = vpop.f32.mrb[0].mxu0
  %v548 = vadd.f32 %v483, %v547
  %v549 = vpop.f32.mrb[0].mxu0
  %550 = vmatprep.mubr.bf16.mxu0 %v185
  %551 = vmatmul.mubr.bf16.gmra.mrb[0].mxu0 %v184
  %v552 = vpop.f32.mrb[0].mxu0
  %v553 = vadd.f32 %v488, %v552
  %v554 = vpop.f32.mrb[0].mxu0
  %v555 = vpop.f32.mrb[0].mxu0
  %v556 = vadd.f32 %v491, %v555
  %v557 = vpop.f32.mrb[0].mxu0
  %558 = vmatprep.mubr.bf16.mxu0 %v190
  %559 = vmatmul.mubr.bf16.gmra.mrb[0].mxu0 %v189
  %v560 = vpop.f32.mrb[0].mxu0
  %v561 = vadd.f32 %v496, %v560
  %v562 = vpop.f32.mrb[0].mxu0
  %v563 = vpop.f32.mrb[0].mxu0
  %v564 = vadd.f32 %v499, %v563
  %v565 = vpop.f32.mrb[0].mxu0
  %566 = vdwg.mxu0
  %567 = vmatprep.subr.bf16.mxu0 0
  %568 = vmatpush1.bf16.msra.mxu0 %v384
  %569 = vmatprep.subr.bf16.mxu0 0
  %570 = vmatpush1.bf16.msra.mxu0 %v385
  %571 = vmatprep.subr.bf16.mxu0 0
  %572 = vmatpush1.bf16.msra.mxu0 %v386
  %573 = vmatprep.subr.bf16.mxu0 0
  %574 = vmatpush1.bf16.msra.mxu0 %v387
  %575 = vmatprep.subr.bf16.mxu0 0
  %576 = vmatpush1.bf16.msra.mxu0 0
  %577 = vmatprep.subr.bf16.mxu0 0
  %578 = vmatpush1.bf16.msra.mxu0 0
  %579 = vmatprep.subr.bf16.mxu0 0
  %580 = vmatpush1.bf16.msra.mxu0 0
  %581 = vmatprep.subr.bf16.mxu0 0
  %582 = vmatpush1.bf16.msra.mxu0 0
  %583 = vmatprep.subr.bf16.mxu0 0
  %584 = vmatpush1.bf16.msra.mxu0 0
  %585 = vmatprep.subr.bf16.mxu0 0
  %586 = vmatpush1.bf16.msra.mxu0 0
  %587 = vmatprep.subr.bf16.mxu0 0
  %588 = vmatpush1.bf16.msra.mxu0 0
  %589 = vmatprep.subr.bf16.mxu0 0
  %590 = vmatpush1.bf16.msra.mxu0 0
  %591 = vmatprep.subr.bf16.mxu0 0
  %592 = vmatpush1.bf16.msra.mxu0 0
  %593 = vmatprep.subr.bf16.mxu0 0
  %594 = vmatpush1.bf16.msra.mxu0 0
  %595 = vmatprep.subr.bf16.mxu0 0
  %596 = vmatpush1.bf16.msra.mxu0 0
  %597 = vmatprep.subr.bf16.mxu0 0
  %598 = vmatpush1.bf16.msra.mxu0 0
  %599 = vmatprep.mubr.bf16.mxu0 0
  %600 = vmatmul.mubr.bf16.gmra.mrb[0].mxu0 %v426
  %v601 = vpop.f32.mrb[0].mxu0
  %v602 = vadd.f32 %v537, %v601
  %v603 = vpop.f32.mrb[0].mxu0
  %v604 = vpop.f32.mrb[0].mxu0
  %v605 = vadd.f32 %v540, %v604
  %v606 = vpop.f32.mrb[0].mxu0
  %607 = vmatprep.mubr.bf16.mxu0 0
  %608 = vmatmul.mubr.bf16.gmra.mrb[0].mxu0 %v429
  %v609 = vpop.f32.mrb[0].mxu0
  %v610 = vadd.f32 %v545, %v609
  %v611 = vpop.f32.mrb[0].mxu0
  %v612 = vpop.f32.mrb[0].mxu0
  %v613 = vadd.f32 %v548, %v612
  %v614 = vpop.f32.mrb[0].mxu0
  %615 = vmatprep.mubr.bf16.mxu0 0
  %616 = vmatmul.mubr.bf16.gmra.mrb[0].mxu0 %v432
  %v617 = vpop.f32.mrb[0].mxu0
  %v618 = vadd.f32 %v553, %v617
  %v619 = vpop.f32.mrb[0].mxu0
  %v620 = vpop.f32.mrb[0].mxu0
  %v621 = vadd.f32 %v556, %v620
  %v622 = vpop.f32.mrb[0].mxu0
  %623 = vmatprep.mubr.bf16.mxu0 0
  %624 = vmatmul.mubr.bf16.gmra.mrb[0].mxu0 %v435
  %v625 = vpop.f32.mrb[0].mxu0
  %v626 = vadd.f32 %v561, %v625
  %v627 = vpop.f32.mrb[0].mxu0
  %v628 = vpop.f32.mrb[0].mxu0
  %v629 = vadd.f32 %v564, %v628
  %v630 = vpop.f32.mrb[0].mxu0
  %631 = vdwg.mxu0
  %v632 = vlaneseq
  %v633 = vand.u32 %v632, 127
  %vm634 = vcmp.lt.s32.totalorder %v633, 18
  %v635 = vsel %vm634, %v602, 0.0
  %v636 = vsel %vm634, %v605, 0.0
  %v637 = vsel %vm634, %v610, 0.0
  %v638 = vsel %vm634, %v613, 0.0
  %v639 = vsel %vm634, %v618, 0.0
  %v640 = vsel %vm634, %v621, 0.0
  %v641 = vsel %vm634, %v626, 0.0
  %v642 = vsel %vm634, %v629, 0.0
  %643 = vadd.xlane.f32.xlu0 %v635
  %v644 = vpop.xlane.xlu0 %643
  %645 = vadd.xlane.f32.xlu0 %v636
  %v646 = vpop.xlane.xlu0 %645
  %647 = vadd.xlane.f32.xlu0 %v637
  %v648 = vpop.xlane.xlu0 %647
  %649 = vadd.xlane.f32.xlu0 %v638
  %v650 = vpop.xlane.xlu0 %649
  %651 = vadd.xlane.f32.xlu0 %v639
  %v652 = vpop.xlane.xlu0 %651
  %653 = vadd.xlane.f32.xlu0 %v640
  %v654 = vpop.xlane.xlu0 %653
  %655 = vadd.xlane.f32.xlu0 %v641
  %v656 = vpop.xlane.xlu0 %655
  %657 = vadd.xlane.f32.xlu0 %v642
  %v658 = vpop.xlane.xlu0 %657
  %v659 = vmul.f32 %v644, 0.055555556
  %v660 = vmul.f32 %v646, 0.055555556
  %v661 = vmul.f32 %v648, 0.055555556
  %v662 = vmul.f32 %v650, 0.055555556
  %v663 = vmul.f32 %v652, 0.055555556
  %v664 = vmul.f32 %v654, 0.055555556
  %v665 = vmul.f32 %v656, 0.055555556
  %v666 = vmul.f32 %v658, 0.055555556
  %v667 = vmul.f32 %v635, %v635
  %v668 = vmul.f32 %v636, %v636
  %v669 = vmul.f32 %v637, %v637
  %v670 = vmul.f32 %v638, %v638
  %v671 = vmul.f32 %v639, %v639
  %v672 = vmul.f32 %v640, %v640
  %v673 = vmul.f32 %v641, %v641
  %v674 = vmul.f32 %v642, %v642
  %675 = vadd.xlane.f32.xlu0 %v667
  %v676 = vpop.xlane.xlu0 %675
  %677 = vadd.xlane.f32.xlu0 %v668
  %v678 = vpop.xlane.xlu0 %677
  %679 = vadd.xlane.f32.xlu0 %v669
  %v680 = vpop.xlane.xlu0 %679
  %681 = vadd.xlane.f32.xlu0 %v670
  %v682 = vpop.xlane.xlu0 %681
  %683 = vadd.xlane.f32.xlu0 %v671
  %v684 = vpop.xlane.xlu0 %683
  %685 = vadd.xlane.f32.xlu0 %v672
  %v686 = vpop.xlane.xlu0 %685
  %687 = vadd.xlane.f32.xlu0 %v673
  %v688 = vpop.xlane.xlu0 %687
  %689 = vadd.xlane.f32.xlu0 %v674
  %v690 = vpop.xlane.xlu0 %689
  %v691 = vmul.f32 %v676, 0.055555556
  %v692 = vmul.f32 %v678, 0.055555556
  %v693 = vmul.f32 %v680, 0.055555556
  %v694 = vmul.f32 %v682, 0.055555556
  %v695 = vmul.f32 %v684, 0.055555556
  %v696 = vmul.f32 %v686, 0.055555556
  %v697 = vmul.f32 %v688, 0.055555556
  %v698 = vmul.f32 %v690, 0.055555556
  %v699 = vmul.f32 %v659, %v659
  %v700 = vmul.f32 %v660, %v660
  %v701 = vmul.f32 %v661, %v661
  %v702 = vmul.f32 %v662, %v662
  %v703 = vmul.f32 %v663, %v663
  %v704 = vmul.f32 %v664, %v664
  %v705 = vmul.f32 %v665, %v665
  %v706 = vmul.f32 %v666, %v666
  %v707 = vsub.f32 %v691, %v699
  %v708 = vsub.f32 %v692, %v700
  %v709 = vsub.f32 %v693, %v701
  %v710 = vsub.f32 %v694, %v702
  %v711 = vsub.f32 %v695, %v703
  %v712 = vsub.f32 %v696, %v704
  %v713 = vsub.f32 %v697, %v705
  %v714 = vsub.f32 %v698, %v706
  %v715 = vmax.f32 %v707, 0.0
  %v716 = vmax.f32 %v708, 0.0
  %v717 = vmax.f32 %v709, 0.0
  %v718 = vmax.f32 %v710, 0.0
  %v719 = vmax.f32 %v711, 0.0
  %v720 = vmax.f32 %v712, 0.0
  %v721 = vmax.f32 %v713, 0.0
  %v722 = vmax.f32 %v714, 0.0
  %v723 = vsub.f32 %v602, %v659
  %v724 = vsub.f32 %v605, %v660
  %v725 = vsub.f32 %v610, %v661
  %v726 = vsub.f32 %v613, %v662
  %v727 = vsub.f32 %v618, %v663
  %v728 = vsub.f32 %v621, %v664
  %v729 = vsub.f32 %v626, %v665
  %v730 = vsub.f32 %v629, %v666
  %v731 = vadd.f32 %v715, 1e-05
  %v732 = vadd.f32 %v716, 1e-05
  %v733 = vadd.f32 %v717, 1e-05
  %v734 = vadd.f32 %v718, 1e-05
  %v735 = vadd.f32 %v719, 1e-05
  %v736 = vadd.f32 %v720, 1e-05
  %v737 = vadd.f32 %v721, 1e-05
  %v738 = vadd.f32 %v722, 1e-05
  %v739 = vrsqrt.pop %v731
  %v740 = vrsqrt.pop %v732
  %v741 = vrsqrt.pop %v733
  %v742 = vrsqrt.pop %v734
  %v743 = vrsqrt.pop %v735
  %v744 = vrsqrt.pop %v736
  %v745 = vrsqrt.pop %v737
  %v746 = vrsqrt.pop %v738
  %v747 = vmul.f32 %v723, %v739
  %v748 = vmul.f32 %v724, %v740
  %v749 = vmul.f32 %v725, %v741
  %v750 = vmul.f32 %v726, %v742
  %v751 = vmul.f32 %v727, %v743
  %v752 = vmul.f32 %v728, %v744
  %v753 = vmul.f32 %v729, %v745
  %v754 = vmul.f32 %v730, %v746
  %v755 = vmul.f32 %v747, 0.01
  %v756 = vmul.f32 %v748, 0.01
  %v757 = vmul.f32 %v749, 0.01
  %v758 = vmul.f32 %v750, 0.01
  %v759 = vmul.f32 %v751, 0.01
  %v760 = vmul.f32 %v752, 0.01
  %v761 = vmul.f32 %v753, 0.01
  %v762 = vmul.f32 %v754, 0.01
  %v763 = vmax.f32 %v747, %v755
  %v764 = vmax.f32 %v748, %v756
  %v765 = vmax.f32 %v749, %v757
  %v766 = vmax.f32 %v750, %v758
  %v767 = vmax.f32 %v751, %v759
  %v768 = vmax.f32 %v752, %v760
  %v769 = vmax.f32 %v753, %v761
  %v770 = vmax.f32 %v754, %v762
  %771 = vst [vmem:[%s2] sm:$0xff] %v763
  %772 = vst [vmem:[%s2 + $0x8] sm:$0xff] %v764
  %773 = vst [vmem:[%s2 + $0x10] sm:$0xff] %v765
  %774 = vst [vmem:[%s2 + $0x18] sm:$0xff] %v766
  %775 = vst [vmem:[%s2 + $0x20] sm:$0xff] %v767
  %776 = vst [vmem:[%s2 + $0x28] sm:$0xff] %v768
  %777 = vst [vmem:[%s2 + $0x30] sm:$0xff] %v769
  %778 = vst [vmem:[%s2 + $0x38] sm:$0xff] %v770
  // Predicated region
  $region10: #{conv_deconv_forward.18} parent=0 // pred_check
    _
  $region11: #{conv_deconv_forward.18} parent=0 // pred_check_branch
    %780 = sbr.rel (0) target = $region13
  $region12: #{conv_deconv_forward.18} parent=0 // pred_region
    _
  $region13: #{conv_deconv_forward.18} parent=0 // pred_fallthru
    _
  // Predicated region
  $region14: #{conv_deconv_forward.18} parent=0 // pred_check
    _
  $region15: #{conv_deconv_forward.18} parent=0 // pred_check_branch
    %782 = sbr.rel (0) target = $region17
  $region16: #{conv_deconv_forward.18} parent=0 // pred_region
    _
  $region17: #{conv_deconv_forward.18} parent=0 // pred_fallthru
    _

// kernel: conv_deconv_forward.19
$region0: #{conv_deconv_forward.19}
  #allocation0 [shape = 'u32[]', space=smem, size = 0x4, offset = 0x4, fixed_abs, tag = 'smem constant byte address 0x4 - core index']
  #allocation1 [shape = 'u32[144,128]{1,0:T(1,128)}', space=vmem, size = 0x12000, scoped, tag = 'internal scratch']
  %s0 = inlined_call_operand.vmem [shape: bf16[32,576], index: 0, kind: input, shape index: {}]
  %s1 = inlined_call_operand.vmem [shape: bf16[576,128], index: 1, kind: input, shape index: {}]
  %s2 = inlined_call_operand.vmem [shape: f32[32,128], index: 2, kind: output, shape index: {}]
  %s3 = sld [smem:[#allocation0]]
  $region18: #{conv_deconv_forward.19} parent=0
    _
  %s5 = ssub.s32 1, %s3
  %s6 = scalar_select 0, %s5, %s3
  // Predicated region
  $region2: #{conv_deconv_forward.19} parent=0 // pred_check
    _
  $region3: #{conv_deconv_forward.19} parent=0 // pred_check_branch
    %8 = sbr.rel (0) target = $region5
  $region4: #{conv_deconv_forward.19} parent=0 // pred_region
    _
  $region5: #{conv_deconv_forward.19} parent=0 // pred_fallthru
    _
  // Predicated region
  $region6: #{conv_deconv_forward.19} parent=0 // pred_check
    _
  $region7: #{conv_deconv_forward.19} parent=0 // pred_check_branch
    %10 = sbr.rel (0) target = $region9
  $region8: #{conv_deconv_forward.19} parent=0 // pred_region
    _
  $region9: #{conv_deconv_forward.19} parent=0 // pred_fallthru
    _
  %v12 = vld [vmem:[%s0] sm:$0xff]
  %v13 = vld [vmem:[%s0 + $0x8] sm:$0xff]
  %v14 = vld [vmem:[%s0 + $0x10] sm:$0xf]
  %v15 = vld [vmem:[%s0 + $0x14] sm:$0xff]
  %v16 = vld [vmem:[%s0 + $0x1c] sm:$0xff]
  %v17 = vld [vmem:[%s0 + $0x24] sm:$0xf]
  %v18 = vld [vmem:[%s0 + $0x28] sm:$0xff]
  %v19 = vld [vmem:[%s0 + $0x30] sm:$0xff]
  %v20 = vld [vmem:[%s0 + $0x38] sm:$0xf]
  %v21 = vld [vmem:[%s0 + $0x3c] sm:$0xff]
  %v22 = vld [vmem:[%s0 + $0x44] sm:$0xff]
  %v23 = vld [vmem:[%s0 + $0x4c] sm:$0xf]
  %v24 = vld [vmem:[%s1] sm:$0xf]
  %v25 = vld [vmem:[%s1 + $0x4] sm:$0xf]
  %v26 = vld [vmem:[%s1 + $0x8] sm:$0xf]
  %v27 = vld [vmem:[%s1 + $0xc] sm:$0xf]
  %v28 = vld [vmem:[%s1 + $0x10] sm:$0xf]
  %v29 = vld [vmem:[%s1 + $0x14] sm:$0xf]
  %v30 = vld [vmem:[%s1 + $0x18] sm:$0xf]
  %v31 = vld [vmem:[%s1 + $0x1c] sm:$0xf]
  %v32 = vld [vmem:[%s1 + $0x20] sm:$0xf]
  %v33 = vld [vmem:[%s1 + $0x24] sm:$0xf]
  %v34 = vld [vmem:[%s1 + $0x28] sm:$0xf]
  %v35 = vld [vmem:[%s1 + $0x2c] sm:$0xf]
  %v36 = vld [vmem:[%s1 + $0x30] sm:$0xf]
  %v37 = vld [vmem:[%s1 + $0x34] sm:$0xf]
  %v38 = vld [vmem:[%s1 + $0x38] sm:$0xf]
  %v39 = vld [vmem:[%s1 + $0x3c] sm:$0xf]
  %v40 = vld [vmem:[%s1 + $0x40] sm:$0xf]
  %v41 = vld [vmem:[%s1 + $0x44] sm:$0xf]
  %v42 = vld [vmem:[%s1 + $0x48] sm:$0xf]
  %v43 = vld [vmem:[%s1 + $0x4c] sm:$0xf]
  %v44 = vld [vmem:[%s1 + $0x50] sm:$0xf]
  %v45 = vld [vmem:[%s1 + $0x54] sm:$0xf]
  %v46 = vld [vmem:[%s1 + $0x58] sm:$0xf]
  %v47 = vld [vmem:[%s1 + $0x5c] sm:$0xf]
  %v48 = vld [vmem:[%s1 + $0x60] sm:$0xf]
  %v49 = vld [vmem:[%s1 + $0x64] sm:$0xf]
  %v50 = vld [vmem:[%s1 + $0x68] sm:$0xf]
  %v51 = vld [vmem:[%s1 + $0x6c] sm:$0xf]
  %v52 = vld [vmem:[%s1 + $0x70] sm:$0xf]
  %v53 = vld [vmem:[%s1 + $0x74] sm:$0xf]
  %v54 = vld [vmem:[%s1 + $0x78] sm:$0xf]
  %v55 = vld [vmem:[%s1 + $0x7c] sm:$0xf]
  %v56 = vld [vmem:[%s1 + $0x80] sm:$0xf]
  %v57 = vld [vmem:[%s1 + $0x84] sm:$0xf]
  %v58 = vld [vmem:[%s1 + $0x88] sm:$0xf]
  %v59 = vld [vmem:[%s1 + $0x8c] sm:$0xf]
  %v60 = vld [vmem:[%s1 + $0x90] sm:$0xf]
  %v61 = vld [vmem:[%s1 + $0x94] sm:$0xf]
  %v62 = vld [vmem:[%s1 + $0x98] sm:$0xf]
  %v63 = vld [vmem:[%s1 + $0x9c] sm:$0xf]
  %v64 = vld [vmem:[%s1 + $0xa0] sm:$0xf]
  %v65 = vld [vmem:[%s1 + $0xa4] sm:$0xf]
  %v66 = vld [vmem:[%s1 + $0xa8] sm:$0xf]
  %v67 = vld [vmem:[%s1 + $0xac] sm:$0xf]
  %v68 = vld [vmem:[%s1 + $0xb0] sm:$0xf]
  %v69 = vld [vmem:[%s1 + $0xb4] sm:$0xf]
  %v70 = vld [vmem:[%s1 + $0xb8] sm:$0xf]
  %v71 = vld [vmem:[%s1 + $0xbc] sm:$0xf]
  %v72 = vld [vmem:[%s1 + $0xc0] sm:$0xf]
  %v73 = vld [vmem:[%s1 + $0xc4] sm:$0xf]
  %v74 = vld [vmem:[%s1 + $0xc8] sm:$0xf]
  %v75 = vld [vmem:[%s1 + $0xcc] sm:$0xf]
  %v76 = vld [vmem:[%s1 + $0xd0] sm:$0xf]
  %v77 = vld [vmem:[%s1 + $0xd4] sm:$0xf]
  %v78 = vld [vmem:[%s1 + $0xd8] sm:$0xf]
  %v79 = vld [vmem:[%s1 + $0xdc] sm:$0xf]
  %v80 = vld [vmem:[%s1 + $0xe0] sm:$0xf]
  %v81 = vld [vmem:[%s1 + $0xe4] sm:$0xf]
  %v82 = vld [vmem:[%s1 + $0xe8] sm:$0xf]
  %v83 = vld [vmem:[%s1 + $0xec] sm:$0xf]
  %v84 = vld [vmem:[%s1 + $0xf0] sm:$0xf]
  %v85 = vld [vmem:[%s1 + $0xf4] sm:$0xf]
  %v86 = vld [vmem:[%s1 + $0xf8] sm:$0xf]
  %v87 = vld [vmem:[%s1 + $0xfc] sm:$0xf]
  %v88 = vld [vmem:[%s1 + $0x100] sm:$0xf]
  %v89 = vld [vmem:[%s1 + $0x104] sm:$0xf]
  %v90 = vld [vmem:[%s1 + $0x108] sm:$0xf]
  %v91 = vld [vmem:[%s1 + $0x10c] sm:$0xf]
  %v92 = vld [vmem:[%s1 + $0x110] sm:$0xf]
  %v93 = vld [vmem:[%s1 + $0x114] sm:$0xf]
  %v94 = vld [vmem:[%s1 + $0x118] sm:$0xf]
  %v95 = vld [vmem:[%s1 + $0x11c] sm:$0xf]
  %v108 = vunpack.c.l.b16 %v12
  %v109 = vunpack.c.h.b16 %v12
  %v110 = vunpack.c.l.b16 %v13
  %v111 = vunpack.c.h.b16 %v13
  %v112 = vunpack.c.l.b16 %v14
  %v113 = vunpack.c.l.b16 %v15
  %v114 = vunpack.c.h.b16 %v15
  %v115 = vunpack.c.l.b16 %v16
  %v116 = vunpack.c.h.b16 %v16
  %v117 = vunpack.c.l.b16 %v17
  %v118 = vunpack.c.l.b16 %v18
  %v119 = vunpack.c.h.b16 %v18
  %v120 = vunpack.c.l.b16 %v19
  %v121 = vunpack.c.h.b16 %v19
  %v122 = vunpack.c.l.b16 %v20
  %v123 = vunpack.c.l.b16 %v21
  %v124 = vunpack.c.h.b16 %v21
  %v125 = vunpack.c.l.b16 %v22
  %v126 = vunpack.c.h.b16 %v22
  %v127 = vunpack.c.l.b16 %v23
  %v128 = vpack.c.b16 %v113, %v108
  %v129 = vpack.c.b16 %v114, %v109
  %v130 = vpack.c.b16 %v115, %v110
  %v131 = vpack.c.b16 %v116, %v111
  %v132 = vpack.c.b16 %v117, %v112
  %v133 = vpack.c.b16 %v123, %v118
  %v134 = vpack.c.b16 %v124, %v119
  %v135 = vpack.c.b16 %v125, %v120
  %v136 = vpack.c.b16 %v126, %v121
  %v137 = vpack.c.b16 %v127, %v122
  %v218 = vunpack.c.l.b16 %v24
  %v219 = vunpack.c.l.b16 %v25
  %v220 = vunpack.c.l.b16 %v26
  %v221 = vunpack.c.l.b16 %v27
  %v222 = vunpack.c.l.b16 %v28
  %v223 = vunpack.c.l.b16 %v29
  %v224 = vunpack.c.l.b16 %v30
  %v225 = vunpack.c.l.b16 %v31
  %v226 = vunpack.c.l.b16 %v32
  %v227 = vunpack.c.l.b16 %v33
  %v228 = vunpack.c.l.b16 %v34
  %v229 = vunpack.c.l.b16 %v35
  %v230 = vunpack.c.l.b16 %v36
  %v231 = vunpack.c.l.b16 %v37
  %v232 = vunpack.c.l.b16 %v38
  %v233 = vunpack.c.l.b16 %v39
  %v234 = vunpack.c.l.b16 %v40
  %v235 = vunpack.c.l.b16 %v41
  %v236 = vunpack.c.l.b16 %v42
  %v237 = vunpack.c.l.b16 %v43
  %v238 = vunpack.c.l.b16 %v44
  %v239 = vunpack.c.l.b16 %v45
  %v240 = vunpack.c.l.b16 %v46
  %v241 = vunpack.c.l.b16 %v47
  %v242 = vunpack.c.l.b16 %v48
  %v243 = vunpack.c.l.b16 %v49
  %v244 = vunpack.c.l.b16 %v50
  %v245 = vunpack.c.l.b16 %v51
  %v246 = vunpack.c.l.b16 %v52
  %v247 = vunpack.c.l.b16 %v53
  %v248 = vunpack.c.l.b16 %v54
  %v249 = vunpack.c.l.b16 %v55
  %v250 = vunpack.c.l.b16 %v56
  %v251 = vunpack.c.l.b16 %v57
  %v252 = vunpack.c.l.b16 %v58
  %v253 = vunpack.c.l.b16 %v59
  %v254 = vunpack.c.l.b16 %v60
  %v255 = vunpack.c.l.b16 %v61
  %v256 = vunpack.c.l.b16 %v62
  %v257 = vunpack.c.l.b16 %v63
  %v258 = vunpack.c.l.b16 %v64
  %v259 = vunpack.c.l.b16 %v65
  %v260 = vunpack.c.l.b16 %v66
  %v261 = vunpack.c.l.b16 %v67
  %v262 = vunpack.c.l.b16 %v68
  %v263 = vunpack.c.l.b16 %v69
  %v264 = vunpack.c.l.b16 %v70
  %v265 = vunpack.c.l.b16 %v71
  %v266 = vunpack.c.l.b16 %v72
  %v267 = vunpack.c.l.b16 %v73
  %v268 = vunpack.c.l.b16 %v74
  %v269 = vunpack.c.l.b16 %v75
  %v270 = vunpack.c.l.b16 %v76
  %v271 = vunpack.c.l.b16 %v77
  %v272 = vunpack.c.l.b16 %v78
  %v273 = vunpack.c.l.b16 %v79
  %v274 = vunpack.c.l.b16 %v80
  %v275 = vunpack.c.l.b16 %v81
  %v276 = vunpack.c.l.b16 %v82
  %v277 = vunpack.c.l.b16 %v83
  %v278 = vunpack.c.l.b16 %v84
  %v279 = vunpack.c.l.b16 %v85
  %v280 = vunpack.c.l.b16 %v86
  %v281 = vunpack.c.l.b16 %v87
  %v282 = vunpack.c.l.b16 %v88
  %v283 = vunpack.c.l.b16 %v89
  %v284 = vunpack.c.l.b16 %v90
  %v285 = vunpack.c.l.b16 %v91
  %v286 = vunpack.c.l.b16 %v92
  %v287 = vunpack.c.l.b16 %v93
  %v288 = vunpack.c.l.b16 %v94
  %v289 = vunpack.c.l.b16 %v95
  %v290 = vpack.c.b16 %v219, %v218
  %v291 = vpack.c.b16 %v221, %v220
  %v292 = vpack.c.b16 %v223, %v222
  %v293 = vpack.c.b16 %v225, %v224
  %v294 = vpack.c.b16 %v227, %v226
  %v295 = vpack.c.b16 %v229, %v228
  %v296 = vpack.c.b16 %v231, %v230
  %v297 = vpack.c.b16 %v233, %v232
  %v298 = vpack.c.b16 %v235, %v234
  %v299 = vpack.c.b16 %v237, %v236
  %v300 = vpack.c.b16 %v239, %v238
  %v301 = vpack.c.b16 %v241, %v240
  %v302 = vpack.c.b16 %v243, %v242
  %v303 = vpack.c.b16 %v245, %v244
  %v304 = vpack.c.b16 %v247, %v246
  %v305 = vpack.c.b16 %v249, %v248
  %v306 = vpack.c.b16 %v251, %v250
  %v307 = vpack.c.b16 %v253, %v252
  %v308 = vpack.c.b16 %v255, %v254
  %v309 = vpack.c.b16 %v257, %v256
  %v310 = vpack.c.b16 %v259, %v258
  %v311 = vpack.c.b16 %v261, %v260
  %v312 = vpack.c.b16 %v263, %v262
  %v313 = vpack.c.b16 %v265, %v264
  %v314 = vpack.c.b16 %v267, %v266
  %v315 = vpack.c.b16 %v269, %v268
  %v316 = vpack.c.b16 %v271, %v270
  %v317 = vpack.c.b16 %v273, %v272
  %v318 = vpack.c.b16 %v275, %v274
  %v319 = vpack.c.b16 %v277, %v276
  %v320 = vpack.c.b16 %v279, %v278
  %v321 = vpack.c.b16 %v281, %v280
  %v322 = vpack.c.b16 %v283, %v282
  %v323 = vpack.c.b16 %v285, %v284
  %v324 = vpack.c.b16 %v287, %v286
  %v325 = vpack.c.b16 %v289, %v288
  %vm362 = vcmask 523264
  %v364 = vsel %vm362, %v132, 0
  %v367 = vsel %vm362, %v137, 0
  %369 = vmatprep.subr.bf16.mxu0 0
  %370 = vmatpush1.bf16.msra.mxu0 %v290
  %371 = vmatprep.subr.bf16.mxu0 0
  %372 = vmatpush1.bf16.msra.mxu0 %v291
  %373 = vmatprep.subr.bf16.mxu0 0
  %374 = vmatpush1.bf16.msra.mxu0 %v292
  %375 = vmatprep.subr.bf16.mxu0 0
  %376 = vmatpush1.bf16.msra.mxu0 %v293
  %377 = vmatprep.subr.bf16.mxu0 0
  %378 = vmatpush1.bf16.msra.mxu0 %v294
  %379 = vmatprep.subr.bf16.mxu0 0
  %380 = vmatpush1.bf16.msra.mxu0 %v295
  %381 = vmatprep.subr.bf16.mxu0 0
  %382 = vmatpush1.bf16.msra.mxu0 %v296
  %383 = vmatprep.subr.bf16.mxu0 0
  %384 = vmatpush1.bf16.msra.mxu0 %v297
  %385 = vmatprep.subr.bf16.mxu0 0
  %386 = vmatpush1.bf16.msra.mxu0 %v298
  %387 = vmatprep.subr.bf16.mxu0 0
  %388 = vmatpush1.bf16.msra.mxu0 %v299
  %389 = vmatprep.subr.bf16.mxu0 0
  %390 = vmatpush1.bf16.msra.mxu0 %v300
  %391 = vmatprep.subr.bf16.mxu0 0
  %392 = vmatpush1.bf16.msra.mxu0 %v301
  %393 = vmatprep.subr.bf16.mxu0 0
  %394 = vmatpush1.bf16.msra.mxu0 %v302
  %395 = vmatprep.subr.bf16.mxu0 0
  %396 = vmatpush1.bf16.msra.mxu0 %v303
  %397 = vmatprep.subr.bf16.mxu0 0
  %398 = vmatpush1.bf16.msra.mxu0 %v304
  %399 = vmatprep.subr.bf16.mxu0 0
  %400 = vmatpush1.bf16.msra.mxu0 %v305
  %401 = vmatprep.mubr.bf16.mxu0 %v129
  %402 = vmatmul.mubr.bf16.gmra.mrb[0].mxu0 %v128
  %v403 = vpop.f32.mrb[0].mxu0
  %v404 = vadd.f32 0.0, %v403
  %v405 = vpop.f32.mrb[0].mxu0
  %v406 = vpop.f32.mrb[0].mxu0
  %v407 = vadd.f32 0.0, %v406
  %v408 = vpop.f32.mrb[0].mxu0
  %409 = vmatprep.mubr.bf16.mxu0 %v134
  %410 = vmatmul.mubr.bf16.gmra.mrb[0].mxu0 %v133
  %v411 = vpop.f32.mrb[0].mxu0
  %v412 = vadd.f32 0.0, %v411
  %v413 = vpop.f32.mrb[0].mxu0
  %v414 = vpop.f32.mrb[0].mxu0
  %v415 = vadd.f32 0.0, %v414
  %v416 = vpop.f32.mrb[0].mxu0
  %417 = vdwg.mxu0
  %418 = vmatprep.subr.bf16.mxu0 0
  %419 = vmatpush1.bf16.msra.mxu0 %v306
  %420 = vmatprep.subr.bf16.mxu0 0
  %421 = vmatpush1.bf16.msra.mxu0 %v307
  %422 = vmatprep.subr.bf16.mxu0 0
  %423 = vmatpush1.bf16.msra.mxu0 %v308
  %424 = vmatprep.subr.bf16.mxu0 0
  %425 = vmatpush1.bf16.msra.mxu0 %v309
  %426 = vmatprep.subr.bf16.mxu0 0
  %427 = vmatpush1.bf16.msra.mxu0 %v310
  %428 = vmatprep.subr.bf16.mxu0 0
  %429 = vmatpush1.bf16.msra.mxu0 %v311
  %430 = vmatprep.subr.bf16.mxu0 0
  %431 = vmatpush1.bf16.msra.mxu0 %v312
  %432 = vmatprep.subr.bf16.mxu0 0
  %433 = vmatpush1.bf16.msra.mxu0 %v313
  %434 = vmatprep.subr.bf16.mxu0 0
  %435 = vmatpush1.bf16.msra.mxu0 %v314
  %436 = vmatprep.subr.bf16.mxu0 0
  %437 = vmatpush1.bf16.msra.mxu0 %v315
  %438 = vmatprep.subr.bf16.mxu0 0
  %439 = vmatpush1.bf16.msra.mxu0 %v316
  %440 = vmatprep.subr.bf16.mxu0 0
  %441 = vmatpush1.bf16.msra.mxu0 %v317
  %442 = vmatprep.subr.bf16.mxu0 0
  %443 = vmatpush1.bf16.msra.mxu0 %v318
  %444 = vmatprep.subr.bf16.mxu0 0
  %445 = vmatpush1.bf16.msra.mxu0 %v319
  %446 = vmatprep.subr.bf16.mxu0 0
  %447 = vmatpush1.bf16.msra.mxu0 %v320
  %448 = vmatprep.subr.bf16.mxu0 0
  %449 = vmatpush1.bf16.msra.mxu0 %v321
  %450 = vmatprep.mubr.bf16.mxu0 %v131
  %451 = vmatmul.mubr.bf16.gmra.mrb[0].mxu0 %v130
  %v452 = vpop.f32.mrb[0].mxu0
  %v453 = vadd.f32 %v404, %v452
  %v454 = vpop.f32.mrb[0].mxu0
  %v455 = vpop.f32.mrb[0].mxu0
  %v456 = vadd.f32 %v407, %v455
  %v457 = vpop.f32.mrb[0].mxu0
  %458 = vmatprep.mubr.bf16.mxu0 %v136
  %459 = vmatmul.mubr.bf16.gmra.mrb[0].mxu0 %v135
  %v460 = vpop.f32.mrb[0].mxu0
  %v461 = vadd.f32 %v412, %v460
  %v462 = vpop.f32.mrb[0].mxu0
  %v463 = vpop.f32.mrb[0].mxu0
  %v464 = vadd.f32 %v415, %v463
  %v465 = vpop.f32.mrb[0].mxu0
  %466 = vdwg.mxu0
  %467 = vmatprep.subr.bf16.mxu0 0
  %468 = vmatpush1.bf16.msra.mxu0 %v322
  %469 = vmatprep.subr.bf16.mxu0 0
  %470 = vmatpush1.bf16.msra.mxu0 %v323
  %471 = vmatprep.subr.bf16.mxu0 0
  %472 = vmatpush1.bf16.msra.mxu0 %v324
  %473 = vmatprep.subr.bf16.mxu0 0
  %474 = vmatpush1.bf16.msra.mxu0 %v325
  %475 = vmatprep.subr.bf16.mxu0 0
  %476 = vmatpush1.bf16.msra.mxu0 0
  %477 = vmatprep.subr.bf16.mxu0 0
  %478 = vmatpush1.bf16.msra.mxu0 0
  %479 = vmatprep.subr.bf16.mxu0 0
  %480 = vmatpush1.bf16.msra.mxu0 0
  %481 = vmatprep.subr.bf16.mxu0 0
  %482 = vmatpush1.bf16.msra.mxu0 0
  %483 = vmatprep.subr.bf16.mxu0 0
  %484 = vmatpush1.bf16.msra.mxu0 0
  %485 = vmatprep.subr.bf16.mxu0 0
  %486 = vmatpush1.bf16.msra.mxu0 0
  %487 = vmatprep.subr.bf16.mxu0 0
  %488 = vmatpush1.bf16.msra.mxu0 0
  %489 = vmatprep.subr.bf16.mxu0 0
  %490 = vmatpush1.bf16.msra.mxu0 0
  %491 = vmatprep.subr.bf16.mxu0 0
  %492 = vmatpush1.bf16.msra.mxu0 0
  %493 = vmatprep.subr.bf16.mxu0 0
  %494 = vmatpush1.bf16.msra.mxu0 0
  %495 = vmatprep.subr.bf16.mxu0 0
  %496 = vmatpush1.bf16.msra.mxu0 0
  %497 = vmatprep.subr.bf16.mxu0 0
  %498 = vmatpush1.bf16.msra.mxu0 0
  %499 = vmatprep.mubr.bf16.mxu0 0
  %500 = vmatmul.mubr.bf16.gmra.mrb[0].mxu0 %v364
  %v501 = vpop.f32.mrb[0].mxu0
  %v502 = vadd.f32 %v453, %v501
  %v503 = vpop.f32.mrb[0].mxu0
  %v504 = vpop.f32.mrb[0].mxu0
  %v505 = vadd.f32 %v456, %v504
  %v506 = vpop.f32.mrb[0].mxu0
  %507 = vmatprep.mubr.bf16.mxu0 0
  %508 = vmatmul.mubr.bf16.gmra.mrb[0].mxu0 %v367
  %v509 = vpop.f32.mrb[0].mxu0
  %v510 = vadd.f32 %v461, %v509
  %v511 = vpop.f32.mrb[0].mxu0
  %v512 = vpop.f32.mrb[0].mxu0
  %v513 = vadd.f32 %v464, %v512
  %v514 = vpop.f32.mrb[0].mxu0
  %515 = vdwg.mxu0
  %v516 = vlaneseq
  %v517 = vand.u32 %v516, 127
  %vm518 = vcmp.lt.s32.totalorder %v517, 50
  %v519 = vsel %vm518, %v502, 0.0
  %v520 = vsel %vm518, %v505, 0.0
  %v521 = vsel %vm518, %v510, 0.0
  %v522 = vsel %vm518, %v513, 0.0
  %523 = vadd.xlane.f32.xlu0 %v519
  %v524 = vpop.xlane.xlu0 %523
  %525 = vadd.xlane.f32.xlu0 %v520
  %v526 = vpop.xlane.xlu0 %525
  %527 = vadd.xlane.f32.xlu0 %v521
  %v528 = vpop.xlane.xlu0 %527
  %529 = vadd.xlane.f32.xlu0 %v522
  %v530 = vpop.xlane.xlu0 %529
  %v531 = vmul.f32 %v524, 0.02
  %v532 = vmul.f32 %v526, 0.02
  %v533 = vmul.f32 %v528, 0.02
  %v534 = vmul.f32 %v530, 0.02
  %v535 = vmul.f32 %v519, %v519
  %v536 = vmul.f32 %v520, %v520
  %v537 = vmul.f32 %v521, %v521
  %v538 = vmul.f32 %v522, %v522
  %539 = vadd.xlane.f32.xlu0 %v535
  %v540 = vpop.xlane.xlu0 %539
  %541 = vadd.xlane.f32.xlu0 %v536
  %v542 = vpop.xlane.xlu0 %541
  %543 = vadd.xlane.f32.xlu0 %v537
  %v544 = vpop.xlane.xlu0 %543
  %545 = vadd.xlane.f32.xlu0 %v538
  %v546 = vpop.xlane.xlu0 %545
  %v547 = vmul.f32 %v540, 0.02
  %v548 = vmul.f32 %v542, 0.02
  %v549 = vmul.f32 %v544, 0.02
  %v550 = vmul.f32 %v546, 0.02
  %v551 = vmul.f32 %v531, %v531
  %v552 = vmul.f32 %v532, %v532
  %v553 = vmul.f32 %v533, %v533
  %v554 = vmul.f32 %v534, %v534
  %v555 = vsub.f32 %v547, %v551
  %v556 = vsub.f32 %v548, %v552
  %v557 = vsub.f32 %v549, %v553
  %v558 = vsub.f32 %v550, %v554
  %v559 = vmax.f32 %v555, 0.0
  %v560 = vmax.f32 %v556, 0.0
  %v561 = vmax.f32 %v557, 0.0
  %v562 = vmax.f32 %v558, 0.0
  %v563 = vsub.f32 %v502, %v531
  %v564 = vsub.f32 %v505, %v532
  %v565 = vsub.f32 %v510, %v533
  %v566 = vsub.f32 %v513, %v534
  %v567 = vadd.f32 %v559, 1e-05
  %v568 = vadd.f32 %v560, 1e-05
  %v569 = vadd.f32 %v561, 1e-05
  %v570 = vadd.f32 %v562, 1e-05
  %v571 = vrsqrt.pop %v567
  %v572 = vrsqrt.pop %v568
  %v573 = vrsqrt.pop %v569
  %v574 = vrsqrt.pop %v570
  %v575 = vmul.f32 %v563, %v571
  %v576 = vmul.f32 %v564, %v572
  %v577 = vmul.f32 %v565, %v573
  %v578 = vmul.f32 %v566, %v574
  %v579 = vmul.f32 %v575, 0.01
  %v580 = vmul.f32 %v576, 0.01
  %v581 = vmul.f32 %v577, 0.01
  %v582 = vmul.f32 %v578, 0.01
  %v583 = vmax.f32 %v575, %v579
  %v584 = vmax.f32 %v576, %v580
  %v585 = vmax.f32 %v577, %v581
  %v586 = vmax.f32 %v578, %v582
  %587 = vst [vmem:[%s2] sm:$0xff] %v583
  %588 = vst [vmem:[%s2 + $0x8] sm:$0xff] %v584
  %589 = vst [vmem:[%s2 + $0x10] sm:$0xff] %v585
  %590 = vst [vmem:[%s2 + $0x18] sm:$0xff] %v586
  // Predicated region
  $region10: #{conv_deconv_forward.19} parent=0 // pred_check
    _
  $region11: #{conv_deconv_forward.19} parent=0 // pred_check_branch
    %592 = sbr.rel (0) target = $region13
  $region12: #{conv_deconv_forward.19} parent=0 // pred_region
    _
  $region13: #{conv_deconv_forward.19} parent=0 // pred_fallthru
    _
  // Predicated region
  $region14: #{conv_deconv_forward.19} parent=0 // pred_check
    _
  $region15: #{conv_deconv_forward.19} parent=0 // pred_check_branch
    %594 = sbr.rel (0) target = $region17
  $region16: #{conv_deconv_forward.19} parent=0 // pred_region
    _
  $region17: #{conv_deconv_forward.19} parent=0 // pred_fallthru
    _

// kernel: conv_deconv_forward.20
$region0: #{conv_deconv_forward.20}
  #allocation0 [shape = 'u32[]', space=smem, size = 0x4, offset = 0x4, fixed_abs, tag = 'smem constant byte address 0x4 - core index']
  #allocation1 [shape = 'u32[144,128]{1,0:T(1,128)}', space=vmem, size = 0x12000, scoped, tag = 'internal scratch']
  %s0 = inlined_call_operand.vmem [shape: bf16[32,576], index: 0, kind: input, shape index: {}]
  %s1 = inlined_call_operand.vmem [shape: bf16[576,384], index: 1, kind: input, shape index: {}]
  %s2 = inlined_call_operand.vmem [shape: f32[32,384], index: 2, kind: output, shape index: {}]
  %s3 = sld [smem:[#allocation0]]
  $region18: #{conv_deconv_forward.20} parent=0
    _
  %s5 = ssub.s32 1, %s3
  %s6 = scalar_select 0, %s5, %s3
  // Predicated region
  $region2: #{conv_deconv_forward.20} parent=0 // pred_check
    _
  $region3: #{conv_deconv_forward.20} parent=0 // pred_check_branch
    %8 = sbr.rel (0) target = $region5
  $region4: #{conv_deconv_forward.20} parent=0 // pred_region
    _
  $region5: #{conv_deconv_forward.20} parent=0 // pred_fallthru
    _
  // Predicated region
  $region6: #{conv_deconv_forward.20} parent=0 // pred_check
    _
  $region7: #{conv_deconv_forward.20} parent=0 // pred_check_branch
    %10 = sbr.rel (0) target = $region9
  $region8: #{conv_deconv_forward.20} parent=0 // pred_region
    _
  $region9: #{conv_deconv_forward.20} parent=0 // pred_fallthru
    _
  %v12 = vld [vmem:[%s0] sm:$0xff]
  %v13 = vld [vmem:[%s0 + $0x8] sm:$0xff]
  %v14 = vld [vmem:[%s0 + $0x10] sm:$0xf]
  %v15 = vld [vmem:[%s0 + $0x14] sm:$0xff]
  %v16 = vld [vmem:[%s0 + $0x1c] sm:$0xff]
  %v17 = vld [vmem:[%s0 + $0x24] sm:$0xf]
  %v18 = vld [vmem:[%s0 + $0x28] sm:$0xff]
  %v19 = vld [vmem:[%s0 + $0x30] sm:$0xff]
  %v20 = vld [vmem:[%s0 + $0x38] sm:$0xf]
  %v21 = vld [vmem:[%s0 + $0x3c] sm:$0xff]
  %v22 = vld [vmem:[%s0 + $0x44] sm:$0xff]
  %v23 = vld [vmem:[%s0 + $0x4c] sm:$0xf]
  %v24 = vld [vmem:[%s1] sm:$0xff]
  %v25 = vld [vmem:[%s1 + $0x8] sm:$0xf]
  %v26 = vld [vmem:[%s1 + $0xc] sm:$0xff]
  %v27 = vld [vmem:[%s1 + $0x14] sm:$0xf]
  %v28 = vld [vmem:[%s1 + $0x18] sm:$0xff]
  %v29 = vld [vmem:[%s1 + $0x20] sm:$0xf]
  %v30 = vld [vmem:[%s1 + $0x24] sm:$0xff]
  %v31 = vld [vmem:[%s1 + $0x2c] sm:$0xf]
  %v32 = vld [vmem:[%s1 + $0x30] sm:$0xff]
  %v33 = vld [vmem:[%s1 + $0x38] sm:$0xf]
  %v34 = vld [vmem:[%s1 + $0x3c] sm:$0xff]
  %v35 = vld [vmem:[%s1 + $0x44] sm:$0xf]
  %v36 = vld [vmem:[%s1 + $0x48] sm:$0xff]
  %v37 = vld [vmem:[%s1 + $0x50] sm:$0xf]
  %v38 = vld [vmem:[%s1 + $0x54] sm:$0xff]
  %v39 = vld [vmem:[%s1 + $0x5c] sm:$0xf]
  %v40 = vld [vmem:[%s1 + $0x60] sm:$0xff]
  %v41 = vld [vmem:[%s1 + $0x68] sm:$0xf]
  %v42 = vld [vmem:[%s1 + $0x6c] sm:$0xff]
  %v43 = vld [vmem:[%s1 + $0x74] sm:$0xf]
  %v44 = vld [vmem:[%s1 + $0x78] sm:$0xff]
  %v45 = vld [vmem:[%s1 + $0x80] sm:$0xf]
  %v46 = vld [vmem:[%s1 + $0x84] sm:$0xff]
  %v47 = vld [vmem:[%s1 + $0x8c] sm:$0xf]
  %v48 = vld [vmem:[%s1 + $0x90] sm:$0xff]
  %v49 = vld [vmem:[%s1 + $0x98] sm:$0xf]
  %v50 = vld [vmem:[%s1 + $0x9c] sm:$0xff]
  %v51 = vld [vmem:[%s1 + $0xa4] sm:$0xf]
  %v52 = vld [vmem:[%s1 + $0xa8] sm:$0xff]
  %v53 = vld [vmem:[%s1 + $0xb0] sm:$0xf]
  %v54 = vld [vmem:[%s1 + $0xb4] sm:$0xff]
  %v55 = vld [vmem:[%s1 + $0xbc] sm:$0xf]
  %v56 = vld [vmem:[%s1 + $0xc0] sm:$0xff]
  %v57 = vld [vmem:[%s1 + $0xc8] sm:$0xf]
  %v58 = vld [vmem:[%s1 + $0xcc] sm:$0xff]
  %v59 = vld [vmem:[%s1 + $0xd4] sm:$0xf]
  %v60 = vld [vmem:[%s1 + $0xd8] sm:$0xff]
  %v61 = vld [vmem:[%s1 + $0xe0] sm:$0xf]
  %v62 = vld [vmem:[%s1 + $0xe4] sm:$0xff]
  %v63 = vld [vmem:[%s1 + $0xec] sm:$0xf]
  %v64 = vld [vmem:[%s1 + $0xf0] sm:$0xff]
  %v65 = vld [vmem:[%s1 + $0xf8] sm:$0xf]
  %v66 = vld [vmem:[%s1 + $0xfc] sm:$0xff]
  %v67 = vld [vmem:[%s1 + $0x104] sm:$0xf]
  %v68 = vld [vmem:[%s1 + $0x108] sm:$0xff]
  %v69 = vld [vmem:[%s1 + $0x110] sm:$0xf]
  %v70 = vld [vmem:[%s1 + $0x114] sm:$0xff]
  %v71 = vld [vmem:[%s1 + $0x11c] sm:$0xf]
  %v72 = vld [vmem:[%s1 + $0x120] sm:$0xff]
  %v73 = vld [vmem:[%s1 + $0x128] sm:$0xf]
  %v74 = vld [vmem:[%s1 + $0x12c] sm:$0xff]
  %v75 = vld [vmem:[%s1 + $0x134] sm:$0xf]
  %v76 = vld [vmem:[%s1 + $0x138] sm:$0xff]
  %v77 = vld [vmem:[%s1 + $0x140] sm:$0xf]
  %v78 = vld [vmem:[%s1 + $0x144] sm:$0xff]
  %v79 = vld [vmem:[%s1 + $0x14c] sm:$0xf]
  %v80 = vld [vmem:[%s1 + $0x150] sm:$0xff]
  %v81 = vld [vmem:[%s1 + $0x158] sm:$0xf]
  %v82 = vld [vmem:[%s1 + $0x15c] sm:$0xff]
  %v83 = vld [vmem:[%s1 + $0x164] sm:$0xf]
  %v84 = vld [vmem:[%s1 + $0x168] sm:$0xff]
  %v85 = vld [vmem:[%s1 + $0x170] sm:$0xf]
  %v86 = vld [vmem:[%s1 + $0x174] sm:$0xff]
  %v87 = vld [vmem:[%s1 + $0x17c] sm:$0xf]
  %v88 = vld [vmem:[%s1 + $0x180] sm:$0xff]
  %v89 = vld [vmem:[%s1 + $0x188] sm:$0xf]
  %v90 = vld [vmem:[%s1 + $0x18c] sm:$0xff]
  %v91 = vld [vmem:[%s1 + $0x194] sm:$0xf]
  %v92 = vld [vmem:[%s1 + $0x198] sm:$0xff]
  %v93 = vld [vmem:[%s1 + $0x1a0] sm:$0xf]
  %v94 = vld [vmem:[%s1 + $0x1a4] sm:$0xff]
  %v95 = vld [vmem:[%s1 + $0x1ac] sm:$0xf]
  %v96 = vld [vmem:[%s1 + $0x1b0] sm:$0xff]
  %v97 = vld [vmem:[%s1 + $0x1b8] sm:$0xf]
  %v98 = vld [vmem:[%s1 + $0x1bc] sm:$0xff]
  %v99 = vld [vmem:[%s1 + $0x1c4] sm:$0xf]
  %v100 = vld [vmem:[%s1 + $0x1c8] sm:$0xff]
  %v101 = vld [vmem:[%s1 + $0x1d0] sm:$0xf]
  %v102 = vld [vmem:[%s1 + $0x1d4] sm:$0xff]
  %v103 = vld [vmem:[%s1 + $0x1dc] sm:$0xf]
  %v104 = vld [vmem:[%s1 + $0x1e0] sm:$0xff]
  %v105 = vld [vmem:[%s1 + $0x1e8] sm:$0xf]
  %v106 = vld [vmem:[%s1 + $0x1ec] sm:$0xff]
  %v107 = vld [vmem:[%s1 + $0x1f4] sm:$0xf]
  %v108 = vld [vmem:[%s1 + $0x1f8] sm:$0xff]
  %v109 = vld [vmem:[%s1 + $0x200] sm:$0xf]
  %v110 = vld [vmem:[%s1 + $0x204] sm:$0xff]
  %v111 = vld [vmem:[%s1 + $0x20c] sm:$0xf]
  %v112 = vld [vmem:[%s1 + $0x210] sm:$0xff]
  %v113 = vld [vmem:[%s1 + $0x218] sm:$0xf]
  %v114 = vld [vmem:[%s1 + $0x21c] sm:$0xff]
  %v115 = vld [vmem:[%s1 + $0x224] sm:$0xf]
  %v116 = vld [vmem:[%s1 + $0x228] sm:$0xff]
  %v117 = vld [vmem:[%s1 + $0x230] sm:$0xf]
  %v118 = vld [vmem:[%s1 + $0x234] sm:$0xff]
  %v119 = vld [vmem:[%s1 + $0x23c] sm:$0xf]
  %v120 = vld [vmem:[%s1 + $0x240] sm:$0xff]
  %v121 = vld [vmem:[%s1 + $0x248] sm:$0xf]
  %v122 = vld [vmem:[%s1 + $0x24c] sm:$0xff]
  %v123 = vld [vmem:[%s1 + $0x254] sm:$0xf]
  %v124 = vld [vmem:[%s1 + $0x258] sm:$0xff]
  %v125 = vld [vmem:[%s1 + $0x260] sm:$0xf]
  %v126 = vld [vmem:[%s1 + $0x264] sm:$0xff]
  %v127 = vld [vmem:[%s1 + $0x26c] sm:$0xf]
  %v128 = vld [vmem:[%s1 + $0x270] sm:$0xff]
  %v129 = vld [vmem:[%s1 + $0x278] sm:$0xf]
  %v130 = vld [vmem:[%s1 + $0x27c] sm:$0xff]
  %v131 = vld [vmem:[%s1 + $0x284] sm:$0xf]
  %v132 = vld [vmem:[%s1 + $0x288] sm:$0xff]
  %v133 = vld [vmem:[%s1 + $0x290] sm:$0xf]
  %v134 = vld [vmem:[%s1 + $0x294] sm:$0xff]
  %v135 = vld [vmem:[%s1 + $0x29c] sm:$0xf]
  %v136 = vld [vmem:[%s1 + $0x2a0] sm:$0xff]
  %v137 = vld [vmem:[%s1 + $0x2a8] sm:$0xf]
  %v138 = vld [vmem:[%s1 + $0x2ac] sm:$0xff]
  %v139 = vld [vmem:[%s1 + $0x2b4] sm:$0xf]
  %v140 = vld [vmem:[%s1 + $0x2b8] sm:$0xff]
  %v141 = vld [vmem:[%s1 + $0x2c0] sm:$0xf]
  %v142 = vld [vmem:[%s1 + $0x2c4] sm:$0xff]
  %v143 = vld [vmem:[%s1 + $0x2cc] sm:$0xf]
  %v144 = vld [vmem:[%s1 + $0x2d0] sm:$0xff]
  %v145 = vld [vmem:[%s1 + $0x2d8] sm:$0xf]
  %v146 = vld [vmem:[%s1 + $0x2dc] sm:$0xff]
  %v147 = vld [vmem:[%s1 + $0x2e4] sm:$0xf]
  %v148 = vld [vmem:[%s1 + $0x2e8] sm:$0xff]
  %v149 = vld [vmem:[%s1 + $0x2f0] sm:$0xf]
  %v150 = vld [vmem:[%s1 + $0x2f4] sm:$0xff]
  %v151 = vld [vmem:[%s1 + $0x2fc] sm:$0xf]
  %v152 = vld [vmem:[%s1 + $0x300] sm:$0xff]
  %v153 = vld [vmem:[%s1 + $0x308] sm:$0xf]
  %v154 = vld [vmem:[%s1 + $0x30c] sm:$0xff]
  %v155 = vld [vmem:[%s1 + $0x314] sm:$0xf]
  %v156 = vld [vmem:[%s1 + $0x318] sm:$0xff]
  %v157 = vld [vmem:[%s1 + $0x320] sm:$0xf]
  %v158 = vld [vmem:[%s1 + $0x324] sm:$0xff]
  %v159 = vld [vmem:[%s1 + $0x32c] sm:$0xf]
  %v160 = vld [vmem:[%s1 + $0x330] sm:$0xff]
  %v161 = vld [vmem:[%s1 + $0x338] sm:$0xf]
  %v162 = vld [vmem:[%s1 + $0x33c] sm:$0xff]
  %v163 = vld [vmem:[%s1 + $0x344] sm:$0xf]
  %v164 = vld [vmem:[%s1 + $0x348] sm:$0xff]
  %v165 = vld [vmem:[%s1 + $0x350] sm:$0xf]
  %v166 = vld [vmem:[%s1 + $0x354] sm:$0xff]
  %v167 = vld [vmem:[%s1 + $0x35c] sm:$0xf]
  %v180 = vunpack.c.l.b16 %v12
  %v181 = vunpack.c.h.b16 %v12
  %v182 = vunpack.c.l.b16 %v13
  %v183 = vunpack.c.h.b16 %v13
  %v184 = vunpack.c.l.b16 %v14
  %v185 = vunpack.c.l.b16 %v15
  %v186 = vunpack.c.h.b16 %v15
  %v187 = vunpack.c.l.b16 %v16
  %v188 = vunpack.c.h.b16 %v16
  %v189 = vunpack.c.l.b16 %v17
  %v190 = vunpack.c.l.b16 %v18
  %v191 = vunpack.c.h.b16 %v18
  %v192 = vunpack.c.l.b16 %v19
  %v193 = vunpack.c.h.b16 %v19
  %v194 = vunpack.c.l.b16 %v20
  %v195 = vunpack.c.l.b16 %v21
  %v196 = vunpack.c.h.b16 %v21
  %v197 = vunpack.c.l.b16 %v22
  %v198 = vunpack.c.h.b16 %v22
  %v199 = vunpack.c.l.b16 %v23
  %v200 = vpack.c.b16 %v185, %v180
  %v201 = vpack.c.b16 %v186, %v181
  %v202 = vpack.c.b16 %v187, %v182
  %v203 = vpack.c.b16 %v188, %v183
  %v204 = vpack.c.b16 %v189, %v184
  %v205 = vpack.c.b16 %v195, %v190
  %v206 = vpack.c.b16 %v196, %v191
  %v207 = vpack.c.b16 %v197, %v192
  %v208 = vpack.c.b16 %v198, %v193
  %v209 = vpack.c.b16 %v199, %v194
  %v362 = vunpack.c.l.b16 %v24
  %v363 = vunpack.c.h.b16 %v24
  %v364 = vunpack.c.l.b16 %v25
  %v365 = vunpack.c.l.b16 %v26
  %v366 = vunpack.c.h.b16 %v26
  %v367 = vunpack.c.l.b16 %v27
  %v368 = vunpack.c.l.b16 %v28
  %v369 = vunpack.c.h.b16 %v28
  %v370 = vunpack.c.l.b16 %v29
  %v371 = vunpack.c.l.b16 %v30
  %v372 = vunpack.c.h.b16 %v30
  %v373 = vunpack.c.l.b16 %v31
  %v374 = vunpack.c.l.b16 %v32
  %v375 = vunpack.c.h.b16 %v32
  %v376 = vunpack.c.l.b16 %v33
  %v377 = vunpack.c.l.b16 %v34
  %v378 = vunpack.c.h.b16 %v34
  %v379 = vunpack.c.l.b16 %v35
  %v380 = vunpack.c.l.b16 %v36
  %v381 = vunpack.c.h.b16 %v36
  %v382 = vunpack.c.l.b16 %v37
  %v383 = vunpack.c.l.b16 %v38
  %v384 = vunpack.c.h.b16 %v38
  %v385 = vunpack.c.l.b16 %v39
  %v386 = vunpack.c.l.b16 %v40
  %v387 = vunpack.c.h.b16 %v40
  %v388 = vunpack.c.l.b16 %v41
  %v389 = vunpack.c.l.b16 %v42
  %v390 = vunpack.c.h.b16 %v42
  %v391 = vunpack.c.l.b16 %v43
  %v392 = vunpack.c.l.b16 %v44
  %v393 = vunpack.c.h.b16 %v44
  %v394 = vunpack.c.l.b16 %v45
  %v395 = vunpack.c.l.b16 %v46
  %v396 = vunpack.c.h.b16 %v46
  %v397 = vunpack.c.l.b16 %v47
  %v398 = vunpack.c.l.b16 %v48
  %v399 = vunpack.c.h.b16 %v48
  %v400 = vunpack.c.l.b16 %v49
  %v401 = vunpack.c.l.b16 %v50
  %v402 = vunpack.c.h.b16 %v50
  %v403 = vunpack.c.l.b16 %v51
  %v404 = vunpack.c.l.b16 %v52
  %v405 = vunpack.c.h.b16 %v52
  %v406 = vunpack.c.l.b16 %v53
  %v407 = vunpack.c.l.b16 %v54
  %v408 = vunpack.c.h.b16 %v54
  %v409 = vunpack.c.l.b16 %v55
  %v410 = vunpack.c.l.b16 %v56
  %v411 = vunpack.c.h.b16 %v56
  %v412 = vunpack.c.l.b16 %v57
  %v413 = vunpack.c.l.b16 %v58
  %v414 = vunpack.c.h.b16 %v58
  %v415 = vunpack.c.l.b16 %v59
  %v416 = vunpack.c.l.b16 %v60
  %v417 = vunpack.c.h.b16 %v60
  %v418 = vunpack.c.l.b16 %v61
  %v419 = vunpack.c.l.b16 %v62
  %v420 = vunpack.c.h.b16 %v62
  %v421 = vunpack.c.l.b16 %v63
  %v422 = vunpack.c.l.b16 %v64
  %v423 = vunpack.c.h.b16 %v64
  %v424 = vunpack.c.l.b16 %v65
  %v425 = vunpack.c.l.b16 %v66
  %v426 = vunpack.c.h.b16 %v66
  %v427 = vunpack.c.l.b16 %v67
  %v428 = vunpack.c.l.b16 %v68
  %v429 = vunpack.c.h.b16 %v68
  %v430 = vunpack.c.l.b16 %v69
  %v431 = vunpack.c.l.b16 %v70
  %v432 = vunpack.c.h.b16 %v70
  %v433 = vunpack.c.l.b16 %v71
  %v434 = vunpack.c.l.b16 %v72
  %v435 = vunpack.c.h.b16 %v72
  %v436 = vunpack.c.l.b16 %v73
  %v437 = vunpack.c.l.b16 %v74
  %v438 = vunpack.c.h.b16 %v74
  %v439 = vunpack.c.l.b16 %v75
  %v440 = vunpack.c.l.b16 %v76
  %v441 = vunpack.c.h.b16 %v76
  %v442 = vunpack.c.l.b16 %v77
  %v443 = vunpack.c.l.b16 %v78
  %v444 = vunpack.c.h.b16 %v78
  %v445 = vunpack.c.l.b16 %v79
  %v446 = vunpack.c.l.b16 %v80
  %v447 = vunpack.c.h.b16 %v80
  %v448 = vunpack.c.l.b16 %v81
  %v449 = vunpack.c.l.b16 %v82
  %v450 = vunpack.c.h.b16 %v82
  %v451 = vunpack.c.l.b16 %v83
  %v452 = vunpack.c.l.b16 %v84
  %v453 = vunpack.c.h.b16 %v84
  %v454 = vunpack.c.l.b16 %v85
  %v455 = vunpack.c.l.b16 %v86
  %v456 = vunpack.c.h.b16 %v86
  %v457 = vunpack.c.l.b16 %v87
  %v458 = vunpack.c.l.b16 %v88
  %v459 = vunpack.c.h.b16 %v88
  %v460 = vunpack.c.l.b16 %v89
  %v461 = vunpack.c.l.b16 %v90
  %v462 = vunpack.c.h.b16 %v90
  %v463 = vunpack.c.l.b16 %v91
  %v464 = vunpack.c.l.b16 %v92
  %v465 = vunpack.c.h.b16 %v92
  %v466 = vunpack.c.l.b16 %v93
  %v467 = vunpack.c.l.b16 %v94
  %v468 = vunpack.c.h.b16 %v94
  %v469 = vunpack.c.l.b16 %v95
  %v470 = vunpack.c.l.b16 %v96
  %v471 = vunpack.c.h.b16 %v96
  %v472 = vunpack.c.l.b16 %v97
  %v473 = vunpack.c.l.b16 %v98
  %v474 = vunpack.c.h.b16 %v98
  %v475 = vunpack.c.l.b16 %v99
  %v476 = vunpack.c.l.b16 %v100
  %v477 = vunpack.c.h.b16 %v100
  %v478 = vunpack.c.l.b16 %v101
  %v479 = vunpack.c.l.b16 %v102
  %v480 = vunpack.c.h.b16 %v102
  %v481 = vunpack.c.l.b16 %v103
  %v482 = vunpack.c.l.b16 %v104
  %v483 = vunpack.c.h.b16 %v104
  %v484 = vunpack.c.l.b16 %v105
  %v485 = vunpack.c.l.b16 %v106
  %v486 = vunpack.c.h.b16 %v106
  %v487 = vunpack.c.l.b16 %v107
  %v488 = vunpack.c.l.b16 %v108
  %v489 = vunpack.c.h.b16 %v108
  %v490 = vunpack.c.l.b16 %v109
  %v491 = vunpack.c.l.b16 %v110
  %v492 = vunpack.c.h.b16 %v110
  %v493 = vunpack.c.l.b16 %v111
  %v494 = vunpack.c.l.b16 %v112
  %v495 = vunpack.c.h.b16 %v112
  %v496 = vunpack.c.l.b16 %v113
  %v497 = vunpack.c.l.b16 %v114
  %v498 = vunpack.c.h.b16 %v114
  %v499 = vunpack.c.l.b16 %v115
  %v500 = vunpack.c.l.b16 %v116
  %v501 = vunpack.c.h.b16 %v116
  %v502 = vunpack.c.l.b16 %v117
  %v503 = vunpack.c.l.b16 %v118
  %v504 = vunpack.c.h.b16 %v118
  %v505 = vunpack.c.l.b16 %v119
  %v506 = vunpack.c.l.b16 %v120
  %v507 = vunpack.c.h.b16 %v120
  %v508 = vunpack.c.l.b16 %v121
  %v509 = vunpack.c.l.b16 %v122
  %v510 = vunpack.c.h.b16 %v122
  %v511 = vunpack.c.l.b16 %v123
  %v512 = vunpack.c.l.b16 %v124
  %v513 = vunpack.c.h.b16 %v124
  %v514 = vunpack.c.l.b16 %v125
  %v515 = vunpack.c.l.b16 %v126
  %v516 = vunpack.c.h.b16 %v126
  %v517 = vunpack.c.l.b16 %v127
  %v518 = vunpack.c.l.b16 %v128
  %v519 = vunpack.c.h.b16 %v128
  %v520 = vunpack.c.l.b16 %v129
  %v521 = vunpack.c.l.b16 %v130
  %v522 = vunpack.c.h.b16 %v130
  %v523 = vunpack.c.l.b16 %v131
  %v524 = vunpack.c.l.b16 %v132
  %v525 = vunpack.c.h.b16 %v132
  %v526 = vunpack.c.l.b16 %v133
  %v527 = vunpack.c.l.b16 %v134
  %v528 = vunpack.c.h.b16 %v134
  %v529 = vunpack.c.l.b16 %v135
  %v530 = vunpack.c.l.b16 %v136
  %v531 = vunpack.c.h.b16 %v136
  %v532 = vunpack.c.l.b16 %v137
  %v533 = vunpack.c.l.b16 %v138
  %v534 = vunpack.c.h.b16 %v138
  %v535 = vunpack.c.l.b16 %v139
  %v536 = vunpack.c.l.b16 %v140
  %v537 = vunpack.c.h.b16 %v140
  %v538 = vunpack.c.l.b16 %v141
  %v539 = vunpack.c.l.b16 %v142
  %v540 = vunpack.c.h.b16 %v142
  %v541 = vunpack.c.l.b16 %v143
  %v542 = vunpack.c.l.b16 %v144
  %v543 = vunpack.c.h.b16 %v144
  %v544 = vunpack.c.l.b16 %v145
  %v545 = vunpack.c.l.b16 %v146
  %v546 = vunpack.c.h.b16 %v146
  %v547 = vunpack.c.l.b16 %v147
  %v548 = vunpack.c.l.b16 %v148
  %v549 = vunpack.c.h.b16 %v148
  %v550 = vunpack.c.l.b16 %v149
  %v551 = vunpack.c.l.b16 %v150
  %v552 = vunpack.c.h.b16 %v150
  %v553 = vunpack.c.l.b16 %v151
  %v554 = vunpack.c.l.b16 %v152
  %v555 = vunpack.c.h.b16 %v152
  %v556 = vunpack.c.l.b16 %v153
  %v557 = vunpack.c.l.b16 %v154
  %v558 = vunpack.c.h.b16 %v154
  %v559 = vunpack.c.l.b16 %v155
  %v560 = vunpack.c.l.b16 %v156
  %v561 = vunpack.c.h.b16 %v156
  %v562 = vunpack.c.l.b16 %v157
  %v563 = vunpack.c.l.b16 %v158
  %v564 = vunpack.c.h.b16 %v158
  %v565 = vunpack.c.l.b16 %v159
  %v566 = vunpack.c.l.b16 %v160
  %v567 = vunpack.c.h.b16 %v160
  %v568 = vunpack.c.l.b16 %v161
  %v569 = vunpack.c.l.b16 %v162
  %v570 = vunpack.c.h.b16 %v162
  %v571 = vunpack.c.l.b16 %v163
  %v572 = vunpack.c.l.b16 %v164
  %v573 = vunpack.c.h.b16 %v164
  %v574 = vunpack.c.l.b16 %v165
  %v575 = vunpack.c.l.b16 %v166
  %v576 = vunpack.c.h.b16 %v166
  %v577 = vunpack.c.l.b16 %v167
  %v578 = vpack.c.b16 %v365, %v362
  %v579 = vpack.c.b16 %v366, %v363
  %v580 = vpack.c.b16 %v367, %v364
  %v581 = vpack.c.b16 %v371, %v368
  %v582 = vpack.c.b16 %v372, %v369
  %v583 = vpack.c.b16 %v373, %v370
  %v584 = vpack.c.b16 %v377, %v374
  %v585 = vpack.c.b16 %v378, %v375
  %v586 = vpack.c.b16 %v379, %v376
  %v587 = vpack.c.b16 %v383, %v380
  %v588 = vpack.c.b16 %v384, %v381
  %v589 = vpack.c.b16 %v385, %v382
  %v590 = vpack.c.b16 %v389, %v386
  %v591 = vpack.c.b16 %v390, %v387
  %v592 = vpack.c.b16 %v391, %v388
  %v593 = vpack.c.b16 %v395, %v392
  %v594 = vpack.c.b16 %v396, %v393
  %v595 = vpack.c.b16 %v397, %v394
  %v596 = vpack.c.b16 %v401, %v398
  %v597 = vpack.c.b16 %v402, %v399
  %v598 = vpack.c.b16 %v403, %v400
  %v599 = vpack.c.b16 %v407, %v404
  %v600 = vpack.c.b16 %v408, %v405
  %v601 = vpack.c.b16 %v409, %v406
  %v602 = vpack.c.b16 %v413, %v410
  %v603 = vpack.c.b16 %v414, %v411
  %v604 = vpack.c.b16 %v415, %v412
  %v605 = vpack.c.b16 %v419, %v416
  %v606 = vpack.c.b16 %v420, %v417
  %v607 = vpack.c.b16 %v421, %v418
  %v608 = vpack.c.b16 %v425, %v422
  %v609 = vpack.c.b16 %v426, %v423
  %v610 = vpack.c.b16 %v427, %v424
  %v611 = vpack.c.b16 %v431, %v428
  %v612 = vpack.c.b16 %v432, %v429
  %v613 = vpack.c.b16 %v433, %v430
  %v614 = vpack.c.b16 %v437, %v434
  %v615 = vpack.c.b16 %v438, %v435
  %v616 = vpack.c.b16 %v439, %v436
  %v617 = vpack.c.b16 %v443, %v440
  %v618 = vpack.c.b16 %v444, %v441
  %v619 = vpack.c.b16 %v445, %v442
  %v620 = vpack.c.b16 %v449, %v446
  %v621 = vpack.c.b16 %v450, %v447
  %v622 = vpack.c.b16 %v451, %v448
  %v623 = vpack.c.b16 %v455, %v452
  %v624 = vpack.c.b16 %v456, %v453
  %v625 = vpack.c.b16 %v457, %v454
  %v626 = vpack.c.b16 %v461, %v458
  %v627 = vpack.c.b16 %v462, %v459
  %v628 = vpack.c.b16 %v463, %v460
  %v629 = vpack.c.b16 %v467, %v464
  %v630 = vpack.c.b16 %v468, %v465
  %v631 = vpack.c.b16 %v469, %v466
  %v632 = vpack.c.b16 %v473, %v470
  %v633 = vpack.c.b16 %v474, %v471
  %v634 = vpack.c.b16 %v475, %v472
  %v635 = vpack.c.b16 %v479, %v476
  %v636 = vpack.c.b16 %v480, %v477
  %v637 = vpack.c.b16 %v481, %v478
  %v638 = vpack.c.b16 %v485, %v482
  %v639 = vpack.c.b16 %v486, %v483
  %v640 = vpack.c.b16 %v487, %v484
  %v641 = vpack.c.b16 %v491, %v488
  %v642 = vpack.c.b16 %v492, %v489
  %v643 = vpack.c.b16 %v493, %v490
  %v644 = vpack.c.b16 %v497, %v494
  %v645 = vpack.c.b16 %v498, %v495
  %v646 = vpack.c.b16 %v499, %v496
  %v647 = vpack.c.b16 %v503, %v500
  %v648 = vpack.c.b16 %v504, %v501
  %v649 = vpack.c.b16 %v505, %v502
  %v650 = vpack.c.b16 %v509, %v506
  %v651 = vpack.c.b16 %v510, %v507
  %v652 = vpack.c.b16 %v511, %v508
  %v653 = vpack.c.b16 %v515, %v512
  %v654 = vpack.c.b16 %v516, %v513
  %v655 = vpack.c.b16 %v517, %v514
  %v656 = vpack.c.b16 %v521, %v518
  %v657 = vpack.c.b16 %v522, %v519
  %v658 = vpack.c.b16 %v523, %v520
  %v659 = vpack.c.b16 %v527, %v524
  %v660 = vpack.c.b16 %v528, %v525
  %v661 = vpack.c.b16 %v529, %v526
  %v662 = vpack.c.b16 %v533, %v530
  %v663 = vpack.c.b16 %v534, %v531
  %v664 = vpack.c.b16 %v535, %v532
  %v665 = vpack.c.b16 %v539, %v536
  %v666 = vpack.c.b16 %v540, %v537
  %v667 = vpack.c.b16 %v541, %v538
  %v668 = vpack.c.b16 %v545, %v542
  %v669 = vpack.c.b16 %v546, %v543
  %v670 = vpack.c.b16 %v547, %v544
  %v671 = vpack.c.b16 %v551, %v548
  %v672 = vpack.c.b16 %v552, %v549
  %v673 = vpack.c.b16 %v553, %v550
  %v674 = vpack.c.b16 %v557, %v554
  %v675 = vpack.c.b16 %v558, %v555
  %v676 = vpack.c.b16 %v559, %v556
  %v677 = vpack.c.b16 %v563, %v560
  %v678 = vpack.c.b16 %v564, %v561
  %v679 = vpack.c.b16 %v565, %v562
  %v680 = vpack.c.b16 %v569, %v566
  %v681 = vpack.c.b16 %v570, %v567
  %v682 = vpack.c.b16 %v571, %v568
  %v683 = vpack.c.b16 %v575, %v572
  %v684 = vpack.c.b16 %v576, %v573
  %v685 = vpack.c.b16 %v577, %v574
  %vm794 = vcmask 523264
  %v796 = vsel %vm794, %v204, 0
  %v799 = vsel %vm794, %v209, 0
  %801 = vmatprep.subr.bf16.mxu0 %v579
  %802 = vmatpush1.bf16.msra.mxu0 %v578
  %803 = vmatprep.subr.bf16.mxu0 %v582
  %804 = vmatpush1.bf16.msra.mxu0 %v581
  %805 = vmatprep.subr.bf16.mxu0 %v585
  %806 = vmatpush1.bf16.msra.mxu0 %v584
  %807 = vmatprep.subr.bf16.mxu0 %v588
  %808 = vmatpush1.bf16.msra.mxu0 %v587
  %809 = vmatprep.subr.bf16.mxu0 %v591
  %810 = vmatpush1.bf16.msra.mxu0 %v590
  %811 = vmatprep.subr.bf16.mxu0 %v594
  %812 = vmatpush1.bf16.msra.mxu0 %v593
  %813 = vmatprep.subr.bf16.mxu0 %v597
  %814 = vmatpush1.bf16.msra.mxu0 %v596
  %815 = vmatprep.subr.bf16.mxu0 %v600
  %816 = vmatpush1.bf16.msra.mxu0 %v599
  %817 = vmatprep.subr.bf16.mxu0 %v603
  %818 = vmatpush1.bf16.msra.mxu0 %v602
  %819 = vmatprep.subr.bf16.mxu0 %v606
  %820 = vmatpush1.bf16.msra.mxu0 %v605
  %821 = vmatprep.subr.bf16.mxu0 %v609
  %822 = vmatpush1.bf16.msra.mxu0 %v608
  %823 = vmatprep.subr.bf16.mxu0 %v612
  %824 = vmatpush1.bf16.msra.mxu0 %v611
  %825 = vmatprep.subr.bf16.mxu0 %v615
  %826 = vmatpush1.bf16.msra.mxu0 %v614
  %827 = vmatprep.subr.bf16.mxu0 %v618
  %828 = vmatpush1.bf16.msra.mxu0 %v617
  %829 = vmatprep.subr.bf16.mxu0 %v621
  %830 = vmatpush1.bf16.msra.mxu0 %v620
  %831 = vmatprep.subr.bf16.mxu0 %v624
  %832 = vmatpush1.bf16.msra.mxu0 %v623
  %833 = vmatprep.mubr.bf16.mxu0 %v201
  %834 = vmatmul.mubr.bf16.gmra.mrb[0].mxu0 %v200
  %v835 = vpop.f32.mrb[0].mxu0
  %v836 = vadd.f32 0.0, %v835
  %v837 = vpop.f32.mrb[0].mxu0
  %v838 = vadd.f32 0.0, %v837
  %v839 = vpop.f32.mrb[0].mxu0
  %v840 = vadd.f32 0.0, %v839
  %v841 = vpop.f32.mrb[0].mxu0
  %v842 = vadd.f32 0.0, %v841
  %843 = vmatprep.mubr.bf16.mxu0 %v206
  %844 = vmatmul.mubr.bf16.gmra.mrb[0].mxu0 %v205
  %v845 = vpop.f32.mrb[0].mxu0
  %v846 = vadd.f32 0.0, %v845
  %v847 = vpop.f32.mrb[0].mxu0
  %v848 = vadd.f32 0.0, %v847
  %v849 = vpop.f32.mrb[0].mxu0
  %v850 = vadd.f32 0.0, %v849
  %v851 = vpop.f32.mrb[0].mxu0
  %v852 = vadd.f32 0.0, %v851
  %853 = vdwg.mxu0
  %854 = vmatprep.subr.bf16.mxu0 %v627
  %855 = vmatpush1.bf16.msra.mxu0 %v626
  %856 = vmatprep.subr.bf16.mxu0 %v630
  %857 = vmatpush1.bf16.msra.mxu0 %v629
  %858 = vmatprep.subr.bf16.mxu0 %v633
  %859 = vmatpush1.bf16.msra.mxu0 %v632
  %860 = vmatprep.subr.bf16.mxu0 %v636
  %861 = vmatpush1.bf16.msra.mxu0 %v635
  %862 = vmatprep.subr.bf16.mxu0 %v639
  %863 = vmatpush1.bf16.msra.mxu0 %v638
  %864 = vmatprep.subr.bf16.mxu0 %v642
  %865 = vmatpush1.bf16.msra.mxu0 %v641
  %866 = vmatprep.subr.bf16.mxu0 %v645
  %867 = vmatpush1.bf16.msra.mxu0 %v644
  %868 = vmatprep.subr.bf16.mxu0 %v648
  %869 = vmatpush1.bf16.msra.mxu0 %v647
  %870 = vmatprep.subr.bf16.mxu0 %v651
  %871 = vmatpush1.bf16.msra.mxu0 %v650
  %872 = vmatprep.subr.bf16.mxu0 %v654
  %873 = vmatpush1.bf16.msra.mxu0 %v653
  %874 = vmatprep.subr.bf16.mxu0 %v657
  %875 = vmatpush1.bf16.msra.mxu0 %v656
  %876 = vmatprep.subr.bf16.mxu0 %v660
  %877 = vmatpush1.bf16.msra.mxu0 %v659
  %878 = vmatprep.subr.bf16.mxu0 %v663
  %879 = vmatpush1.bf16.msra.mxu0 %v662
  %880 = vmatprep.subr.bf16.mxu0 %v666
  %881 = vmatpush1.bf16.msra.mxu0 %v665
  %882 = vmatprep.subr.bf16.mxu0 %v669
  %883 = vmatpush1.bf16.msra.mxu0 %v668
  %884 = vmatprep.subr.bf16.mxu0 %v672
  %885 = vmatpush1.bf16.msra.mxu0 %v671
  %886 = vmatprep.mubr.bf16.mxu0 %v203
  %887 = vmatmul.mubr.bf16.gmra.mrb[0].mxu0 %v202
  %v888 = vpop.f32.mrb[0].mxu0
  %v889 = vadd.f32 %v836, %v888
  %v890 = vpop.f32.mrb[0].mxu0
  %v891 = vadd.f32 %v838, %v890
  %v892 = vpop.f32.mrb[0].mxu0
  %v893 = vadd.f32 %v840, %v892
  %v894 = vpop.f32.mrb[0].mxu0
  %v895 = vadd.f32 %v842, %v894
  %896 = vmatprep.mubr.bf16.mxu0 %v208
  %897 = vmatmul.mubr.bf16.gmra.mrb[0].mxu0 %v207
  %v898 = vpop.f32.mrb[0].mxu0
  %v899 = vadd.f32 %v846, %v898
  %v900 = vpop.f32.mrb[0].mxu0
  %v901 = vadd.f32 %v848, %v900
  %v902 = vpop.f32.mrb[0].mxu0
  %v903 = vadd.f32 %v850, %v902
  %v904 = vpop.f32.mrb[0].mxu0
  %v905 = vadd.f32 %v852, %v904
  %906 = vdwg.mxu0
  %907 = vmatprep.subr.bf16.mxu0 %v675
  %908 = vmatpush1.bf16.msra.mxu0 %v674
  %909 = vmatprep.subr.bf16.mxu0 %v678
  %910 = vmatpush1.bf16.msra.mxu0 %v677
  %911 = vmatprep.subr.bf16.mxu0 %v681
  %912 = vmatpush1.bf16.msra.mxu0 %v680
  %913 = vmatprep.subr.bf16.mxu0 %v684
  %914 = vmatpush1.bf16.msra.mxu0 %v683
  %915 = vmatprep.subr.bf16.mxu0 0
  %916 = vmatpush1.bf16.msra.mxu0 0
  %917 = vmatprep.subr.bf16.mxu0 0
  %918 = vmatpush1.bf16.msra.mxu0 0
  %919 = vmatprep.subr.bf16.mxu0 0
  %920 = vmatpush1.bf16.msra.mxu0 0
  %921 = vmatprep.subr.bf16.mxu0 0
  %922 = vmatpush1.bf16.msra.mxu0 0
  %923 = vmatprep.subr.bf16.mxu0 0
  %924 = vmatpush1.bf16.msra.mxu0 0
  %925 = vmatprep.subr.bf16.mxu0 0
  %926 = vmatpush1.bf16.msra.mxu0 0
  %927 = vmatprep.subr.bf16.mxu0 0
  %928 = vmatpush1.bf16.msra.mxu0 0
  %929 = vmatprep.subr.bf16.mxu0 0
  %930 = vmatpush1.bf16.msra.mxu0 0
  %931 = vmatprep.subr.bf16.mxu0 0
  %932 = vmatpush1.bf16.msra.mxu0 0
  %933 = vmatprep.subr.bf16.mxu0 0
  %934 = vmatpush1.bf16.msra.mxu0 0
  %935 = vmatprep.subr.bf16.mxu0 0
  %936 = vmatpush1.bf16.msra.mxu0 0
  %937 = vmatprep.subr.bf16.mxu0 0
  %938 = vmatpush1.bf16.msra.mxu0 0
  %939 = vmatprep.mubr.bf16.mxu0 0
  %940 = vmatmul.mubr.bf16.gmra.mrb[0].mxu0 %v796
  %v941 = vpop.f32.mrb[0].mxu0
  %v942 = vadd.f32 %v889, %v941
  %v943 = vpop.f32.mrb[0].mxu0
  %v944 = vadd.f32 %v891, %v943
  %v945 = vpop.f32.mrb[0].mxu0
  %v946 = vadd.f32 %v893, %v945
  %v947 = vpop.f32.mrb[0].mxu0
  %v948 = vadd.f32 %v895, %v947
  %949 = vmatprep.mubr.bf16.mxu0 0
  %950 = vmatmul.mubr.bf16.gmra.mrb[0].mxu0 %v799
  %v951 = vpop.f32.mrb[0].mxu0
  %v952 = vadd.f32 %v899, %v951
  %v953 = vpop.f32.mrb[0].mxu0
  %v954 = vadd.f32 %v901, %v953
  %v955 = vpop.f32.mrb[0].mxu0
  %v956 = vadd.f32 %v903, %v955
  %v957 = vpop.f32.mrb[0].mxu0
  %v958 = vadd.f32 %v905, %v957
  %959 = vdwg.mxu0
  %960 = vmatprep.subr.bf16.mxu0 0
  %961 = vmatpush1.bf16.msra.mxu0 %v580
  %962 = vmatprep.subr.bf16.mxu0 0
  %963 = vmatpush1.bf16.msra.mxu0 %v583
  %964 = vmatprep.subr.bf16.mxu0 0
  %965 = vmatpush1.bf16.msra.mxu0 %v586
  %966 = vmatprep.subr.bf16.mxu0 0
  %967 = vmatpush1.bf16.msra.mxu0 %v589
  %968 = vmatprep.subr.bf16.mxu0 0
  %969 = vmatpush1.bf16.msra.mxu0 %v592
  %970 = vmatprep.subr.bf16.mxu0 0
  %971 = vmatpush1.bf16.msra.mxu0 %v595
  %972 = vmatprep.subr.bf16.mxu0 0
  %973 = vmatpush1.bf16.msra.mxu0 %v598
  %974 = vmatprep.subr.bf16.mxu0 0
  %975 = vmatpush1.bf16.msra.mxu0 %v601
  %976 = vmatprep.subr.bf16.mxu0 0
  %977 = vmatpush1.bf16.msra.mxu0 %v604
  %978 = vmatprep.subr.bf16.mxu0 0
  %979 = vmatpush1.bf16.msra.mxu0 %v607
  %980 = vmatprep.subr.bf16.mxu0 0
  %981 = vmatpush1.bf16.msra.mxu0 %v610
  %982 = vmatprep.subr.bf16.mxu0 0
  %983 = vmatpush1.bf16.msra.mxu0 %v613
  %984 = vmatprep.subr.bf16.mxu0 0
  %985 = vmatpush1.bf16.msra.mxu0 %v616
  %986 = vmatprep.subr.bf16.mxu0 0
  %987 = vmatpush1.bf16.msra.mxu0 %v619
  %988 = vmatprep.subr.bf16.mxu0 0
  %989 = vmatpush1.bf16.msra.mxu0 %v622
  %990 = vmatprep.subr.bf16.mxu0 0
  %991 = vmatpush1.bf16.msra.mxu0 %v625
  %992 = vmatprep.mubr.bf16.mxu0 %v201
  %993 = vmatmul.mubr.bf16.gmra.mrb[0].mxu0 %v200
  %v994 = vpop.f32.mrb[0].mxu0
  %v995 = vadd.f32 0.0, %v994
  %v996 = vpop.f32.mrb[0].mxu0
  %v997 = vpop.f32.mrb[0].mxu0
  %v998 = vadd.f32 0.0, %v997
  %v999 = vpop.f32.mrb[0].mxu0
  %1000 = vmatprep.mubr.bf16.mxu0 %v206
  %1001 = vmatmul.mubr.bf16.gmra.mrb[0].mxu0 %v205
  %v1002 = vpop.f32.mrb[0].mxu0
  %v1003 = vadd.f32 0.0, %v1002
  %v1004 = vpop.f32.mrb[0].mxu0
  %v1005 = vpop.f32.mrb[0].mxu0
  %v1006 = vadd.f32 0.0, %v1005
  %v1007 = vpop.f32.mrb[0].mxu0
  %1008 = vdwg.mxu0
  %1009 = vmatprep.subr.bf16.mxu0 0
  %1010 = vmatpush1.bf16.msra.mxu0 %v628
  %1011 = vmatprep.subr.bf16.mxu0 0
  %1012 = vmatpush1.bf16.msra.mxu0 %v631
  %1013 = vmatprep.subr.bf16.mxu0 0
  %1014 = vmatpush1.bf16.msra.mxu0 %v634
  %1015 = vmatprep.subr.bf16.mxu0 0
  %1016 = vmatpush1.bf16.msra.mxu0 %v637
  %1017 = vmatprep.subr.bf16.mxu0 0
  %1018 = vmatpush1.bf16.msra.mxu0 %v640
  %1019 = vmatprep.subr.bf16.mxu0 0
  %1020 = vmatpush1.bf16.msra.mxu0 %v643
  %1021 = vmatprep.subr.bf16.mxu0 0
  %1022 = vmatpush1.bf16.msra.mxu0 %v646
  %1023 = vmatprep.subr.bf16.mxu0 0
  %1024 = vmatpush1.bf16.msra.mxu0 %v649
  %1025 = vmatprep.subr.bf16.mxu0 0
  %1026 = vmatpush1.bf16.msra.mxu0 %v652
  %1027 = vmatprep.subr.bf16.mxu0 0
  %1028 = vmatpush1.bf16.msra.mxu0 %v655
  %1029 = vmatprep.subr.bf16.mxu0 0
  %1030 = vmatpush1.bf16.msra.mxu0 %v658
  %1031 = vmatprep.subr.bf16.mxu0 0
  %1032 = vmatpush1.bf16.msra.mxu0 %v661
  %1033 = vmatprep.subr.bf16.mxu0 0
  %1034 = vmatpush1.bf16.msra.mxu0 %v664
  %1035 = vmatprep.subr.bf16.mxu0 0
  %1036 = vmatpush1.bf16.msra.mxu0 %v667
  %1037 = vmatprep.subr.bf16.mxu0 0
  %1038 = vmatpush1.bf16.msra.mxu0 %v670
  %1039 = vmatprep.subr.bf16.mxu0 0
  %1040 = vmatpush1.bf16.msra.mxu0 %v673
  %1041 = vmatprep.mubr.bf16.mxu0 %v203
  %1042 = vmatmul.mubr.bf16.gmra.mrb[0].mxu0 %v202
  %v1043 = vpop.f32.mrb[0].mxu0
  %v1044 = vadd.f32 %v995, %v1043
  %v1045 = vpop.f32.mrb[0].mxu0
  %v1046 = vpop.f32.mrb[0].mxu0
  %v1047 = vadd.f32 %v998, %v1046
  %v1048 = vpop.f32.mrb[0].mxu0
  %1049 = vmatprep.mubr.bf16.mxu0 %v208
  %1050 = vmatmul.mubr.bf16.gmra.mrb[0].mxu0 %v207
  %v1051 = vpop.f32.mrb[0].mxu0
  %v1052 = vadd.f32 %v1003, %v1051
  %v1053 = vpop.f32.mrb[0].mxu0
  %v1054 = vpop.f32.mrb[0].mxu0
  %v1055 = vadd.f32 %v1006, %v1054
  %v1056 = vpop.f32.mrb[0].mxu0
  %1057 = vdwg.mxu0
  %1058 = vmatprep.subr.bf16.mxu0 0
  %1059 = vmatpush1.bf16.msra.mxu0 %v676
  %1060 = vmatprep.subr.bf16.mxu0 0
  %1061 = vmatpush1.bf16.msra.mxu0 %v679
  %1062 = vmatprep.subr.bf16.mxu0 0
  %1063 = vmatpush1.bf16.msra.mxu0 %v682
  %1064 = vmatprep.subr.bf16.mxu0 0
  %1065 = vmatpush1.bf16.msra.mxu0 %v685
  %1066 = vmatprep.subr.bf16.mxu0 0
  %1067 = vmatpush1.bf16.msra.mxu0 0
  %1068 = vmatprep.subr.bf16.mxu0 0
  %1069 = vmatpush1.bf16.msra.mxu0 0
  %1070 = vmatprep.subr.bf16.mxu0 0
  %1071 = vmatpush1.bf16.msra.mxu0 0
  %1072 = vmatprep.subr.bf16.mxu0 0
  %1073 = vmatpush1.bf16.msra.mxu0 0
  %1074 = vmatprep.subr.bf16.mxu0 0
  %1075 = vmatpush1.bf16.msra.mxu0 0
  %1076 = vmatprep.subr.bf16.mxu0 0
  %1077 = vmatpush1.bf16.msra.mxu0 0
  %1078 = vmatprep.subr.bf16.mxu0 0
  %1079 = vmatpush1.bf16.msra.mxu0 0
  %1080 = vmatprep.subr.bf16.mxu0 0
  %1081 = vmatpush1.bf16.msra.mxu0 0
  %1082 = vmatprep.subr.bf16.mxu0 0
  %1083 = vmatpush1.bf16.msra.mxu0 0
  %1084 = vmatprep.subr.bf16.mxu0 0
  %1085 = vmatpush1.bf16.msra.mxu0 0
  %1086 = vmatprep.subr.bf16.mxu0 0
  %1087 = vmatpush1.bf16.msra.mxu0 0
  %1088 = vmatprep.subr.bf16.mxu0 0
  %1089 = vmatpush1.bf16.msra.mxu0 0
  %1090 = vmatprep.mubr.bf16.mxu0 0
  %1091 = vmatmul.mubr.bf16.gmra.mrb[0].mxu0 %v796
  %v1092 = vpop.f32.mrb[0].mxu0
  %v1093 = vadd.f32 %v1044, %v1092
  %v1094 = vpop.f32.mrb[0].mxu0
  %v1095 = vpop.f32.mrb[0].mxu0
  %v1096 = vadd.f32 %v1047, %v1095
  %v1097 = vpop.f32.mrb[0].mxu0
  %1098 = vmatprep.mubr.bf16.mxu0 0
  %1099 = vmatmul.mubr.bf16.gmra.mrb[0].mxu0 %v799
  %v1100 = vpop.f32.mrb[0].mxu0
  %v1101 = vadd.f32 %v1052, %v1100
  %v1102 = vpop.f32.mrb[0].mxu0
  %v1103 = vpop.f32.mrb[0].mxu0
  %v1104 = vadd.f32 %v1055, %v1103
  %v1105 = vpop.f32.mrb[0].mxu0
  %1106 = vdwg.mxu0
  %v1107 = vlaneseq
  %v1108 = vand.u32 %v1107, 127
  %v1109 = vadd.s32 %v1108, 128
  %v1110 = vadd.s32 %v1108, 256
  %vm1111 = vcmp.lt.s32.totalorder %v1108, 288
  %vm1112 = vcmp.lt.s32.totalorder %v1109, 288
  %vm1113 = vcmp.lt.s32.totalorder %v1110, 288
  %v1114 = vsel %vm1111, %v942, 0.0
  %v1115 = vsel %vm1112, %v944, 0.0
  %v1116 = vsel %vm1113, %v1093, 0.0
  %v1117 = vsel %vm1111, %v946, 0.0
  %v1118 = vsel %vm1112, %v948, 0.0
  %v1119 = vsel %vm1113, %v1096, 0.0
  %v1120 = vsel %vm1111, %v952, 0.0
  %v1121 = vsel %vm1112, %v954, 0.0
  %v1122 = vsel %vm1113, %v1101, 0.0
  %v1123 = vsel %vm1111, %v956, 0.0
  %v1124 = vsel %vm1112, %v958, 0.0
  %v1125 = vsel %vm1113, %v1104, 0.0
  %v1126 = vadd.f32 %v1114, %v1115
  %v1127 = vadd.f32 %v1126, %v1116
  %1128 = vadd.xlane.f32.xlu0 %v1127
  %v1129 = vpop.xlane.xlu0 %1128
  %v1130 = vadd.f32 %v1117, %v1118
  %v1131 = vadd.f32 %v1130, %v1119
  %1132 = vadd.xlane.f32.xlu0 %v1131
  %v1133 = vpop.xlane.xlu0 %1132
  %v1134 = vadd.f32 %v1120, %v1121
  %v1135 = vadd.f32 %v1134, %v1122
  %1136 = vadd.xlane.f32.xlu0 %v1135
  %v1137 = vpop.xlane.xlu0 %1136
  %v1138 = vadd.f32 %v1123, %v1124
  %v1139 = vadd.f32 %v1138, %v1125
  %1140 = vadd.xlane.f32.xlu0 %v1139
  %v1141 = vpop.xlane.xlu0 %1140
  %v1142 = vmul.f32 %v1129, 0.0034722222
  %v1143 = vmul.f32 %v1133, 0.0034722222
  %v1144 = vmul.f32 %v1137, 0.0034722222
  %v1145 = vmul.f32 %v1141, 0.0034722222
  %v1146 = vmul.f32 %v1114, %v1114
  %v1147 = vmul.f32 %v1115, %v1115
  %v1148 = vmul.f32 %v1116, %v1116
  %v1149 = vmul.f32 %v1117, %v1117
  %v1150 = vmul.f32 %v1118, %v1118
  %v1151 = vmul.f32 %v1119, %v1119
  %v1152 = vmul.f32 %v1120, %v1120
  %v1153 = vmul.f32 %v1121, %v1121
  %v1154 = vmul.f32 %v1122, %v1122
  %v1155 = vmul.f32 %v1123, %v1123
  %v1156 = vmul.f32 %v1124, %v1124
  %v1157 = vmul.f32 %v1125, %v1125
  %v1158 = vadd.f32 %v1146, %v1147
  %v1159 = vadd.f32 %v1158, %v1148
  %1160 = vadd.xlane.f32.xlu0 %v1159
  %v1161 = vpop.xlane.xlu0 %1160
  %v1162 = vadd.f32 %v1149, %v1150
  %v1163 = vadd.f32 %v1162, %v1151
  %1164 = vadd.xlane.f32.xlu0 %v1163
  %v1165 = vpop.xlane.xlu0 %1164
  %v1166 = vadd.f32 %v1152, %v1153
  %v1167 = vadd.f32 %v1166, %v1154
  %1168 = vadd.xlane.f32.xlu0 %v1167
  %v1169 = vpop.xlane.xlu0 %1168
  %v1170 = vadd.f32 %v1155, %v1156
  %v1171 = vadd.f32 %v1170, %v1157
  %1172 = vadd.xlane.f32.xlu0 %v1171
  %v1173 = vpop.xlane.xlu0 %1172
  %v1174 = vmul.f32 %v1161, 0.0034722222
  %v1175 = vmul.f32 %v1165, 0.0034722222
  %v1176 = vmul.f32 %v1169, 0.0034722222
  %v1177 = vmul.f32 %v1173, 0.0034722222
  %v1178 = vmul.f32 %v1142, %v1142
  %v1179 = vmul.f32 %v1143, %v1143
  %v1180 = vmul.f32 %v1144, %v1144
  %v1181 = vmul.f32 %v1145, %v1145
  %v1182 = vsub.f32 %v1174, %v1178
  %v1183 = vsub.f32 %v1175, %v1179
  %v1184 = vsub.f32 %v1176, %v1180
  %v1185 = vsub.f32 %v1177, %v1181
  %v1186 = vmax.f32 %v1182, 0.0
  %v1187 = vmax.f32 %v1183, 0.0
  %v1188 = vmax.f32 %v1184, 0.0
  %v1189 = vmax.f32 %v1185, 0.0
  %v1190 = vsub.f32 %v942, %v1142
  %v1191 = vsub.f32 %v944, %v1142
  %v1192 = vsub.f32 %v1093, %v1142
  %v1193 = vsub.f32 %v946, %v1143
  %v1194 = vsub.f32 %v948, %v1143
  %v1195 = vsub.f32 %v1096, %v1143
  %v1196 = vsub.f32 %v952, %v1144
  %v1197 = vsub.f32 %v954, %v1144
  %v1198 = vsub.f32 %v1101, %v1144
  %v1199 = vsub.f32 %v956, %v1145
  %v1200 = vsub.f32 %v958, %v1145
  %v1201 = vsub.f32 %v1104, %v1145
  %v1202 = vadd.f32 %v1186, 1e-05
  %v1203 = vadd.f32 %v1187, 1e-05
  %v1204 = vadd.f32 %v1188, 1e-05
  %v1205 = vadd.f32 %v1189, 1e-05
  %v1206 = vrsqrt.pop %v1202
  %v1207 = vrsqrt.pop %v1203
  %v1208 = vrsqrt.pop %v1204
  %v1209 = vrsqrt.pop %v1205
  %v1210 = vmul.f32 %v1190, %v1206
  %v1211 = vmul.f32 %v1191, %v1206
  %v1212 = vmul.f32 %v1192, %v1206
  %v1213 = vmul.f32 %v1193, %v1207
  %v1214 = vmul.f32 %v1194, %v1207
  %v1215 = vmul.f32 %v1195, %v1207
  %v1216 = vmul.f32 %v1196, %v1208
  %v1217 = vmul.f32 %v1197, %v1208
  %v1218 = vmul.f32 %v1198, %v1208
  %v1219 = vmul.f32 %v1199, %v1209
  %v1220 = vmul.f32 %v1200, %v1209
  %v1221 = vmul.f32 %v1201, %v1209
  %v1222 = vmul.f32 %v1210, 0.01
  %v1223 = vmul.f32 %v1211, 0.01
  %v1224 = vmul.f32 %v1212, 0.01
  %v1225 = vmul.f32 %v1213, 0.01
  %v1226 = vmul.f32 %v1214, 0.01
  %v1227 = vmul.f32 %v1215, 0.01
  %v1228 = vmul.f32 %v1216, 0.01
  %v1229 = vmul.f32 %v1217, 0.01
  %v1230 = vmul.f32 %v1218, 0.01
  %v1231 = vmul.f32 %v1219, 0.01
  %v1232 = vmul.f32 %v1220, 0.01
  %v1233 = vmul.f32 %v1221, 0.01
  %v1234 = vmax.f32 %v1210, %v1222
  %v1235 = vmax.f32 %v1211, %v1223
  %v1236 = vmax.f32 %v1212, %v1224
  %v1237 = vmax.f32 %v1213, %v1225
  %v1238 = vmax.f32 %v1214, %v1226
  %v1239 = vmax.f32 %v1215, %v1227
  %v1240 = vmax.f32 %v1216, %v1228
  %v1241 = vmax.f32 %v1217, %v1229
  %v1242 = vmax.f32 %v1218, %v1230
  %v1243 = vmax.f32 %v1219, %v1231
  %v1244 = vmax.f32 %v1220, %v1232
  %v1245 = vmax.f32 %v1221, %v1233
  %1246 = vst [vmem:[%s2] sm:$0xff] %v1234
  %1247 = vst [vmem:[%s2 + $0x8] sm:$0xff] %v1235
  %1248 = vst [vmem:[%s2 + $0x10] sm:$0xff] %v1236
  %1249 = vst [vmem:[%s2 + $0x18] sm:$0xff] %v1237
  %1250 = vst [vmem:[%s2 + $0x20] sm:$0xff] %v1238
  %1251 = vst [vmem:[%s2 + $0x28] sm:$0xff] %v1239
  %1252 = vst [vmem:[%s2 + $0x30] sm:$0xff] %v1240
  %1253 = vst [vmem:[%s2 + $0x38] sm:$0xff] %v1241
  %1254 = vst [vmem:[%s2 + $0x40] sm:$0xff] %v1242
  %1255 = vst [vmem:[%s2 + $0x48] sm:$0xff] %v1243
  %1256 = vst [vmem:[%s2 + $0x50] sm:$0xff] %v1244
  %1257 = vst [vmem:[%s2 + $0x58] sm:$0xff] %v1245
  // Predicated region
  $region10: #{conv_deconv_forward.20} parent=0 // pred_check
    _
  $region11: #{conv_deconv_forward.20} parent=0 // pred_check_branch
    %1259 = sbr.rel (0) target = $region13
  $region12: #{conv_deconv_forward.20} parent=0 // pred_region
    _
  $region13: #{conv_deconv_forward.20} parent=0 // pred_fallthru
    _
  // Predicated region
  $region14: #{conv_deconv_forward.20} parent=0 // pred_check
    _
  $region15: #{conv_deconv_forward.20} parent=0 // pred_check_branch
    %1261 = sbr.rel (0) target = $region17
  $region16: #{conv_deconv_forward.20} parent=0 // pred_region
    _
  $region17: #{conv_deconv_forward.20} parent=0 // pred_fallthru
    _

// kernel: conv_deconv_forward.21
$region0: #{conv_deconv_forward.21}
  #allocation0 [shape = 'u32[]', space=smem, size = 0x4, offset = 0x4, fixed_abs, tag = 'smem constant byte address 0x4 - core index']
  #allocation1 [shape = 'u32[144,128]{1,0:T(1,128)}', space=vmem, size = 0x12000, scoped, tag = 'internal scratch']
  %s0 = inlined_call_operand.vmem [shape: bf16[16,800], index: 0, kind: input, shape index: {}]
  %s1 = inlined_call_operand.vmem [shape: bf16[800,512], index: 1, kind: input, shape index: {}]
  %s2 = inlined_call_operand.vmem [shape: f32[16,512], index: 2, kind: output, shape index: {}]
  %s3 = sld [smem:[#allocation0]]
  $region18: #{conv_deconv_forward.21} parent=0
    _
  %s5 = ssub.s32 1, %s3
  %s6 = scalar_select 0, %s5, %s3
  // Predicated region
  $region2: #{conv_deconv_forward.21} parent=0 // pred_check
    _
  $region3: #{conv_deconv_forward.21} parent=0 // pred_check_branch
    %8 = sbr.rel (0) target = $region5
  $region4: #{conv_deconv_forward.21} parent=0 // pred_region
    _
  $region5: #{conv_deconv_forward.21} parent=0 // pred_fallthru
    _
  // Predicated region
  $region6: #{conv_deconv_forward.21} parent=0 // pred_check
    _
  $region7: #{conv_deconv_forward.21} parent=0 // pred_check_branch
    %10 = sbr.rel (0) target = $region9
  $region8: #{conv_deconv_forward.21} parent=0 // pred_region
    _
  $region9: #{conv_deconv_forward.21} parent=0 // pred_fallthru
    _
  %v12 = vld [vmem:[%s0] sm:$0xff]
  %v13 = vld [vmem:[%s0 + $0x8] sm:$0xff]
  %v14 = vld [vmem:[%s0 + $0x10] sm:$0xff]
  %v15 = vld [vmem:[%s0 + $0x18] sm:$0xf]
  %v16 = vld [vmem:[%s0 + $0x1c] sm:$0xff]
  %v17 = vld [vmem:[%s0 + $0x24] sm:$0xff]
  %v18 = vld [vmem:[%s0 + $0x2c] sm:$0xff]
  %v19 = vld [vmem:[%s0 + $0x34] sm:$0xf]
  %v20 = vld [vmem:[%s1] sm:$0xff]
  %v21 = vld [vmem:[%s1 + $0x8] sm:$0xff]
  %v22 = vld [vmem:[%s1 + $0x10] sm:$0xff]
  %v23 = vld [vmem:[%s1 + $0x18] sm:$0xff]
  %v24 = vld [vmem:[%s1 + $0x20] sm:$0xff]
  %v25 = vld [vmem:[%s1 + $0x28] sm:$0xff]
  %v26 = vld [vmem:[%s1 + $0x30] sm:$0xff]
  %v27 = vld [vmem:[%s1 + $0x38] sm:$0xff]
  %v28 = vld [vmem:[%s1 + $0x40] sm:$0xff]
  %v29 = vld [vmem:[%s1 + $0x48] sm:$0xff]
  %v30 = vld [vmem:[%s1 + $0x50] sm:$0xff]
  %v31 = vld [vmem:[%s1 + $0x58] sm:$0xff]
  %v32 = vld [vmem:[%s1 + $0x60] sm:$0xff]
  %v33 = vld [vmem:[%s1 + $0x68] sm:$0xff]
  %v34 = vld [vmem:[%s1 + $0x70] sm:$0xff]
  %v35 = vld [vmem:[%s1 + $0x78] sm:$0xff]
  %v36 = vld [vmem:[%s1 + $0x80] sm:$0xff]
  %v37 = vld [vmem:[%s1 + $0x88] sm:$0xff]
  %v38 = vld [vmem:[%s1 + $0x90] sm:$0xff]
  %v39 = vld [vmem:[%s1 + $0x98] sm:$0xff]
  %v40 = vld [vmem:[%s1 + $0xa0] sm:$0xff]
  %v41 = vld [vmem:[%s1 + $0xa8] sm:$0xff]
  %v42 = vld [vmem:[%s1 + $0xb0] sm:$0xff]
  %v43 = vld [vmem:[%s1 + $0xb8] sm:$0xff]
  %v44 = vld [vmem:[%s1 + $0xc0] sm:$0xff]
  %v45 = vld [vmem:[%s1 + $0xc8] sm:$0xff]
  %v46 = vld [vmem:[%s1 + $0xd0] sm:$0xff]
  %v47 = vld [vmem:[%s1 + $0xd8] sm:$0xff]
  %v48 = vld [vmem:[%s1 + $0xe0] sm:$0xff]
  %v49 = vld [vmem:[%s1 + $0xe8] sm:$0xff]
  %v50 = vld [vmem:[%s1 + $0xf0] sm:$0xff]
  %v51 = vld [vmem:[%s1 + $0xf8] sm:$0xff]
  %v52 = vld [vmem:[%s1 + $0x100] sm:$0xff]
  %v53 = vld [vmem:[%s1 + $0x108] sm:$0xff]
  %v54 = vld [vmem:[%s1 + $0x110] sm:$0xff]
  %v55 = vld [vmem:[%s1 + $0x118] sm:$0xff]
  %v56 = vld [vmem:[%s1 + $0x120] sm:$0xff]
  %v57 = vld [vmem:[%s1 + $0x128] sm:$0xff]
  %v58 = vld [vmem:[%s1 + $0x130] sm:$0xff]
  %v59 = vld [vmem:[%s1 + $0x138] sm:$0xff]
  %v60 = vld [vmem:[%s1 + $0x140] sm:$0xff]
  %v61 = vld [vmem:[%s1 + $0x148] sm:$0xff]
  %v62 = vld [vmem:[%s1 + $0x150] sm:$0xff]
  %v63 = vld [vmem:[%s1 + $0x158] sm:$0xff]
  %v64 = vld [vmem:[%s1 + $0x160] sm:$0xff]
  %v65 = vld [vmem:[%s1 + $0x168] sm:$0xff]
  %v66 = vld [vmem:[%s1 + $0x170] sm:$0xff]
  %v67 = vld [vmem:[%s1 + $0x178] sm:$0xff]
  %v68 = vld [vmem:[%s1 + $0x180] sm:$0xff]
  %v69 = vld [vmem:[%s1 + $0x188] sm:$0xff]
  %v70 = vld [vmem:[%s1 + $0x190] sm:$0xff]
  %v71 = vld [vmem:[%s1 + $0x198] sm:$0xff]
  %v72 = vld [vmem:[%s1 + $0x1a0] sm:$0xff]
  %v73 = vld [vmem:[%s1 + $0x1a8] sm:$0xff]
  %v74 = vld [vmem:[%s1 + $0x1b0] sm:$0xff]
  %v75 = vld [vmem:[%s1 + $0x1b8] sm:$0xff]
  %v76 = vld [vmem:[%s1 + $0x1c0] sm:$0xff]
  %v77 = vld [vmem:[%s1 + $0x1c8] sm:$0xff]
  %v78 = vld [vmem:[%s1 + $0x1d0] sm:$0xff]
  %v79 = vld [vmem:[%s1 + $0x1d8] sm:$0xff]
  %v80 = vld [vmem:[%s1 + $0x1e0] sm:$0xff]
  %v81 = vld [vmem:[%s1 + $0x1e8] sm:$0xff]
  %v82 = vld [vmem:[%s1 + $0x1f0] sm:$0xff]
  %v83 = vld [vmem:[%s1 + $0x1f8] sm:$0xff]
  %v84 = vld [vmem:[%s1 + $0x200] sm:$0xff]
  %v85 = vld [vmem:[%s1 + $0x208] sm:$0xff]
  %v86 = vld [vmem:[%s1 + $0x210] sm:$0xff]
  %v87 = vld [vmem:[%s1 + $0x218] sm:$0xff]
  %v88 = vld [vmem:[%s1 + $0x220] sm:$0xff]
  %v89 = vld [vmem:[%s1 + $0x228] sm:$0xff]
  %v90 = vld [vmem:[%s1 + $0x230] sm:$0xff]
  %v91 = vld [vmem:[%s1 + $0x238] sm:$0xff]
  %v92 = vld [vmem:[%s1 + $0x240] sm:$0xff]
  %v93 = vld [vmem:[%s1 + $0x248] sm:$0xff]
  %v94 = vld [vmem:[%s1 + $0x250] sm:$0xff]
  %v95 = vld [vmem:[%s1 + $0x258] sm:$0xff]
  %v96 = vld [vmem:[%s1 + $0x260] sm:$0xff]
  %v97 = vld [vmem:[%s1 + $0x268] sm:$0xff]
  %v98 = vld [vmem:[%s1 + $0x270] sm:$0xff]
  %v99 = vld [vmem:[%s1 + $0x278] sm:$0xff]
  %v100 = vld [vmem:[%s1 + $0x280] sm:$0xff]
  %v101 = vld [vmem:[%s1 + $0x288] sm:$0xff]
  %v102 = vld [vmem:[%s1 + $0x290] sm:$0xff]
  %v103 = vld [vmem:[%s1 + $0x298] sm:$0xff]
  %v104 = vld [vmem:[%s1 + $0x2a0] sm:$0xff]
  %v105 = vld [vmem:[%s1 + $0x2a8] sm:$0xff]
  %v106 = vld [vmem:[%s1 + $0x2b0] sm:$0xff]
  %v107 = vld [vmem:[%s1 + $0x2b8] sm:$0xff]
  %v108 = vld [vmem:[%s1 + $0x2c0] sm:$0xff]
  %v109 = vld [vmem:[%s1 + $0x2c8] sm:$0xff]
  %v110 = vld [vmem:[%s1 + $0x2d0] sm:$0xff]
  %v111 = vld [vmem:[%s1 + $0x2d8] sm:$0xff]
  %v112 = vld [vmem:[%s1 + $0x2e0] sm:$0xff]
  %v113 = vld [vmem:[%s1 + $0x2e8] sm:$0xff]
  %v114 = vld [vmem:[%s1 + $0x2f0] sm:$0xff]
  %v115 = vld [vmem:[%s1 + $0x2f8] sm:$0xff]
  %v116 = vld [vmem:[%s1 + $0x300] sm:$0xff]
  %v117 = vld [vmem:[%s1 + $0x308] sm:$0xff]
  %v118 = vld [vmem:[%s1 + $0x310] sm:$0xff]
  %v119 = vld [vmem:[%s1 + $0x318] sm:$0xff]
  %v120 = vld [vmem:[%s1 + $0x320] sm:$0xff]
  %v121 = vld [vmem:[%s1 + $0x328] sm:$0xff]
  %v122 = vld [vmem:[%s1 + $0x330] sm:$0xff]
  %v123 = vld [vmem:[%s1 + $0x338] sm:$0xff]
  %v124 = vld [vmem:[%s1 + $0x340] sm:$0xff]
  %v125 = vld [vmem:[%s1 + $0x348] sm:$0xff]
  %v126 = vld [vmem:[%s1 + $0x350] sm:$0xff]
  %v127 = vld [vmem:[%s1 + $0x358] sm:$0xff]
  %v128 = vld [vmem:[%s1 + $0x360] sm:$0xff]
  %v129 = vld [vmem:[%s1 + $0x368] sm:$0xff]
  %v130 = vld [vmem:[%s1 + $0x370] sm:$0xff]
  %v131 = vld [vmem:[%s1 + $0x378] sm:$0xff]
  %v132 = vld [vmem:[%s1 + $0x380] sm:$0xff]
  %v133 = vld [vmem:[%s1 + $0x388] sm:$0xff]
  %v134 = vld [vmem:[%s1 + $0x390] sm:$0xff]
  %v135 = vld [vmem:[%s1 + $0x398] sm:$0xff]
  %v136 = vld [vmem:[%s1 + $0x3a0] sm:$0xff]
  %v137 = vld [vmem:[%s1 + $0x3a8] sm:$0xff]
  %v138 = vld [vmem:[%s1 + $0x3b0] sm:$0xff]
  %v139 = vld [vmem:[%s1 + $0x3b8] sm:$0xff]
  %v140 = vld [vmem:[%s1 + $0x3c0] sm:$0xff]
  %v141 = vld [vmem:[%s1 + $0x3c8] sm:$0xff]
  %v142 = vld [vmem:[%s1 + $0x3d0] sm:$0xff]
  %v143 = vld [vmem:[%s1 + $0x3d8] sm:$0xff]
  %v144 = vld [vmem:[%s1 + $0x3e0] sm:$0xff]
  %v145 = vld [vmem:[%s1 + $0x3e8] sm:$0xff]
  %v146 = vld [vmem:[%s1 + $0x3f0] sm:$0xff]
  %v147 = vld [vmem:[%s1 + $0x3f8] sm:$0xff]
  %v148 = vld [vmem:[%s1 + $0x400] sm:$0xff]
  %v149 = vld [vmem:[%s1 + $0x408] sm:$0xff]
  %v150 = vld [vmem:[%s1 + $0x410] sm:$0xff]
  %v151 = vld [vmem:[%s1 + $0x418] sm:$0xff]
  %v152 = vld [vmem:[%s1 + $0x420] sm:$0xff]
  %v153 = vld [vmem:[%s1 + $0x428] sm:$0xff]
  %v154 = vld [vmem:[%s1 + $0x430] sm:$0xff]
  %v155 = vld [vmem:[%s1 + $0x438] sm:$0xff]
  %v156 = vld [vmem:[%s1 + $0x440] sm:$0xff]
  %v157 = vld [vmem:[%s1 + $0x448] sm:$0xff]
  %v158 = vld [vmem:[%s1 + $0x450] sm:$0xff]
  %v159 = vld [vmem:[%s1 + $0x458] sm:$0xff]
  %v160 = vld [vmem:[%s1 + $0x460] sm:$0xff]
  %v161 = vld [vmem:[%s1 + $0x468] sm:$0xff]
  %v162 = vld [vmem:[%s1 + $0x470] sm:$0xff]
  %v163 = vld [vmem:[%s1 + $0x478] sm:$0xff]
  %v164 = vld [vmem:[%s1 + $0x480] sm:$0xff]
  %v165 = vld [vmem:[%s1 + $0x488] sm:$0xff]
  %v166 = vld [vmem:[%s1 + $0x490] sm:$0xff]
  %v167 = vld [vmem:[%s1 + $0x498] sm:$0xff]
  %v168 = vld [vmem:[%s1 + $0x4a0] sm:$0xff]
  %v169 = vld [vmem:[%s1 + $0x4a8] sm:$0xff]
  %v170 = vld [vmem:[%s1 + $0x4b0] sm:$0xff]
  %v171 = vld [vmem:[%s1 + $0x4b8] sm:$0xff]
  %v172 = vld [vmem:[%s1 + $0x4c0] sm:$0xff]
  %v173 = vld [vmem:[%s1 + $0x4c8] sm:$0xff]
  %v174 = vld [vmem:[%s1 + $0x4d0] sm:$0xff]
  %v175 = vld [vmem:[%s1 + $0x4d8] sm:$0xff]
  %v176 = vld [vmem:[%s1 + $0x4e0] sm:$0xff]
  %v177 = vld [vmem:[%s1 + $0x4e8] sm:$0xff]
  %v178 = vld [vmem:[%s1 + $0x4f0] sm:$0xff]
  %v179 = vld [vmem:[%s1 + $0x4f8] sm:$0xff]
  %v180 = vld [vmem:[%s1 + $0x500] sm:$0xff]
  %v181 = vld [vmem:[%s1 + $0x508] sm:$0xff]
  %v182 = vld [vmem:[%s1 + $0x510] sm:$0xff]
  %v183 = vld [vmem:[%s1 + $0x518] sm:$0xff]
  %v184 = vld [vmem:[%s1 + $0x520] sm:$0xff]
  %v185 = vld [vmem:[%s1 + $0x528] sm:$0xff]
  %v186 = vld [vmem:[%s1 + $0x530] sm:$0xff]
  %v187 = vld [vmem:[%s1 + $0x538] sm:$0xff]
  %v188 = vld [vmem:[%s1 + $0x540] sm:$0xff]
  %v189 = vld [vmem:[%s1 + $0x548] sm:$0xff]
  %v190 = vld [vmem:[%s1 + $0x550] sm:$0xff]
  %v191 = vld [vmem:[%s1 + $0x558] sm:$0xff]
  %v192 = vld [vmem:[%s1 + $0x560] sm:$0xff]
  %v193 = vld [vmem:[%s1 + $0x568] sm:$0xff]
  %v194 = vld [vmem:[%s1 + $0x570] sm:$0xff]
  %v195 = vld [vmem:[%s1 + $0x578] sm:$0xff]
  %v196 = vld [vmem:[%s1 + $0x580] sm:$0xff]
  %v197 = vld [vmem:[%s1 + $0x588] sm:$0xff]
  %v198 = vld [vmem:[%s1 + $0x590] sm:$0xff]
  %v199 = vld [vmem:[%s1 + $0x598] sm:$0xff]
  %v200 = vld [vmem:[%s1 + $0x5a0] sm:$0xff]
  %v201 = vld [vmem:[%s1 + $0x5a8] sm:$0xff]
  %v202 = vld [vmem:[%s1 + $0x5b0] sm:$0xff]
  %v203 = vld [vmem:[%s1 + $0x5b8] sm:$0xff]
  %v204 = vld [vmem:[%s1 + $0x5c0] sm:$0xff]
  %v205 = vld [vmem:[%s1 + $0x5c8] sm:$0xff]
  %v206 = vld [vmem:[%s1 + $0x5d0] sm:$0xff]
  %v207 = vld [vmem:[%s1 + $0x5d8] sm:$0xff]
  %v208 = vld [vmem:[%s1 + $0x5e0] sm:$0xff]
  %v209 = vld [vmem:[%s1 + $0x5e8] sm:$0xff]
  %v210 = vld [vmem:[%s1 + $0x5f0] sm:$0xff]
  %v211 = vld [vmem:[%s1 + $0x5f8] sm:$0xff]
  %v212 = vld [vmem:[%s1 + $0x600] sm:$0xff]
  %v213 = vld [vmem:[%s1 + $0x608] sm:$0xff]
  %v214 = vld [vmem:[%s1 + $0x610] sm:$0xff]
  %v215 = vld [vmem:[%s1 + $0x618] sm:$0xff]
  %v216 = vld [vmem:[%s1 + $0x620] sm:$0xff]
  %v217 = vld [vmem:[%s1 + $0x628] sm:$0xff]
  %v218 = vld [vmem:[%s1 + $0x630] sm:$0xff]
  %v219 = vld [vmem:[%s1 + $0x638] sm:$0xff]
  %v228 = vunpack.c.l.b16 %v12
  %v229 = vunpack.c.h.b16 %v12
  %v230 = vunpack.c.l.b16 %v13
  %v231 = vunpack.c.h.b16 %v13
  %v232 = vunpack.c.l.b16 %v14
  %v233 = vunpack.c.h.b16 %v14
  %v234 = vunpack.c.l.b16 %v15
  %v235 = vunpack.c.l.b16 %v16
  %v236 = vunpack.c.h.b16 %v16
  %v237 = vunpack.c.l.b16 %v17
  %v238 = vunpack.c.h.b16 %v17
  %v239 = vunpack.c.l.b16 %v18
  %v240 = vunpack.c.h.b16 %v18
  %v241 = vunpack.c.l.b16 %v19
  %v242 = vpack.c.b16 %v235, %v228
  %v243 = vpack.c.b16 %v236, %v229
  %v244 = vpack.c.b16 %v237, %v230
  %v245 = vpack.c.b16 %v238, %v231
  %v246 = vpack.c.b16 %v239, %v232
  %v247 = vpack.c.b16 %v240, %v233
  %v248 = vpack.c.b16 %v241, %v234
  %v455 = vunpack.c.l.b16 %v20
  %v456 = vunpack.c.h.b16 %v20
  %v457 = vunpack.c.l.b16 %v21
  %v458 = vunpack.c.h.b16 %v21
  %v459 = vunpack.c.l.b16 %v22
  %v460 = vunpack.c.h.b16 %v22
  %v461 = vunpack.c.l.b16 %v23
  %v462 = vunpack.c.h.b16 %v23
  %v463 = vunpack.c.l.b16 %v24
  %v464 = vunpack.c.h.b16 %v24
  %v465 = vunpack.c.l.b16 %v25
  %v466 = vunpack.c.h.b16 %v25
  %v467 = vunpack.c.l.b16 %v26
  %v468 = vunpack.c.h.b16 %v26
  %v469 = vunpack.c.l.b16 %v27
  %v470 = vunpack.c.h.b16 %v27
  %v471 = vunpack.c.l.b16 %v28
  %v472 = vunpack.c.h.b16 %v28
  %v473 = vunpack.c.l.b16 %v29
  %v474 = vunpack.c.h.b16 %v29
  %v475 = vunpack.c.l.b16 %v30
  %v476 = vunpack.c.h.b16 %v30
  %v477 = vunpack.c.l.b16 %v31
  %v478 = vunpack.c.h.b16 %v31
  %v479 = vunpack.c.l.b16 %v32
  %v480 = vunpack.c.h.b16 %v32
  %v481 = vunpack.c.l.b16 %v33
  %v482 = vunpack.c.h.b16 %v33
  %v483 = vunpack.c.l.b16 %v34
  %v484 = vunpack.c.h.b16 %v34
  %v485 = vunpack.c.l.b16 %v35
  %v486 = vunpack.c.h.b16 %v35
  %v487 = vunpack.c.l.b16 %v36
  %v488 = vunpack.c.h.b16 %v36
  %v489 = vunpack.c.l.b16 %v37
  %v490 = vunpack.c.h.b16 %v37
  %v491 = vunpack.c.l.b16 %v38
  %v492 = vunpack.c.h.b16 %v38
  %v493 = vunpack.c.l.b16 %v39
  %v494 = vunpack.c.h.b16 %v39
  %v495 = vunpack.c.l.b16 %v40
  %v496 = vunpack.c.h.b16 %v40
  %v497 = vunpack.c.l.b16 %v41
  %v498 = vunpack.c.h.b16 %v41
  %v499 = vunpack.c.l.b16 %v42
  %v500 = vunpack.c.h.b16 %v42
  %v501 = vunpack.c.l.b16 %v43
  %v502 = vunpack.c.h.b16 %v43
  %v503 = vunpack.c.l.b16 %v44
  %v504 = vunpack.c.h.b16 %v44
  %v505 = vunpack.c.l.b16 %v45
  %v506 = vunpack.c.h.b16 %v45
  %v507 = vunpack.c.l.b16 %v46
  %v508 = vunpack.c.h.b16 %v46
  %v509 = vunpack.c.l.b16 %v47
  %v510 = vunpack.c.h.b16 %v47
  %v511 = vunpack.c.l.b16 %v48
  %v512 = vunpack.c.h.b16 %v48
  %v513 = vunpack.c.l.b16 %v49
  %v514 = vunpack.c.h.b16 %v49
  %v515 = vunpack.c.l.b16 %v50
  %v516 = vunpack.c.h.b16 %v50
  %v517 = vunpack.c.l.b16 %v51
  %v518 = vunpack.c.h.b16 %v51
  %v519 = vunpack.c.l.b16 %v52
  %v520 = vunpack.c.h.b16 %v52
  %v521 = vunpack.c.l.b16 %v53
  %v522 = vunpack.c.h.b16 %v53
  %v523 = vunpack.c.l.b16 %v54
  %v524 = vunpack.c.h.b16 %v54
  %v525 = vunpack.c.l.b16 %v55
  %v526 = vunpack.c.h.b16 %v55
  %v527 = vunpack.c.l.b16 %v56
  %v528 = vunpack.c.h.b16 %v56
  %v529 = vunpack.c.l.b16 %v57
  %v530 = vunpack.c.h.b16 %v57
  %v531 = vunpack.c.l.b16 %v58
  %v532 = vunpack.c.h.b16 %v58
  %v533 = vunpack.c.l.b16 %v59
  %v534 = vunpack.c.h.b16 %v59
  %v535 = vunpack.c.l.b16 %v60
  %v536 = vunpack.c.h.b16 %v60
  %v537 = vunpack.c.l.b16 %v61
  %v538 = vunpack.c.h.b16 %v61
  %v539 = vunpack.c.l.b16 %v62
  %v540 = vunpack.c.h.b16 %v62
  %v541 = vunpack.c.l.b16 %v63
  %v542 = vunpack.c.h.b16 %v63
  %v543 = vunpack.c.l.b16 %v64
  %v544 = vunpack.c.h.b16 %v64
  %v545 = vunpack.c.l.b16 %v65
  %v546 = vunpack.c.h.b16 %v65
  %v547 = vunpack.c.l.b16 %v66
  %v548 = vunpack.c.h.b16 %v66
  %v549 = vunpack.c.l.b16 %v67
  %v550 = vunpack.c.h.b16 %v67
  %v551 = vunpack.c.l.b16 %v68
  %v552 = vunpack.c.h.b16 %v68
  %v553 = vunpack.c.l.b16 %v69
  %v554 = vunpack.c.h.b16 %v69
  %v555 = vunpack.c.l.b16 %v70
  %v556 = vunpack.c.h.b16 %v70
  %v557 = vunpack.c.l.b16 %v71
  %v558 = vunpack.c.h.b16 %v71
  %v559 = vunpack.c.l.b16 %v72
  %v560 = vunpack.c.h.b16 %v72
  %v561 = vunpack.c.l.b16 %v73
  %v562 = vunpack.c.h.b16 %v73
  %v563 = vunpack.c.l.b16 %v74
  %v564 = vunpack.c.h.b16 %v74
  %v565 = vunpack.c.l.b16 %v75
  %v566 = vunpack.c.h.b16 %v75
  %v567 = vunpack.c.l.b16 %v76
  %v568 = vunpack.c.h.b16 %v76
  %v569 = vunpack.c.l.b16 %v77
  %v570 = vunpack.c.h.b16 %v77
  %v571 = vunpack.c.l.b16 %v78
  %v572 = vunpack.c.h.b16 %v78
  %v573 = vunpack.c.l.b16 %v79
  %v574 = vunpack.c.h.b16 %v79
  %v575 = vunpack.c.l.b16 %v80
  %v576 = vunpack.c.h.b16 %v80
  %v577 = vunpack.c.l.b16 %v81
  %v578 = vunpack.c.h.b16 %v81
  %v579 = vunpack.c.l.b16 %v82
  %v580 = vunpack.c.h.b16 %v82
  %v581 = vunpack.c.l.b16 %v83
  %v582 = vunpack.c.h.b16 %v83
  %v583 = vunpack.c.l.b16 %v84
  %v584 = vunpack.c.h.b16 %v84
  %v585 = vunpack.c.l.b16 %v85
  %v586 = vunpack.c.h.b16 %v85
  %v587 = vunpack.c.l.b16 %v86
  %v588 = vunpack.c.h.b16 %v86
  %v589 = vunpack.c.l.b16 %v87
  %v590 = vunpack.c.h.b16 %v87
  %v591 = vunpack.c.l.b16 %v88
  %v592 = vunpack.c.h.b16 %v88
  %v593 = vunpack.c.l.b16 %v89
  %v594 = vunpack.c.h.b16 %v89
  %v595 = vunpack.c.l.b16 %v90
  %v596 = vunpack.c.h.b16 %v90
  %v597 = vunpack.c.l.b16 %v91
  %v598 = vunpack.c.h.b16 %v91
  %v599 = vunpack.c.l.b16 %v92
  %v600 = vunpack.c.h.b16 %v92
  %v601 = vunpack.c.l.b16 %v93
  %v602 = vunpack.c.h.b16 %v93
  %v603 = vunpack.c.l.b16 %v94
  %v604 = vunpack.c.h.b16 %v94
  %v605 = vunpack.c.l.b16 %v95
  %v606 = vunpack.c.h.b16 %v95
  %v607 = vunpack.c.l.b16 %v96
  %v608 = vunpack.c.h.b16 %v96
  %v609 = vunpack.c.l.b16 %v97
  %v610 = vunpack.c.h.b16 %v97
  %v611 = vunpack.c.l.b16 %v98
  %v612 = vunpack.c.h.b16 %v98
  %v613 = vunpack.c.l.b16 %v99
  %v614 = vunpack.c.h.b16 %v99
  %v615 = vunpack.c.l.b16 %v100
  %v616 = vunpack.c.h.b16 %v100
  %v617 = vunpack.c.l.b16 %v101
  %v618 = vunpack.c.h.b16 %v101
  %v619 = vunpack.c.l.b16 %v102
  %v620 = vunpack.c.h.b16 %v102
  %v621 = vunpack.c.l.b16 %v103
  %v622 = vunpack.c.h.b16 %v103
  %v623 = vunpack.c.l.b16 %v104
  %v624 = vunpack.c.h.b16 %v104
  %v625 = vunpack.c.l.b16 %v105
  %v626 = vunpack.c.h.b16 %v105
  %v627 = vunpack.c.l.b16 %v106
  %v628 = vunpack.c.h.b16 %v106
  %v629 = vunpack.c.l.b16 %v107
  %v630 = vunpack.c.h.b16 %v107
  %v631 = vunpack.c.l.b16 %v108
  %v632 = vunpack.c.h.b16 %v108
  %v633 = vunpack.c.l.b16 %v109
  %v634 = vunpack.c.h.b16 %v109
  %v635 = vunpack.c.l.b16 %v110
  %v636 = vunpack.c.h.b16 %v110
  %v637 = vunpack.c.l.b16 %v111
  %v638 = vunpack.c.h.b16 %v111
  %v639 = vunpack.c.l.b16 %v112
  %v640 = vunpack.c.h.b16 %v112
  %v641 = vunpack.c.l.b16 %v113
  %v642 = vunpack.c.h.b16 %v113
  %v643 = vunpack.c.l.b16 %v114
  %v644 = vunpack.c.h.b16 %v114
  %v645 = vunpack.c.l.b16 %v115
  %v646 = vunpack.c.h.b16 %v115
  %v647 = vunpack.c.l.b16 %v116
  %v648 = vunpack.c.h.b16 %v116
  %v649 = vunpack.c.l.b16 %v117
  %v650 = vunpack.c.h.b16 %v117
  %v651 = vunpack.c.l.b16 %v118
  %v652 = vunpack.c.h.b16 %v118
  %v653 = vunpack.c.l.b16 %v119
  %v654 = vunpack.c.h.b16 %v119
  %v655 = vunpack.c.l.b16 %v120
  %v656 = vunpack.c.h.b16 %v120
  %v657 = vunpack.c.l.b16 %v121
  %v658 = vunpack.c.h.b16 %v121
  %v659 = vunpack.c.l.b16 %v122
  %v660 = vunpack.c.h.b16 %v122
  %v661 = vunpack.c.l.b16 %v123
  %v662 = vunpack.c.h.b16 %v123
  %v663 = vunpack.c.l.b16 %v124
  %v664 = vunpack.c.h.b16 %v124
  %v665 = vunpack.c.l.b16 %v125
  %v666 = vunpack.c.h.b16 %v125
  %v667 = vunpack.c.l.b16 %v126
  %v668 = vunpack.c.h.b16 %v126
  %v669 = vunpack.c.l.b16 %v127
  %v670 = vunpack.c.h.b16 %v127
  %v671 = vunpack.c.l.b16 %v128
  %v672 = vunpack.c.h.b16 %v128
  %v673 = vunpack.c.l.b16 %v129
  %v674 = vunpack.c.h.b16 %v129
  %v675 = vunpack.c.l.b16 %v130
  %v676 = vunpack.c.h.b16 %v130
  %v677 = vunpack.c.l.b16 %v131
  %v678 = vunpack.c.h.b16 %v131
  %v679 = vunpack.c.l.b16 %v132
  %v680 = vunpack.c.h.b16 %v132
  %v681 = vunpack.c.l.b16 %v133
  %v682 = vunpack.c.h.b16 %v133
  %v683 = vunpack.c.l.b16 %v134
  %v684 = vunpack.c.h.b16 %v134
  %v685 = vunpack.c.l.b16 %v135
  %v686 = vunpack.c.h.b16 %v135
  %v687 = vunpack.c.l.b16 %v136
  %v688 = vunpack.c.h.b16 %v136
  %v689 = vunpack.c.l.b16 %v137
  %v690 = vunpack.c.h.b16 %v137
  %v691 = vunpack.c.l.b16 %v138
  %v692 = vunpack.c.h.b16 %v138
  %v693 = vunpack.c.l.b16 %v139
  %v694 = vunpack.c.h.b16 %v139
  %v695 = vunpack.c.l.b16 %v140
  %v696 = vunpack.c.h.b16 %v140
  %v697 = vunpack.c.l.b16 %v141
  %v698 = vunpack.c.h.b16 %v141
  %v699 = vunpack.c.l.b16 %v142
  %v700 = vunpack.c.h.b16 %v142
  %v701 = vunpack.c.l.b16 %v143
  %v702 = vunpack.c.h.b16 %v143
  %v703 = vunpack.c.l.b16 %v144
  %v704 = vunpack.c.h.b16 %v144
  %v705 = vunpack.c.l.b16 %v145
  %v706 = vunpack.c.h.b16 %v145
  %v707 = vunpack.c.l.b16 %v146
  %v708 = vunpack.c.h.b16 %v146
  %v709 = vunpack.c.l.b16 %v147
  %v710 = vunpack.c.h.b16 %v147
  %v711 = vunpack.c.l.b16 %v148
  %v712 = vunpack.c.h.b16 %v148
  %v713 = vunpack.c.l.b16 %v149
  %v714 = vunpack.c.h.b16 %v149
  %v715 = vunpack.c.l.b16 %v150
  %v716 = vunpack.c.h.b16 %v150
  %v717 = vunpack.c.l.b16 %v151
  %v718 = vunpack.c.h.b16 %v151
  %v719 = vunpack.c.l.b16 %v152
  %v720 = vunpack.c.h.b16 %v152
  %v721 = vunpack.c.l.b16 %v153
  %v722 = vunpack.c.h.b16 %v153
  %v723 = vunpack.c.l.b16 %v154
  %v724 = vunpack.c.h.b16 %v154
  %v725 = vunpack.c.l.b16 %v155
  %v726 = vunpack.c.h.b16 %v155
  %v727 = vunpack.c.l.b16 %v156
  %v728 = vunpack.c.h.b16 %v156
  %v729 = vunpack.c.l.b16 %v157
  %v730 = vunpack.c.h.b16 %v157
  %v731 = vunpack.c.l.b16 %v158
  %v732 = vunpack.c.h.b16 %v158
  %v733 = vunpack.c.l.b16 %v159
  %v734 = vunpack.c.h.b16 %v159
  %v735 = vunpack.c.l.b16 %v160
  %v736 = vunpack.c.h.b16 %v160
  %v737 = vunpack.c.l.b16 %v161
  %v738 = vunpack.c.h.b16 %v161
  %v739 = vunpack.c.l.b16 %v162
  %v740 = vunpack.c.h.b16 %v162
  %v741 = vunpack.c.l.b16 %v163
  %v742 = vunpack.c.h.b16 %v163
  %v743 = vunpack.c.l.b16 %v164
  %v744 = vunpack.c.h.b16 %v164
  %v745 = vunpack.c.l.b16 %v165
  %v746 = vunpack.c.h.b16 %v165
  %v747 = vunpack.c.l.b16 %v166
  %v748 = vunpack.c.h.b16 %v166
  %v749 = vunpack.c.l.b16 %v167
  %v750 = vunpack.c.h.b16 %v167
  %v751 = vunpack.c.l.b16 %v168
  %v752 = vunpack.c.h.b16 %v168
  %v753 = vunpack.c.l.b16 %v169
  %v754 = vunpack.c.h.b16 %v169
  %v755 = vunpack.c.l.b16 %v170
  %v756 = vunpack.c.h.b16 %v170
  %v757 = vunpack.c.l.b16 %v171
  %v758 = vunpack.c.h.b16 %v171
  %v759 = vunpack.c.l.b16 %v172
  %v760 = vunpack.c.h.b16 %v172
  %v761 = vunpack.c.l.b16 %v173
  %v762 = vunpack.c.h.b16 %v173
  %v763 = vunpack.c.l.b16 %v174
  %v764 = vunpack.c.h.b16 %v174
  %v765 = vunpack.c.l.b16 %v175
  %v766 = vunpack.c.h.b16 %v175
  %v767 = vunpack.c.l.b16 %v176
  %v768 = vunpack.c.h.b16 %v176
  %v769 = vunpack.c.l.b16 %v177
  %v770 = vunpack.c.h.b16 %v177
  %v771 = vunpack.c.l.b16 %v178
  %v772 = vunpack.c.h.b16 %v178
  %v773 = vunpack.c.l.b16 %v179
  %v774 = vunpack.c.h.b16 %v179
  %v775 = vunpack.c.l.b16 %v180
  %v776 = vunpack.c.h.b16 %v180
  %v777 = vunpack.c.l.b16 %v181
  %v778 = vunpack.c.h.b16 %v181
  %v779 = vunpack.c.l.b16 %v182
  %v780 = vunpack.c.h.b16 %v182
  %v781 = vunpack.c.l.b16 %v183
  %v782 = vunpack.c.h.b16 %v183
  %v783 = vunpack.c.l.b16 %v184
  %v784 = vunpack.c.h.b16 %v184
  %v785 = vunpack.c.l.b16 %v185
  %v786 = vunpack.c.h.b16 %v185
  %v787 = vunpack.c.l.b16 %v186
  %v788 = vunpack.c.h.b16 %v186
  %v789 = vunpack.c.l.b16 %v187
  %v790 = vunpack.c.h.b16 %v187
  %v791 = vunpack.c.l.b16 %v188
  %v792 = vunpack.c.h.b16 %v188
  %v793 = vunpack.c.l.b16 %v189
  %v794 = vunpack.c.h.b16 %v189
  %v795 = vunpack.c.l.b16 %v190
  %v796 = vunpack.c.h.b16 %v190
  %v797 = vunpack.c.l.b16 %v191
  %v798 = vunpack.c.h.b16 %v191
  %v799 = vunpack.c.l.b16 %v192
  %v800 = vunpack.c.h.b16 %v192
  %v801 = vunpack.c.l.b16 %v193
  %v802 = vunpack.c.h.b16 %v193
  %v803 = vunpack.c.l.b16 %v194
  %v804 = vunpack.c.h.b16 %v194
  %v805 = vunpack.c.l.b16 %v195
  %v806 = vunpack.c.h.b16 %v195
  %v807 = vunpack.c.l.b16 %v196
  %v808 = vunpack.c.h.b16 %v196
  %v809 = vunpack.c.l.b16 %v197
  %v810 = vunpack.c.h.b16 %v197
  %v811 = vunpack.c.l.b16 %v198
  %v812 = vunpack.c.h.b16 %v198
  %v813 = vunpack.c.l.b16 %v199
  %v814 = vunpack.c.h.b16 %v199
  %v815 = vunpack.c.l.b16 %v200
  %v816 = vunpack.c.h.b16 %v200
  %v817 = vunpack.c.l.b16 %v201
  %v818 = vunpack.c.h.b16 %v201
  %v819 = vunpack.c.l.b16 %v202
  %v820 = vunpack.c.h.b16 %v202
  %v821 = vunpack.c.l.b16 %v203
  %v822 = vunpack.c.h.b16 %v203
  %v823 = vunpack.c.l.b16 %v204
  %v824 = vunpack.c.h.b16 %v204
  %v825 = vunpack.c.l.b16 %v205
  %v826 = vunpack.c.h.b16 %v205
  %v827 = vunpack.c.l.b16 %v206
  %v828 = vunpack.c.h.b16 %v206
  %v829 = vunpack.c.l.b16 %v207
  %v830 = vunpack.c.h.b16 %v207
  %v831 = vunpack.c.l.b16 %v208
  %v832 = vunpack.c.h.b16 %v208
  %v833 = vunpack.c.l.b16 %v209
  %v834 = vunpack.c.h.b16 %v209
  %v835 = vunpack.c.l.b16 %v210
  %v836 = vunpack.c.h.b16 %v210
  %v837 = vunpack.c.l.b16 %v211
  %v838 = vunpack.c.h.b16 %v211
  %v839 = vunpack.c.l.b16 %v212
  %v840 = vunpack.c.h.b16 %v212
  %v841 = vunpack.c.l.b16 %v213
  %v842 = vunpack.c.h.b16 %v213
  %v843 = vunpack.c.l.b16 %v214
  %v844 = vunpack.c.h.b16 %v214
  %v845 = vunpack.c.l.b16 %v215
  %v846 = vunpack.c.h.b16 %v215
  %v847 = vunpack.c.l.b16 %v216
  %v848 = vunpack.c.h.b16 %v216
  %v849 = vunpack.c.l.b16 %v217
  %v850 = vunpack.c.h.b16 %v217
  %v851 = vunpack.c.l.b16 %v218
  %v852 = vunpack.c.h.b16 %v218
  %v853 = vunpack.c.l.b16 %v219
  %v854 = vunpack.c.h.b16 %v219
  %v855 = vpack.c.b16 %v459, %v455
  %v856 = vpack.c.b16 %v460, %v456
  %v857 = vpack.c.b16 %v461, %v457
  %v858 = vpack.c.b16 %v462, %v458
  %v859 = vpack.c.b16 %v467, %v463
  %v860 = vpack.c.b16 %v468, %v464
  %v861 = vpack.c.b16 %v469, %v465
  %v862 = vpack.c.b16 %v470, %v466
  %v863 = vpack.c.b16 %v475, %v471
  %v864 = vpack.c.b16 %v476, %v472
  %v865 = vpack.c.b16 %v477, %v473
  %v866 = vpack.c.b16 %v478, %v474
  %v867 = vpack.c.b16 %v483, %v479
  %v868 = vpack.c.b16 %v484, %v480
  %v869 = vpack.c.b16 %v485, %v481
  %v870 = vpack.c.b16 %v486, %v482
  %v871 = vpack.c.b16 %v491, %v487
  %v872 = vpack.c.b16 %v492, %v488
  %v873 = vpack.c.b16 %v493, %v489
  %v874 = vpack.c.b16 %v494, %v490
  %v875 = vpack.c.b16 %v499, %v495
  %v876 = vpack.c.b16 %v500, %v496
  %v877 = vpack.c.b16 %v501, %v497
  %v878 = vpack.c.b16 %v502, %v498
  %v879 = vpack.c.b16 %v507, %v503
  %v880 = vpack.c.b16 %v508, %v504
  %v881 = vpack.c.b16 %v509, %v505
  %v882 = vpack.c.b16 %v510, %v506
  %v883 = vpack.c.b16 %v515, %v511
  %v884 = vpack.c.b16 %v516, %v512
  %v885 = vpack.c.b16 %v517, %v513
  %v886 = vpack.c.b16 %v518, %v514
  %v887 = vpack.c.b16 %v523, %v519
  %v888 = vpack.c.b16 %v524, %v520
  %v889 = vpack.c.b16 %v525, %v521
  %v890 = vpack.c.b16 %v526, %v522
  %v891 = vpack.c.b16 %v531, %v527
  %v892 = vpack.c.b16 %v532, %v528
  %v893 = vpack.c.b16 %v533, %v529
  %v894 = vpack.c.b16 %v534, %v530
  %v895 = vpack.c.b16 %v539, %v535
  %v896 = vpack.c.b16 %v540, %v536
  %v897 = vpack.c.b16 %v541, %v537
  %v898 = vpack.c.b16 %v542, %v538
  %v899 = vpack.c.b16 %v547, %v543
  %v900 = vpack.c.b16 %v548, %v544
  %v901 = vpack.c.b16 %v549, %v545
  %v902 = vpack.c.b16 %v550, %v546
  %v903 = vpack.c.b16 %v555, %v551
  %v904 = vpack.c.b16 %v556, %v552
  %v905 = vpack.c.b16 %v557, %v553
  %v906 = vpack.c.b16 %v558, %v554
  %v907 = vpack.c.b16 %v563, %v559
  %v908 = vpack.c.b16 %v564, %v560
  %v909 = vpack.c.b16 %v565, %v561
  %v910 = vpack.c.b16 %v566, %v562
  %v911 = vpack.c.b16 %v571, %v567
  %v912 = vpack.c.b16 %v572, %v568
  %v913 = vpack.c.b16 %v573, %v569
  %v914 = vpack.c.b16 %v574, %v570
  %v915 = vpack.c.b16 %v579, %v575
  %v916 = vpack.c.b16 %v580, %v576
  %v917 = vpack.c.b16 %v581, %v577
  %v918 = vpack.c.b16 %v582, %v578
  %v919 = vpack.c.b16 %v587, %v583
  %v920 = vpack.c.b16 %v588, %v584
  %v921 = vpack.c.b16 %v589, %v585
  %v922 = vpack.c.b16 %v590, %v586
  %v923 = vpack.c.b16 %v595, %v591
  %v924 = vpack.c.b16 %v596, %v592
  %v925 = vpack.c.b16 %v597, %v593
  %v926 = vpack.c.b16 %v598, %v594
  %v927 = vpack.c.b16 %v603, %v599
  %v928 = vpack.c.b16 %v604, %v600
  %v929 = vpack.c.b16 %v605, %v601
  %v930 = vpack.c.b16 %v606, %v602
  %v931 = vpack.c.b16 %v611, %v607
  %v932 = vpack.c.b16 %v612, %v608
  %v933 = vpack.c.b16 %v613, %v609
  %v934 = vpack.c.b16 %v614, %v610
  %v935 = vpack.c.b16 %v619, %v615
  %v936 = vpack.c.b16 %v620, %v616
  %v937 = vpack.c.b16 %v621, %v617
  %v938 = vpack.c.b16 %v622, %v618
  %v939 = vpack.c.b16 %v627, %v623
  %v940 = vpack.c.b16 %v628, %v624
  %v941 = vpack.c.b16 %v629, %v625
  %v942 = vpack.c.b16 %v630, %v626
  %v943 = vpack.c.b16 %v635, %v631
  %v944 = vpack.c.b16 %v636, %v632
  %v945 = vpack.c.b16 %v637, %v633
  %v946 = vpack.c.b16 %v638, %v634
  %v947 = vpack.c.b16 %v643, %v639
  %v948 = vpack.c.b16 %v644, %v640
  %v949 = vpack.c.b16 %v645, %v641
  %v950 = vpack.c.b16 %v646, %v642
  %v951 = vpack.c.b16 %v651, %v647
  %v952 = vpack.c.b16 %v652, %v648
  %v953 = vpack.c.b16 %v653, %v649
  %v954 = vpack.c.b16 %v654, %v650
  %v955 = vpack.c.b16 %v659, %v655
  %v956 = vpack.c.b16 %v660, %v656
  %v957 = vpack.c.b16 %v661, %v657
  %v958 = vpack.c.b16 %v662, %v658
  %v959 = vpack.c.b16 %v667, %v663
  %v960 = vpack.c.b16 %v668, %v664
  %v961 = vpack.c.b16 %v669, %v665
  %v962 = vpack.c.b16 %v670, %v666
  %v963 = vpack.c.b16 %v675, %v671
  %v964 = vpack.c.b16 %v676, %v672
  %v965 = vpack.c.b16 %v677, %v673
  %v966 = vpack.c.b16 %v678, %v674
  %v967 = vpack.c.b16 %v683, %v679
  %v968 = vpack.c.b16 %v684, %v680
  %v969 = vpack.c.b16 %v685, %v681
  %v970 = vpack.c.b16 %v686, %v682
  %v971 = vpack.c.b16 %v691, %v687
  %v972 = vpack.c.b16 %v692, %v688
  %v973 = vpack.c.b16 %v693, %v689
  %v974 = vpack.c.b16 %v694, %v690
  %v975 = vpack.c.b16 %v699, %v695
  %v976 = vpack.c.b16 %v700, %v696
  %v977 = vpack.c.b16 %v701, %v697
  %v978 = vpack.c.b16 %v702, %v698
  %v979 = vpack.c.b16 %v707, %v703
  %v980 = vpack.c.b16 %v708, %v704
  %v981 = vpack.c.b16 %v709, %v705
  %v982 = vpack.c.b16 %v710, %v706
  %v983 = vpack.c.b16 %v715, %v711
  %v984 = vpack.c.b16 %v716, %v712
  %v985 = vpack.c.b16 %v717, %v713
  %v986 = vpack.c.b16 %v718, %v714
  %v987 = vpack.c.b16 %v723, %v719
  %v988 = vpack.c.b16 %v724, %v720
  %v989 = vpack.c.b16 %v725, %v721
  %v990 = vpack.c.b16 %v726, %v722
  %v991 = vpack.c.b16 %v731, %v727
  %v992 = vpack.c.b16 %v732, %v728
  %v993 = vpack.c.b16 %v733, %v729
  %v994 = vpack.c.b16 %v734, %v730
  %v995 = vpack.c.b16 %v739, %v735
  %v996 = vpack.c.b16 %v740, %v736
  %v997 = vpack.c.b16 %v741, %v737
  %v998 = vpack.c.b16 %v742, %v738
  %v999 = vpack.c.b16 %v747, %v743
  %v1000 = vpack.c.b16 %v748, %v744
  %v1001 = vpack.c.b16 %v749, %v745
  %v1002 = vpack.c.b16 %v750, %v746
  %v1003 = vpack.c.b16 %v755, %v751
  %v1004 = vpack.c.b16 %v756, %v752
  %v1005 = vpack.c.b16 %v757, %v753
  %v1006 = vpack.c.b16 %v758, %v754
  %v1007 = vpack.c.b16 %v763, %v759
  %v1008 = vpack.c.b16 %v764, %v760
  %v1009 = vpack.c.b16 %v765, %v761
  %v1010 = vpack.c.b16 %v766, %v762
  %v1011 = vpack.c.b16 %v771, %v767
  %v1012 = vpack.c.b16 %v772, %v768
  %v1013 = vpack.c.b16 %v773, %v769
  %v1014 = vpack.c.b16 %v774, %v770
  %v1015 = vpack.c.b16 %v779, %v775
  %v1016 = vpack.c.b16 %v780, %v776
  %v1017 = vpack.c.b16 %v781, %v777
  %v1018 = vpack.c.b16 %v782, %v778
  %v1019 = vpack.c.b16 %v787, %v783
  %v1020 = vpack.c.b16 %v788, %v784
  %v1021 = vpack.c.b16 %v789, %v785
  %v1022 = vpack.c.b16 %v790, %v786
  %v1023 = vpack.c.b16 %v795, %v791
  %v1024 = vpack.c.b16 %v796, %v792
  %v1025 = vpack.c.b16 %v797, %v793
  %v1026 = vpack.c.b16 %v798, %v794
  %v1027 = vpack.c.b16 %v803, %v799
  %v1028 = vpack.c.b16 %v804, %v800
  %v1029 = vpack.c.b16 %v805, %v801
  %v1030 = vpack.c.b16 %v806, %v802
  %v1031 = vpack.c.b16 %v811, %v807
  %v1032 = vpack.c.b16 %v812, %v808
  %v1033 = vpack.c.b16 %v813, %v809
  %v1034 = vpack.c.b16 %v814, %v810
  %v1035 = vpack.c.b16 %v819, %v815
  %v1036 = vpack.c.b16 %v820, %v816
  %v1037 = vpack.c.b16 %v821, %v817
  %v1038 = vpack.c.b16 %v822, %v818
  %v1039 = vpack.c.b16 %v827, %v823
  %v1040 = vpack.c.b16 %v828, %v824
  %v1041 = vpack.c.b16 %v829, %v825
  %v1042 = vpack.c.b16 %v830, %v826
  %v1043 = vpack.c.b16 %v835, %v831
  %v1044 = vpack.c.b16 %v836, %v832
  %v1045 = vpack.c.b16 %v837, %v833
  %v1046 = vpack.c.b16 %v838, %v834
  %v1047 = vpack.c.b16 %v843, %v839
  %v1048 = vpack.c.b16 %v844, %v840
  %v1049 = vpack.c.b16 %v845, %v841
  %v1050 = vpack.c.b16 %v846, %v842
  %v1051 = vpack.c.b16 %v851, %v847
  %v1052 = vpack.c.b16 %v852, %v848
  %v1053 = vpack.c.b16 %v853, %v849
  %v1054 = vpack.c.b16 %v854, %v850
  %vm1255 = vcmask 261120
  %v1257 = vsel %vm1255, %v248, 0
  %1259 = vmatprep.subr.bf16.mxu0 %v856
  %1260 = vmatpush1.bf16.msra.mxu0 %v855
  %1261 = vmatprep.subr.bf16.mxu0 %v860
  %1262 = vmatpush1.bf16.msra.mxu0 %v859
  %1263 = vmatprep.subr.bf16.mxu0 %v864
  %1264 = vmatpush1.bf16.msra.mxu0 %v863
  %1265 = vmatprep.subr.bf16.mxu0 %v868
  %1266 = vmatpush1.bf16.msra.mxu0 %v867
  %1267 = vmatprep.subr.bf16.mxu0 %v872
  %1268 = vmatpush1.bf16.msra.mxu0 %v871
  %1269 = vmatprep.subr.bf16.mxu0 %v876
  %1270 = vmatpush1.bf16.msra.mxu0 %v875
  %1271 = vmatprep.subr.bf16.mxu0 %v880
  %1272 = vmatpush1.bf16.msra.mxu0 %v879
  %1273 = vmatprep.subr.bf16.mxu0 %v884
  %1274 = vmatpush1.bf16.msra.mxu0 %v883
  %1275 = vmatprep.subr.bf16.mxu0 %v888
  %1276 = vmatpush1.bf16.msra.mxu0 %v887
  %1277 = vmatprep.subr.bf16.mxu0 %v892
  %1278 = vmatpush1.bf16.msra.mxu0 %v891
  %1279 = vmatprep.subr.bf16.mxu0 %v896
  %1280 = vmatpush1.bf16.msra.mxu0 %v895
  %1281 = vmatprep.subr.bf16.mxu0 %v900
  %1282 = vmatpush1.bf16.msra.mxu0 %v899
  %1283 = vmatprep.subr.bf16.mxu0 %v904
  %1284 = vmatpush1.bf16.msra.mxu0 %v903
  %1285 = vmatprep.subr.bf16.mxu0 %v908
  %1286 = vmatpush1.bf16.msra.mxu0 %v907
  %1287 = vmatprep.subr.bf16.mxu0 %v912
  %1288 = vmatpush1.bf16.msra.mxu0 %v911
  %1289 = vmatprep.subr.bf16.mxu0 %v916
  %1290 = vmatpush1.bf16.msra.mxu0 %v915
  %1291 = vmatprep.mubr.bf16.mxu0 %v243
  %1292 = vmatmul.mubr.bf16.gmra.mrb[0].mxu0 %v242
  %v1293 = vpop.f32.mrb[0].mxu0
  %v1294 = vadd.f32 0.0, %v1293
  %v1295 = vpop.f32.mrb[0].mxu0
  %v1296 = vadd.f32 0.0, %v1295
  %v1297 = vpop.f32.mrb[0].mxu0
  %v1298 = vadd.f32 0.0, %v1297
  %v1299 = vpop.f32.mrb[0].mxu0
  %v1300 = vadd.f32 0.0, %v1299
  %1301 = vdwg.mxu0
  %1302 = vmatprep.subr.bf16.mxu0 %v920
  %1303 = vmatpush1.bf16.msra.mxu0 %v919
  %1304 = vmatprep.subr.bf16.mxu0 %v924
  %1305 = vmatpush1.bf16.msra.mxu0 %v923
  %1306 = vmatprep.subr.bf16.mxu0 %v928
  %1307 = vmatpush1.bf16.msra.mxu0 %v927
  %1308 = vmatprep.subr.bf16.mxu0 %v932
  %1309 = vmatpush1.bf16.msra.mxu0 %v931
  %1310 = vmatprep.subr.bf16.mxu0 %v936
  %1311 = vmatpush1.bf16.msra.mxu0 %v935
  %1312 = vmatprep.subr.bf16.mxu0 %v940
  %1313 = vmatpush1.bf16.msra.mxu0 %v939
  %1314 = vmatprep.subr.bf16.mxu0 %v944
  %1315 = vmatpush1.bf16.msra.mxu0 %v943
  %1316 = vmatprep.subr.bf16.mxu0 %v948
  %1317 = vmatpush1.bf16.msra.mxu0 %v947
  %1318 = vmatprep.subr.bf16.mxu0 %v952
  %1319 = vmatpush1.bf16.msra.mxu0 %v951
  %1320 = vmatprep.subr.bf16.mxu0 %v956
  %1321 = vmatpush1.bf16.msra.mxu0 %v955
  %1322 = vmatprep.subr.bf16.mxu0 %v960
  %1323 = vmatpush1.bf16.msra.mxu0 %v959
  %1324 = vmatprep.subr.bf16.mxu0 %v964
  %1325 = vmatpush1.bf16.msra.mxu0 %v963
  %1326 = vmatprep.subr.bf16.mxu0 %v968
  %1327 = vmatpush1.bf16.msra.mxu0 %v967
  %1328 = vmatprep.subr.bf16.mxu0 %v972
  %1329 = vmatpush1.bf16.msra.mxu0 %v971
  %1330 = vmatprep.subr.bf16.mxu0 %v976
  %1331 = vmatpush1.bf16.msra.mxu0 %v975
  %1332 = vmatprep.subr.bf16.mxu0 %v980
  %1333 = vmatpush1.bf16.msra.mxu0 %v979
  %1334 = vmatprep.mubr.bf16.mxu0 %v245
  %1335 = vmatmul.mubr.bf16.gmra.mrb[0].mxu0 %v244
  %v1336 = vpop.f32.mrb[0].mxu0
  %v1337 = vadd.f32 %v1294, %v1336
  %v1338 = vpop.f32.mrb[0].mxu0
  %v1339 = vadd.f32 %v1296, %v1338
  %v1340 = vpop.f32.mrb[0].mxu0
  %v1341 = vadd.f32 %v1298, %v1340
  %v1342 = vpop.f32.mrb[0].mxu0
  %v1343 = vadd.f32 %v1300, %v1342
  %1344 = vdwg.mxu0
  %1345 = vmatprep.subr.bf16.mxu0 %v984
  %1346 = vmatpush1.bf16.msra.mxu0 %v983
  %1347 = vmatprep.subr.bf16.mxu0 %v988
  %1348 = vmatpush1.bf16.msra.mxu0 %v987
  %1349 = vmatprep.subr.bf16.mxu0 %v992
  %1350 = vmatpush1.bf16.msra.mxu0 %v991
  %1351 = vmatprep.subr.bf16.mxu0 %v996
  %1352 = vmatpush1.bf16.msra.mxu0 %v995
  %1353 = vmatprep.subr.bf16.mxu0 %v1000
  %1354 = vmatpush1.bf16.msra.mxu0 %v999
  %1355 = vmatprep.subr.bf16.mxu0 %v1004
  %1356 = vmatpush1.bf16.msra.mxu0 %v1003
  %1357 = vmatprep.subr.bf16.mxu0 %v1008
  %1358 = vmatpush1.bf16.msra.mxu0 %v1007
  %1359 = vmatprep.subr.bf16.mxu0 %v1012
  %1360 = vmatpush1.bf16.msra.mxu0 %v1011
  %1361 = vmatprep.subr.bf16.mxu0 %v1016
  %1362 = vmatpush1.bf16.msra.mxu0 %v1015
  %1363 = vmatprep.subr.bf16.mxu0 %v1020
  %1364 = vmatpush1.bf16.msra.mxu0 %v1019
  %1365 = vmatprep.subr.bf16.mxu0 %v1024
  %1366 = vmatpush1.bf16.msra.mxu0 %v1023
  %1367 = vmatprep.subr.bf16.mxu0 %v1028
  %1368 = vmatpush1.bf16.msra.mxu0 %v1027
  %1369 = vmatprep.subr.bf16.mxu0 %v1032
  %1370 = vmatpush1.bf16.msra.mxu0 %v1031
  %1371 = vmatprep.subr.bf16.mxu0 %v1036
  %1372 = vmatpush1.bf16.msra.mxu0 %v1035
  %1373 = vmatprep.subr.bf16.mxu0 %v1040
  %1374 = vmatpush1.bf16.msra.mxu0 %v1039
  %1375 = vmatprep.subr.bf16.mxu0 %v1044
  %1376 = vmatpush1.bf16.msra.mxu0 %v1043
  %1377 = vmatprep.mubr.bf16.mxu0 %v247
  %1378 = vmatmul.mubr.bf16.gmra.mrb[0].mxu0 %v246
  %v1379 = vpop.f32.mrb[0].mxu0
  %v1380 = vadd.f32 %v1337, %v1379
  %v1381 = vpop.f32.mrb[0].mxu0
  %v1382 = vadd.f32 %v1339, %v1381
  %v1383 = vpop.f32.mrb[0].mxu0
  %v1384 = vadd.f32 %v1341, %v1383
  %v1385 = vpop.f32.mrb[0].mxu0
  %v1386 = vadd.f32 %v1343, %v1385
  %1387 = vdwg.mxu0
  %1388 = vmatprep.subr.bf16.mxu0 %v1048
  %1389 = vmatpush1.bf16.msra.mxu0 %v1047
  %1390 = vmatprep.subr.bf16.mxu0 %v1052
  %1391 = vmatpush1.bf16.msra.mxu0 %v1051
  %1392 = vmatprep.subr.bf16.mxu0 0
  %1393 = vmatpush1.bf16.msra.mxu0 0
  %1394 = vmatprep.subr.bf16.mxu0 0
  %1395 = vmatpush1.bf16.msra.mxu0 0
  %1396 = vmatprep.subr.bf16.mxu0 0
  %1397 = vmatpush1.bf16.msra.mxu0 0
  %1398 = vmatprep.subr.bf16.mxu0 0
  %1399 = vmatpush1.bf16.msra.mxu0 0
  %1400 = vmatprep.subr.bf16.mxu0 0
  %1401 = vmatpush1.bf16.msra.mxu0 0
  %1402 = vmatprep.subr.bf16.mxu0 0
  %1403 = vmatpush1.bf16.msra.mxu0 0
  %1404 = vmatprep.subr.bf16.mxu0 0
  %1405 = vmatpush1.bf16.msra.mxu0 0
  %1406 = vmatprep.subr.bf16.mxu0 0
  %1407 = vmatpush1.bf16.msra.mxu0 0
  %1408 = vmatprep.subr.bf16.mxu0 0
  %1409 = vmatpush1.bf16.msra.mxu0 0
  %1410 = vmatprep.subr.bf16.mxu0 0
  %1411 = vmatpush1.bf16.msra.mxu0 0
  %1412 = vmatprep.subr.bf16.mxu0 0
  %1413 = vmatpush1.bf16.msra.mxu0 0
  %1414 = vmatprep.subr.bf16.mxu0 0
  %1415 = vmatpush1.bf16.msra.mxu0 0
  %1416 = vmatprep.subr.bf16.mxu0 0
  %1417 = vmatpush1.bf16.msra.mxu0 0
  %1418 = vmatprep.subr.bf16.mxu0 0
  %1419 = vmatpush1.bf16.msra.mxu0 0
  %1420 = vmatprep.mubr.bf16.mxu0 0
  %1421 = vmatmul.mubr.bf16.gmra.mrb[0].mxu0 %v1257
  %v1422 = vpop.f32.mrb[0].mxu0
  %v1423 = vadd.f32 %v1380, %v1422
  %v1424 = vpop.f32.mrb[0].mxu0
  %v1425 = vadd.f32 %v1382, %v1424
  %v1426 = vpop.f32.mrb[0].mxu0
  %v1427 = vadd.f32 %v1384, %v1426
  %v1428 = vpop.f32.mrb[0].mxu0
  %v1429 = vadd.f32 %v1386, %v1428
  %1430 = vdwg.mxu0
  %1431 = vmatprep.subr.bf16.mxu0 %v858
  %1432 = vmatpush1.bf16.msra.mxu0 %v857
  %1433 = vmatprep.subr.bf16.mxu0 %v862
  %1434 = vmatpush1.bf16.msra.mxu0 %v861
  %1435 = vmatprep.subr.bf16.mxu0 %v866
  %1436 = vmatpush1.bf16.msra.mxu0 %v865
  %1437 = vmatprep.subr.bf16.mxu0 %v870
  %1438 = vmatpush1.bf16.msra.mxu0 %v869
  %1439 = vmatprep.subr.bf16.mxu0 %v874
  %1440 = vmatpush1.bf16.msra.mxu0 %v873
  %1441 = vmatprep.subr.bf16.mxu0 %v878
  %1442 = vmatpush1.bf16.msra.mxu0 %v877
  %1443 = vmatprep.subr.bf16.mxu0 %v882
  %1444 = vmatpush1.bf16.msra.mxu0 %v881
  %1445 = vmatprep.subr.bf16.mxu0 %v886
  %1446 = vmatpush1.bf16.msra.mxu0 %v885
  %1447 = vmatprep.subr.bf16.mxu0 %v890
  %1448 = vmatpush1.bf16.msra.mxu0 %v889
  %1449 = vmatprep.subr.bf16.mxu0 %v894
  %1450 = vmatpush1.bf16.msra.mxu0 %v893
  %1451 = vmatprep.subr.bf16.mxu0 %v898
  %1452 = vmatpush1.bf16.msra.mxu0 %v897
  %1453 = vmatprep.subr.bf16.mxu0 %v902
  %1454 = vmatpush1.bf16.msra.mxu0 %v901
  %1455 = vmatprep.subr.bf16.mxu0 %v906
  %1456 = vmatpush1.bf16.msra.mxu0 %v905
  %1457 = vmatprep.subr.bf16.mxu0 %v910
  %1458 = vmatpush1.bf16.msra.mxu0 %v909
  %1459 = vmatprep.subr.bf16.mxu0 %v914
  %1460 = vmatpush1.bf16.msra.mxu0 %v913
  %1461 = vmatprep.subr.bf16.mxu0 %v918
  %1462 = vmatpush1.bf16.msra.mxu0 %v917
  %1463 = vmatprep.mubr.bf16.mxu0 %v243
  %1464 = vmatmul.mubr.bf16.gmra.mrb[0].mxu0 %v242
  %v1465 = vpop.f32.mrb[0].mxu0
  %v1466 = vadd.f32 0.0, %v1465
  %v1467 = vpop.f32.mrb[0].mxu0
  %v1468 = vadd.f32 0.0, %v1467
  %v1469 = vpop.f32.mrb[0].mxu0
  %v1470 = vadd.f32 0.0, %v1469
  %v1471 = vpop.f32.mrb[0].mxu0
  %v1472 = vadd.f32 0.0, %v1471
  %1473 = vdwg.mxu0
  %1474 = vmatprep.subr.bf16.mxu0 %v922
  %1475 = vmatpush1.bf16.msra.mxu0 %v921
  %1476 = vmatprep.subr.bf16.mxu0 %v926
  %1477 = vmatpush1.bf16.msra.mxu0 %v925
  %1478 = vmatprep.subr.bf16.mxu0 %v930
  %1479 = vmatpush1.bf16.msra.mxu0 %v929
  %1480 = vmatprep.subr.bf16.mxu0 %v934
  %1481 = vmatpush1.bf16.msra.mxu0 %v933
  %1482 = vmatprep.subr.bf16.mxu0 %v938
  %1483 = vmatpush1.bf16.msra.mxu0 %v937
  %1484 = vmatprep.subr.bf16.mxu0 %v942
  %1485 = vmatpush1.bf16.msra.mxu0 %v941
  %1486 = vmatprep.subr.bf16.mxu0 %v946
  %1487 = vmatpush1.bf16.msra.mxu0 %v945
  %1488 = vmatprep.subr.bf16.mxu0 %v950
  %1489 = vmatpush1.bf16.msra.mxu0 %v949
  %1490 = vmatprep.subr.bf16.mxu0 %v954
  %1491 = vmatpush1.bf16.msra.mxu0 %v953
  %1492 = vmatprep.subr.bf16.mxu0 %v958
  %1493 = vmatpush1.bf16.msra.mxu0 %v957
  %1494 = vmatprep.subr.bf16.mxu0 %v962
  %1495 = vmatpush1.bf16.msra.mxu0 %v961
  %1496 = vmatprep.subr.bf16.mxu0 %v966
  %1497 = vmatpush1.bf16.msra.mxu0 %v965
  %1498 = vmatprep.subr.bf16.mxu0 %v970
  %1499 = vmatpush1.bf16.msra.mxu0 %v969
  %1500 = vmatprep.subr.bf16.mxu0 %v974
  %1501 = vmatpush1.bf16.msra.mxu0 %v973
  %1502 = vmatprep.subr.bf16.mxu0 %v978
  %1503 = vmatpush1.bf16.msra.mxu0 %v977
  %1504 = vmatprep.subr.bf16.mxu0 %v982
  %1505 = vmatpush1.bf16.msra.mxu0 %v981
  %1506 = vmatprep.mubr.bf16.mxu0 %v245
  %1507 = vmatmul.mubr.bf16.gmra.mrb[0].mxu0 %v244
  %v1508 = vpop.f32.mrb[0].mxu0
  %v1509 = vadd.f32 %v1466, %v1508
  %v1510 = vpop.f32.mrb[0].mxu0
  %v1511 = vadd.f32 %v1468, %v1510
  %v1512 = vpop.f32.mrb[0].mxu0
  %v1513 = vadd.f32 %v1470, %v1512
  %v1514 = vpop.f32.mrb[0].mxu0
  %v1515 = vadd.f32 %v1472, %v1514
  %1516 = vdwg.mxu0
  %1517 = vmatprep.subr.bf16.mxu0 %v986
  %1518 = vmatpush1.bf16.msra.mxu0 %v985
  %1519 = vmatprep.subr.bf16.mxu0 %v990
  %1520 = vmatpush1.bf16.msra.mxu0 %v989
  %1521 = vmatprep.subr.bf16.mxu0 %v994
  %1522 = vmatpush1.bf16.msra.mxu0 %v993
  %1523 = vmatprep.subr.bf16.mxu0 %v998
  %1524 = vmatpush1.bf16.msra.mxu0 %v997
  %1525 = vmatprep.subr.bf16.mxu0 %v1002
  %1526 = vmatpush1.bf16.msra.mxu0 %v1001
  %1527 = vmatprep.subr.bf16.mxu0 %v1006
  %1528 = vmatpush1.bf16.msra.mxu0 %v1005
  %1529 = vmatprep.subr.bf16.mxu0 %v1010
  %1530 = vmatpush1.bf16.msra.mxu0 %v1009
  %1531 = vmatprep.subr.bf16.mxu0 %v1014
  %1532 = vmatpush1.bf16.msra.mxu0 %v1013
  %1533 = vmatprep.subr.bf16.mxu0 %v1018
  %1534 = vmatpush1.bf16.msra.mxu0 %v1017
  %1535 = vmatprep.subr.bf16.mxu0 %v1022
  %1536 = vmatpush1.bf16.msra.mxu0 %v1021
  %1537 = vmatprep.subr.bf16.mxu0 %v1026
  %1538 = vmatpush1.bf16.msra.mxu0 %v1025
  %1539 = vmatprep.subr.bf16.mxu0 %v1030
  %1540 = vmatpush1.bf16.msra.mxu0 %v1029
  %1541 = vmatprep.subr.bf16.mxu0 %v1034
  %1542 = vmatpush1.bf16.msra.mxu0 %v1033
  %1543 = vmatprep.subr.bf16.mxu0 %v1038
  %1544 = vmatpush1.bf16.msra.mxu0 %v1037
  %1545 = vmatprep.subr.bf16.mxu0 %v1042
  %1546 = vmatpush1.bf16.msra.mxu0 %v1041
  %1547 = vmatprep.subr.bf16.mxu0 %v1046
  %1548 = vmatpush1.bf16.msra.mxu0 %v1045
  %1549 = vmatprep.mubr.bf16.mxu0 %v247
  %1550 = vmatmul.mubr.bf16.gmra.mrb[0].mxu0 %v246
  %v1551 = vpop.f32.mrb[0].mxu0
  %v1552 = vadd.f32 %v1509, %v1551
  %v1553 = vpop.f32.mrb[0].mxu0
  %v1554 = vadd.f32 %v1511, %v1553
  %v1555 = vpop.f32.mrb[0].mxu0
  %v1556 = vadd.f32 %v1513, %v1555
  %v1557 = vpop.f32.mrb[0].mxu0
  %v1558 = vadd.f32 %v1515, %v1557
  %1559 = vdwg.mxu0
  %1560 = vmatprep.subr.bf16.mxu0 %v1050
  %1561 = vmatpush1.bf16.msra.mxu0 %v1049
  %1562 = vmatprep.subr.bf16.mxu0 %v1054
  %1563 = vmatpush1.bf16.msra.mxu0 %v1053
  %1564 = vmatprep.subr.bf16.mxu0 0
  %1565 = vmatpush1.bf16.msra.mxu0 0
  %1566 = vmatprep.subr.bf16.mxu0 0
  %1567 = vmatpush1.bf16.msra.mxu0 0
  %1568 = vmatprep.subr.bf16.mxu0 0
  %1569 = vmatpush1.bf16.msra.mxu0 0
  %1570 = vmatprep.subr.bf16.mxu0 0
  %1571 = vmatpush1.bf16.msra.mxu0 0
  %1572 = vmatprep.subr.bf16.mxu0 0
  %1573 = vmatpush1.bf16.msra.mxu0 0
  %1574 = vmatprep.subr.bf16.mxu0 0
  %1575 = vmatpush1.bf16.msra.mxu0 0
  %1576 = vmatprep.subr.bf16.mxu0 0
  %1577 = vmatpush1.bf16.msra.mxu0 0
  %1578 = vmatprep.subr.bf16.mxu0 0
  %1579 = vmatpush1.bf16.msra.mxu0 0
  %1580 = vmatprep.subr.bf16.mxu0 0
  %1581 = vmatpush1.bf16.msra.mxu0 0
  %1582 = vmatprep.subr.bf16.mxu0 0
  %1583 = vmatpush1.bf16.msra.mxu0 0
  %1584 = vmatprep.subr.bf16.mxu0 0
  %1585 = vmatpush1.bf16.msra.mxu0 0
  %1586 = vmatprep.subr.bf16.mxu0 0
  %1587 = vmatpush1.bf16.msra.mxu0 0
  %1588 = vmatprep.subr.bf16.mxu0 0
  %1589 = vmatpush1.bf16.msra.mxu0 0
  %1590 = vmatprep.subr.bf16.mxu0 0
  %1591 = vmatpush1.bf16.msra.mxu0 0
  %1592 = vmatprep.mubr.bf16.mxu0 0
  %1593 = vmatmul.mubr.bf16.gmra.mrb[0].mxu0 %v1257
  %v1594 = vpop.f32.mrb[0].mxu0
  %v1595 = vadd.f32 %v1552, %v1594
  %v1596 = vpop.f32.mrb[0].mxu0
  %v1597 = vadd.f32 %v1554, %v1596
  %v1598 = vpop.f32.mrb[0].mxu0
  %v1599 = vadd.f32 %v1556, %v1598
  %v1600 = vpop.f32.mrb[0].mxu0
  %v1601 = vadd.f32 %v1558, %v1600
  %1602 = vdwg.mxu0
  %v1603 = vlaneseq
  %v1604 = vand.u32 %v1603, 127
  %v1605 = vadd.s32 %v1604, 128
  %v1606 = vadd.s32 %v1604, 256
  %v1607 = vadd.s32 %v1604, 384
  %vm1608 = vcmp.lt.s32.totalorder %v1604, 512
  %vm1609 = vcmp.lt.s32.totalorder %v1605, 512
  %vm1610 = vcmp.lt.s32.totalorder %v1606, 512
  %vm1611 = vcmp.lt.s32.totalorder %v1607, 512
  %v1612 = vsel %vm1608, %v1423, 0.0
  %v1613 = vsel %vm1609, %v1425, 0.0
  %v1614 = vsel %vm1610, %v1595, 0.0
  %v1615 = vsel %vm1611, %v1597, 0.0
  %v1616 = vsel %vm1608, %v1427, 0.0
  %v1617 = vsel %vm1609, %v1429, 0.0
  %v1618 = vsel %vm1610, %v1599, 0.0
  %v1619 = vsel %vm1611, %v1601, 0.0
  %v1620 = vadd.f32 %v1612, %v1613
  %v1621 = vadd.f32 %v1620, %v1614
  %v1622 = vadd.f32 %v1621, %v1615
  %1623 = vadd.xlane.f32.xlu0 %v1622
  %v1624 = vpop.xlane.xlu0 %1623
  %v1625 = vadd.f32 %v1616, %v1617
  %v1626 = vadd.f32 %v1625, %v1618
  %v1627 = vadd.f32 %v1626, %v1619
  %1628 = vadd.xlane.f32.xlu0 %v1627
  %v1629 = vpop.xlane.xlu0 %1628
  %v1630 = vmul.f32 %v1624, 0.001953125
  %v1631 = vmul.f32 %v1629, 0.001953125
  %v1632 = vmul.f32 %v1612, %v1612
  %v1633 = vmul.f32 %v1613, %v1613
  %v1634 = vmul.f32 %v1614, %v1614
  %v1635 = vmul.f32 %v1615, %v1615
  %v1636 = vmul.f32 %v1616, %v1616
  %v1637 = vmul.f32 %v1617, %v1617
  %v1638 = vmul.f32 %v1618, %v1618
  %v1639 = vmul.f32 %v1619, %v1619
  %v1640 = vadd.f32 %v1632, %v1633
  %v1641 = vadd.f32 %v1640, %v1634
  %v1642 = vadd.f32 %v1641, %v1635
  %1643 = vadd.xlane.f32.xlu0 %v1642
  %v1644 = vpop.xlane.xlu0 %1643
  %v1645 = vadd.f32 %v1636, %v1637
  %v1646 = vadd.f32 %v1645, %v1638
  %v1647 = vadd.f32 %v1646, %v1639
  %1648 = vadd.xlane.f32.xlu0 %v1647
  %v1649 = vpop.xlane.xlu0 %1648
  %v1650 = vmul.f32 %v1644, 0.001953125
  %v1651 = vmul.f32 %v1649, 0.001953125
  %v1652 = vmul.f32 %v1630, %v1630
  %v1653 = vmul.f32 %v1631, %v1631
  %v1654 = vsub.f32 %v1650, %v1652
  %v1655 = vsub.f32 %v1651, %v1653
  %v1656 = vmax.f32 %v1654, 0.0
  %v1657 = vmax.f32 %v1655, 0.0
  %v1658 = vsub.f32 %v1423, %v1630
  %v1659 = vsub.f32 %v1425, %v1630
  %v1660 = vsub.f32 %v1595, %v1630
  %v1661 = vsub.f32 %v1597, %v1630
  %v1662 = vsub.f32 %v1427, %v1631
  %v1663 = vsub.f32 %v1429, %v1631
  %v1664 = vsub.f32 %v1599, %v1631
  %v1665 = vsub.f32 %v1601, %v1631
  %v1666 = vadd.f32 %v1656, 1e-05
  %v1667 = vadd.f32 %v1657, 1e-05
  %v1668 = vrsqrt.pop %v1666
  %v1669 = vrsqrt.pop %v1667
  %v1670 = vmul.f32 %v1658, %v1668
  %v1671 = vmul.f32 %v1659, %v1668
  %v1672 = vmul.f32 %v1660, %v1668
  %v1673 = vmul.f32 %v1661, %v1668
  %v1674 = vmul.f32 %v1662, %v1669
  %v1675 = vmul.f32 %v1663, %v1669
  %v1676 = vmul.f32 %v1664, %v1669
  %v1677 = vmul.f32 %v1665, %v1669
  %v1678 = vmul.f32 %v1670, 0.01
  %v1679 = vmul.f32 %v1671, 0.01
  %v1680 = vmul.f32 %v1672, 0.01
  %v1681 = vmul.f32 %v1673, 0.01
  %v1682 = vmul.f32 %v1674, 0.01
  %v1683 = vmul.f32 %v1675, 0.01
  %v1684 = vmul.f32 %v1676, 0.01
  %v1685 = vmul.f32 %v1677, 0.01
  %v1686 = vmax.f32 %v1670, %v1678
  %v1687 = vmax.f32 %v1671, %v1679
  %v1688 = vmax.f32 %v1672, %v1680
  %v1689 = vmax.f32 %v1673, %v1681
  %v1690 = vmax.f32 %v1674, %v1682
  %v1691 = vmax.f32 %v1675, %v1683
  %v1692 = vmax.f32 %v1676, %v1684
  %v1693 = vmax.f32 %v1677, %v1685
  %1694 = vst [vmem:[%s2] sm:$0xff] %v1686
  %1695 = vst [vmem:[%s2 + $0x8] sm:$0xff] %v1687
  %1696 = vst [vmem:[%s2 + $0x10] sm:$0xff] %v1688
  %1697 = vst [vmem:[%s2 + $0x18] sm:$0xff] %v1689
  %1698 = vst [vmem:[%s2 + $0x20] sm:$0xff] %v1690
  %1699 = vst [vmem:[%s2 + $0x28] sm:$0xff] %v1691
  %1700 = vst [vmem:[%s2 + $0x30] sm:$0xff] %v1692
  %1701 = vst [vmem:[%s2 + $0x38] sm:$0xff] %v1693
  // Predicated region
  $region10: #{conv_deconv_forward.21} parent=0 // pred_check
    _
  $region11: #{conv_deconv_forward.21} parent=0 // pred_check_branch
    %1703 = sbr.rel (0) target = $region13
  $region12: #{conv_deconv_forward.21} parent=0 // pred_region
    _
  $region13: #{conv_deconv_forward.21} parent=0 // pred_fallthru
    _
  // Predicated region
  $region14: #{conv_deconv_forward.21} parent=0 // pred_check
    _
  $region15: #{conv_deconv_forward.21} parent=0 // pred_check_branch
    %1705 = sbr.rel (0) target = $region17
  $region16: #{conv_deconv_forward.21} parent=0 // pred_region
    _
  $region17: #{conv_deconv_forward.21} parent=0 // pred_fallthru
    _

// kernel: conv_deconv_forward.22
$region0: #{conv_deconv_forward.22}
  #allocation0 [shape = 'u32[]', space=smem, size = 0x4, offset = 0x4, fixed_abs, tag = 'smem constant byte address 0x4 - core index']
  #allocation1 [shape = 'u32[144,128]{1,0:T(1,128)}', space=vmem, size = 0x12000, scoped, tag = 'internal scratch']
  %s0 = inlined_call_operand.vmem [shape: f32[32,256], index: 0, kind: input, shape index: {}]
  %s1 = inlined_call_operand.vmem [shape: s32[32,256], index: 1, kind: input, shape index: {}]
  %s2 = inlined_call_operand.vmem [shape: f32[4,32,256], index: 2, kind: output, shape index: {}]
  %s3 = sld [smem:[#allocation0]]
  $region18: #{conv_deconv_forward.22} parent=0
    _
  %s5 = ssub.s32 1, %s3
  %s6 = scalar_select 0, %s5, %s3
  // Predicated region
  $region2: #{conv_deconv_forward.22} parent=0 // pred_check
    _
  $region3: #{conv_deconv_forward.22} parent=0 // pred_check_branch
    %8 = sbr.rel (0) target = $region5
  $region4: #{conv_deconv_forward.22} parent=0 // pred_region
    _
  $region5: #{conv_deconv_forward.22} parent=0 // pred_fallthru
    _
  // Predicated region
  $region6: #{conv_deconv_forward.22} parent=0 // pred_check
    _
  $region7: #{conv_deconv_forward.22} parent=0 // pred_check_branch
    %10 = sbr.rel (0) target = $region9
  $region8: #{conv_deconv_forward.22} parent=0 // pred_region
    _
  $region9: #{conv_deconv_forward.22} parent=0 // pred_fallthru
    _
  %v11 = vld [vmem:[%s0] sm:$0xff]
  %v12 = vld [vmem:[%s0 + $0x8] sm:$0xff]
  %v13 = vld [vmem:[%s0 + $0x10] sm:$0xff]
  %v14 = vld [vmem:[%s0 + $0x18] sm:$0xff]
  %v15 = vld [vmem:[%s0 + $0x20] sm:$0xff]
  %v16 = vld [vmem:[%s0 + $0x28] sm:$0xff]
  %v17 = vld [vmem:[%s0 + $0x30] sm:$0xff]
  %v18 = vld [vmem:[%s0 + $0x38] sm:$0xff]
  %v19 = vld [vmem:[%s1] sm:$0xff]
  %v20 = vld [vmem:[%s1 + $0x8] sm:$0xff]
  %v21 = vld [vmem:[%s1 + $0x10] sm:$0xff]
  %v22 = vld [vmem:[%s1 + $0x18] sm:$0xff]
  %v23 = vld [vmem:[%s1 + $0x20] sm:$0xff]
  %v24 = vld [vmem:[%s1 + $0x28] sm:$0xff]
  %v25 = vld [vmem:[%s1 + $0x30] sm:$0xff]
  %v26 = vld [vmem:[%s1 + $0x38] sm:$0xff]
  %vm27 = vcmp.eq.s32.totalorder %v19, 0
  %vm28 = vcmp.eq.s32.totalorder %v20, 0
  %vm29 = vcmp.eq.s32.totalorder %v21, 0
  %vm30 = vcmp.eq.s32.totalorder %v22, 0
  %vm31 = vcmp.eq.s32.totalorder %v23, 0
  %vm32 = vcmp.eq.s32.totalorder %v24, 0
  %vm33 = vcmp.eq.s32.totalorder %v25, 0
  %vm34 = vcmp.eq.s32.totalorder %v26, 0
  %v35 = vsel %vm27, %v11, 0.0
  %v36 = vsel %vm28, %v12, 0.0
  %v37 = vsel %vm29, %v13, 0.0
  %v38 = vsel %vm30, %v14, 0.0
  %v39 = vsel %vm31, %v15, 0.0
  %v40 = vsel %vm32, %v16, 0.0
  %v41 = vsel %vm33, %v17, 0.0
  %v42 = vsel %vm34, %v18, 0.0
  %43 = vst [vmem:[%s2] sm:$0xff] %v35
  %44 = vst [vmem:[%s2 + $0x8] sm:$0xff] %v36
  %45 = vst [vmem:[%s2 + $0x10] sm:$0xff] %v37
  %46 = vst [vmem:[%s2 + $0x18] sm:$0xff] %v38
  %47 = vst [vmem:[%s2 + $0x20] sm:$0xff] %v39
  %48 = vst [vmem:[%s2 + $0x28] sm:$0xff] %v40
  %49 = vst [vmem:[%s2 + $0x30] sm:$0xff] %v41
  %50 = vst [vmem:[%s2 + $0x38] sm:$0xff] %v42
  %vm51 = vcmp.eq.s32.totalorder %v19, 1
  %vm52 = vcmp.eq.s32.totalorder %v20, 1
  %vm53 = vcmp.eq.s32.totalorder %v21, 1
  %vm54 = vcmp.eq.s32.totalorder %v22, 1
  %vm55 = vcmp.eq.s32.totalorder %v23, 1
  %vm56 = vcmp.eq.s32.totalorder %v24, 1
  %vm57 = vcmp.eq.s32.totalorder %v25, 1
  %vm58 = vcmp.eq.s32.totalorder %v26, 1
  %v59 = vsel %vm51, %v11, 0.0
  %v60 = vsel %vm52, %v12, 0.0
  %v61 = vsel %vm53, %v13, 0.0
  %v62 = vsel %vm54, %v14, 0.0
  %v63 = vsel %vm55, %v15, 0.0
  %v64 = vsel %vm56, %v16, 0.0
  %v65 = vsel %vm57, %v17, 0.0
  %v66 = vsel %vm58, %v18, 0.0
  %s67 = scalar_lea.vmem %s2, 64
  %68 = vst [vmem:[%s67] sm:$0xff] %v59
  %69 = vst [vmem:[%s67 + $0x8] sm:$0xff] %v60
  %70 = vst [vmem:[%s67 + $0x10] sm:$0xff] %v61
  %71 = vst [vmem:[%s67 + $0x18] sm:$0xff] %v62
  %72 = vst [vmem:[%s67 + $0x20] sm:$0xff] %v63
  %73 = vst [vmem:[%s67 + $0x28] sm:$0xff] %v64
  %74 = vst [vmem:[%s67 + $0x30] sm:$0xff] %v65
  %75 = vst [vmem:[%s67 + $0x38] sm:$0xff] %v66
  %vm76 = vcmp.eq.s32.totalorder %v19, 2
  %vm77 = vcmp.eq.s32.totalorder %v20, 2
  %vm78 = vcmp.eq.s32.totalorder %v21, 2
  %vm79 = vcmp.eq.s32.totalorder %v22, 2
  %vm80 = vcmp.eq.s32.totalorder %v23, 2
  %vm81 = vcmp.eq.s32.totalorder %v24, 2
  %vm82 = vcmp.eq.s32.totalorder %v25, 2
  %vm83 = vcmp.eq.s32.totalorder %v26, 2
  %v84 = vsel %vm76, %v11, 0.0
  %v85 = vsel %vm77, %v12, 0.0
  %v86 = vsel %vm78, %v13, 0.0
  %v87 = vsel %vm79, %v14, 0.0
  %v88 = vsel %vm80, %v15, 0.0
  %v89 = vsel %vm81, %v16, 0.0
  %v90 = vsel %vm82, %v17, 0.0
  %v91 = vsel %vm83, %v18, 0.0
  %s92 = scalar_lea.vmem %s2, 128
  %93 = vst [vmem:[%s92] sm:$0xff] %v84
  %94 = vst [vmem:[%s92 + $0x8] sm:$0xff] %v85
  %95 = vst [vmem:[%s92 + $0x10] sm:$0xff] %v86
  %96 = vst [vmem:[%s92 + $0x18] sm:$0xff] %v87
  %97 = vst [vmem:[%s92 + $0x20] sm:$0xff] %v88
  %98 = vst [vmem:[%s92 + $0x28] sm:$0xff] %v89
  %99 = vst [vmem:[%s92 + $0x30] sm:$0xff] %v90
  %100 = vst [vmem:[%s92 + $0x38] sm:$0xff] %v91
  %vm101 = vcmp.eq.s32.totalorder %v19, 3
  %vm102 = vcmp.eq.s32.totalorder %v20, 3
  %vm103 = vcmp.eq.s32.totalorder %v21, 3
  %vm104 = vcmp.eq.s32.totalorder %v22, 3
  %vm105 = vcmp.eq.s32.totalorder %v23, 3
  %vm106 = vcmp.eq.s32.totalorder %v24, 3
  %vm107 = vcmp.eq.s32.totalorder %v25, 3
  %vm108 = vcmp.eq.s32.totalorder %v26, 3
  %v109 = vsel %vm101, %v11, 0.0
  %v110 = vsel %vm102, %v12, 0.0
  %v111 = vsel %vm103, %v13, 0.0
  %v112 = vsel %vm104, %v14, 0.0
  %v113 = vsel %vm105, %v15, 0.0
  %v114 = vsel %vm106, %v16, 0.0
  %v115 = vsel %vm107, %v17, 0.0
  %v116 = vsel %vm108, %v18, 0.0
  %s117 = scalar_lea.vmem %s2, 192
  %118 = vst [vmem:[%s117] sm:$0xff] %v109
  %119 = vst [vmem:[%s117 + $0x8] sm:$0xff] %v110
  %120 = vst [vmem:[%s117 + $0x10] sm:$0xff] %v111
  %121 = vst [vmem:[%s117 + $0x18] sm:$0xff] %v112
  %122 = vst [vmem:[%s117 + $0x20] sm:$0xff] %v113
  %123 = vst [vmem:[%s117 + $0x28] sm:$0xff] %v114
  %124 = vst [vmem:[%s117 + $0x30] sm:$0xff] %v115
  %125 = vst [vmem:[%s117 + $0x38] sm:$0xff] %v116
  // Predicated region
  $region10: #{conv_deconv_forward.22} parent=0 // pred_check
    _
  $region11: #{conv_deconv_forward.22} parent=0 // pred_check_branch
    %127 = sbr.rel (0) target = $region13
  $region12: #{conv_deconv_forward.22} parent=0 // pred_region
    _
  $region13: #{conv_deconv_forward.22} parent=0 // pred_fallthru
    _
  // Predicated region
  $region14: #{conv_deconv_forward.22} parent=0 // pred_check
    _
  $region15: #{conv_deconv_forward.22} parent=0 // pred_check_branch
    %129 = sbr.rel (0) target = $region17
  $region16: #{conv_deconv_forward.22} parent=0 // pred_region
    _
  $region17: #{conv_deconv_forward.22} parent=0 // pred_fallthru
    _

// kernel: conv_deconv_forward.23
$region0: #{conv_deconv_forward.23}
  #allocation0 [shape = 'u32[]', space=smem, size = 0x4, offset = 0x4, fixed_abs, tag = 'smem constant byte address 0x4 - core index']
  #allocation1 [shape = 'u32[144,128]{1,0:T(1,128)}', space=vmem, size = 0x12000, scoped, tag = 'internal scratch']
  %s0 = inlined_call_operand.vmem [shape: bf16[3,400], index: 0, kind: input, shape index: {}]
  %s1 = inlined_call_operand.vmem [shape: bf16[400,2688], index: 1, kind: input, shape index: {}]
  %s2 = inlined_call_operand.vmem [shape: f32[3,1], index: 2, kind: input, shape index: {}]
  %s3 = inlined_call_operand.vmem [shape: f32[3,2688], index: 3, kind: input, shape index: {}]
  %s4 = inlined_call_operand.vmem [shape: f32[3,2688], index: 4, kind: output, shape index: {}]
  %s5 = sld [smem:[#allocation0]]
  $region26: #{conv_deconv_forward.23} parent=0
    _
  %s7 = ssub.s32 1, %s5
  %s8 = scalar_select 0, %s7, %s5
  // Predicated region
  $region2: #{conv_deconv_forward.23} parent=0 // pred_check
    _
  $region3: #{conv_deconv_forward.23} parent=0 // pred_check_branch
    %10 = sbr.rel (0) target = $region5
  $region4: #{conv_deconv_forward.23} parent=0 // pred_region
    _
  $region5: #{conv_deconv_forward.23} parent=0 // pred_fallthru
    _
  // Predicated region
  $region6: #{conv_deconv_forward.23} parent=0 // pred_check
    _
  $region7: #{conv_deconv_forward.23} parent=0 // pred_check_branch
    %12 = sbr.rel (0) target = $region9
  $region8: #{conv_deconv_forward.23} parent=0 // pred_region
    _
  $region9: #{conv_deconv_forward.23} parent=0 // pred_fallthru
    _
  // Predicated region
  $region10: #{conv_deconv_forward.23} parent=0 // pred_check
    _
  $region11: #{conv_deconv_forward.23} parent=0 // pred_check_branch
    %14 = sbr.rel (0) target = $region13
  $region12: #{conv_deconv_forward.23} parent=0 // pred_region
    _
  $region13: #{conv_deconv_forward.23} parent=0 // pred_fallthru
    _
  // Predicated region
  $region14: #{conv_deconv_forward.23} parent=0 // pred_check
    _
  $region15: #{conv_deconv_forward.23} parent=0 // pred_check_branch
    %16 = sbr.rel (0) target = $region17
  $region16: #{conv_deconv_forward.23} parent=0 // pred_region
    _
  $region17: #{conv_deconv_forward.23} parent=0 // pred_fallthru
    _
  %v18 = vld [vmem:[%s0] sm:$0xff]
  %v19 = vld [vmem:[%s1] sm:$0xff]
  %v20 = vld [vmem:[%s1 + $0x8] sm:$0xff]
  %v21 = vld [vmem:[%s1 + $0x10] sm:$0xff]
  %v22 = vld [vmem:[%s1 + $0x18] sm:$0xff]
  %v23 = vld [vmem:[%s1 + $0x20] sm:$0xff]
  %v24 = vld [vmem:[%s1 + $0x28] sm:$0xff]
  %v25 = vld [vmem:[%s1 + $0x30] sm:$0xff]
  %v26 = vld [vmem:[%s1 + $0x38] sm:$0xff]
  %v27 = vld [vmem:[%s1 + $0x40] sm:$0xff]
  %v28 = vld [vmem:[%s1 + $0x48] sm:$0xff]
  %v29 = vld [vmem:[%s1 + $0x50] sm:$0xf]
  %v30 = vld [vmem:[%s1 + $0x54] sm:$0xff]
  %v31 = vld [vmem:[%s1 + $0x5c] sm:$0xff]
  %v32 = vld [vmem:[%s1 + $0x64] sm:$0xff]
  %v33 = vld [vmem:[%s1 + $0x6c] sm:$0xff]
  %v34 = vld [vmem:[%s1 + $0x74] sm:$0xff]
  %v35 = vld [vmem:[%s1 + $0x7c] sm:$0xff]
  %v36 = vld [vmem:[%s1 + $0x84] sm:$0xff]
  %v37 = vld [vmem:[%s1 + $0x8c] sm:$0xff]
  %v38 = vld [vmem:[%s1 + $0x94] sm:$0xff]
  %v39 = vld [vmem:[%s1 + $0x9c] sm:$0xff]
  %v40 = vld [vmem:[%s1 + $0xa4] sm:$0xf]
  %v41 = vld [vmem:[%s1 + $0xa8] sm:$0xff]
  %v42 = vld [vmem:[%s1 + $0xb0] sm:$0xff]
  %v43 = vld [vmem:[%s1 + $0xb8] sm:$0xff]
  %v44 = vld [vmem:[%s1 + $0xc0] sm:$0xff]
  %v45 = vld [vmem:[%s1 + $0xc8] sm:$0xff]
  %v46 = vld [vmem:[%s1 + $0xd0] sm:$0xff]
  %v47 = vld [vmem:[%s1 + $0xd8] sm:$0xff]
  %v48 = vld [vmem:[%s1 + $0xe0] sm:$0xff]
  %v49 = vld [vmem:[%s1 + $0xe8] sm:$0xff]
  %v50 = vld [vmem:[%s1 + $0xf0] sm:$0xff]
  %v51 = vld [vmem:[%s1 + $0xf8] sm:$0xf]
  %v52 = vld [vmem:[%s1 + $0xfc] sm:$0xff]
  %v53 = vld [vmem:[%s1 + $0x104] sm:$0xff]
  %v54 = vld [vmem:[%s1 + $0x10c] sm:$0xff]
  %v55 = vld [vmem:[%s1 + $0x114] sm:$0xff]
  %v56 = vld [vmem:[%s1 + $0x11c] sm:$0xff]
  %v57 = vld [vmem:[%s1 + $0x124] sm:$0xff]
  %v58 = vld [vmem:[%s1 + $0x12c] sm:$0xff]
  %v59 = vld [vmem:[%s1 + $0x134] sm:$0xff]
  %v60 = vld [vmem:[%s1 + $0x13c] sm:$0xff]
  %v61 = vld [vmem:[%s1 + $0x144] sm:$0xff]
  %v62 = vld [vmem:[%s1 + $0x14c] sm:$0xf]
  %v63 = vld [vmem:[%s1 + $0x150] sm:$0xff]
  %v64 = vld [vmem:[%s1 + $0x158] sm:$0xff]
  %v65 = vld [vmem:[%s1 + $0x160] sm:$0xff]
  %v66 = vld [vmem:[%s1 + $0x168] sm:$0xff]
  %v67 = vld [vmem:[%s1 + $0x170] sm:$0xff]
  %v68 = vld [vmem:[%s1 + $0x178] sm:$0xff]
  %v69 = vld [vmem:[%s1 + $0x180] sm:$0xff]
  %v70 = vld [vmem:[%s1 + $0x188] sm:$0xff]
  %v71 = vld [vmem:[%s1 + $0x190] sm:$0xff]
  %v72 = vld [vmem:[%s1 + $0x198] sm:$0xff]
  %v73 = vld [vmem:[%s1 + $0x1a0] sm:$0xf]
  %v74 = vld [vmem:[%s1 + $0x1a4] sm:$0xff]
  %v75 = vld [vmem:[%s1 + $0x1ac] sm:$0xff]
  %v76 = vld [vmem:[%s1 + $0x1b4] sm:$0xff]
  %v77 = vld [vmem:[%s1 + $0x1bc] sm:$0xff]
  %v78 = vld [vmem:[%s1 + $0x1c4] sm:$0xff]
  %v79 = vld [vmem:[%s1 + $0x1cc] sm:$0xff]
  %v80 = vld [vmem:[%s1 + $0x1d4] sm:$0xff]
  %v81 = vld [vmem:[%s1 + $0x1dc] sm:$0xff]
  %v82 = vld [vmem:[%s1 + $0x1e4] sm:$0xff]
  %v83 = vld [vmem:[%s1 + $0x1ec] sm:$0xff]
  %v84 = vld [vmem:[%s1 + $0x1f4] sm:$0xf]
  %v85 = vld [vmem:[%s1 + $0x1f8] sm:$0xff]
  %v86 = vld [vmem:[%s1 + $0x200] sm:$0xff]
  %v87 = vld [vmem:[%s1 + $0x208] sm:$0xff]
  %v88 = vld [vmem:[%s1 + $0x210] sm:$0xff]
  %v89 = vld [vmem:[%s1 + $0x218] sm:$0xff]
  %v90 = vld [vmem:[%s1 + $0x220] sm:$0xff]
  %v91 = vld [vmem:[%s1 + $0x228] sm:$0xff]
  %v92 = vld [vmem:[%s1 + $0x230] sm:$0xff]
  %v93 = vld [vmem:[%s1 + $0x238] sm:$0xff]
  %v94 = vld [vmem:[%s1 + $0x240] sm:$0xff]
  %v95 = vld [vmem:[%s1 + $0x248] sm:$0xf]
  %v96 = vld [vmem:[%s1 + $0x24c] sm:$0xff]
  %v97 = vld [vmem:[%s1 + $0x254] sm:$0xff]
  %v98 = vld [vmem:[%s1 + $0x25c] sm:$0xff]
  %v99 = vld [vmem:[%s1 + $0x264] sm:$0xff]
  %v100 = vld [vmem:[%s1 + $0x26c] sm:$0xff]
  %v101 = vld [vmem:[%s1 + $0x274] sm:$0xff]
  %v102 = vld [vmem:[%s1 + $0x27c] sm:$0xff]
  %v103 = vld [vmem:[%s1 + $0x284] sm:$0xff]
  %v104 = vld [vmem:[%s1 + $0x28c] sm:$0xff]
  %v105 = vld [vmem:[%s1 + $0x294] sm:$0xff]
  %v106 = vld [vmem:[%s1 + $0x29c] sm:$0xf]
  %v107 = vld [vmem:[%s1 + $0x2a0] sm:$0xff]
  %v108 = vld [vmem:[%s1 + $0x2a8] sm:$0xff]
  %v109 = vld [vmem:[%s1 + $0x2b0] sm:$0xff]
  %v110 = vld [vmem:[%s1 + $0x2b8] sm:$0xff]
  %v111 = vld [vmem:[%s1 + $0x2c0] sm:$0xff]
  %v112 = vld [vmem:[%s1 + $0x2c8] sm:$0xff]
  %v113 = vld [vmem:[%s1 + $0x2d0] sm:$0xff]
  %v114 = vld [vmem:[%s1 + $0x2d8] sm:$0xff]
  %v115 = vld [vmem:[%s1 + $0x2e0] sm:$0xff]
  %v116 = vld [vmem:[%s1 + $0x2e8] sm:$0xff]
  %v117 = vld [vmem:[%s1 + $0x2f0] sm:$0xf]
  %v118 = vld [vmem:[%s1 + $0x2f4] sm:$0xff]
  %v119 = vld [vmem:[%s1 + $0x2fc] sm:$0xff]
  %v120 = vld [vmem:[%s1 + $0x304] sm:$0xff]
  %v121 = vld [vmem:[%s1 + $0x30c] sm:$0xff]
  %v122 = vld [vmem:[%s1 + $0x314] sm:$0xff]
  %v123 = vld [vmem:[%s1 + $0x31c] sm:$0xff]
  %v124 = vld [vmem:[%s1 + $0x324] sm:$0xff]
  %v125 = vld [vmem:[%s1 + $0x32c] sm:$0xff]
  %v126 = vld [vmem:[%s1 + $0x334] sm:$0xff]
  %v127 = vld [vmem:[%s1 + $0x33c] sm:$0xff]
  %v128 = vld [vmem:[%s1 + $0x344] sm:$0xf]
  %v129 = vld [vmem:[%s1 + $0x348] sm:$0xff]
  %v130 = vld [vmem:[%s1 + $0x350] sm:$0xff]
  %v131 = vld [vmem:[%s1 + $0x358] sm:$0xff]
  %v132 = vld [vmem:[%s1 + $0x360] sm:$0xff]
  %v133 = vld [vmem:[%s1 + $0x368] sm:$0xff]
  %v134 = vld [vmem:[%s1 + $0x370] sm:$0xff]
  %v135 = vld [vmem:[%s1 + $0x378] sm:$0xff]
  %v136 = vld [vmem:[%s1 + $0x380] sm:$0xff]
  %v137 = vld [vmem:[%s1 + $0x388] sm:$0xff]
  %v138 = vld [vmem:[%s1 + $0x390] sm:$0xff]
  %v139 = vld [vmem:[%s1 + $0x398] sm:$0xf]
  %v140 = vld [vmem:[%s1 + $0x39c] sm:$0xff]
  %v141 = vld [vmem:[%s1 + $0x3a4] sm:$0xff]
  %v142 = vld [vmem:[%s1 + $0x3ac] sm:$0xff]
  %v143 = vld [vmem:[%s1 + $0x3b4] sm:$0xff]
  %v144 = vld [vmem:[%s1 + $0x3bc] sm:$0xff]
  %v145 = vld [vmem:[%s1 + $0x3c4] sm:$0xff]
  %v146 = vld [vmem:[%s1 + $0x3cc] sm:$0xff]
  %v147 = vld [vmem:[%s1 + $0x3d4] sm:$0xff]
  %v148 = vld [vmem:[%s1 + $0x3dc] sm:$0xff]
  %v149 = vld [vmem:[%s1 + $0x3e4] sm:$0xff]
  %v150 = vld [vmem:[%s1 + $0x3ec] sm:$0xf]
  %v151 = vld [vmem:[%s1 + $0x3f0] sm:$0xff]
  %v152 = vld [vmem:[%s1 + $0x3f8] sm:$0xff]
  %v153 = vld [vmem:[%s1 + $0x400] sm:$0xff]
  %v154 = vld [vmem:[%s1 + $0x408] sm:$0xff]
  %v155 = vld [vmem:[%s1 + $0x410] sm:$0xff]
  %v156 = vld [vmem:[%s1 + $0x418] sm:$0xff]
  %v157 = vld [vmem:[%s1 + $0x420] sm:$0xff]
  %v158 = vld [vmem:[%s1 + $0x428] sm:$0xff]
  %v159 = vld [vmem:[%s1 + $0x430] sm:$0xff]
  %v160 = vld [vmem:[%s1 + $0x438] sm:$0xff]
  %v161 = vld [vmem:[%s1 + $0x440] sm:$0xf]
  %v162 = vld [vmem:[%s1 + $0x444] sm:$0xff]
  %v163 = vld [vmem:[%s1 + $0x44c] sm:$0xff]
  %v164 = vld [vmem:[%s1 + $0x454] sm:$0xff]
  %v165 = vld [vmem:[%s1 + $0x45c] sm:$0xff]
  %v166 = vld [vmem:[%s1 + $0x464] sm:$0xff]
  %v167 = vld [vmem:[%s1 + $0x46c] sm:$0xff]
  %v168 = vld [vmem:[%s1 + $0x474] sm:$0xff]
  %v169 = vld [vmem:[%s1 + $0x47c] sm:$0xff]
  %v170 = vld [vmem:[%s1 + $0x484] sm:$0xff]
  %v171 = vld [vmem:[%s1 + $0x48c] sm:$0xff]
  %v172 = vld [vmem:[%s1 + $0x494] sm:$0xf]
  %v173 = vld [vmem:[%s1 + $0x498] sm:$0xff]
  %v174 = vld [vmem:[%s1 + $0x4a0] sm:$0xff]
  %v175 = vld [vmem:[%s1 + $0x4a8] sm:$0xff]
  %v176 = vld [vmem:[%s1 + $0x4b0] sm:$0xff]
  %v177 = vld [vmem:[%s1 + $0x4b8] sm:$0xff]
  %v178 = vld [vmem:[%s1 + $0x4c0] sm:$0xff]
  %v179 = vld [vmem:[%s1 + $0x4c8] sm:$0xff]
  %v180 = vld [vmem:[%s1 + $0x4d0] sm:$0xff]
  %v181 = vld [vmem:[%s1 + $0x4d8] sm:$0xff]
  %v182 = vld [vmem:[%s1 + $0x4e0] sm:$0xff]
  %v183 = vld [vmem:[%s1 + $0x4e8] sm:$0xf]
  %v184 = vld [vmem:[%s1 + $0x4ec] sm:$0xff]
  %v185 = vld [vmem:[%s1 + $0x4f4] sm:$0xff]
  %v186 = vld [vmem:[%s1 + $0x4fc] sm:$0xff]
  %v187 = vld [vmem:[%s1 + $0x504] sm:$0xff]
  %v188 = vld [vmem:[%s1 + $0x50c] sm:$0xff]
  %v189 = vld [vmem:[%s1 + $0x514] sm:$0xff]
  %v190 = vld [vmem:[%s1 + $0x51c] sm:$0xff]
  %v191 = vld [vmem:[%s1 + $0x524] sm:$0xff]
  %v192 = vld [vmem:[%s1 + $0x52c] sm:$0xff]
  %v193 = vld [vmem:[%s1 + $0x534] sm:$0xff]
  %v194 = vld [vmem:[%s1 + $0x53c] sm:$0xf]
  %v195 = vld [vmem:[%s1 + $0x540] sm:$0xff]
  %v196 = vld [vmem:[%s1 + $0x548] sm:$0xff]
  %v197 = vld [vmem:[%s1 + $0x550] sm:$0xff]
  %v198 = vld [vmem:[%s1 + $0x558] sm:$0xff]
  %v199 = vld [vmem:[%s1 + $0x560] sm:$0xff]
  %v200 = vld [vmem:[%s1 + $0x568] sm:$0xff]
  %v201 = vld [vmem:[%s1 + $0x570] sm:$0xff]
  %v202 = vld [vmem:[%s1 + $0x578] sm:$0xff]
  %v203 = vld [vmem:[%s1 + $0x580] sm:$0xff]
  %v204 = vld [vmem:[%s1 + $0x588] sm:$0xff]
  %v205 = vld [vmem:[%s1 + $0x590] sm:$0xf]
  %v206 = vld [vmem:[%s1 + $0x594] sm:$0xff]
  %v207 = vld [vmem:[%s1 + $0x59c] sm:$0xff]
  %v208 = vld [vmem:[%s1 + $0x5a4] sm:$0xff]
  %v209 = vld [vmem:[%s1 + $0x5ac] sm:$0xff]
  %v210 = vld [vmem:[%s1 + $0x5b4] sm:$0xff]
  %v211 = vld [vmem:[%s1 + $0x5bc] sm:$0xff]
  %v212 = vld [vmem:[%s1 + $0x5c4] sm:$0xff]
  %v213 = vld [vmem:[%s1 + $0x5cc] sm:$0xff]
  %v214 = vld [vmem:[%s1 + $0x5d4] sm:$0xff]
  %v215 = vld [vmem:[%s1 + $0x5dc] sm:$0xff]
  %v216 = vld [vmem:[%s1 + $0x5e4] sm:$0xf]
  %v217 = vld [vmem:[%s1 + $0x5e8] sm:$0xff]
  %v218 = vld [vmem:[%s1 + $0x5f0] sm:$0xff]
  %v219 = vld [vmem:[%s1 + $0x5f8] sm:$0xff]
  %v220 = vld [vmem:[%s1 + $0x600] sm:$0xff]
  %v221 = vld [vmem:[%s1 + $0x608] sm:$0xff]
  %v222 = vld [vmem:[%s1 + $0x610] sm:$0xff]
  %v223 = vld [vmem:[%s1 + $0x618] sm:$0xff]
  %v224 = vld [vmem:[%s1 + $0x620] sm:$0xff]
  %v225 = vld [vmem:[%s1 + $0x628] sm:$0xff]
  %v226 = vld [vmem:[%s1 + $0x630] sm:$0xff]
  %v227 = vld [vmem:[%s1 + $0x638] sm:$0xf]
  %v228 = vld [vmem:[%s1 + $0x63c] sm:$0xff]
  %v229 = vld [vmem:[%s1 + $0x644] sm:$0xff]
  %v230 = vld [vmem:[%s1 + $0x64c] sm:$0xff]
  %v231 = vld [vmem:[%s1 + $0x654] sm:$0xff]
  %v232 = vld [vmem:[%s1 + $0x65c] sm:$0xff]
  %v233 = vld [vmem:[%s1 + $0x664] sm:$0xff]
  %v234 = vld [vmem:[%s1 + $0x66c] sm:$0xff]
  %v235 = vld [vmem:[%s1 + $0x674] sm:$0xff]
  %v236 = vld [vmem:[%s1 + $0x67c] sm:$0xff]
  %v237 = vld [vmem:[%s1 + $0x684] sm:$0xff]
  %v238 = vld [vmem:[%s1 + $0x68c] sm:$0xf]
  %v239 = vld [vmem:[%s1 + $0x690] sm:$0xff]
  %v240 = vld [vmem:[%s1 + $0x698] sm:$0xff]
  %v241 = vld [vmem:[%s1 + $0x6a0] sm:$0xff]
  %v242 = vld [vmem:[%s1 + $0x6a8] sm:$0xff]
  %v243 = vld [vmem:[%s1 + $0x6b0] sm:$0xff]
  %v244 = vld [vmem:[%s1 + $0x6b8] sm:$0xff]
  %v245 = vld [vmem:[%s1 + $0x6c0] sm:$0xff]
  %v246 = vld [vmem:[%s1 + $0x6c8] sm:$0xff]
  %v247 = vld [vmem:[%s1 + $0x6d0] sm:$0xff]
  %v248 = vld [vmem:[%s1 + $0x6d8] sm:$0xff]
  %v249 = vld [vmem:[%s1 + $0x6e0] sm:$0xf]
  %v250 = vld [vmem:[%s1 + $0x6e4] sm:$0xff]
  %v251 = vld [vmem:[%s1 + $0x6ec] sm:$0xff]
  %v252 = vld [vmem:[%s1 + $0x6f4] sm:$0xff]
  %v253 = vld [vmem:[%s1 + $0x6fc] sm:$0xff]
  %v254 = vld [vmem:[%s1 + $0x704] sm:$0xff]
  %v255 = vld [vmem:[%s1 + $0x70c] sm:$0xff]
  %v256 = vld [vmem:[%s1 + $0x714] sm:$0xff]
  %v257 = vld [vmem:[%s1 + $0x71c] sm:$0xff]
  %v258 = vld [vmem:[%s1 + $0x724] sm:$0xff]
  %v259 = vld [vmem:[%s1 + $0x72c] sm:$0xff]
  %v260 = vld [vmem:[%s1 + $0x734] sm:$0xf]
  %v261 = vld [vmem:[%s1 + $0x738] sm:$0xff]
  %v262 = vld [vmem:[%s1 + $0x740] sm:$0xff]
  %v263 = vld [vmem:[%s1 + $0x748] sm:$0xff]
  %v264 = vld [vmem:[%s1 + $0x750] sm:$0xff]
  %v265 = vld [vmem:[%s1 + $0x758] sm:$0xff]
  %v266 = vld [vmem:[%s1 + $0x760] sm:$0xff]
  %v267 = vld [vmem:[%s1 + $0x768] sm:$0xff]
  %v268 = vld [vmem:[%s1 + $0x770] sm:$0xff]
  %v269 = vld [vmem:[%s1 + $0x778] sm:$0xff]
  %v270 = vld [vmem:[%s1 + $0x780] sm:$0xff]
  %v271 = vld [vmem:[%s1 + $0x788] sm:$0xf]
  %v272 = vld [vmem:[%s1 + $0x78c] sm:$0xff]
  %v273 = vld [vmem:[%s1 + $0x794] sm:$0xff]
  %v274 = vld [vmem:[%s1 + $0x79c] sm:$0xff]
  %v275 = vld [vmem:[%s1 + $0x7a4] sm:$0xff]
  %v276 = vld [vmem:[%s1 + $0x7ac] sm:$0xff]
  %v277 = vld [vmem:[%s1 + $0x7b4] sm:$0xff]
  %v278 = vld [vmem:[%s1 + $0x7bc] sm:$0xff]
  %v279 = vld [vmem:[%s1 + $0x7c4] sm:$0xff]
  %v280 = vld [vmem:[%s1 + $0x7cc] sm:$0xff]
  %v281 = vld [vmem:[%s1 + $0x7d4] sm:$0xff]
  %v282 = vld [vmem:[%s1 + $0x7dc] sm:$0xf]
  %v283 = vld [vmem:[%s1 + $0x7e0] sm:$0xff]
  %v284 = vld [vmem:[%s1 + $0x7e8] sm:$0xff]
  %v285 = vld [vmem:[%s1 + $0x7f0] sm:$0xff]
  %v286 = vld [vmem:[%s1 + $0x7f8] sm:$0xff]
  %v287 = vld [vmem:[%s1 + $0x800] sm:$0xff]
  %v288 = vld [vmem:[%s1 + $0x808] sm:$0xff]
  %v289 = vld [vmem:[%s1 + $0x810] sm:$0xff]
  %v290 = vld [vmem:[%s1 + $0x818] sm:$0xff]
  %v291 = vld [vmem:[%s1 + $0x820] sm:$0xff]
  %v292 = vld [vmem:[%s1 + $0x828] sm:$0xff]
  %v293 = vld [vmem:[%s1 + $0x830] sm:$0xf]
  %v294 = vld [vmem:[%s1 + $0x834] sm:$0xff]
  %v295 = vld [vmem:[%s1 + $0x83c] sm:$0xff]
  %v296 = vld [vmem:[%s1 + $0x844] sm:$0xff]
  %v297 = vld [vmem:[%s1 + $0x84c] sm:$0xff]
  %v298 = vld [vmem:[%s1 + $0x854] sm:$0xff]
  %v299 = vld [vmem:[%s1 + $0x85c] sm:$0xff]
  %v300 = vld [vmem:[%s1 + $0x864] sm:$0xff]
  %v301 = vld [vmem:[%s1 + $0x86c] sm:$0xff]
  %v302 = vld [vmem:[%s1 + $0x874] sm:$0xff]
  %v303 = vld [vmem:[%s1 + $0x87c] sm:$0xff]
  %v304 = vld [vmem:[%s1 + $0x884] sm:$0xf]
  %v305 = vld [vmem:[%s1 + $0x888] sm:$0xff]
  %v306 = vld [vmem:[%s1 + $0x890] sm:$0xff]
  %v307 = vld [vmem:[%s1 + $0x898] sm:$0xff]
  %v308 = vld [vmem:[%s1 + $0x8a0] sm:$0xff]
  %v309 = vld [vmem:[%s1 + $0x8a8] sm:$0xff]
  %v310 = vld [vmem:[%s1 + $0x8b0] sm:$0xff]
  %v311 = vld [vmem:[%s1 + $0x8b8] sm:$0xff]
  %v312 = vld [vmem:[%s1 + $0x8c0] sm:$0xff]
  %v313 = vld [vmem:[%s1 + $0x8c8] sm:$0xff]
  %v314 = vld [vmem:[%s1 + $0x8d0] sm:$0xff]
  %v315 = vld [vmem:[%s1 + $0x8d8] sm:$0xf]
  %v316 = vld [vmem:[%s1 + $0x8dc] sm:$0xff]
  %v317 = vld [vmem:[%s1 + $0x8e4] sm:$0xff]
  %v318 = vld [vmem:[%s1 + $0x8ec] sm:$0xff]
  %v319 = vld [vmem:[%s1 + $0x8f4] sm:$0xff]
  %v320 = vld [vmem:[%s1 + $0x8fc] sm:$0xff]
  %v321 = vld [vmem:[%s1 + $0x904] sm:$0xff]
  %v322 = vld [vmem:[%s1 + $0x90c] sm:$0xff]
  %v323 = vld [vmem:[%s1 + $0x914] sm:$0xff]
  %v324 = vld [vmem:[%s1 + $0x91c] sm:$0xff]
  %v325 = vld [vmem:[%s1 + $0x924] sm:$0xff]
  %v326 = vld [vmem:[%s1 + $0x92c] sm:$0xf]
  %v327 = vld [vmem:[%s1 + $0x930] sm:$0xff]
  %v328 = vld [vmem:[%s1 + $0x938] sm:$0xff]
  %v329 = vld [vmem:[%s1 + $0x940] sm:$0xff]
  %v330 = vld [vmem:[%s1 + $0x948] sm:$0xff]
  %v331 = vld [vmem:[%s1 + $0x950] sm:$0xff]
  %v332 = vld [vmem:[%s1 + $0x958] sm:$0xff]
  %v333 = vld [vmem:[%s1 + $0x960] sm:$0xff]
  %v334 = vld [vmem:[%s1 + $0x968] sm:$0xff]
  %v335 = vld [vmem:[%s1 + $0x970] sm:$0xff]
  %v336 = vld [vmem:[%s1 + $0x978] sm:$0xff]
  %v337 = vld [vmem:[%s1 + $0x980] sm:$0xf]
  %v338 = vld [vmem:[%s1 + $0x984] sm:$0xff]
  %v339 = vld [vmem:[%s1 + $0x98c] sm:$0xff]
  %v340 = vld [vmem:[%s1 + $0x994] sm:$0xff]
  %v341 = vld [vmem:[%s1 + $0x99c] sm:$0xff]
  %v342 = vld [vmem:[%s1 + $0x9a4] sm:$0xff]
  %v343 = vld [vmem:[%s1 + $0x9ac] sm:$0xff]
  %v344 = vld [vmem:[%s1 + $0x9b4] sm:$0xff]
  %v345 = vld [vmem:[%s1 + $0x9bc] sm:$0xff]
  %v346 = vld [vmem:[%s1 + $0x9c4] sm:$0xff]
  %v347 = vld [vmem:[%s1 + $0x9cc] sm:$0xff]
  %v348 = vld [vmem:[%s1 + $0x9d4] sm:$0xf]
  %v349 = vld [vmem:[%s1 + $0x9d8] sm:$0xff]
  %v350 = vld [vmem:[%s1 + $0x9e0] sm:$0xff]
  %v351 = vld [vmem:[%s1 + $0x9e8] sm:$0xff]
  %v352 = vld [vmem:[%s1 + $0x9f0] sm:$0xff]
  %v353 = vld [vmem:[%s1 + $0x9f8] sm:$0xff]
  %v354 = vld [vmem:[%s1 + $0xa00] sm:$0xff]
  %v355 = vld [vmem:[%s1 + $0xa08] sm:$0xff]
  %v356 = vld [vmem:[%s1 + $0xa10] sm:$0xff]
  %v357 = vld [vmem:[%s1 + $0xa18] sm:$0xff]
  %v358 = vld [vmem:[%s1 + $0xa20] sm:$0xff]
  %v359 = vld [vmem:[%s1 + $0xa28] sm:$0xf]
  %v360 = vld [vmem:[%s1 + $0xa2c] sm:$0xff]
  %v361 = vld [vmem:[%s1 + $0xa34] sm:$0xff]
  %v362 = vld [vmem:[%s1 + $0xa3c] sm:$0xff]
  %v363 = vld [vmem:[%s1 + $0xa44] sm:$0xff]
  %v364 = vld [vmem:[%s1 + $0xa4c] sm:$0xff]
  %v365 = vld [vmem:[%s1 + $0xa54] sm:$0xff]
  %v366 = vld [vmem:[%s1 + $0xa5c] sm:$0xff]
  %v367 = vld [vmem:[%s1 + $0xa64] sm:$0xff]
  %v368 = vld [vmem:[%s1 + $0xa6c] sm:$0xff]
  %v369 = vld [vmem:[%s1 + $0xa74] sm:$0xff]
  %v370 = vld [vmem:[%s1 + $0xa7c] sm:$0xf]
  %v371 = vld [vmem:[%s1 + $0xa80] sm:$0xff]
  %v372 = vld [vmem:[%s1 + $0xa88] sm:$0xff]
  %v373 = vld [vmem:[%s1 + $0xa90] sm:$0xff]
  %v374 = vld [vmem:[%s1 + $0xa98] sm:$0xff]
  %v375 = vld [vmem:[%s1 + $0xaa0] sm:$0xff]
  %v376 = vld [vmem:[%s1 + $0xaa8] sm:$0xff]
  %v377 = vld [vmem:[%s1 + $0xab0] sm:$0xff]
  %v378 = vld [vmem:[%s1 + $0xab8] sm:$0xff]
  %v379 = vld [vmem:[%s1 + $0xac0] sm:$0xff]
  %v380 = vld [vmem:[%s1 + $0xac8] sm:$0xff]
  %v381 = vld [vmem:[%s1 + $0xad0] sm:$0xf]
  %v382 = vld [vmem:[%s1 + $0xad4] sm:$0xff]
  %v383 = vld [vmem:[%s1 + $0xadc] sm:$0xff]
  %v384 = vld [vmem:[%s1 + $0xae4] sm:$0xff]
  %v385 = vld [vmem:[%s1 + $0xaec] sm:$0xff]
  %v386 = vld [vmem:[%s1 + $0xaf4] sm:$0xff]
  %v387 = vld [vmem:[%s1 + $0xafc] sm:$0xff]
  %v388 = vld [vmem:[%s1 + $0xb04] sm:$0xff]
  %v389 = vld [vmem:[%s1 + $0xb0c] sm:$0xff]
  %v390 = vld [vmem:[%s1 + $0xb14] sm:$0xff]
  %v391 = vld [vmem:[%s1 + $0xb1c] sm:$0xff]
  %v392 = vld [vmem:[%s1 + $0xb24] sm:$0xf]
  %v393 = vld [vmem:[%s1 + $0xb28] sm:$0xff]
  %v394 = vld [vmem:[%s1 + $0xb30] sm:$0xff]
  %v395 = vld [vmem:[%s1 + $0xb38] sm:$0xff]
  %v396 = vld [vmem:[%s1 + $0xb40] sm:$0xff]
  %v397 = vld [vmem:[%s1 + $0xb48] sm:$0xff]
  %v398 = vld [vmem:[%s1 + $0xb50] sm:$0xff]
  %v399 = vld [vmem:[%s1 + $0xb58] sm:$0xff]
  %v400 = vld [vmem:[%s1 + $0xb60] sm:$0xff]
  %v401 = vld [vmem:[%s1 + $0xb68] sm:$0xff]
  %v402 = vld [vmem:[%s1 + $0xb70] sm:$0xff]
  %v403 = vld [vmem:[%s1 + $0xb78] sm:$0xf]
  %v404 = vld [vmem:[%s1 + $0xb7c] sm:$0xff]
  %v405 = vld [vmem:[%s1 + $0xb84] sm:$0xff]
  %v406 = vld [vmem:[%s1 + $0xb8c] sm:$0xff]
  %v407 = vld [vmem:[%s1 + $0xb94] sm:$0xff]
  %v408 = vld [vmem:[%s1 + $0xb9c] sm:$0xff]
  %v409 = vld [vmem:[%s1 + $0xba4] sm:$0xff]
  %v410 = vld [vmem:[%s1 + $0xbac] sm:$0xff]
  %v411 = vld [vmem:[%s1 + $0xbb4] sm:$0xff]
  %v412 = vld [vmem:[%s1 + $0xbbc] sm:$0xff]
  %v413 = vld [vmem:[%s1 + $0xbc4] sm:$0xff]
  %v414 = vld [vmem:[%s1 + $0xbcc] sm:$0xf]
  %v415 = vld [vmem:[%s1 + $0xbd0] sm:$0xff]
  %v416 = vld [vmem:[%s1 + $0xbd8] sm:$0xff]
  %v417 = vld [vmem:[%s1 + $0xbe0] sm:$0xff]
  %v418 = vld [vmem:[%s1 + $0xbe8] sm:$0xff]
  %v419 = vld [vmem:[%s1 + $0xbf0] sm:$0xff]
  %v420 = vld [vmem:[%s1 + $0xbf8] sm:$0xff]
  %v421 = vld [vmem:[%s1 + $0xc00] sm:$0xff]
  %v422 = vld [vmem:[%s1 + $0xc08] sm:$0xff]
  %v423 = vld [vmem:[%s1 + $0xc10] sm:$0xff]
  %v424 = vld [vmem:[%s1 + $0xc18] sm:$0xff]
  %v425 = vld [vmem:[%s1 + $0xc20] sm:$0xf]
  %v426 = vld [vmem:[%s1 + $0xc24] sm:$0xff]
  %v427 = vld [vmem:[%s1 + $0xc2c] sm:$0xff]
  %v428 = vld [vmem:[%s1 + $0xc34] sm:$0xff]
  %v429 = vld [vmem:[%s1 + $0xc3c] sm:$0xff]
  %v430 = vld [vmem:[%s1 + $0xc44] sm:$0xff]
  %v431 = vld [vmem:[%s1 + $0xc4c] sm:$0xff]
  %v432 = vld [vmem:[%s1 + $0xc54] sm:$0xff]
  %v433 = vld [vmem:[%s1 + $0xc5c] sm:$0xff]
  %v434 = vld [vmem:[%s1 + $0xc64] sm:$0xff]
  %v435 = vld [vmem:[%s1 + $0xc6c] sm:$0xff]
  %v436 = vld [vmem:[%s1 + $0xc74] sm:$0xf]
  %v437 = vld [vmem:[%s1 + $0xc78] sm:$0xff]
  %v438 = vld [vmem:[%s1 + $0xc80] sm:$0xff]
  %v439 = vld [vmem:[%s1 + $0xc88] sm:$0xff]
  %v440 = vld [vmem:[%s1 + $0xc90] sm:$0xff]
  %v441 = vld [vmem:[%s1 + $0xc98] sm:$0xff]
  %v442 = vld [vmem:[%s1 + $0xca0] sm:$0xff]
  %v443 = vld [vmem:[%s1 + $0xca8] sm:$0xff]
  %v444 = vld [vmem:[%s1 + $0xcb0] sm:$0xff]
  %v445 = vld [vmem:[%s1 + $0xcb8] sm:$0xff]
  %v446 = vld [vmem:[%s1 + $0xcc0] sm:$0xff]
  %v447 = vld [vmem:[%s1 + $0xcc8] sm:$0xf]
  %v448 = vld [vmem:[%s1 + $0xccc] sm:$0xff]
  %v449 = vld [vmem:[%s1 + $0xcd4] sm:$0xff]
  %v450 = vld [vmem:[%s1 + $0xcdc] sm:$0xff]
  %v451 = vld [vmem:[%s1 + $0xce4] sm:$0xff]
  %v452 = vld [vmem:[%s1 + $0xcec] sm:$0xff]
  %v453 = vld [vmem:[%s1 + $0xcf4] sm:$0xff]
  %v454 = vld [vmem:[%s1 + $0xcfc] sm:$0xff]
  %v455 = vld [vmem:[%s1 + $0xd04] sm:$0xff]
  %v456 = vld [vmem:[%s1 + $0xd0c] sm:$0xff]
  %v457 = vld [vmem:[%s1 + $0xd14] sm:$0xff]
  %v458 = vld [vmem:[%s1 + $0xd1c] sm:$0xf]
  %v459 = vld [vmem:[%s1 + $0xd20] sm:$0xff]
  %v460 = vld [vmem:[%s1 + $0xd28] sm:$0xff]
  %v461 = vld [vmem:[%s1 + $0xd30] sm:$0xff]
  %v462 = vld [vmem:[%s1 + $0xd38] sm:$0xff]
  %v463 = vld [vmem:[%s1 + $0xd40] sm:$0xff]
  %v464 = vld [vmem:[%s1 + $0xd48] sm:$0xff]
  %v465 = vld [vmem:[%s1 + $0xd50] sm:$0xff]
  %v466 = vld [vmem:[%s1 + $0xd58] sm:$0xff]
  %v467 = vld [vmem:[%s1 + $0xd60] sm:$0xff]
  %v468 = vld [vmem:[%s1 + $0xd68] sm:$0xff]
  %v469 = vld [vmem:[%s1 + $0xd70] sm:$0xf]
  %v470 = vld [vmem:[%s1 + $0xd74] sm:$0xff]
  %v471 = vld [vmem:[%s1 + $0xd7c] sm:$0xff]
  %v472 = vld [vmem:[%s1 + $0xd84] sm:$0xff]
  %v473 = vld [vmem:[%s1 + $0xd8c] sm:$0xff]
  %v474 = vld [vmem:[%s1 + $0xd94] sm:$0xff]
  %v475 = vld [vmem:[%s1 + $0xd9c] sm:$0xff]
  %v476 = vld [vmem:[%s1 + $0xda4] sm:$0xff]
  %v477 = vld [vmem:[%s1 + $0xdac] sm:$0xff]
  %v478 = vld [vmem:[%s1 + $0xdb4] sm:$0xff]
  %v479 = vld [vmem:[%s1 + $0xdbc] sm:$0xff]
  %v480 = vld [vmem:[%s1 + $0xdc4] sm:$0xf]
  %v481 = vld [vmem:[%s1 + $0xdc8] sm:$0xff]
  %v482 = vld [vmem:[%s1 + $0xdd0] sm:$0xff]
  %v483 = vld [vmem:[%s1 + $0xdd8] sm:$0xff]
  %v484 = vld [vmem:[%s1 + $0xde0] sm:$0xff]
  %v485 = vld [vmem:[%s1 + $0xde8] sm:$0xff]
  %v486 = vld [vmem:[%s1 + $0xdf0] sm:$0xff]
  %v487 = vld [vmem:[%s1 + $0xdf8] sm:$0xff]
  %v488 = vld [vmem:[%s1 + $0xe00] sm:$0xff]
  %v489 = vld [vmem:[%s1 + $0xe08] sm:$0xff]
  %v490 = vld [vmem:[%s1 + $0xe10] sm:$0xff]
  %v491 = vld [vmem:[%s1 + $0xe18] sm:$0xf]
  %v492 = vld [vmem:[%s1 + $0xe1c] sm:$0xff]
  %v493 = vld [vmem:[%s1 + $0xe24] sm:$0xff]
  %v494 = vld [vmem:[%s1 + $0xe2c] sm:$0xff]
  %v495 = vld [vmem:[%s1 + $0xe34] sm:$0xff]
  %v496 = vld [vmem:[%s1 + $0xe3c] sm:$0xff]
  %v497 = vld [vmem:[%s1 + $0xe44] sm:$0xff]
  %v498 = vld [vmem:[%s1 + $0xe4c] sm:$0xff]
  %v499 = vld [vmem:[%s1 + $0xe54] sm:$0xff]
  %v500 = vld [vmem:[%s1 + $0xe5c] sm:$0xff]
  %v501 = vld [vmem:[%s1 + $0xe64] sm:$0xff]
  %v502 = vld [vmem:[%s1 + $0xe6c] sm:$0xf]
  %v503 = vld [vmem:[%s1 + $0xe70] sm:$0xff]
  %v504 = vld [vmem:[%s1 + $0xe78] sm:$0xff]
  %v505 = vld [vmem:[%s1 + $0xe80] sm:$0xff]
  %v506 = vld [vmem:[%s1 + $0xe88] sm:$0xff]
  %v507 = vld [vmem:[%s1 + $0xe90] sm:$0xff]
  %v508 = vld [vmem:[%s1 + $0xe98] sm:$0xff]
  %v509 = vld [vmem:[%s1 + $0xea0] sm:$0xff]
  %v510 = vld [vmem:[%s1 + $0xea8] sm:$0xff]
  %v511 = vld [vmem:[%s1 + $0xeb0] sm:$0xff]
  %v512 = vld [vmem:[%s1 + $0xeb8] sm:$0xff]
  %v513 = vld [vmem:[%s1 + $0xec0] sm:$0xf]
  %v514 = vld [vmem:[%s1 + $0xec4] sm:$0xff]
  %v515 = vld [vmem:[%s1 + $0xecc] sm:$0xff]
  %v516 = vld [vmem:[%s1 + $0xed4] sm:$0xff]
  %v517 = vld [vmem:[%s1 + $0xedc] sm:$0xff]
  %v518 = vld [vmem:[%s1 + $0xee4] sm:$0xff]
  %v519 = vld [vmem:[%s1 + $0xeec] sm:$0xff]
  %v520 = vld [vmem:[%s1 + $0xef4] sm:$0xff]
  %v521 = vld [vmem:[%s1 + $0xefc] sm:$0xff]
  %v522 = vld [vmem:[%s1 + $0xf04] sm:$0xff]
  %v523 = vld [vmem:[%s1 + $0xf0c] sm:$0xff]
  %v524 = vld [vmem:[%s1 + $0xf14] sm:$0xf]
  %v525 = vld [vmem:[%s1 + $0xf18] sm:$0xff]
  %v526 = vld [vmem:[%s1 + $0xf20] sm:$0xff]
  %v527 = vld [vmem:[%s1 + $0xf28] sm:$0xff]
  %v528 = vld [vmem:[%s1 + $0xf30] sm:$0xff]
  %v529 = vld [vmem:[%s1 + $0xf38] sm:$0xff]
  %v530 = vld [vmem:[%s1 + $0xf40] sm:$0xff]
  %v531 = vld [vmem:[%s1 + $0xf48] sm:$0xff]
  %v532 = vld [vmem:[%s1 + $0xf50] sm:$0xff]
  %v533 = vld [vmem:[%s1 + $0xf58] sm:$0xff]
  %v534 = vld [vmem:[%s1 + $0xf60] sm:$0xff]
  %v535 = vld [vmem:[%s1 + $0xf68] sm:$0xf]
  %v536 = vld [vmem:[%s1 + $0xf6c] sm:$0xff]
  %v537 = vld [vmem:[%s1 + $0xf74] sm:$0xff]
  %v538 = vld [vmem:[%s1 + $0xf7c] sm:$0xff]
  %v539 = vld [vmem:[%s1 + $0xf84] sm:$0xff]
  %v540 = vld [vmem:[%s1 + $0xf8c] sm:$0xff]
  %v541 = vld [vmem:[%s1 + $0xf94] sm:$0xff]
  %v542 = vld [vmem:[%s1 + $0xf9c] sm:$0xff]
  %v543 = vld [vmem:[%s1 + $0xfa4] sm:$0xff]
  %v544 = vld [vmem:[%s1 + $0xfac] sm:$0xff]
  %v545 = vld [vmem:[%s1 + $0xfb4] sm:$0xff]
  %v546 = vld [vmem:[%s1 + $0xfbc] sm:$0xf]
  %v547 = vld [vmem:[%s1 + $0xfc0] sm:$0xff]
  %v548 = vld [vmem:[%s1 + $0xfc8] sm:$0xff]
  %v549 = vld [vmem:[%s1 + $0xfd0] sm:$0xff]
  %v550 = vld [vmem:[%s1 + $0xfd8] sm:$0xff]
  %v551 = vld [vmem:[%s1 + $0xfe0] sm:$0xff]
  %v552 = vld [vmem:[%s1 + $0xfe8] sm:$0xff]
  %v553 = vld [vmem:[%s1 + $0xff0] sm:$0xff]
  %v554 = vld [vmem:[%s1 + $0xff8] sm:$0xff]
  %v555 = vld [vmem:[%s1 + $0x1000] sm:$0xff]
  %v556 = vld [vmem:[%s1 + $0x1008] sm:$0xff]
  %v557 = vld [vmem:[%s1 + $0x1010] sm:$0xf]
  %v558 = vld [vmem:[%s1 + $0x1014] sm:$0xff]
  %v559 = vld [vmem:[%s1 + $0x101c] sm:$0xff]
  %v560 = vld [vmem:[%s1 + $0x1024] sm:$0xff]
  %v561 = vld [vmem:[%s1 + $0x102c] sm:$0xff]
  %v562 = vld [vmem:[%s1 + $0x1034] sm:$0xff]
  %v563 = vld [vmem:[%s1 + $0x103c] sm:$0xff]
  %v564 = vld [vmem:[%s1 + $0x1044] sm:$0xff]
  %v565 = vld [vmem:[%s1 + $0x104c] sm:$0xff]
  %v566 = vld [vmem:[%s1 + $0x1054] sm:$0xff]
  %v567 = vld [vmem:[%s1 + $0x105c] sm:$0xff]
  %v568 = vld [vmem:[%s1 + $0x1064] sm:$0xf]
  %v569 = vld [vmem:[%s2] sm:$0x7]
  %571 = vset.pattern.permute.xlu0 0
  %572 = vperm.xlu0 %571, %v569
  %v573 = vpop.permute.xlu0 %572
  %v576 = vcombine.high %v18, %v18
  %v578 = vunpack.c.l.s4 1983009808
  %v579 = vunpack.c.0.s8 %v578
  %v580 = vlaneseq
  %v581 = vshrl.u32 %v580, 7
  %v582 = vsub.s32 %v579, %v581
  %v583 = vrot.slane %v18, %v582
  %v585 = vunpack.c.l.s4 1983009808
  %v586 = vunpack.c.0.s8 %v585
  %v587 = vlaneseq
  %v588 = vshrl.u32 %v587, 7
  %v589 = vsub.s32 %v586, %v588
  %v590 = vrot.slane %v576, %v589
  %v591 = vcombine.high %v583, %v583
  %v592 = vcombine.high %v590, %v590
  %v1146 = vunpack.c.l.b16 %v19
  %v1147 = vunpack.c.h.b16 %v19
  %v1148 = vunpack.c.l.b16 %v20
  %v1149 = vunpack.c.h.b16 %v20
  %v1150 = vunpack.c.l.b16 %v21
  %v1151 = vunpack.c.h.b16 %v21
  %v1152 = vunpack.c.l.b16 %v22
  %v1153 = vunpack.c.h.b16 %v22
  %v1154 = vunpack.c.l.b16 %v23
  %v1155 = vunpack.c.h.b16 %v23
  %v1156 = vunpack.c.l.b16 %v24
  %v1157 = vunpack.c.h.b16 %v24
  %v1158 = vunpack.c.l.b16 %v25
  %v1159 = vunpack.c.h.b16 %v25
  %v1160 = vunpack.c.l.b16 %v26
  %v1161 = vunpack.c.h.b16 %v26
  %v1162 = vunpack.c.l.b16 %v27
  %v1163 = vunpack.c.h.b16 %v27
  %v1164 = vunpack.c.l.b16 %v28
  %v1165 = vunpack.c.h.b16 %v28
  %v1166 = vunpack.c.l.b16 %v29
  %v1167 = vunpack.c.l.b16 %v30
  %v1168 = vunpack.c.h.b16 %v30
  %v1169 = vunpack.c.l.b16 %v31
  %v1170 = vunpack.c.h.b16 %v31
  %v1171 = vunpack.c.l.b16 %v32
  %v1172 = vunpack.c.h.b16 %v32
  %v1173 = vunpack.c.l.b16 %v33
  %v1174 = vunpack.c.h.b16 %v33
  %v1175 = vunpack.c.l.b16 %v34
  %v1176 = vunpack.c.h.b16 %v34
  %v1177 = vunpack.c.l.b16 %v35
  %v1178 = vunpack.c.h.b16 %v35
  %v1179 = vunpack.c.l.b16 %v36
  %v1180 = vunpack.c.h.b16 %v36
  %v1181 = vunpack.c.l.b16 %v37
  %v1182 = vunpack.c.h.b16 %v37
  %v1183 = vunpack.c.l.b16 %v38
  %v1184 = vunpack.c.h.b16 %v38
  %v1185 = vunpack.c.l.b16 %v39
  %v1186 = vunpack.c.h.b16 %v39
  %v1187 = vunpack.c.l.b16 %v40
  %v1188 = vunpack.c.l.b16 %v41
  %v1189 = vunpack.c.h.b16 %v41
  %v1190 = vunpack.c.l.b16 %v42
  %v1191 = vunpack.c.h.b16 %v42
  %v1192 = vunpack.c.l.b16 %v43
  %v1193 = vunpack.c.h.b16 %v43
  %v1194 = vunpack.c.l.b16 %v44
  %v1195 = vunpack.c.h.b16 %v44
  %v1196 = vunpack.c.l.b16 %v45
  %v1197 = vunpack.c.h.b16 %v45
  %v1198 = vunpack.c.l.b16 %v46
  %v1199 = vunpack.c.h.b16 %v46
  %v1200 = vunpack.c.l.b16 %v47
  %v1201 = vunpack.c.h.b16 %v47
  %v1202 = vunpack.c.l.b16 %v48
  %v1203 = vunpack.c.h.b16 %v48
  %v1204 = vunpack.c.l.b16 %v49
  %v1205 = vunpack.c.h.b16 %v49
  %v1206 = vunpack.c.l.b16 %v50
  %v1207 = vunpack.c.h.b16 %v50
  %v1208 = vunpack.c.l.b16 %v51
  %v1209 = vunpack.c.l.b16 %v52
  %v1210 = vunpack.c.h.b16 %v52
  %v1211 = vunpack.c.l.b16 %v53
  %v1212 = vunpack.c.h.b16 %v53
  %v1213 = vunpack.c.l.b16 %v54
  %v1214 = vunpack.c.h.b16 %v54
  %v1215 = vunpack.c.l.b16 %v55
  %v1216 = vunpack.c.h.b16 %v55
  %v1217 = vunpack.c.l.b16 %v56
  %v1218 = vunpack.c.h.b16 %v56
  %v1219 = vunpack.c.l.b16 %v57
  %v1220 = vunpack.c.h.b16 %v57
  %v1221 = vunpack.c.l.b16 %v58
  %v1222 = vunpack.c.h.b16 %v58
  %v1223 = vunpack.c.l.b16 %v59
  %v1224 = vunpack.c.h.b16 %v59
  %v1225 = vunpack.c.l.b16 %v60
  %v1226 = vunpack.c.h.b16 %v60
  %v1227 = vunpack.c.l.b16 %v61
  %v1228 = vunpack.c.h.b16 %v61
  %v1229 = vunpack.c.l.b16 %v62
  %v1230 = vunpack.c.l.b16 %v63
  %v1231 = vunpack.c.h.b16 %v63
  %v1232 = vunpack.c.l.b16 %v64
  %v1233 = vunpack.c.h.b16 %v64
  %v1234 = vunpack.c.l.b16 %v65
  %v1235 = vunpack.c.h.b16 %v65
  %v1236 = vunpack.c.l.b16 %v66
  %v1237 = vunpack.c.h.b16 %v66
  %v1238 = vunpack.c.l.b16 %v67
  %v1239 = vunpack.c.h.b16 %v67
  %v1240 = vunpack.c.l.b16 %v68
  %v1241 = vunpack.c.h.b16 %v68
  %v1242 = vunpack.c.l.b16 %v69
  %v1243 = vunpack.c.h.b16 %v69
  %v1244 = vunpack.c.l.b16 %v70
  %v1245 = vunpack.c.h.b16 %v70
  %v1246 = vunpack.c.l.b16 %v71
  %v1247 = vunpack.c.h.b16 %v71
  %v1248 = vunpack.c.l.b16 %v72
  %v1249 = vunpack.c.h.b16 %v72
  %v1250 = vunpack.c.l.b16 %v73
  %v1251 = vunpack.c.l.b16 %v74
  %v1252 = vunpack.c.h.b16 %v74
  %v1253 = vunpack.c.l.b16 %v75
  %v1254 = vunpack.c.h.b16 %v75
  %v1255 = vunpack.c.l.b16 %v76
  %v1256 = vunpack.c.h.b16 %v76
  %v1257 = vunpack.c.l.b16 %v77
  %v1258 = vunpack.c.h.b16 %v77
  %v1259 = vunpack.c.l.b16 %v78
  %v1260 = vunpack.c.h.b16 %v78
  %v1261 = vunpack.c.l.b16 %v79
  %v1262 = vunpack.c.h.b16 %v79
  %v1263 = vunpack.c.l.b16 %v80
  %v1264 = vunpack.c.h.b16 %v80
  %v1265 = vunpack.c.l.b16 %v81
  %v1266 = vunpack.c.h.b16 %v81
  %v1267 = vunpack.c.l.b16 %v82
  %v1268 = vunpack.c.h.b16 %v82
  %v1269 = vunpack.c.l.b16 %v83
  %v1270 = vunpack.c.h.b16 %v83
  %v1271 = vunpack.c.l.b16 %v84
  %v1272 = vunpack.c.l.b16 %v85
  %v1273 = vunpack.c.h.b16 %v85
  %v1274 = vunpack.c.l.b16 %v86
  %v1275 = vunpack.c.h.b16 %v86
  %v1276 = vunpack.c.l.b16 %v87
  %v1277 = vunpack.c.h.b16 %v87
  %v1278 = vunpack.c.l.b16 %v88
  %v1279 = vunpack.c.h.b16 %v88
  %v1280 = vunpack.c.l.b16 %v89
  %v1281 = vunpack.c.h.b16 %v89
  %v1282 = vunpack.c.l.b16 %v90
  %v1283 = vunpack.c.h.b16 %v90
  %v1284 = vunpack.c.l.b16 %v91
  %v1285 = vunpack.c.h.b16 %v91
  %v1286 = vunpack.c.l.b16 %v92
  %v1287 = vunpack.c.h.b16 %v92
  %v1288 = vunpack.c.l.b16 %v93
  %v1289 = vunpack.c.h.b16 %v93
  %v1290 = vunpack.c.l.b16 %v94
  %v1291 = vunpack.c.h.b16 %v94
  %v1292 = vunpack.c.l.b16 %v95
  %v1293 = vunpack.c.l.b16 %v96
  %v1294 = vunpack.c.h.b16 %v96
  %v1295 = vunpack.c.l.b16 %v97
  %v1296 = vunpack.c.h.b16 %v97
  %v1297 = vunpack.c.l.b16 %v98
  %v1298 = vunpack.c.h.b16 %v98
  %v1299 = vunpack.c.l.b16 %v99
  %v1300 = vunpack.c.h.b16 %v99
  %v1301 = vunpack.c.l.b16 %v100
  %v1302 = vunpack.c.h.b16 %v100
  %v1303 = vunpack.c.l.b16 %v101
  %v1304 = vunpack.c.h.b16 %v101
  %v1305 = vunpack.c.l.b16 %v102
  %v1306 = vunpack.c.h.b16 %v102
  %v1307 = vunpack.c.l.b16 %v103
  %v1308 = vunpack.c.h.b16 %v103
  %v1309 = vunpack.c.l.b16 %v104
  %v1310 = vunpack.c.h.b16 %v104
  %v1311 = vunpack.c.l.b16 %v105
  %v1312 = vunpack.c.h.b16 %v105
  %v1313 = vunpack.c.l.b16 %v106
  %v1314 = vunpack.c.l.b16 %v107
  %v1315 = vunpack.c.h.b16 %v107
  %v1316 = vunpack.c.l.b16 %v108
  %v1317 = vunpack.c.h.b16 %v108
  %v1318 = vunpack.c.l.b16 %v109
  %v1319 = vunpack.c.h.b16 %v109
  %v1320 = vunpack.c.l.b16 %v110
  %v1321 = vunpack.c.h.b16 %v110
  %v1322 = vunpack.c.l.b16 %v111
  %v1323 = vunpack.c.h.b16 %v111
  %v1324 = vunpack.c.l.b16 %v112
  %v1325 = vunpack.c.h.b16 %v112
  %v1326 = vunpack.c.l.b16 %v113
  %v1327 = vunpack.c.h.b16 %v113
  %v1328 = vunpack.c.l.b16 %v114
  %v1329 = vunpack.c.h.b16 %v114
  %v1330 = vunpack.c.l.b16 %v115
  %v1331 = vunpack.c.h.b16 %v115
  %v1332 = vunpack.c.l.b16 %v116
  %v1333 = vunpack.c.h.b16 %v116
  %v1334 = vunpack.c.l.b16 %v117
  %v1335 = vunpack.c.l.b16 %v118
  %v1336 = vunpack.c.h.b16 %v118
  %v1337 = vunpack.c.l.b16 %v119
  %v1338 = vunpack.c.h.b16 %v119
  %v1339 = vunpack.c.l.b16 %v120
  %v1340 = vunpack.c.h.b16 %v120
  %v1341 = vunpack.c.l.b16 %v121
  %v1342 = vunpack.c.h.b16 %v121
  %v1343 = vunpack.c.l.b16 %v122
  %v1344 = vunpack.c.h.b16 %v122
  %v1345 = vunpack.c.l.b16 %v123
  %v1346 = vunpack.c.h.b16 %v123
  %v1347 = vunpack.c.l.b16 %v124
  %v1348 = vunpack.c.h.b16 %v124
  %v1349 = vunpack.c.l.b16 %v125
  %v1350 = vunpack.c.h.b16 %v125
  %v1351 = vunpack.c.l.b16 %v126
  %v1352 = vunpack.c.h.b16 %v126
  %v1353 = vunpack.c.l.b16 %v127
  %v1354 = vunpack.c.h.b16 %v127
  %v1355 = vunpack.c.l.b16 %v128
  %v1356 = vunpack.c.l.b16 %v129
  %v1357 = vunpack.c.h.b16 %v129
  %v1358 = vunpack.c.l.b16 %v130
  %v1359 = vunpack.c.h.b16 %v130
  %v1360 = vunpack.c.l.b16 %v131
  %v1361 = vunpack.c.h.b16 %v131
  %v1362 = vunpack.c.l.b16 %v132
  %v1363 = vunpack.c.h.b16 %v132
  %v1364 = vunpack.c.l.b16 %v133
  %v1365 = vunpack.c.h.b16 %v133
  %v1366 = vunpack.c.l.b16 %v134
  %v1367 = vunpack.c.h.b16 %v134
  %v1368 = vunpack.c.l.b16 %v135
  %v1369 = vunpack.c.h.b16 %v135
  %v1370 = vunpack.c.l.b16 %v136
  %v1371 = vunpack.c.h.b16 %v136
  %v1372 = vunpack.c.l.b16 %v137
  %v1373 = vunpack.c.h.b16 %v137
  %v1374 = vunpack.c.l.b16 %v138
  %v1375 = vunpack.c.h.b16 %v138
  %v1376 = vunpack.c.l.b16 %v139
  %v1377 = vunpack.c.l.b16 %v140
  %v1378 = vunpack.c.h.b16 %v140
  %v1379 = vunpack.c.l.b16 %v141
  %v1380 = vunpack.c.h.b16 %v141
  %v1381 = vunpack.c.l.b16 %v142
  %v1382 = vunpack.c.h.b16 %v142
  %v1383 = vunpack.c.l.b16 %v143
  %v1384 = vunpack.c.h.b16 %v143
  %v1385 = vunpack.c.l.b16 %v144
  %v1386 = vunpack.c.h.b16 %v144
  %v1387 = vunpack.c.l.b16 %v145
  %v1388 = vunpack.c.h.b16 %v145
  %v1389 = vunpack.c.l.b16 %v146
  %v1390 = vunpack.c.h.b16 %v146
  %v1391 = vunpack.c.l.b16 %v147
  %v1392 = vunpack.c.h.b16 %v147
  %v1393 = vunpack.c.l.b16 %v148
  %v1394 = vunpack.c.h.b16 %v148
  %v1395 = vunpack.c.l.b16 %v149
  %v1396 = vunpack.c.h.b16 %v149
  %v1397 = vunpack.c.l.b16 %v150
  %v1398 = vunpack.c.l.b16 %v151
  %v1399 = vunpack.c.h.b16 %v151
  %v1400 = vunpack.c.l.b16 %v152
  %v1401 = vunpack.c.h.b16 %v152
  %v1402 = vunpack.c.l.b16 %v153
  %v1403 = vunpack.c.h.b16 %v153
  %v1404 = vunpack.c.l.b16 %v154
  %v1405 = vunpack.c.h.b16 %v154
  %v1406 = vunpack.c.l.b16 %v155
  %v1407 = vunpack.c.h.b16 %v155
  %v1408 = vunpack.c.l.b16 %v156
  %v1409 = vunpack.c.h.b16 %v156
  %v1410 = vunpack.c.l.b16 %v157
  %v1411 = vunpack.c.h.b16 %v157
  %v1412 = vunpack.c.l.b16 %v158
  %v1413 = vunpack.c.h.b16 %v158
  %v1414 = vunpack.c.l.b16 %v159
  %v1415 = vunpack.c.h.b16 %v159
  %v1416 = vunpack.c.l.b16 %v160
  %v1417 = vunpack.c.h.b16 %v160
  %v1418 = vunpack.c.l.b16 %v161
  %v1419 = vunpack.c.l.b16 %v162
  %v1420 = vunpack.c.h.b16 %v162
  %v1421 = vunpack.c.l.b16 %v163
  %v1422 = vunpack.c.h.b16 %v163
  %v1423 = vunpack.c.l.b16 %v164
  %v1424 = vunpack.c.h.b16 %v164
  %v1425 = vunpack.c.l.b16 %v165
  %v1426 = vunpack.c.h.b16 %v165
  %v1427 = vunpack.c.l.b16 %v166
  %v1428 = vunpack.c.h.b16 %v166
  %v1429 = vunpack.c.l.b16 %v167
  %v1430 = vunpack.c.h.b16 %v167
  %v1431 = vunpack.c.l.b16 %v168
  %v1432 = vunpack.c.h.b16 %v168
  %v1433 = vunpack.c.l.b16 %v169
  %v1434 = vunpack.c.h.b16 %v169
  %v1435 = vunpack.c.l.b16 %v170
  %v1436 = vunpack.c.h.b16 %v170
  %v1437 = vunpack.c.l.b16 %v171
  %v1438 = vunpack.c.h.b16 %v171
  %v1439 = vunpack.c.l.b16 %v172
  %v1440 = vunpack.c.l.b16 %v173
  %v1441 = vunpack.c.h.b16 %v173
  %v1442 = vunpack.c.l.b16 %v174
  %v1443 = vunpack.c.h.b16 %v174
  %v1444 = vunpack.c.l.b16 %v175
  %v1445 = vunpack.c.h.b16 %v175
  %v1446 = vunpack.c.l.b16 %v176
  %v1447 = vunpack.c.h.b16 %v176
  %v1448 = vunpack.c.l.b16 %v177
  %v1449 = vunpack.c.h.b16 %v177
  %v1450 = vunpack.c.l.b16 %v178
  %v1451 = vunpack.c.h.b16 %v178
  %v1452 = vunpack.c.l.b16 %v179
  %v1453 = vunpack.c.h.b16 %v179
  %v1454 = vunpack.c.l.b16 %v180
  %v1455 = vunpack.c.h.b16 %v180
  %v1456 = vunpack.c.l.b16 %v181
  %v1457 = vunpack.c.h.b16 %v181
  %v1458 = vunpack.c.l.b16 %v182
  %v1459 = vunpack.c.h.b16 %v182
  %v1460 = vunpack.c.l.b16 %v183
  %v1461 = vunpack.c.l.b16 %v184
  %v1462 = vunpack.c.h.b16 %v184
  %v1463 = vunpack.c.l.b16 %v185
  %v1464 = vunpack.c.h.b16 %v185
  %v1465 = vunpack.c.l.b16 %v186
  %v1466 = vunpack.c.h.b16 %v186
  %v1467 = vunpack.c.l.b16 %v187
  %v1468 = vunpack.c.h.b16 %v187
  %v1469 = vunpack.c.l.b16 %v188
  %v1470 = vunpack.c.h.b16 %v188
  %v1471 = vunpack.c.l.b16 %v189
  %v1472 = vunpack.c.h.b16 %v189
  %v1473 = vunpack.c.l.b16 %v190
  %v1474 = vunpack.c.h.b16 %v190
  %v1475 = vunpack.c.l.b16 %v191
  %v1476 = vunpack.c.h.b16 %v191
  %v1477 = vunpack.c.l.b16 %v192
  %v1478 = vunpack.c.h.b16 %v192
  %v1479 = vunpack.c.l.b16 %v193
  %v1480 = vunpack.c.h.b16 %v193
  %v1481 = vunpack.c.l.b16 %v194
  %v1482 = vunpack.c.l.b16 %v195
  %v1483 = vunpack.c.h.b16 %v195
  %v1484 = vunpack.c.l.b16 %v196
  %v1485 = vunpack.c.h.b16 %v196
  %v1486 = vunpack.c.l.b16 %v197
  %v1487 = vunpack.c.h.b16 %v197
  %v1488 = vunpack.c.l.b16 %v198
  %v1489 = vunpack.c.h.b16 %v198
  %v1490 = vunpack.c.l.b16 %v199
  %v1491 = vunpack.c.h.b16 %v199
  %v1492 = vunpack.c.l.b16 %v200
  %v1493 = vunpack.c.h.b16 %v200
  %v1494 = vunpack.c.l.b16 %v201
  %v1495 = vunpack.c.h.b16 %v201
  %v1496 = vunpack.c.l.b16 %v202
  %v1497 = vunpack.c.h.b16 %v202
  %v1498 = vunpack.c.l.b16 %v203
  %v1499 = vunpack.c.h.b16 %v203
  %v1500 = vunpack.c.l.b16 %v204
  %v1501 = vunpack.c.h.b16 %v204
  %v1502 = vunpack.c.l.b16 %v205
  %v1503 = vunpack.c.l.b16 %v206
  %v1504 = vunpack.c.h.b16 %v206
  %v1505 = vunpack.c.l.b16 %v207
  %v1506 = vunpack.c.h.b16 %v207
  %v1507 = vunpack.c.l.b16 %v208
  %v1508 = vunpack.c.h.b16 %v208
  %v1509 = vunpack.c.l.b16 %v209
  %v1510 = vunpack.c.h.b16 %v209
  %v1511 = vunpack.c.l.b16 %v210
  %v1512 = vunpack.c.h.b16 %v210
  %v1513 = vunpack.c.l.b16 %v211
  %v1514 = vunpack.c.h.b16 %v211
  %v1515 = vunpack.c.l.b16 %v212
  %v1516 = vunpack.c.h.b16 %v212
  %v1517 = vunpack.c.l.b16 %v213
  %v1518 = vunpack.c.h.b16 %v213
  %v1519 = vunpack.c.l.b16 %v214
  %v1520 = vunpack.c.h.b16 %v214
  %v1521 = vunpack.c.l.b16 %v215
  %v1522 = vunpack.c.h.b16 %v215
  %v1523 = vunpack.c.l.b16 %v216
  %v1524 = vunpack.c.l.b16 %v217
  %v1525 = vunpack.c.h.b16 %v217
  %v1526 = vunpack.c.l.b16 %v218
  %v1527 = vunpack.c.h.b16 %v218
  %v1528 = vunpack.c.l.b16 %v219
  %v1529 = vunpack.c.h.b16 %v219
  %v1530 = vunpack.c.l.b16 %v220
  %v1531 = vunpack.c.h.b16 %v220
  %v1532 = vunpack.c.l.b16 %v221
  %v1533 = vunpack.c.h.b16 %v221
  %v1534 = vunpack.c.l.b16 %v222
  %v1535 = vunpack.c.h.b16 %v222
  %v1536 = vunpack.c.l.b16 %v223
  %v1537 = vunpack.c.h.b16 %v223
  %v1538 = vunpack.c.l.b16 %v224
  %v1539 = vunpack.c.h.b16 %v224
  %v1540 = vunpack.c.l.b16 %v225
  %v1541 = vunpack.c.h.b16 %v225
  %v1542 = vunpack.c.l.b16 %v226
  %v1543 = vunpack.c.h.b16 %v226
  %v1544 = vunpack.c.l.b16 %v227
  %v1545 = vunpack.c.l.b16 %v228
  %v1546 = vunpack.c.h.b16 %v228
  %v1547 = vunpack.c.l.b16 %v229
  %v1548 = vunpack.c.h.b16 %v229
  %v1549 = vunpack.c.l.b16 %v230
  %v1550 = vunpack.c.h.b16 %v230
  %v1551 = vunpack.c.l.b16 %v231
  %v1552 = vunpack.c.h.b16 %v231
  %v1553 = vunpack.c.l.b16 %v232
  %v1554 = vunpack.c.h.b16 %v232
  %v1555 = vunpack.c.l.b16 %v233
  %v1556 = vunpack.c.h.b16 %v233
  %v1557 = vunpack.c.l.b16 %v234
  %v1558 = vunpack.c.h.b16 %v234
  %v1559 = vunpack.c.l.b16 %v235
  %v1560 = vunpack.c.h.b16 %v235
  %v1561 = vunpack.c.l.b16 %v236
  %v1562 = vunpack.c.h.b16 %v236
  %v1563 = vunpack.c.l.b16 %v237
  %v1564 = vunpack.c.h.b16 %v237
  %v1565 = vunpack.c.l.b16 %v238
  %v1566 = vunpack.c.l.b16 %v239
  %v1567 = vunpack.c.h.b16 %v239
  %v1568 = vunpack.c.l.b16 %v240
  %v1569 = vunpack.c.h.b16 %v240
  %v1570 = vunpack.c.l.b16 %v241
  %v1571 = vunpack.c.h.b16 %v241
  %v1572 = vunpack.c.l.b16 %v242
  %v1573 = vunpack.c.h.b16 %v242
  %v1574 = vunpack.c.l.b16 %v243
  %v1575 = vunpack.c.h.b16 %v243
  %v1576 = vunpack.c.l.b16 %v244
  %v1577 = vunpack.c.h.b16 %v244
  %v1578 = vunpack.c.l.b16 %v245
  %v1579 = vunpack.c.h.b16 %v245
  %v1580 = vunpack.c.l.b16 %v246
  %v1581 = vunpack.c.h.b16 %v246
  %v1582 = vunpack.c.l.b16 %v247
  %v1583 = vunpack.c.h.b16 %v247
  %v1584 = vunpack.c.l.b16 %v248
  %v1585 = vunpack.c.h.b16 %v248
  %v1586 = vunpack.c.l.b16 %v249
  %v1587 = vunpack.c.l.b16 %v250
  %v1588 = vunpack.c.h.b16 %v250
  %v1589 = vunpack.c.l.b16 %v251
  %v1590 = vunpack.c.h.b16 %v251
  %v1591 = vunpack.c.l.b16 %v252
  %v1592 = vunpack.c.h.b16 %v252
  %v1593 = vunpack.c.l.b16 %v253
  %v1594 = vunpack.c.h.b16 %v253
  %v1595 = vunpack.c.l.b16 %v254
  %v1596 = vunpack.c.h.b16 %v254
  %v1597 = vunpack.c.l.b16 %v255
  %v1598 = vunpack.c.h.b16 %v255
  %v1599 = vunpack.c.l.b16 %v256
  %v1600 = vunpack.c.h.b16 %v256
  %v1601 = vunpack.c.l.b16 %v257
  %v1602 = vunpack.c.h.b16 %v257
  %v1603 = vunpack.c.l.b16 %v258
  %v1604 = vunpack.c.h.b16 %v258
  %v1605 = vunpack.c.l.b16 %v259
  %v1606 = vunpack.c.h.b16 %v259
  %v1607 = vunpack.c.l.b16 %v260
  %v1608 = vunpack.c.l.b16 %v261
  %v1609 = vunpack.c.h.b16 %v261
  %v1610 = vunpack.c.l.b16 %v262
  %v1611 = vunpack.c.h.b16 %v262
  %v1612 = vunpack.c.l.b16 %v263
  %v1613 = vunpack.c.h.b16 %v263
  %v1614 = vunpack.c.l.b16 %v264
  %v1615 = vunpack.c.h.b16 %v264
  %v1616 = vunpack.c.l.b16 %v265
  %v1617 = vunpack.c.h.b16 %v265
  %v1618 = vunpack.c.l.b16 %v266
  %v1619 = vunpack.c.h.b16 %v266
  %v1620 = vunpack.c.l.b16 %v267
  %v1621 = vunpack.c.h.b16 %v267
  %v1622 = vunpack.c.l.b16 %v268
  %v1623 = vunpack.c.h.b16 %v268
  %v1624 = vunpack.c.l.b16 %v269
  %v1625 = vunpack.c.h.b16 %v269
  %v1626 = vunpack.c.l.b16 %v270
  %v1627 = vunpack.c.h.b16 %v270
  %v1628 = vunpack.c.l.b16 %v271
  %v1629 = vunpack.c.l.b16 %v272
  %v1630 = vunpack.c.h.b16 %v272
  %v1631 = vunpack.c.l.b16 %v273
  %v1632 = vunpack.c.h.b16 %v273
  %v1633 = vunpack.c.l.b16 %v274
  %v1634 = vunpack.c.h.b16 %v274
  %v1635 = vunpack.c.l.b16 %v275
  %v1636 = vunpack.c.h.b16 %v275
  %v1637 = vunpack.c.l.b16 %v276
  %v1638 = vunpack.c.h.b16 %v276
  %v1639 = vunpack.c.l.b16 %v277
  %v1640 = vunpack.c.h.b16 %v277
  %v1641 = vunpack.c.l.b16 %v278
  %v1642 = vunpack.c.h.b16 %v278
  %v1643 = vunpack.c.l.b16 %v279
  %v1644 = vunpack.c.h.b16 %v279
  %v1645 = vunpack.c.l.b16 %v280
  %v1646 = vunpack.c.h.b16 %v280
  %v1647 = vunpack.c.l.b16 %v281
  %v1648 = vunpack.c.h.b16 %v281
  %v1649 = vunpack.c.l.b16 %v282
  %v1650 = vunpack.c.l.b16 %v283
  %v1651 = vunpack.c.h.b16 %v283
  %v1652 = vunpack.c.l.b16 %v284
  %v1653 = vunpack.c.h.b16 %v284
  %v1654 = vunpack.c.l.b16 %v285
  %v1655 = vunpack.c.h.b16 %v285
  %v1656 = vunpack.c.l.b16 %v286
  %v1657 = vunpack.c.h.b16 %v286
  %v1658 = vunpack.c.l.b16 %v287
  %v1659 = vunpack.c.h.b16 %v287
  %v1660 = vunpack.c.l.b16 %v288
  %v1661 = vunpack.c.h.b16 %v288
  %v1662 = vunpack.c.l.b16 %v289
  %v1663 = vunpack.c.h.b16 %v289
  %v1664 = vunpack.c.l.b16 %v290
  %v1665 = vunpack.c.h.b16 %v290
  %v1666 = vunpack.c.l.b16 %v291
  %v1667 = vunpack.c.h.b16 %v291
  %v1668 = vunpack.c.l.b16 %v292
  %v1669 = vunpack.c.h.b16 %v292
  %v1670 = vunpack.c.l.b16 %v293
  %v1671 = vunpack.c.l.b16 %v294
  %v1672 = vunpack.c.h.b16 %v294
  %v1673 = vunpack.c.l.b16 %v295
  %v1674 = vunpack.c.h.b16 %v295
  %v1675 = vunpack.c.l.b16 %v296
  %v1676 = vunpack.c.h.b16 %v296
  %v1677 = vunpack.c.l.b16 %v297
  %v1678 = vunpack.c.h.b16 %v297
  %v1679 = vunpack.c.l.b16 %v298
  %v1680 = vunpack.c.h.b16 %v298
  %v1681 = vunpack.c.l.b16 %v299
  %v1682 = vunpack.c.h.b16 %v299
  %v1683 = vunpack.c.l.b16 %v300
  %v1684 = vunpack.c.h.b16 %v300
  %v1685 = vunpack.c.l.b16 %v301
  %v1686 = vunpack.c.h.b16 %v301
  %v1687 = vunpack.c.l.b16 %v302
  %v1688 = vunpack.c.h.b16 %v302
  %v1689 = vunpack.c.l.b16 %v303
  %v1690 = vunpack.c.h.b16 %v303
  %v1691 = vunpack.c.l.b16 %v304
  %v1692 = vunpack.c.l.b16 %v305
  %v1693 = vunpack.c.h.b16 %v305
  %v1694 = vunpack.c.l.b16 %v306
  %v1695 = vunpack.c.h.b16 %v306
  %v1696 = vunpack.c.l.b16 %v307
  %v1697 = vunpack.c.h.b16 %v307
  %v1698 = vunpack.c.l.b16 %v308
  %v1699 = vunpack.c.h.b16 %v308
  %v1700 = vunpack.c.l.b16 %v309
  %v1701 = vunpack.c.h.b16 %v309
  %v1702 = vunpack.c.l.b16 %v310
  %v1703 = vunpack.c.h.b16 %v310
  %v1704 = vunpack.c.l.b16 %v311
  %v1705 = vunpack.c.h.b16 %v311
  %v1706 = vunpack.c.l.b16 %v312
  %v1707 = vunpack.c.h.b16 %v312
  %v1708 = vunpack.c.l.b16 %v313
  %v1709 = vunpack.c.h.b16 %v313
  %v1710 = vunpack.c.l.b16 %v314
  %v1711 = vunpack.c.h.b16 %v314
  %v1712 = vunpack.c.l.b16 %v315
  %v1713 = vunpack.c.l.b16 %v316
  %v1714 = vunpack.c.h.b16 %v316
  %v1715 = vunpack.c.l.b16 %v317
  %v1716 = vunpack.c.h.b16 %v317
  %v1717 = vunpack.c.l.b16 %v318
  %v1718 = vunpack.c.h.b16 %v318
  %v1719 = vunpack.c.l.b16 %v319
  %v1720 = vunpack.c.h.b16 %v319
  %v1721 = vunpack.c.l.b16 %v320
  %v1722 = vunpack.c.h.b16 %v320
  %v1723 = vunpack.c.l.b16 %v321
  %v1724 = vunpack.c.h.b16 %v321
  %v1725 = vunpack.c.l.b16 %v322
  %v1726 = vunpack.c.h.b16 %v322
  %v1727 = vunpack.c.l.b16 %v323
  %v1728 = vunpack.c.h.b16 %v323
  %v1729 = vunpack.c.l.b16 %v324
  %v1730 = vunpack.c.h.b16 %v324
  %v1731 = vunpack.c.l.b16 %v325
  %v1732 = vunpack.c.h.b16 %v325
  %v1733 = vunpack.c.l.b16 %v326
  %v1734 = vunpack.c.l.b16 %v327
  %v1735 = vunpack.c.h.b16 %v327
  %v1736 = vunpack.c.l.b16 %v328
  %v1737 = vunpack.c.h.b16 %v328
  %v1738 = vunpack.c.l.b16 %v329
  %v1739 = vunpack.c.h.b16 %v329
  %v1740 = vunpack.c.l.b16 %v330
  %v1741 = vunpack.c.h.b16 %v330
  %v1742 = vunpack.c.l.b16 %v331
  %v1743 = vunpack.c.h.b16 %v331
  %v1744 = vunpack.c.l.b16 %v332
  %v1745 = vunpack.c.h.b16 %v332
  %v1746 = vunpack.c.l.b16 %v333
  %v1747 = vunpack.c.h.b16 %v333
  %v1748 = vunpack.c.l.b16 %v334
  %v1749 = vunpack.c.h.b16 %v334
  %v1750 = vunpack.c.l.b16 %v335
  %v1751 = vunpack.c.h.b16 %v335
  %v1752 = vunpack.c.l.b16 %v336
  %v1753 = vunpack.c.h.b16 %v336
  %v1754 = vunpack.c.l.b16 %v337
  %v1755 = vunpack.c.l.b16 %v338
  %v1756 = vunpack.c.h.b16 %v338
  %v1757 = vunpack.c.l.b16 %v339
  %v1758 = vunpack.c.h.b16 %v339
  %v1759 = vunpack.c.l.b16 %v340
  %v1760 = vunpack.c.h.b16 %v340
  %v1761 = vunpack.c.l.b16 %v341
  %v1762 = vunpack.c.h.b16 %v341
  %v1763 = vunpack.c.l.b16 %v342
  %v1764 = vunpack.c.h.b16 %v342
  %v1765 = vunpack.c.l.b16 %v343
  %v1766 = vunpack.c.h.b16 %v343
  %v1767 = vunpack.c.l.b16 %v344
  %v1768 = vunpack.c.h.b16 %v344
  %v1769 = vunpack.c.l.b16 %v345
  %v1770 = vunpack.c.h.b16 %v345
  %v1771 = vunpack.c.l.b16 %v346
  %v1772 = vunpack.c.h.b16 %v346
  %v1773 = vunpack.c.l.b16 %v347
  %v1774 = vunpack.c.h.b16 %v347
  %v1775 = vunpack.c.l.b16 %v348
  %v1776 = vunpack.c.l.b16 %v349
  %v1777 = vunpack.c.h.b16 %v349
  %v1778 = vunpack.c.l.b16 %v350
  %v1779 = vunpack.c.h.b16 %v350
  %v1780 = vunpack.c.l.b16 %v351
  %v1781 = vunpack.c.h.b16 %v351
  %v1782 = vunpack.c.l.b16 %v352
  %v1783 = vunpack.c.h.b16 %v352
  %v1784 = vunpack.c.l.b16 %v353
  %v1785 = vunpack.c.h.b16 %v353
  %v1786 = vunpack.c.l.b16 %v354
  %v1787 = vunpack.c.h.b16 %v354
  %v1788 = vunpack.c.l.b16 %v355
  %v1789 = vunpack.c.h.b16 %v355
  %v1790 = vunpack.c.l.b16 %v356
  %v1791 = vunpack.c.h.b16 %v356
  %v1792 = vunpack.c.l.b16 %v357
  %v1793 = vunpack.c.h.b16 %v357
  %v1794 = vunpack.c.l.b16 %v358
  %v1795 = vunpack.c.h.b16 %v358
  %v1796 = vunpack.c.l.b16 %v359
  %v1797 = vunpack.c.l.b16 %v360
  %v1798 = vunpack.c.h.b16 %v360
  %v1799 = vunpack.c.l.b16 %v361
  %v1800 = vunpack.c.h.b16 %v361
  %v1801 = vunpack.c.l.b16 %v362
  %v1802 = vunpack.c.h.b16 %v362
  %v1803 = vunpack.c.l.b16 %v363
  %v1804 = vunpack.c.h.b16 %v363
  %v1805 = vunpack.c.l.b16 %v364
  %v1806 = vunpack.c.h.b16 %v364
  %v1807 = vunpack.c.l.b16 %v365
  %v1808 = vunpack.c.h.b16 %v365
  %v1809 = vunpack.c.l.b16 %v366
  %v1810 = vunpack.c.h.b16 %v366
  %v1811 = vunpack.c.l.b16 %v367
  %v1812 = vunpack.c.h.b16 %v367
  %v1813 = vunpack.c.l.b16 %v368
  %v1814 = vunpack.c.h.b16 %v368
  %v1815 = vunpack.c.l.b16 %v369
  %v1816 = vunpack.c.h.b16 %v369
  %v1817 = vunpack.c.l.b16 %v370
  %v1818 = vunpack.c.l.b16 %v371
  %v1819 = vunpack.c.h.b16 %v371
  %v1820 = vunpack.c.l.b16 %v372
  %v1821 = vunpack.c.h.b16 %v372
  %v1822 = vunpack.c.l.b16 %v373
  %v1823 = vunpack.c.h.b16 %v373
  %v1824 = vunpack.c.l.b16 %v374
  %v1825 = vunpack.c.h.b16 %v374
  %v1826 = vunpack.c.l.b16 %v375
  %v1827 = vunpack.c.h.b16 %v375
  %v1828 = vunpack.c.l.b16 %v376
  %v1829 = vunpack.c.h.b16 %v376
  %v1830 = vunpack.c.l.b16 %v377
  %v1831 = vunpack.c.h.b16 %v377
  %v1832 = vunpack.c.l.b16 %v378
  %v1833 = vunpack.c.h.b16 %v378
  %v1834 = vunpack.c.l.b16 %v379
  %v1835 = vunpack.c.h.b16 %v379
  %v1836 = vunpack.c.l.b16 %v380
  %v1837 = vunpack.c.h.b16 %v380
  %v1838 = vunpack.c.l.b16 %v381
  %v1839 = vunpack.c.l.b16 %v382
  %v1840 = vunpack.c.h.b16 %v382
  %v1841 = vunpack.c.l.b16 %v383
  %v1842 = vunpack.c.h.b16 %v383
  %v1843 = vunpack.c.l.b16 %v384
  %v1844 = vunpack.c.h.b16 %v384
  %v1845 = vunpack.c.l.b16 %v385
  %v1846 = vunpack.c.h.b16 %v385
  %v1847 = vunpack.c.l.b16 %v386
  %v1848 = vunpack.c.h.b16 %v386
  %v1849 = vunpack.c.l.b16 %v387
  %v1850 = vunpack.c.h.b16 %v387
  %v1851 = vunpack.c.l.b16 %v388
  %v1852 = vunpack.c.h.b16 %v388
  %v1853 = vunpack.c.l.b16 %v389
  %v1854 = vunpack.c.h.b16 %v389
  %v1855 = vunpack.c.l.b16 %v390
  %v1856 = vunpack.c.h.b16 %v390
  %v1857 = vunpack.c.l.b16 %v391
  %v1858 = vunpack.c.h.b16 %v391
  %v1859 = vunpack.c.l.b16 %v392
  %v1860 = vunpack.c.l.b16 %v393
  %v1861 = vunpack.c.h.b16 %v393
  %v1862 = vunpack.c.l.b16 %v394
  %v1863 = vunpack.c.h.b16 %v394
  %v1864 = vunpack.c.l.b16 %v395
  %v1865 = vunpack.c.h.b16 %v395
  %v1866 = vunpack.c.l.b16 %v396
  %v1867 = vunpack.c.h.b16 %v396
  %v1868 = vunpack.c.l.b16 %v397
  %v1869 = vunpack.c.h.b16 %v397
  %v1870 = vunpack.c.l.b16 %v398
  %v1871 = vunpack.c.h.b16 %v398
  %v1872 = vunpack.c.l.b16 %v399
  %v1873 = vunpack.c.h.b16 %v399
  %v1874 = vunpack.c.l.b16 %v400
  %v1875 = vunpack.c.h.b16 %v400
  %v1876 = vunpack.c.l.b16 %v401
  %v1877 = vunpack.c.h.b16 %v401
  %v1878 = vunpack.c.l.b16 %v402
  %v1879 = vunpack.c.h.b16 %v402
  %v1880 = vunpack.c.l.b16 %v403
  %v1881 = vunpack.c.l.b16 %v404
  %v1882 = vunpack.c.h.b16 %v404
  %v1883 = vunpack.c.l.b16 %v405
  %v1884 = vunpack.c.h.b16 %v405
  %v1885 = vunpack.c.l.b16 %v406
  %v1886 = vunpack.c.h.b16 %v406
  %v1887 = vunpack.c.l.b16 %v407
  %v1888 = vunpack.c.h.b16 %v407
  %v1889 = vunpack.c.l.b16 %v408
  %v1890 = vunpack.c.h.b16 %v408
  %v1891 = vunpack.c.l.b16 %v409
  %v1892 = vunpack.c.h.b16 %v409
  %v1893 = vunpack.c.l.b16 %v410
  %v1894 = vunpack.c.h.b16 %v410
  %v1895 = vunpack.c.l.b16 %v411
  %v1896 = vunpack.c.h.b16 %v411
  %v1897 = vunpack.c.l.b16 %v412
  %v1898 = vunpack.c.h.b16 %v412
  %v1899 = vunpack.c.l.b16 %v413
  %v1900 = vunpack.c.h.b16 %v413
  %v1901 = vunpack.c.l.b16 %v414
  %v1902 = vunpack.c.l.b16 %v415
  %v1903 = vunpack.c.h.b16 %v415
  %v1904 = vunpack.c.l.b16 %v416
  %v1905 = vunpack.c.h.b16 %v416
  %v1906 = vunpack.c.l.b16 %v417
  %v1907 = vunpack.c.h.b16 %v417
  %v1908 = vunpack.c.l.b16 %v418
  %v1909 = vunpack.c.h.b16 %v418
  %v1910 = vunpack.c.l.b16 %v419
  %v1911 = vunpack.c.h.b16 %v419
  %v1912 = vunpack.c.l.b16 %v420
  %v1913 = vunpack.c.h.b16 %v420
  %v1914 = vunpack.c.l.b16 %v421
  %v1915 = vunpack.c.h.b16 %v421
  %v1916 = vunpack.c.l.b16 %v422
  %v1917 = vunpack.c.h.b16 %v422
  %v1918 = vunpack.c.l.b16 %v423
  %v1919 = vunpack.c.h.b16 %v423
  %v1920 = vunpack.c.l.b16 %v424
  %v1921 = vunpack.c.h.b16 %v424
  %v1922 = vunpack.c.l.b16 %v425
  %v1923 = vunpack.c.l.b16 %v426
  %v1924 = vunpack.c.h.b16 %v426
  %v1925 = vunpack.c.l.b16 %v427
  %v1926 = vunpack.c.h.b16 %v427
  %v1927 = vunpack.c.l.b16 %v428
  %v1928 = vunpack.c.h.b16 %v428
  %v1929 = vunpack.c.l.b16 %v429
  %v1930 = vunpack.c.h.b16 %v429
  %v1931 = vunpack.c.l.b16 %v430
  %v1932 = vunpack.c.h.b16 %v430
  %v1933 = vunpack.c.l.b16 %v431
  %v1934 = vunpack.c.h.b16 %v431
  %v1935 = vunpack.c.l.b16 %v432
  %v1936 = vunpack.c.h.b16 %v432
  %v1937 = vunpack.c.l.b16 %v433
  %v1938 = vunpack.c.h.b16 %v433
  %v1939 = vunpack.c.l.b16 %v434
  %v1940 = vunpack.c.h.b16 %v434
  %v1941 = vunpack.c.l.b16 %v435
  %v1942 = vunpack.c.h.b16 %v435
  %v1943 = vunpack.c.l.b16 %v436
  %v1944 = vunpack.c.l.b16 %v437
  %v1945 = vunpack.c.h.b16 %v437
  %v1946 = vunpack.c.l.b16 %v438
  %v1947 = vunpack.c.h.b16 %v438
  %v1948 = vunpack.c.l.b16 %v439
  %v1949 = vunpack.c.h.b16 %v439
  %v1950 = vunpack.c.l.b16 %v440
  %v1951 = vunpack.c.h.b16 %v440
  %v1952 = vunpack.c.l.b16 %v441
  %v1953 = vunpack.c.h.b16 %v441
  %v1954 = vunpack.c.l.b16 %v442
  %v1955 = vunpack.c.h.b16 %v442
  %v1956 = vunpack.c.l.b16 %v443
  %v1957 = vunpack.c.h.b16 %v443
  %v1958 = vunpack.c.l.b16 %v444
  %v1959 = vunpack.c.h.b16 %v444
  %v1960 = vunpack.c.l.b16 %v445
  %v1961 = vunpack.c.h.b16 %v445
  %v1962 = vunpack.c.l.b16 %v446
  %v1963 = vunpack.c.h.b16 %v446
  %v1964 = vunpack.c.l.b16 %v447
  %v1965 = vunpack.c.l.b16 %v448
  %v1966 = vunpack.c.h.b16 %v448
  %v1967 = vunpack.c.l.b16 %v449
  %v1968 = vunpack.c.h.b16 %v449
  %v1969 = vunpack.c.l.b16 %v450
  %v1970 = vunpack.c.h.b16 %v450
  %v1971 = vunpack.c.l.b16 %v451
  %v1972 = vunpack.c.h.b16 %v451
  %v1973 = vunpack.c.l.b16 %v452
  %v1974 = vunpack.c.h.b16 %v452
  %v1975 = vunpack.c.l.b16 %v453
  %v1976 = vunpack.c.h.b16 %v453
  %v1977 = vunpack.c.l.b16 %v454
  %v1978 = vunpack.c.h.b16 %v454
  %v1979 = vunpack.c.l.b16 %v455
  %v1980 = vunpack.c.h.b16 %v455
  %v1981 = vunpack.c.l.b16 %v456
  %v1982 = vunpack.c.h.b16 %v456
  %v1983 = vunpack.c.l.b16 %v457
  %v1984 = vunpack.c.h.b16 %v457
  %v1985 = vunpack.c.l.b16 %v458
  %v1986 = vunpack.c.l.b16 %v459
  %v1987 = vunpack.c.h.b16 %v459
  %v1988 = vunpack.c.l.b16 %v460
  %v1989 = vunpack.c.h.b16 %v460
  %v1990 = vunpack.c.l.b16 %v461
  %v1991 = vunpack.c.h.b16 %v461
  %v1992 = vunpack.c.l.b16 %v462
  %v1993 = vunpack.c.h.b16 %v462
  %v1994 = vunpack.c.l.b16 %v463
  %v1995 = vunpack.c.h.b16 %v463
  %v1996 = vunpack.c.l.b16 %v464
  %v1997 = vunpack.c.h.b16 %v464
  %v1998 = vunpack.c.l.b16 %v465
  %v1999 = vunpack.c.h.b16 %v465
  %v2000 = vunpack.c.l.b16 %v466
  %v2001 = vunpack.c.h.b16 %v466
  %v2002 = vunpack.c.l.b16 %v467
  %v2003 = vunpack.c.h.b16 %v467
  %v2004 = vunpack.c.l.b16 %v468
  %v2005 = vunpack.c.h.b16 %v468
  %v2006 = vunpack.c.l.b16 %v469
  %v2007 = vunpack.c.l.b16 %v470
  %v2008 = vunpack.c.h.b16 %v470
  %v2009 = vunpack.c.l.b16 %v471
  %v2010 = vunpack.c.h.b16 %v471
  %v2011 = vunpack.c.l.b16 %v472
  %v2012 = vunpack.c.h.b16 %v472
  %v2013 = vunpack.c.l.b16 %v473
  %v2014 = vunpack.c.h.b16 %v473
  %v2015 = vunpack.c.l.b16 %v474
  %v2016 = vunpack.c.h.b16 %v474
  %v2017 = vunpack.c.l.b16 %v475
  %v2018 = vunpack.c.h.b16 %v475
  %v2019 = vunpack.c.l.b16 %v476
  %v2020 = vunpack.c.h.b16 %v476
  %v2021 = vunpack.c.l.b16 %v477
  %v2022 = vunpack.c.h.b16 %v477
  %v2023 = vunpack.c.l.b16 %v478
  %v2024 = vunpack.c.h.b16 %v478
  %v2025 = vunpack.c.l.b16 %v479
  %v2026 = vunpack.c.h.b16 %v479
  %v2027 = vunpack.c.l.b16 %v480
  %v2028 = vunpack.c.l.b16 %v481
  %v2029 = vunpack.c.h.b16 %v481
  %v2030 = vunpack.c.l.b16 %v482
  %v2031 = vunpack.c.h.b16 %v482
  %v2032 = vunpack.c.l.b16 %v483
  %v2033 = vunpack.c.h.b16 %v483
  %v2034 = vunpack.c.l.b16 %v484
  %v2035 = vunpack.c.h.b16 %v484
  %v2036 = vunpack.c.l.b16 %v485
  %v2037 = vunpack.c.h.b16 %v485
  %v2038 = vunpack.c.l.b16 %v486
  %v2039 = vunpack.c.h.b16 %v486
  %v2040 = vunpack.c.l.b16 %v487
  %v2041 = vunpack.c.h.b16 %v487
  %v2042 = vunpack.c.l.b16 %v488
  %v2043 = vunpack.c.h.b16 %v488
  %v2044 = vunpack.c.l.b16 %v489
  %v2045 = vunpack.c.h.b16 %v489
  %v2046 = vunpack.c.l.b16 %v490
  %v2047 = vunpack.c.h.b16 %v490
  %v2048 = vunpack.c.l.b16 %v491
  %v2049 = vunpack.c.l.b16 %v492
  %v2050 = vunpack.c.h.b16 %v492
  %v2051 = vunpack.c.l.b16 %v493
  %v2052 = vunpack.c.h.b16 %v493
  %v2053 = vunpack.c.l.b16 %v494
  %v2054 = vunpack.c.h.b16 %v494
  %v2055 = vunpack.c.l.b16 %v495
  %v2056 = vunpack.c.h.b16 %v495
  %v2057 = vunpack.c.l.b16 %v496
  %v2058 = vunpack.c.h.b16 %v496
  %v2059 = vunpack.c.l.b16 %v497
  %v2060 = vunpack.c.h.b16 %v497
  %v2061 = vunpack.c.l.b16 %v498
  %v2062 = vunpack.c.h.b16 %v498
  %v2063 = vunpack.c.l.b16 %v499
  %v2064 = vunpack.c.h.b16 %v499
  %v2065 = vunpack.c.l.b16 %v500
  %v2066 = vunpack.c.h.b16 %v500
  %v2067 = vunpack.c.l.b16 %v501
  %v2068 = vunpack.c.h.b16 %v501
  %v2069 = vunpack.c.l.b16 %v502
  %v2070 = vunpack.c.l.b16 %v503
  %v2071 = vunpack.c.h.b16 %v503
  %v2072 = vunpack.c.l.b16 %v504
  %v2073 = vunpack.c.h.b16 %v504
  %v2074 = vunpack.c.l.b16 %v505
  %v2075 = vunpack.c.h.b16 %v505
  %v2076 = vunpack.c.l.b16 %v506
  %v2077 = vunpack.c.h.b16 %v506
  %v2078 = vunpack.c.l.b16 %v507
  %v2079 = vunpack.c.h.b16 %v507
  %v2080 = vunpack.c.l.b16 %v508
  %v2081 = vunpack.c.h.b16 %v508
  %v2082 = vunpack.c.l.b16 %v509
  %v2083 = vunpack.c.h.b16 %v509
  %v2084 = vunpack.c.l.b16 %v510
  %v2085 = vunpack.c.h.b16 %v510
  %v2086 = vunpack.c.l.b16 %v511
  %v2087 = vunpack.c.h.b16 %v511
  %v2088 = vunpack.c.l.b16 %v512
  %v2089 = vunpack.c.h.b16 %v512
  %v2090 = vunpack.c.l.b16 %v513
  %v2091 = vunpack.c.l.b16 %v514
  %v2092 = vunpack.c.h.b16 %v514
  %v2093 = vunpack.c.l.b16 %v515
  %v2094 = vunpack.c.h.b16 %v515
  %v2095 = vunpack.c.l.b16 %v516
  %v2096 = vunpack.c.h.b16 %v516
  %v2097 = vunpack.c.l.b16 %v517
  %v2098 = vunpack.c.h.b16 %v517
  %v2099 = vunpack.c.l.b16 %v518
  %v2100 = vunpack.c.h.b16 %v518
  %v2101 = vunpack.c.l.b16 %v519
  %v2102 = vunpack.c.h.b16 %v519
  %v2103 = vunpack.c.l.b16 %v520
  %v2104 = vunpack.c.h.b16 %v520
  %v2105 = vunpack.c.l.b16 %v521
  %v2106 = vunpack.c.h.b16 %v521
  %v2107 = vunpack.c.l.b16 %v522
  %v2108 = vunpack.c.h.b16 %v522
  %v2109 = vunpack.c.l.b16 %v523
  %v2110 = vunpack.c.h.b16 %v523
  %v2111 = vunpack.c.l.b16 %v524
  %v2112 = vunpack.c.l.b16 %v525
  %v2113 = vunpack.c.h.b16 %v525
  %v2114 = vunpack.c.l.b16 %v526
  %v2115 = vunpack.c.h.b16 %v526
  %v2116 = vunpack.c.l.b16 %v527
  %v2117 = vunpack.c.h.b16 %v527
  %v2118 = vunpack.c.l.b16 %v528
  %v2119 = vunpack.c.h.b16 %v528
  %v2120 = vunpack.c.l.b16 %v529
  %v2121 = vunpack.c.h.b16 %v529
  %v2122 = vunpack.c.l.b16 %v530
  %v2123 = vunpack.c.h.b16 %v530
  %v2124 = vunpack.c.l.b16 %v531
  %v2125 = vunpack.c.h.b16 %v531
  %v2126 = vunpack.c.l.b16 %v532
  %v2127 = vunpack.c.h.b16 %v532
  %v2128 = vunpack.c.l.b16 %v533
  %v2129 = vunpack.c.h.b16 %v533
  %v2130 = vunpack.c.l.b16 %v534
  %v2131 = vunpack.c.h.b16 %v534
  %v2132 = vunpack.c.l.b16 %v535
  %v2133 = vunpack.c.l.b16 %v536
  %v2134 = vunpack.c.h.b16 %v536
  %v2135 = vunpack.c.l.b16 %v537
  %v2136 = vunpack.c.h.b16 %v537
  %v2137 = vunpack.c.l.b16 %v538
  %v2138 = vunpack.c.h.b16 %v538
  %v2139 = vunpack.c.l.b16 %v539
  %v2140 = vunpack.c.h.b16 %v539
  %v2141 = vunpack.c.l.b16 %v540
  %v2142 = vunpack.c.h.b16 %v540
  %v2143 = vunpack.c.l.b16 %v541
  %v2144 = vunpack.c.h.b16 %v541
  %v2145 = vunpack.c.l.b16 %v542
  %v2146 = vunpack.c.h.b16 %v542
  %v2147 = vunpack.c.l.b16 %v543
  %v2148 = vunpack.c.h.b16 %v543
  %v2149 = vunpack.c.l.b16 %v544
  %v2150 = vunpack.c.h.b16 %v544
  %v2151 = vunpack.c.l.b16 %v545
  %v2152 = vunpack.c.h.b16 %v545
  %v2153 = vunpack.c.l.b16 %v546
  %v2154 = vunpack.c.l.b16 %v547
  %v2155 = vunpack.c.h.b16 %v547
  %v2156 = vunpack.c.l.b16 %v548
  %v2157 = vunpack.c.h.b16 %v548
  %v2158 = vunpack.c.l.b16 %v549
  %v2159 = vunpack.c.h.b16 %v549
  %v2160 = vunpack.c.l.b16 %v550
  %v2161 = vunpack.c.h.b16 %v550
  %v2162 = vunpack.c.l.b16 %v551
  %v2163 = vunpack.c.h.b16 %v551
  %v2164 = vunpack.c.l.b16 %v552
  %v2165 = vunpack.c.h.b16 %v552
  %v2166 = vunpack.c.l.b16 %v553
  %v2167 = vunpack.c.h.b16 %v553
  %v2168 = vunpack.c.l.b16 %v554
  %v2169 = vunpack.c.h.b16 %v554
  %v2170 = vunpack.c.l.b16 %v555
  %v2171 = vunpack.c.h.b16 %v555
  %v2172 = vunpack.c.l.b16 %v556
  %v2173 = vunpack.c.h.b16 %v556
  %v2174 = vunpack.c.l.b16 %v557
  %v2175 = vunpack.c.l.b16 %v558
  %v2176 = vunpack.c.h.b16 %v558
  %v2177 = vunpack.c.l.b16 %v559
  %v2178 = vunpack.c.h.b16 %v559
  %v2179 = vunpack.c.l.b16 %v560
  %v2180 = vunpack.c.h.b16 %v560
  %v2181 = vunpack.c.l.b16 %v561
  %v2182 = vunpack.c.h.b16 %v561
  %v2183 = vunpack.c.l.b16 %v562
  %v2184 = vunpack.c.h.b16 %v562
  %v2185 = vunpack.c.l.b16 %v563
  %v2186 = vunpack.c.h.b16 %v563
  %v2187 = vunpack.c.l.b16 %v564
  %v2188 = vunpack.c.h.b16 %v564
  %v2189 = vunpack.c.l.b16 %v565
  %v2190 = vunpack.c.h.b16 %v565
  %v2191 = vunpack.c.l.b16 %v566
  %v2192 = vunpack.c.h.b16 %v566
  %v2193 = vunpack.c.l.b16 %v567
  %v2194 = vunpack.c.h.b16 %v567
  %v2195 = vunpack.c.l.b16 %v568
  %v2196 = vpack.c.b16 %v1167, %v1146
  %v2197 = vpack.c.b16 %v1168, %v1147
  %v2198 = vpack.c.b16 %v1169, %v1148
  %v2199 = vpack.c.b16 %v1170, %v1149
  %v2200 = vpack.c.b16 %v1171, %v1150
  %v2201 = vpack.c.b16 %v1172, %v1151
  %v2202 = vpack.c.b16 %v1173, %v1152
  %v2203 = vpack.c.b16 %v1174, %v1153
  %v2204 = vpack.c.b16 %v1175, %v1154
  %v2205 = vpack.c.b16 %v1176, %v1155
  %v2206 = vpack.c.b16 %v1177, %v1156
  %v2207 = vpack.c.b16 %v1178, %v1157
  %v2208 = vpack.c.b16 %v1179, %v1158
  %v2209 = vpack.c.b16 %v1180, %v1159
  %v2210 = vpack.c.b16 %v1181, %v1160
  %v2211 = vpack.c.b16 %v1182, %v1161
  %v2212 = vpack.c.b16 %v1183, %v1162
  %v2213 = vpack.c.b16 %v1184, %v1163
  %v2214 = vpack.c.b16 %v1185, %v1164
  %v2215 = vpack.c.b16 %v1186, %v1165
  %v2216 = vpack.c.b16 %v1187, %v1166
  %v2217 = vpack.c.b16 %v1209, %v1188
  %v2218 = vpack.c.b16 %v1210, %v1189
  %v2219 = vpack.c.b16 %v1211, %v1190
  %v2220 = vpack.c.b16 %v1212, %v1191
  %v2221 = vpack.c.b16 %v1213, %v1192
  %v2222 = vpack.c.b16 %v1214, %v1193
  %v2223 = vpack.c.b16 %v1215, %v1194
  %v2224 = vpack.c.b16 %v1216, %v1195
  %v2225 = vpack.c.b16 %v1217, %v1196
  %v2226 = vpack.c.b16 %v1218, %v1197
  %v2227 = vpack.c.b16 %v1219, %v1198
  %v2228 = vpack.c.b16 %v1220, %v1199
  %v2229 = vpack.c.b16 %v1221, %v1200
  %v2230 = vpack.c.b16 %v1222, %v1201
  %v2231 = vpack.c.b16 %v1223, %v1202
  %v2232 = vpack.c.b16 %v1224, %v1203
  %v2233 = vpack.c.b16 %v1225, %v1204
  %v2234 = vpack.c.b16 %v1226, %v1205
  %v2235 = vpack.c.b16 %v1227, %v1206
  %v2236 = vpack.c.b16 %v1228, %v1207
  %v2237 = vpack.c.b16 %v1229, %v1208
  %v2238 = vpack.c.b16 %v1251, %v1230
  %v2239 = vpack.c.b16 %v1252, %v1231
  %v2240 = vpack.c.b16 %v1253, %v1232
  %v2241 = vpack.c.b16 %v1254, %v1233
  %v2242 = vpack.c.b16 %v1255, %v1234
  %v2243 = vpack.c.b16 %v1256, %v1235
  %v2244 = vpack.c.b16 %v1257, %v1236
  %v2245 = vpack.c.b16 %v1258, %v1237
  %v2246 = vpack.c.b16 %v1259, %v1238
  %v2247 = vpack.c.b16 %v1260, %v1239
  %v2248 = vpack.c.b16 %v1261, %v1240
  %v2249 = vpack.c.b16 %v1262, %v1241
  %v2250 = vpack.c.b16 %v1263, %v1242
  %v2251 = vpack.c.b16 %v1264, %v1243
  %v2252 = vpack.c.b16 %v1265, %v1244
  %v2253 = vpack.c.b16 %v1266, %v1245
  %v2254 = vpack.c.b16 %v1267, %v1246
  %v2255 = vpack.c.b16 %v1268, %v1247
  %v2256 = vpack.c.b16 %v1269, %v1248
  %v2257 = vpack.c.b16 %v1270, %v1249
  %v2258 = vpack.c.b16 %v1271, %v1250
  %v2259 = vpack.c.b16 %v1293, %v1272
  %v2260 = vpack.c.b16 %v1294, %v1273
  %v2261 = vpack.c.b16 %v1295, %v1274
  %v2262 = vpack.c.b16 %v1296, %v1275
  %v2263 = vpack.c.b16 %v1297, %v1276
  %v2264 = vpack.c.b16 %v1298, %v1277
  %v2265 = vpack.c.b16 %v1299, %v1278
  %v2266 = vpack.c.b16 %v1300, %v1279
  %v2267 = vpack.c.b16 %v1301, %v1280
  %v2268 = vpack.c.b16 %v1302, %v1281
  %v2269 = vpack.c.b16 %v1303, %v1282
  %v2270 = vpack.c.b16 %v1304, %v1283
  %v2271 = vpack.c.b16 %v1305, %v1284
  %v2272 = vpack.c.b16 %v1306, %v1285
  %v2273 = vpack.c.b16 %v1307, %v1286
  %v2274 = vpack.c.b16 %v1308, %v1287
  %v2275 = vpack.c.b16 %v1309, %v1288
  %v2276 = vpack.c.b16 %v1310, %v1289
  %v2277 = vpack.c.b16 %v1311, %v1290
  %v2278 = vpack.c.b16 %v1312, %v1291
  %v2279 = vpack.c.b16 %v1313, %v1292
  %v2280 = vpack.c.b16 %v1335, %v1314
  %v2281 = vpack.c.b16 %v1336, %v1315
  %v2282 = vpack.c.b16 %v1337, %v1316
  %v2283 = vpack.c.b16 %v1338, %v1317
  %v2284 = vpack.c.b16 %v1339, %v1318
  %v2285 = vpack.c.b16 %v1340, %v1319
  %v2286 = vpack.c.b16 %v1341, %v1320
  %v2287 = vpack.c.b16 %v1342, %v1321
  %v2288 = vpack.c.b16 %v1343, %v1322
  %v2289 = vpack.c.b16 %v1344, %v1323
  %v2290 = vpack.c.b16 %v1345, %v1324
  %v2291 = vpack.c.b16 %v1346, %v1325
  %v2292 = vpack.c.b16 %v1347, %v1326
  %v2293 = vpack.c.b16 %v1348, %v1327
  %v2294 = vpack.c.b16 %v1349, %v1328
  %v2295 = vpack.c.b16 %v1350, %v1329
  %v2296 = vpack.c.b16 %v1351, %v1330
  %v2297 = vpack.c.b16 %v1352, %v1331
  %v2298 = vpack.c.b16 %v1353, %v1332
  %v2299 = vpack.c.b16 %v1354, %v1333
  %v2300 = vpack.c.b16 %v1355, %v1334
  %v2301 = vpack.c.b16 %v1377, %v1356
  %v2302 = vpack.c.b16 %v1378, %v1357
  %v2303 = vpack.c.b16 %v1379, %v1358
  %v2304 = vpack.c.b16 %v1380, %v1359
  %v2305 = vpack.c.b16 %v1381, %v1360
  %v2306 = vpack.c.b16 %v1382, %v1361
  %v2307 = vpack.c.b16 %v1383, %v1362
  %v2308 = vpack.c.b16 %v1384, %v1363
  %v2309 = vpack.c.b16 %v1385, %v1364
  %v2310 = vpack.c.b16 %v1386, %v1365
  %v2311 = vpack.c.b16 %v1387, %v1366
  %v2312 = vpack.c.b16 %v1388, %v1367
  %v2313 = vpack.c.b16 %v1389, %v1368
  %v2314 = vpack.c.b16 %v1390, %v1369
  %v2315 = vpack.c.b16 %v1391, %v1370
  %v2316 = vpack.c.b16 %v1392, %v1371
  %v2317 = vpack.c.b16 %v1393, %v1372
  %v2318 = vpack.c.b16 %v1394, %v1373
  %v2319 = vpack.c.b16 %v1395, %v1374
  %v2320 = vpack.c.b16 %v1396, %v1375
  %v2321 = vpack.c.b16 %v1397, %v1376
  %v2322 = vpack.c.b16 %v1419, %v1398
  %v2323 = vpack.c.b16 %v1420, %v1399
  %v2324 = vpack.c.b16 %v1421, %v1400
  %v2325 = vpack.c.b16 %v1422, %v1401
  %v2326 = vpack.c.b16 %v1423, %v1402
  %v2327 = vpack.c.b16 %v1424, %v1403
  %v2328 = vpack.c.b16 %v1425, %v1404
  %v2329 = vpack.c.b16 %v1426, %v1405
  %v2330 = vpack.c.b16 %v1427, %v1406
  %v2331 = vpack.c.b16 %v1428, %v1407
  %v2332 = vpack.c.b16 %v1429, %v1408
  %v2333 = vpack.c.b16 %v1430, %v1409
  %v2334 = vpack.c.b16 %v1431, %v1410
  %v2335 = vpack.c.b16 %v1432, %v1411
  %v2336 = vpack.c.b16 %v1433, %v1412
  %v2337 = vpack.c.b16 %v1434, %v1413
  %v2338 = vpack.c.b16 %v1435, %v1414
  %v2339 = vpack.c.b16 %v1436, %v1415
  %v2340 = vpack.c.b16 %v1437, %v1416
  %v2341 = vpack.c.b16 %v1438, %v1417
  %v2342 = vpack.c.b16 %v1439, %v1418
  %v2343 = vpack.c.b16 %v1461, %v1440
  %v2344 = vpack.c.b16 %v1462, %v1441
  %v2345 = vpack.c.b16 %v1463, %v1442
  %v2346 = vpack.c.b16 %v1464, %v1443
  %v2347 = vpack.c.b16 %v1465, %v1444
  %v2348 = vpack.c.b16 %v1466, %v1445
  %v2349 = vpack.c.b16 %v1467, %v1446
  %v2350 = vpack.c.b16 %v1468, %v1447
  %v2351 = vpack.c.b16 %v1469, %v1448
  %v2352 = vpack.c.b16 %v1470, %v1449
  %v2353 = vpack.c.b16 %v1471, %v1450
  %v2354 = vpack.c.b16 %v1472, %v1451
  %v2355 = vpack.c.b16 %v1473, %v1452
  %v2356 = vpack.c.b16 %v1474, %v1453
  %v2357 = vpack.c.b16 %v1475, %v1454
  %v2358 = vpack.c.b16 %v1476, %v1455
  %v2359 = vpack.c.b16 %v1477, %v1456
  %v2360 = vpack.c.b16 %v1478, %v1457
  %v2361 = vpack.c.b16 %v1479, %v1458
  %v2362 = vpack.c.b16 %v1480, %v1459
  %v2363 = vpack.c.b16 %v1481, %v1460
  %v2364 = vpack.c.b16 %v1503, %v1482
  %v2365 = vpack.c.b16 %v1504, %v1483
  %v2366 = vpack.c.b16 %v1505, %v1484
  %v2367 = vpack.c.b16 %v1506, %v1485
  %v2368 = vpack.c.b16 %v1507, %v1486
  %v2369 = vpack.c.b16 %v1508, %v1487
  %v2370 = vpack.c.b16 %v1509, %v1488
  %v2371 = vpack.c.b16 %v1510, %v1489
  %v2372 = vpack.c.b16 %v1511, %v1490
  %v2373 = vpack.c.b16 %v1512, %v1491
  %v2374 = vpack.c.b16 %v1513, %v1492
  %v2375 = vpack.c.b16 %v1514, %v1493
  %v2376 = vpack.c.b16 %v1515, %v1494
  %v2377 = vpack.c.b16 %v1516, %v1495
  %v2378 = vpack.c.b16 %v1517, %v1496
  %v2379 = vpack.c.b16 %v1518, %v1497
  %v2380 = vpack.c.b16 %v1519, %v1498
  %v2381 = vpack.c.b16 %v1520, %v1499
  %v2382 = vpack.c.b16 %v1521, %v1500
  %v2383 = vpack.c.b16 %v1522, %v1501
  %v2384 = vpack.c.b16 %v1523, %v1502
  %v2385 = vpack.c.b16 %v1545, %v1524
  %v2386 = vpack.c.b16 %v1546, %v1525
  %v2387 = vpack.c.b16 %v1547, %v1526
  %v2388 = vpack.c.b16 %v1548, %v1527
  %v2389 = vpack.c.b16 %v1549, %v1528
  %v2390 = vpack.c.b16 %v1550, %v1529
  %v2391 = vpack.c.b16 %v1551, %v1530
  %v2392 = vpack.c.b16 %v1552, %v1531
  %v2393 = vpack.c.b16 %v1553, %v1532
  %v2394 = vpack.c.b16 %v1554, %v1533
  %v2395 = vpack.c.b16 %v1555, %v1534
  %v2396 = vpack.c.b16 %v1556, %v1535
  %v2397 = vpack.c.b16 %v1557, %v1536
  %v2398 = vpack.c.b16 %v1558, %v1537
  %v2399 = vpack.c.b16 %v1559, %v1538
  %v2400 = vpack.c.b16 %v1560, %v1539
  %v2401 = vpack.c.b16 %v1561, %v1540
  %v2402 = vpack.c.b16 %v1562, %v1541
  %v2403 = vpack.c.b16 %v1563, %v1542
  %v2404 = vpack.c.b16 %v1564, %v1543
  %v2405 = vpack.c.b16 %v1565, %v1544
  %v2406 = vpack.c.b16 %v1587, %v1566
  %v2407 = vpack.c.b16 %v1588, %v1567
  %v2408 = vpack.c.b16 %v1589, %v1568
  %v2409 = vpack.c.b16 %v1590, %v1569
  %v2410 = vpack.c.b16 %v1591, %v1570
  %v2411 = vpack.c.b16 %v1592, %v1571
  %v2412 = vpack.c.b16 %v1593, %v1572
  %v2413 = vpack.c.b16 %v1594, %v1573
  %v2414 = vpack.c.b16 %v1595, %v1574
  %v2415 = vpack.c.b16 %v1596, %v1575
  %v2416 = vpack.c.b16 %v1597, %v1576
  %v2417 = vpack.c.b16 %v1598, %v1577
  %v2418 = vpack.c.b16 %v1599, %v1578
  %v2419 = vpack.c.b16 %v1600, %v1579
  %v2420 = vpack.c.b16 %v1601, %v1580
  %v2421 = vpack.c.b16 %v1602, %v1581
  %v2422 = vpack.c.b16 %v1603, %v1582
  %v2423 = vpack.c.b16 %v1604, %v1583
  %v2424 = vpack.c.b16 %v1605, %v1584
  %v2425 = vpack.c.b16 %v1606, %v1585
  %v2426 = vpack.c.b16 %v1607, %v1586
  %v2427 = vpack.c.b16 %v1629, %v1608
  %v2428 = vpack.c.b16 %v1630, %v1609
  %v2429 = vpack.c.b16 %v1631, %v1610
  %v2430 = vpack.c.b16 %v1632, %v1611
  %v2431 = vpack.c.b16 %v1633, %v1612
  %v2432 = vpack.c.b16 %v1634, %v1613
  %v2433 = vpack.c.b16 %v1635, %v1614
  %v2434 = vpack.c.b16 %v1636, %v1615
  %v2435 = vpack.c.b16 %v1637, %v1616
  %v2436 = vpack.c.b16 %v1638, %v1617
  %v2437 = vpack.c.b16 %v1639, %v1618
  %v2438 = vpack.c.b16 %v1640, %v1619
  %v2439 = vpack.c.b16 %v1641, %v1620
  %v2440 = vpack.c.b16 %v1642, %v1621
  %v2441 = vpack.c.b16 %v1643, %v1622
  %v2442 = vpack.c.b16 %v1644, %v1623
  %v2443 = vpack.c.b16 %v1645, %v1624
  %v2444 = vpack.c.b16 %v1646, %v1625
  %v2445 = vpack.c.b16 %v1647, %v1626
  %v2446 = vpack.c.b16 %v1648, %v1627
  %v2447 = vpack.c.b16 %v1649, %v1628
  %v2448 = vpack.c.b16 %v1671, %v1650
  %v2449 = vpack.c.b16 %v1672, %v1651
  %v2450 = vpack.c.b16 %v1673, %v1652
  %v2451 = vpack.c.b16 %v1674, %v1653
  %v2452 = vpack.c.b16 %v1675, %v1654
  %v2453 = vpack.c.b16 %v1676, %v1655
  %v2454 = vpack.c.b16 %v1677, %v1656
  %v2455 = vpack.c.b16 %v1678, %v1657
  %v2456 = vpack.c.b16 %v1679, %v1658
  %v2457 = vpack.c.b16 %v1680, %v1659
  %v2458 = vpack.c.b16 %v1681, %v1660
  %v2459 = vpack.c.b16 %v1682, %v1661
  %v2460 = vpack.c.b16 %v1683, %v1662
  %v2461 = vpack.c.b16 %v1684, %v1663
  %v2462 = vpack.c.b16 %v1685, %v1664
  %v2463 = vpack.c.b16 %v1686, %v1665
  %v2464 = vpack.c.b16 %v1687, %v1666
  %v2465 = vpack.c.b16 %v1688, %v1667
  %v2466 = vpack.c.b16 %v1689, %v1668
  %v2467 = vpack.c.b16 %v1690, %v1669
  %v2468 = vpack.c.b16 %v1691, %v1670
  %v2469 = vpack.c.b16 %v1713, %v1692
  %v2470 = vpack.c.b16 %v1714, %v1693
  %v2471 = vpack.c.b16 %v1715, %v1694
  %v2472 = vpack.c.b16 %v1716, %v1695
  %v2473 = vpack.c.b16 %v1717, %v1696
  %v2474 = vpack.c.b16 %v1718, %v1697
  %v2475 = vpack.c.b16 %v1719, %v1698
  %v2476 = vpack.c.b16 %v1720, %v1699
  %v2477 = vpack.c.b16 %v1721, %v1700
  %v2478 = vpack.c.b16 %v1722, %v1701
  %v2479 = vpack.c.b16 %v1723, %v1702
  %v2480 = vpack.c.b16 %v1724, %v1703
  %v2481 = vpack.c.b16 %v1725, %v1704
  %v2482 = vpack.c.b16 %v1726, %v1705
  %v2483 = vpack.c.b16 %v1727, %v1706
  %v2484 = vpack.c.b16 %v1728, %v1707
  %v2485 = vpack.c.b16 %v1729, %v1708
  %v2486 = vpack.c.b16 %v1730, %v1709
  %v2487 = vpack.c.b16 %v1731, %v1710
  %v2488 = vpack.c.b16 %v1732, %v1711
  %v2489 = vpack.c.b16 %v1733, %v1712
  %v2490 = vpack.c.b16 %v1755, %v1734
  %v2491 = vpack.c.b16 %v1756, %v1735
  %v2492 = vpack.c.b16 %v1757, %v1736
  %v2493 = vpack.c.b16 %v1758, %v1737
  %v2494 = vpack.c.b16 %v1759, %v1738
  %v2495 = vpack.c.b16 %v1760, %v1739
  %v2496 = vpack.c.b16 %v1761, %v1740
  %v2497 = vpack.c.b16 %v1762, %v1741
  %v2498 = vpack.c.b16 %v1763, %v1742
  %v2499 = vpack.c.b16 %v1764, %v1743
  %v2500 = vpack.c.b16 %v1765, %v1744
  %v2501 = vpack.c.b16 %v1766, %v1745
  %v2502 = vpack.c.b16 %v1767, %v1746
  %v2503 = vpack.c.b16 %v1768, %v1747
  %v2504 = vpack.c.b16 %v1769, %v1748
  %v2505 = vpack.c.b16 %v1770, %v1749
  %v2506 = vpack.c.b16 %v1771, %v1750
  %v2507 = vpack.c.b16 %v1772, %v1751
  %v2508 = vpack.c.b16 %v1773, %v1752
  %v2509 = vpack.c.b16 %v1774, %v1753
  %v2510 = vpack.c.b16 %v1775, %v1754
  %v2511 = vpack.c.b16 %v1797, %v1776
  %v2512 = vpack.c.b16 %v1798, %v1777
  %v2513 = vpack.c.b16 %v1799, %v1778
  %v2514 = vpack.c.b16 %v1800, %v1779
  %v2515 = vpack.c.b16 %v1801, %v1780
  %v2516 = vpack.c.b16 %v1802, %v1781
  %v2517 = vpack.c.b16 %v1803, %v1782
  %v2518 = vpack.c.b16 %v1804, %v1783
  %v2519 = vpack.c.b16 %v1805, %v1784
  %v2520 = vpack.c.b16 %v1806, %v1785
  %v2521 = vpack.c.b16 %v1807, %v1786
  %v2522 = vpack.c.b16 %v1808, %v1787
  %v2523 = vpack.c.b16 %v1809, %v1788
  %v2524 = vpack.c.b16 %v1810, %v1789
  %v2525 = vpack.c.b16 %v1811, %v1790
  %v2526 = vpack.c.b16 %v1812, %v1791
  %v2527 = vpack.c.b16 %v1813, %v1792
  %v2528 = vpack.c.b16 %v1814, %v1793
  %v2529 = vpack.c.b16 %v1815, %v1794
  %v2530 = vpack.c.b16 %v1816, %v1795
  %v2531 = vpack.c.b16 %v1817, %v1796
  %v2532 = vpack.c.b16 %v1839, %v1818
  %v2533 = vpack.c.b16 %v1840, %v1819
  %v2534 = vpack.c.b16 %v1841, %v1820
  %v2535 = vpack.c.b16 %v1842, %v1821
  %v2536 = vpack.c.b16 %v1843, %v1822
  %v2537 = vpack.c.b16 %v1844, %v1823
  %v2538 = vpack.c.b16 %v1845, %v1824
  %v2539 = vpack.c.b16 %v1846, %v1825
  %v2540 = vpack.c.b16 %v1847, %v1826
  %v2541 = vpack.c.b16 %v1848, %v1827
  %v2542 = vpack.c.b16 %v1849, %v1828
  %v2543 = vpack.c.b16 %v1850, %v1829
  %v2544 = vpack.c.b16 %v1851, %v1830
  %v2545 = vpack.c.b16 %v1852, %v1831
  %v2546 = vpack.c.b16 %v1853, %v1832
  %v2547 = vpack.c.b16 %v1854, %v1833
  %v2548 = vpack.c.b16 %v1855, %v1834
  %v2549 = vpack.c.b16 %v1856, %v1835
  %v2550 = vpack.c.b16 %v1857, %v1836
  %v2551 = vpack.c.b16 %v1858, %v1837
  %v2552 = vpack.c.b16 %v1859, %v1838
  %v2553 = vpack.c.b16 %v1881, %v1860
  %v2554 = vpack.c.b16 %v1882, %v1861
  %v2555 = vpack.c.b16 %v1883, %v1862
  %v2556 = vpack.c.b16 %v1884, %v1863
  %v2557 = vpack.c.b16 %v1885, %v1864
  %v2558 = vpack.c.b16 %v1886, %v1865
  %v2559 = vpack.c.b16 %v1887, %v1866
  %v2560 = vpack.c.b16 %v1888, %v1867
  %v2561 = vpack.c.b16 %v1889, %v1868
  %v2562 = vpack.c.b16 %v1890, %v1869
  %v2563 = vpack.c.b16 %v1891, %v1870
  %v2564 = vpack.c.b16 %v1892, %v1871
  %v2565 = vpack.c.b16 %v1893, %v1872
  %v2566 = vpack.c.b16 %v1894, %v1873
  %v2567 = vpack.c.b16 %v1895, %v1874
  %v2568 = vpack.c.b16 %v1896, %v1875
  %v2569 = vpack.c.b16 %v1897, %v1876
  %v2570 = vpack.c.b16 %v1898, %v1877
  %v2571 = vpack.c.b16 %v1899, %v1878
  %v2572 = vpack.c.b16 %v1900, %v1879
  %v2573 = vpack.c.b16 %v1901, %v1880
  %v2574 = vpack.c.b16 %v1923, %v1902
  %v2575 = vpack.c.b16 %v1924, %v1903
  %v2576 = vpack.c.b16 %v1925, %v1904
  %v2577 = vpack.c.b16 %v1926, %v1905
  %v2578 = vpack.c.b16 %v1927, %v1906
  %v2579 = vpack.c.b16 %v1928, %v1907
  %v2580 = vpack.c.b16 %v1929, %v1908
  %v2581 = vpack.c.b16 %v1930, %v1909
  %v2582 = vpack.c.b16 %v1931, %v1910
  %v2583 = vpack.c.b16 %v1932, %v1911
  %v2584 = vpack.c.b16 %v1933, %v1912
  %v2585 = vpack.c.b16 %v1934, %v1913
  %v2586 = vpack.c.b16 %v1935, %v1914
  %v2587 = vpack.c.b16 %v1936, %v1915
  %v2588 = vpack.c.b16 %v1937, %v1916
  %v2589 = vpack.c.b16 %v1938, %v1917
  %v2590 = vpack.c.b16 %v1939, %v1918
  %v2591 = vpack.c.b16 %v1940, %v1919
  %v2592 = vpack.c.b16 %v1941, %v1920
  %v2593 = vpack.c.b16 %v1942, %v1921
  %v2594 = vpack.c.b16 %v1943, %v1922
  %v2595 = vpack.c.b16 %v1965, %v1944
  %v2596 = vpack.c.b16 %v1966, %v1945
  %v2597 = vpack.c.b16 %v1967, %v1946
  %v2598 = vpack.c.b16 %v1968, %v1947
  %v2599 = vpack.c.b16 %v1969, %v1948
  %v2600 = vpack.c.b16 %v1970, %v1949
  %v2601 = vpack.c.b16 %v1971, %v1950
  %v2602 = vpack.c.b16 %v1972, %v1951
  %v2603 = vpack.c.b16 %v1973, %v1952
  %v2604 = vpack.c.b16 %v1974, %v1953
  %v2605 = vpack.c.b16 %v1975, %v1954
  %v2606 = vpack.c.b16 %v1976, %v1955
  %v2607 = vpack.c.b16 %v1977, %v1956
  %v2608 = vpack.c.b16 %v1978, %v1957
  %v2609 = vpack.c.b16 %v1979, %v1958
  %v2610 = vpack.c.b16 %v1980, %v1959
  %v2611 = vpack.c.b16 %v1981, %v1960
  %v2612 = vpack.c.b16 %v1982, %v1961
  %v2613 = vpack.c.b16 %v1983, %v1962
  %v2614 = vpack.c.b16 %v1984, %v1963
  %v2615 = vpack.c.b16 %v1985, %v1964
  %v2616 = vpack.c.b16 %v2007, %v1986
  %v2617 = vpack.c.b16 %v2008, %v1987
  %v2618 = vpack.c.b16 %v2009, %v1988
  %v2619 = vpack.c.b16 %v2010, %v1989
  %v2620 = vpack.c.b16 %v2011, %v1990
  %v2621 = vpack.c.b16 %v2012, %v1991
  %v2622 = vpack.c.b16 %v2013, %v1992
  %v2623 = vpack.c.b16 %v2014, %v1993
  %v2624 = vpack.c.b16 %v2015, %v1994
  %v2625 = vpack.c.b16 %v2016, %v1995
  %v2626 = vpack.c.b16 %v2017, %v1996
  %v2627 = vpack.c.b16 %v2018, %v1997
  %v2628 = vpack.c.b16 %v2019, %v1998
  %v2629 = vpack.c.b16 %v2020, %v1999
  %v2630 = vpack.c.b16 %v2021, %v2000
  %v2631 = vpack.c.b16 %v2022, %v2001
  %v2632 = vpack.c.b16 %v2023, %v2002
  %v2633 = vpack.c.b16 %v2024, %v2003
  %v2634 = vpack.c.b16 %v2025, %v2004
  %v2635 = vpack.c.b16 %v2026, %v2005
  %v2636 = vpack.c.b16 %v2027, %v2006
  %v2637 = vpack.c.b16 %v2049, %v2028
  %v2638 = vpack.c.b16 %v2050, %v2029
  %v2639 = vpack.c.b16 %v2051, %v2030
  %v2640 = vpack.c.b16 %v2052, %v2031
  %v2641 = vpack.c.b16 %v2053, %v2032
  %v2642 = vpack.c.b16 %v2054, %v2033
  %v2643 = vpack.c.b16 %v2055, %v2034
  %v2644 = vpack.c.b16 %v2056, %v2035
  %v2645 = vpack.c.b16 %v2057, %v2036
  %v2646 = vpack.c.b16 %v2058, %v2037
  %v2647 = vpack.c.b16 %v2059, %v2038
  %v2648 = vpack.c.b16 %v2060, %v2039
  %v2649 = vpack.c.b16 %v2061, %v2040
  %v2650 = vpack.c.b16 %v2062, %v2041
  %v2651 = vpack.c.b16 %v2063, %v2042
  %v2652 = vpack.c.b16 %v2064, %v2043
  %v2653 = vpack.c.b16 %v2065, %v2044
  %v2654 = vpack.c.b16 %v2066, %v2045
  %v2655 = vpack.c.b16 %v2067, %v2046
  %v2656 = vpack.c.b16 %v2068, %v2047
  %v2657 = vpack.c.b16 %v2069, %v2048
  %v2658 = vpack.c.b16 %v2091, %v2070
  %v2659 = vpack.c.b16 %v2092, %v2071
  %v2660 = vpack.c.b16 %v2093, %v2072
  %v2661 = vpack.c.b16 %v2094, %v2073
  %v2662 = vpack.c.b16 %v2095, %v2074
  %v2663 = vpack.c.b16 %v2096, %v2075
  %v2664 = vpack.c.b16 %v2097, %v2076
  %v2665 = vpack.c.b16 %v2098, %v2077
  %v2666 = vpack.c.b16 %v2099, %v2078
  %v2667 = vpack.c.b16 %v2100, %v2079
  %v2668 = vpack.c.b16 %v2101, %v2080
  %v2669 = vpack.c.b16 %v2102, %v2081
  %v2670 = vpack.c.b16 %v2103, %v2082
  %v2671 = vpack.c.b16 %v2104, %v2083
  %v2672 = vpack.c.b16 %v2105, %v2084
  %v2673 = vpack.c.b16 %v2106, %v2085
  %v2674 = vpack.c.b16 %v2107, %v2086
  %v2675 = vpack.c.b16 %v2108, %v2087
  %v2676 = vpack.c.b16 %v2109, %v2088
  %v2677 = vpack.c.b16 %v2110, %v2089
  %v2678 = vpack.c.b16 %v2111, %v2090
  %v2679 = vpack.c.b16 %v2133, %v2112
  %v2680 = vpack.c.b16 %v2134, %v2113
  %v2681 = vpack.c.b16 %v2135, %v2114
  %v2682 = vpack.c.b16 %v2136, %v2115
  %v2683 = vpack.c.b16 %v2137, %v2116
  %v2684 = vpack.c.b16 %v2138, %v2117
  %v2685 = vpack.c.b16 %v2139, %v2118
  %v2686 = vpack.c.b16 %v2140, %v2119
  %v2687 = vpack.c.b16 %v2141, %v2120
  %v2688 = vpack.c.b16 %v2142, %v2121
  %v2689 = vpack.c.b16 %v2143, %v2122
  %v2690 = vpack.c.b16 %v2144, %v2123
  %v2691 = vpack.c.b16 %v2145, %v2124
  %v2692 = vpack.c.b16 %v2146, %v2125
  %v2693 = vpack.c.b16 %v2147, %v2126
  %v2694 = vpack.c.b16 %v2148, %v2127
  %v2695 = vpack.c.b16 %v2149, %v2128
  %v2696 = vpack.c.b16 %v2150, %v2129
  %v2697 = vpack.c.b16 %v2151, %v2130
  %v2698 = vpack.c.b16 %v2152, %v2131
  %v2699 = vpack.c.b16 %v2153, %v2132
  %v2700 = vpack.c.b16 %v2175, %v2154
  %v2701 = vpack.c.b16 %v2176, %v2155
  %v2702 = vpack.c.b16 %v2177, %v2156
  %v2703 = vpack.c.b16 %v2178, %v2157
  %v2704 = vpack.c.b16 %v2179, %v2158
  %v2705 = vpack.c.b16 %v2180, %v2159
  %v2706 = vpack.c.b16 %v2181, %v2160
  %v2707 = vpack.c.b16 %v2182, %v2161
  %v2708 = vpack.c.b16 %v2183, %v2162
  %v2709 = vpack.c.b16 %v2184, %v2163
  %v2710 = vpack.c.b16 %v2185, %v2164
  %v2711 = vpack.c.b16 %v2186, %v2165
  %v2712 = vpack.c.b16 %v2187, %v2166
  %v2713 = vpack.c.b16 %v2188, %v2167
  %v2714 = vpack.c.b16 %v2189, %v2168
  %v2715 = vpack.c.b16 %v2190, %v2169
  %v2716 = vpack.c.b16 %v2191, %v2170
  %v2717 = vpack.c.b16 %v2192, %v2171
  %v2718 = vpack.c.b16 %v2193, %v2172
  %v2719 = vpack.c.b16 %v2194, %v2173
  %v2720 = vpack.c.b16 %v2195, %v2174
  %vm3246 = vcmask 130048
  %v3248 = vsel %vm3246, %v592, 0
  %3250 = vmatprep.subr.bf16.mxu0 %v2197
  %3251 = vmatpush1.bf16.msra.mxu0 %v2196
  %3252 = vmatprep.subr.bf16.mxu0 %v2218
  %3253 = vmatpush1.bf16.msra.mxu0 %v2217
  %3254 = vmatprep.subr.bf16.mxu0 %v2239
  %3255 = vmatpush1.bf16.msra.mxu0 %v2238
  %3256 = vmatprep.subr.bf16.mxu0 %v2260
  %3257 = vmatpush1.bf16.msra.mxu0 %v2259
  %3258 = vmatprep.subr.bf16.mxu0 %v2281
  %3259 = vmatpush1.bf16.msra.mxu0 %v2280
  %3260 = vmatprep.subr.bf16.mxu0 %v2302
  %3261 = vmatpush1.bf16.msra.mxu0 %v2301
  %3262 = vmatprep.subr.bf16.mxu0 %v2323
  %3263 = vmatpush1.bf16.msra.mxu0 %v2322
  %3264 = vmatprep.subr.bf16.mxu0 %v2344
  %3265 = vmatpush1.bf16.msra.mxu0 %v2343
  %3266 = vmatprep.subr.bf16.mxu0 %v2365
  %3267 = vmatpush1.bf16.msra.mxu0 %v2364
  %3268 = vmatprep.subr.bf16.mxu0 %v2386
  %3269 = vmatpush1.bf16.msra.mxu0 %v2385
  %3270 = vmatprep.subr.bf16.mxu0 %v2407
  %3271 = vmatpush1.bf16.msra.mxu0 %v2406
  %3272 = vmatprep.subr.bf16.mxu0 %v2428
  %3273 = vmatpush1.bf16.msra.mxu0 %v2427
  %3274 = vmatprep.subr.bf16.mxu0 %v2449
  %3275 = vmatpush1.bf16.msra.mxu0 %v2448
  %3276 = vmatprep.subr.bf16.mxu0 %v2470
  %3277 = vmatpush1.bf16.msra.mxu0 %v2469
  %3278 = vmatprep.subr.bf16.mxu0 %v2491
  %3279 = vmatpush1.bf16.msra.mxu0 %v2490
  %3280 = vmatprep.subr.bf16.mxu0 %v2512
  %3281 = vmatpush1.bf16.msra.mxu0 %v2511
  %3282 = vmatprep.mubr.bf16.mxu0 %v591
  %3283 = vmatmul.mubr.bf16.gmra.mrb[0].mxu0 %v583
  %v3284 = vpop.f32.mrb[0].mxu0
  %v3285 = vadd.f32 %v573, %v3284
  %v3286 = vpop.f32.mrb[0].mxu0
  %v3287 = vadd.f32 %v573, %v3286
  %v3288 = vpop.f32.mrb[0].mxu0
  %v3289 = vpop.f32.mrb[0].mxu0
  %3290 = vdwg.mxu0
  %3291 = vmatprep.subr.bf16.mxu0 %v2533
  %3292 = vmatpush1.bf16.msra.mxu0 %v2532
  %3293 = vmatprep.subr.bf16.mxu0 %v2554
  %3294 = vmatpush1.bf16.msra.mxu0 %v2553
  %3295 = vmatprep.subr.bf16.mxu0 %v2575
  %3296 = vmatpush1.bf16.msra.mxu0 %v2574
  %3297 = vmatprep.subr.bf16.mxu0 %v2596
  %3298 = vmatpush1.bf16.msra.mxu0 %v2595
  %3299 = vmatprep.subr.bf16.mxu0 %v2617
  %3300 = vmatpush1.bf16.msra.mxu0 %v2616
  %3301 = vmatprep.subr.bf16.mxu0 %v2638
  %3302 = vmatpush1.bf16.msra.mxu0 %v2637
  %3303 = vmatprep.subr.bf16.mxu0 %v2659
  %3304 = vmatpush1.bf16.msra.mxu0 %v2658
  %3305 = vmatprep.subr.bf16.mxu0 %v2680
  %3306 = vmatpush1.bf16.msra.mxu0 %v2679
  %3307 = vmatprep.subr.bf16.mxu0 %v2701
  %3308 = vmatpush1.bf16.msra.mxu0 %v2700
  %3309 = vmatprep.subr.bf16.mxu0 0
  %3310 = vmatpush1.bf16.msra.mxu0 0
  %3311 = vmatprep.subr.bf16.mxu0 0
  %3312 = vmatpush1.bf16.msra.mxu0 0
  %3313 = vmatprep.subr.bf16.mxu0 0
  %3314 = vmatpush1.bf16.msra.mxu0 0
  %3315 = vmatprep.subr.bf16.mxu0 0
  %3316 = vmatpush1.bf16.msra.mxu0 0
  %3317 = vmatprep.subr.bf16.mxu0 0
  %3318 = vmatpush1.bf16.msra.mxu0 0
  %3319 = vmatprep.subr.bf16.mxu0 0
  %3320 = vmatpush1.bf16.msra.mxu0 0
  %3321 = vmatprep.subr.bf16.mxu0 0
  %3322 = vmatpush1.bf16.msra.mxu0 0
  %3323 = vmatprep.mubr.bf16.mxu0 %v3248
  %3324 = vmatmul.mubr.bf16.gmra.mrb[0].mxu0 %v590
  %v3325 = vpop.f32.mrb[0].mxu0
  %v3326 = vadd.f32 %v3285, %v3325
  %v3327 = vpop.f32.mrb[0].mxu0
  %v3328 = vadd.f32 %v3287, %v3327
  %v3329 = vpop.f32.mrb[0].mxu0
  %v3330 = vpop.f32.mrb[0].mxu0
  %3331 = vdwg.mxu0
  %3332 = vmatprep.subr.bf16.mxu0 %v2199
  %3333 = vmatpush1.bf16.msra.mxu0 %v2198
  %3334 = vmatprep.subr.bf16.mxu0 %v2220
  %3335 = vmatpush1.bf16.msra.mxu0 %v2219
  %3336 = vmatprep.subr.bf16.mxu0 %v2241
  %3337 = vmatpush1.bf16.msra.mxu0 %v2240
  %3338 = vmatprep.subr.bf16.mxu0 %v2262
  %3339 = vmatpush1.bf16.msra.mxu0 %v2261
  %3340 = vmatprep.subr.bf16.mxu0 %v2283
  %3341 = vmatpush1.bf16.msra.mxu0 %v2282
  %3342 = vmatprep.subr.bf16.mxu0 %v2304
  %3343 = vmatpush1.bf16.msra.mxu0 %v2303
  %3344 = vmatprep.subr.bf16.mxu0 %v2325
  %3345 = vmatpush1.bf16.msra.mxu0 %v2324
  %3346 = vmatprep.subr.bf16.mxu0 %v2346
  %3347 = vmatpush1.bf16.msra.mxu0 %v2345
  %3348 = vmatprep.subr.bf16.mxu0 %v2367
  %3349 = vmatpush1.bf16.msra.mxu0 %v2366
  %3350 = vmatprep.subr.bf16.mxu0 %v2388
  %3351 = vmatpush1.bf16.msra.mxu0 %v2387
  %3352 = vmatprep.subr.bf16.mxu0 %v2409
  %3353 = vmatpush1.bf16.msra.mxu0 %v2408
  %3354 = vmatprep.subr.bf16.mxu0 %v2430
  %3355 = vmatpush1.bf16.msra.mxu0 %v2429
  %3356 = vmatprep.subr.bf16.mxu0 %v2451
  %3357 = vmatpush1.bf16.msra.mxu0 %v2450
  %3358 = vmatprep.subr.bf16.mxu0 %v2472
  %3359 = vmatpush1.bf16.msra.mxu0 %v2471
  %3360 = vmatprep.subr.bf16.mxu0 %v2493
  %3361 = vmatpush1.bf16.msra.mxu0 %v2492
  %3362 = vmatprep.subr.bf16.mxu0 %v2514
  %3363 = vmatpush1.bf16.msra.mxu0 %v2513
  %3364 = vmatprep.mubr.bf16.mxu0 %v591
  %3365 = vmatmul.mubr.bf16.gmra.mrb[0].mxu0 %v583
  %v3366 = vpop.f32.mrb[0].mxu0
  %v3367 = vadd.f32 %v573, %v3366
  %v3368 = vpop.f32.mrb[0].mxu0
  %v3369 = vadd.f32 %v573, %v3368
  %v3370 = vpop.f32.mrb[0].mxu0
  %v3371 = vpop.f32.mrb[0].mxu0
  %3372 = vdwg.mxu0
  %3373 = vmatprep.subr.bf16.mxu0 %v2535
  %3374 = vmatpush1.bf16.msra.mxu0 %v2534
  %3375 = vmatprep.subr.bf16.mxu0 %v2556
  %3376 = vmatpush1.bf16.msra.mxu0 %v2555
  %3377 = vmatprep.subr.bf16.mxu0 %v2577
  %3378 = vmatpush1.bf16.msra.mxu0 %v2576
  %3379 = vmatprep.subr.bf16.mxu0 %v2598
  %3380 = vmatpush1.bf16.msra.mxu0 %v2597
  %3381 = vmatprep.subr.bf16.mxu0 %v2619
  %3382 = vmatpush1.bf16.msra.mxu0 %v2618
  %3383 = vmatprep.subr.bf16.mxu0 %v2640
  %3384 = vmatpush1.bf16.msra.mxu0 %v2639
  %3385 = vmatprep.subr.bf16.mxu0 %v2661
  %3386 = vmatpush1.bf16.msra.mxu0 %v2660
  %3387 = vmatprep.subr.bf16.mxu0 %v2682
  %3388 = vmatpush1.bf16.msra.mxu0 %v2681
  %3389 = vmatprep.subr.bf16.mxu0 %v2703
  %3390 = vmatpush1.bf16.msra.mxu0 %v2702
  %3391 = vmatprep.subr.bf16.mxu0 0
  %3392 = vmatpush1.bf16.msra.mxu0 0
  %3393 = vmatprep.subr.bf16.mxu0 0
  %3394 = vmatpush1.bf16.msra.mxu0 0
  %3395 = vmatprep.subr.bf16.mxu0 0
  %3396 = vmatpush1.bf16.msra.mxu0 0
  %3397 = vmatprep.subr.bf16.mxu0 0
  %3398 = vmatpush1.bf16.msra.mxu0 0
  %3399 = vmatprep.subr.bf16.mxu0 0
  %3400 = vmatpush1.bf16.msra.mxu0 0
  %3401 = vmatprep.subr.bf16.mxu0 0
  %3402 = vmatpush1.bf16.msra.mxu0 0
  %3403 = vmatprep.subr.bf16.mxu0 0
  %3404 = vmatpush1.bf16.msra.mxu0 0
  %3405 = vmatprep.mubr.bf16.mxu0 %v3248
  %3406 = vmatmul.mubr.bf16.gmra.mrb[0].mxu0 %v590
  %v3407 = vpop.f32.mrb[0].mxu0
  %v3408 = vadd.f32 %v3367, %v3407
  %v3409 = vpop.f32.mrb[0].mxu0
  %v3410 = vadd.f32 %v3369, %v3409
  %v3411 = vpop.f32.mrb[0].mxu0
  %v3412 = vpop.f32.mrb[0].mxu0
  %3413 = vdwg.mxu0
  %3414 = vmatprep.subr.bf16.mxu0 %v2201
  %3415 = vmatpush1.bf16.msra.mxu0 %v2200
  %3416 = vmatprep.subr.bf16.mxu0 %v2222
  %3417 = vmatpush1.bf16.msra.mxu0 %v2221
  %3418 = vmatprep.subr.bf16.mxu0 %v2243
  %3419 = vmatpush1.bf16.msra.mxu0 %v2242
  %3420 = vmatprep.subr.bf16.mxu0 %v2264
  %3421 = vmatpush1.bf16.msra.mxu0 %v2263
  %3422 = vmatprep.subr.bf16.mxu0 %v2285
  %3423 = vmatpush1.bf16.msra.mxu0 %v2284
  %3424 = vmatprep.subr.bf16.mxu0 %v2306
  %3425 = vmatpush1.bf16.msra.mxu0 %v2305
  %3426 = vmatprep.subr.bf16.mxu0 %v2327
  %3427 = vmatpush1.bf16.msra.mxu0 %v2326
  %3428 = vmatprep.subr.bf16.mxu0 %v2348
  %3429 = vmatpush1.bf16.msra.mxu0 %v2347
  %3430 = vmatprep.subr.bf16.mxu0 %v2369
  %3431 = vmatpush1.bf16.msra.mxu0 %v2368
  %3432 = vmatprep.subr.bf16.mxu0 %v2390
  %3433 = vmatpush1.bf16.msra.mxu0 %v2389
  %3434 = vmatprep.subr.bf16.mxu0 %v2411
  %3435 = vmatpush1.bf16.msra.mxu0 %v2410
  %3436 = vmatprep.subr.bf16.mxu0 %v2432
  %3437 = vmatpush1.bf16.msra.mxu0 %v2431
  %3438 = vmatprep.subr.bf16.mxu0 %v2453
  %3439 = vmatpush1.bf16.msra.mxu0 %v2452
  %3440 = vmatprep.subr.bf16.mxu0 %v2474
  %3441 = vmatpush1.bf16.msra.mxu0 %v2473
  %3442 = vmatprep.subr.bf16.mxu0 %v2495
  %3443 = vmatpush1.bf16.msra.mxu0 %v2494
  %3444 = vmatprep.subr.bf16.mxu0 %v2516
  %3445 = vmatpush1.bf16.msra.mxu0 %v2515
  %3446 = vmatprep.mubr.bf16.mxu0 %v591
  %3447 = vmatmul.mubr.bf16.gmra.mrb[0].mxu0 %v583
  %v3448 = vpop.f32.mrb[0].mxu0
  %v3449 = vadd.f32 %v573, %v3448
  %v3450 = vpop.f32.mrb[0].mxu0
  %v3451 = vadd.f32 %v573, %v3450
  %v3452 = vpop.f32.mrb[0].mxu0
  %v3453 = vpop.f32.mrb[0].mxu0
  %3454 = vdwg.mxu0
  %3455 = vmatprep.subr.bf16.mxu0 %v2537
  %3456 = vmatpush1.bf16.msra.mxu0 %v2536
  %3457 = vmatprep.subr.bf16.mxu0 %v2558
  %3458 = vmatpush1.bf16.msra.mxu0 %v2557
  %3459 = vmatprep.subr.bf16.mxu0 %v2579
  %3460 = vmatpush1.bf16.msra.mxu0 %v2578
  %3461 = vmatprep.subr.bf16.mxu0 %v2600
  %3462 = vmatpush1.bf16.msra.mxu0 %v2599
  %3463 = vmatprep.subr.bf16.mxu0 %v2621
  %3464 = vmatpush1.bf16.msra.mxu0 %v2620
  %3465 = vmatprep.subr.bf16.mxu0 %v2642
  %3466 = vmatpush1.bf16.msra.mxu0 %v2641
  %3467 = vmatprep.subr.bf16.mxu0 %v2663
  %3468 = vmatpush1.bf16.msra.mxu0 %v2662
  %3469 = vmatprep.subr.bf16.mxu0 %v2684
  %3470 = vmatpush1.bf16.msra.mxu0 %v2683
  %3471 = vmatprep.subr.bf16.mxu0 %v2705
  %3472 = vmatpush1.bf16.msra.mxu0 %v2704
  %3473 = vmatprep.subr.bf16.mxu0 0
  %3474 = vmatpush1.bf16.msra.mxu0 0
  %3475 = vmatprep.subr.bf16.mxu0 0
  %3476 = vmatpush1.bf16.msra.mxu0 0
  %3477 = vmatprep.subr.bf16.mxu0 0
  %3478 = vmatpush1.bf16.msra.mxu0 0
  %3479 = vmatprep.subr.bf16.mxu0 0
  %3480 = vmatpush1.bf16.msra.mxu0 0
  %3481 = vmatprep.subr.bf16.mxu0 0
  %3482 = vmatpush1.bf16.msra.mxu0 0
  %3483 = vmatprep.subr.bf16.mxu0 0
  %3484 = vmatpush1.bf16.msra.mxu0 0
  %3485 = vmatprep.subr.bf16.mxu0 0
  %3486 = vmatpush1.bf16.msra.mxu0 0
  %3487 = vmatprep.mubr.bf16.mxu0 %v3248
  %3488 = vmatmul.mubr.bf16.gmra.mrb[0].mxu0 %v590
  %v3489 = vpop.f32.mrb[0].mxu0
  %v3490 = vadd.f32 %v3449, %v3489
  %v3491 = vpop.f32.mrb[0].mxu0
  %v3492 = vadd.f32 %v3451, %v3491
  %v3493 = vpop.f32.mrb[0].mxu0
  %v3494 = vpop.f32.mrb[0].mxu0
  %3495 = vdwg.mxu0
  %3496 = vmatprep.subr.bf16.mxu0 %v2203
  %3497 = vmatpush1.bf16.msra.mxu0 %v2202
  %3498 = vmatprep.subr.bf16.mxu0 %v2224
  %3499 = vmatpush1.bf16.msra.mxu0 %v2223
  %3500 = vmatprep.subr.bf16.mxu0 %v2245
  %3501 = vmatpush1.bf16.msra.mxu0 %v2244
  %3502 = vmatprep.subr.bf16.mxu0 %v2266
  %3503 = vmatpush1.bf16.msra.mxu0 %v2265
  %3504 = vmatprep.subr.bf16.mxu0 %v2287
  %3505 = vmatpush1.bf16.msra.mxu0 %v2286
  %3506 = vmatprep.subr.bf16.mxu0 %v2308
  %3507 = vmatpush1.bf16.msra.mxu0 %v2307
  %3508 = vmatprep.subr.bf16.mxu0 %v2329
  %3509 = vmatpush1.bf16.msra.mxu0 %v2328
  %3510 = vmatprep.subr.bf16.mxu0 %v2350
  %3511 = vmatpush1.bf16.msra.mxu0 %v2349
  %3512 = vmatprep.subr.bf16.mxu0 %v2371
  %3513 = vmatpush1.bf16.msra.mxu0 %v2370
  %3514 = vmatprep.subr.bf16.mxu0 %v2392
  %3515 = vmatpush1.bf16.msra.mxu0 %v2391
  %3516 = vmatprep.subr.bf16.mxu0 %v2413
  %3517 = vmatpush1.bf16.msra.mxu0 %v2412
  %3518 = vmatprep.subr.bf16.mxu0 %v2434
  %3519 = vmatpush1.bf16.msra.mxu0 %v2433
  %3520 = vmatprep.subr.bf16.mxu0 %v2455
  %3521 = vmatpush1.bf16.msra.mxu0 %v2454
  %3522 = vmatprep.subr.bf16.mxu0 %v2476
  %3523 = vmatpush1.bf16.msra.mxu0 %v2475
  %3524 = vmatprep.subr.bf16.mxu0 %v2497
  %3525 = vmatpush1.bf16.msra.mxu0 %v2496
  %3526 = vmatprep.subr.bf16.mxu0 %v2518
  %3527 = vmatpush1.bf16.msra.mxu0 %v2517
  %3528 = vmatprep.mubr.bf16.mxu0 %v591
  %3529 = vmatmul.mubr.bf16.gmra.mrb[0].mxu0 %v583
  %v3530 = vpop.f32.mrb[0].mxu0
  %v3531 = vadd.f32 %v573, %v3530
  %v3532 = vpop.f32.mrb[0].mxu0
  %v3533 = vadd.f32 %v573, %v3532
  %v3534 = vpop.f32.mrb[0].mxu0
  %v3535 = vpop.f32.mrb[0].mxu0
  %3536 = vdwg.mxu0
  %3537 = vmatprep.subr.bf16.mxu0 %v2539
  %3538 = vmatpush1.bf16.msra.mxu0 %v2538
  %3539 = vmatprep.subr.bf16.mxu0 %v2560
  %3540 = vmatpush1.bf16.msra.mxu0 %v2559
  %3541 = vmatprep.subr.bf16.mxu0 %v2581
  %3542 = vmatpush1.bf16.msra.mxu0 %v2580
  %3543 = vmatprep.subr.bf16.mxu0 %v2602
  %3544 = vmatpush1.bf16.msra.mxu0 %v2601
  %3545 = vmatprep.subr.bf16.mxu0 %v2623
  %3546 = vmatpush1.bf16.msra.mxu0 %v2622
  %3547 = vmatprep.subr.bf16.mxu0 %v2644
  %3548 = vmatpush1.bf16.msra.mxu0 %v2643
  %3549 = vmatprep.subr.bf16.mxu0 %v2665
  %3550 = vmatpush1.bf16.msra.mxu0 %v2664
  %3551 = vmatprep.subr.bf16.mxu0 %v2686
  %3552 = vmatpush1.bf16.msra.mxu0 %v2685
  %3553 = vmatprep.subr.bf16.mxu0 %v2707
  %3554 = vmatpush1.bf16.msra.mxu0 %v2706
  %3555 = vmatprep.subr.bf16.mxu0 0
  %3556 = vmatpush1.bf16.msra.mxu0 0
  %3557 = vmatprep.subr.bf16.mxu0 0
  %3558 = vmatpush1.bf16.msra.mxu0 0
  %3559 = vmatprep.subr.bf16.mxu0 0
  %3560 = vmatpush1.bf16.msra.mxu0 0
  %3561 = vmatprep.subr.bf16.mxu0 0
  %3562 = vmatpush1.bf16.msra.mxu0 0
  %3563 = vmatprep.subr.bf16.mxu0 0
  %3564 = vmatpush1.bf16.msra.mxu0 0
  %3565 = vmatprep.subr.bf16.mxu0 0
  %3566 = vmatpush1.bf16.msra.mxu0 0
  %3567 = vmatprep.subr.bf16.mxu0 0
  %3568 = vmatpush1.bf16.msra.mxu0 0
  %3569 = vmatprep.mubr.bf16.mxu0 %v3248
  %3570 = vmatmul.mubr.bf16.gmra.mrb[0].mxu0 %v590
  %v3571 = vpop.f32.mrb[0].mxu0
  %v3572 = vadd.f32 %v3531, %v3571
  %v3573 = vpop.f32.mrb[0].mxu0
  %v3574 = vadd.f32 %v3533, %v3573
  %v3575 = vpop.f32.mrb[0].mxu0
  %v3576 = vpop.f32.mrb[0].mxu0
  %3577 = vdwg.mxu0
  %3578 = vmatprep.subr.bf16.mxu0 %v2205
  %3579 = vmatpush1.bf16.msra.mxu0 %v2204
  %3580 = vmatprep.subr.bf16.mxu0 %v2226
  %3581 = vmatpush1.bf16.msra.mxu0 %v2225
  %3582 = vmatprep.subr.bf16.mxu0 %v2247
  %3583 = vmatpush1.bf16.msra.mxu0 %v2246
  %3584 = vmatprep.subr.bf16.mxu0 %v2268
  %3585 = vmatpush1.bf16.msra.mxu0 %v2267
  %3586 = vmatprep.subr.bf16.mxu0 %v2289
  %3587 = vmatpush1.bf16.msra.mxu0 %v2288
  %3588 = vmatprep.subr.bf16.mxu0 %v2310
  %3589 = vmatpush1.bf16.msra.mxu0 %v2309
  %3590 = vmatprep.subr.bf16.mxu0 %v2331
  %3591 = vmatpush1.bf16.msra.mxu0 %v2330
  %3592 = vmatprep.subr.bf16.mxu0 %v2352
  %3593 = vmatpush1.bf16.msra.mxu0 %v2351
  %3594 = vmatprep.subr.bf16.mxu0 %v2373
  %3595 = vmatpush1.bf16.msra.mxu0 %v2372
  %3596 = vmatprep.subr.bf16.mxu0 %v2394
  %3597 = vmatpush1.bf16.msra.mxu0 %v2393
  %3598 = vmatprep.subr.bf16.mxu0 %v2415
  %3599 = vmatpush1.bf16.msra.mxu0 %v2414
  %3600 = vmatprep.subr.bf16.mxu0 %v2436
  %3601 = vmatpush1.bf16.msra.mxu0 %v2435
  %3602 = vmatprep.subr.bf16.mxu0 %v2457
  %3603 = vmatpush1.bf16.msra.mxu0 %v2456
  %3604 = vmatprep.subr.bf16.mxu0 %v2478
  %3605 = vmatpush1.bf16.msra.mxu0 %v2477
  %3606 = vmatprep.subr.bf16.mxu0 %v2499
  %3607 = vmatpush1.bf16.msra.mxu0 %v2498
  %3608 = vmatprep.subr.bf16.mxu0 %v2520
  %3609 = vmatpush1.bf16.msra.mxu0 %v2519
  %3610 = vmatprep.mubr.bf16.mxu0 %v591
  %3611 = vmatmul.mubr.bf16.gmra.mrb[0].mxu0 %v583
  %v3612 = vpop.f32.mrb[0].mxu0
  %v3613 = vadd.f32 %v573, %v3612
  %v3614 = vpop.f32.mrb[0].mxu0
  %v3615 = vadd.f32 %v573, %v3614
  %v3616 = vpop.f32.mrb[0].mxu0
  %v3617 = vpop.f32.mrb[0].mxu0
  %3618 = vdwg.mxu0
  %3619 = vmatprep.subr.bf16.mxu0 %v2541
  %3620 = vmatpush1.bf16.msra.mxu0 %v2540
  %3621 = vmatprep.subr.bf16.mxu0 %v2562
  %3622 = vmatpush1.bf16.msra.mxu0 %v2561
  %3623 = vmatprep.subr.bf16.mxu0 %v2583
  %3624 = vmatpush1.bf16.msra.mxu0 %v2582
  %3625 = vmatprep.subr.bf16.mxu0 %v2604
  %3626 = vmatpush1.bf16.msra.mxu0 %v2603
  %3627 = vmatprep.subr.bf16.mxu0 %v2625
  %3628 = vmatpush1.bf16.msra.mxu0 %v2624
  %3629 = vmatprep.subr.bf16.mxu0 %v2646
  %3630 = vmatpush1.bf16.msra.mxu0 %v2645
  %3631 = vmatprep.subr.bf16.mxu0 %v2667
  %3632 = vmatpush1.bf16.msra.mxu0 %v2666
  %3633 = vmatprep.subr.bf16.mxu0 %v2688
  %3634 = vmatpush1.bf16.msra.mxu0 %v2687
  %3635 = vmatprep.subr.bf16.mxu0 %v2709
  %3636 = vmatpush1.bf16.msra.mxu0 %v2708
  %3637 = vmatprep.subr.bf16.mxu0 0
  %3638 = vmatpush1.bf16.msra.mxu0 0
  %3639 = vmatprep.subr.bf16.mxu0 0
  %3640 = vmatpush1.bf16.msra.mxu0 0
  %3641 = vmatprep.subr.bf16.mxu0 0
  %3642 = vmatpush1.bf16.msra.mxu0 0
  %3643 = vmatprep.subr.bf16.mxu0 0
  %3644 = vmatpush1.bf16.msra.mxu0 0
  %3645 = vmatprep.subr.bf16.mxu0 0
  %3646 = vmatpush1.bf16.msra.mxu0 0
  %3647 = vmatprep.subr.bf16.mxu0 0
  %3648 = vmatpush1.bf16.msra.mxu0 0
  %3649 = vmatprep.subr.bf16.mxu0 0
  %3650 = vmatpush1.bf16.msra.mxu0 0
  %3651 = vmatprep.mubr.bf16.mxu0 %v3248
  %3652 = vmatmul.mubr.bf16.gmra.mrb[0].mxu0 %v590
  %v3653 = vpop.f32.mrb[0].mxu0
  %v3654 = vadd.f32 %v3613, %v3653
  %v3655 = vpop.f32.mrb[0].mxu0
  %v3656 = vadd.f32 %v3615, %v3655
  %v3657 = vpop.f32.mrb[0].mxu0
  %v3658 = vpop.f32.mrb[0].mxu0
  %3659 = vdwg.mxu0
  %3660 = vmatprep.subr.bf16.mxu0 %v2207
  %3661 = vmatpush1.bf16.msra.mxu0 %v2206
  %3662 = vmatprep.subr.bf16.mxu0 %v2228
  %3663 = vmatpush1.bf16.msra.mxu0 %v2227
  %3664 = vmatprep.subr.bf16.mxu0 %v2249
  %3665 = vmatpush1.bf16.msra.mxu0 %v2248
  %3666 = vmatprep.subr.bf16.mxu0 %v2270
  %3667 = vmatpush1.bf16.msra.mxu0 %v2269
  %3668 = vmatprep.subr.bf16.mxu0 %v2291
  %3669 = vmatpush1.bf16.msra.mxu0 %v2290
  %3670 = vmatprep.subr.bf16.mxu0 %v2312
  %3671 = vmatpush1.bf16.msra.mxu0 %v2311
  %3672 = vmatprep.subr.bf16.mxu0 %v2333
  %3673 = vmatpush1.bf16.msra.mxu0 %v2332
  %3674 = vmatprep.subr.bf16.mxu0 %v2354
  %3675 = vmatpush1.bf16.msra.mxu0 %v2353
  %3676 = vmatprep.subr.bf16.mxu0 %v2375
  %3677 = vmatpush1.bf16.msra.mxu0 %v2374
  %3678 = vmatprep.subr.bf16.mxu0 %v2396
  %3679 = vmatpush1.bf16.msra.mxu0 %v2395
  %3680 = vmatprep.subr.bf16.mxu0 %v2417
  %3681 = vmatpush1.bf16.msra.mxu0 %v2416
  %3682 = vmatprep.subr.bf16.mxu0 %v2438
  %3683 = vmatpush1.bf16.msra.mxu0 %v2437
  %3684 = vmatprep.subr.bf16.mxu0 %v2459
  %3685 = vmatpush1.bf16.msra.mxu0 %v2458
  %3686 = vmatprep.subr.bf16.mxu0 %v2480
  %3687 = vmatpush1.bf16.msra.mxu0 %v2479
  %3688 = vmatprep.subr.bf16.mxu0 %v2501
  %3689 = vmatpush1.bf16.msra.mxu0 %v2500
  %3690 = vmatprep.subr.bf16.mxu0 %v2522
  %3691 = vmatpush1.bf16.msra.mxu0 %v2521
  %3692 = vmatprep.mubr.bf16.mxu0 %v591
  %3693 = vmatmul.mubr.bf16.gmra.mrb[0].mxu0 %v583
  %v3694 = vpop.f32.mrb[0].mxu0
  %v3695 = vadd.f32 %v573, %v3694
  %v3696 = vpop.f32.mrb[0].mxu0
  %v3697 = vadd.f32 %v573, %v3696
  %v3698 = vpop.f32.mrb[0].mxu0
  %v3699 = vpop.f32.mrb[0].mxu0
  %3700 = vdwg.mxu0
  %3701 = vmatprep.subr.bf16.mxu0 %v2543
  %3702 = vmatpush1.bf16.msra.mxu0 %v2542
  %3703 = vmatprep.subr.bf16.mxu0 %v2564
  %3704 = vmatpush1.bf16.msra.mxu0 %v2563
  %3705 = vmatprep.subr.bf16.mxu0 %v2585
  %3706 = vmatpush1.bf16.msra.mxu0 %v2584
  %3707 = vmatprep.subr.bf16.mxu0 %v2606
  %3708 = vmatpush1.bf16.msra.mxu0 %v2605
  %3709 = vmatprep.subr.bf16.mxu0 %v2627
  %3710 = vmatpush1.bf16.msra.mxu0 %v2626
  %3711 = vmatprep.subr.bf16.mxu0 %v2648
  %3712 = vmatpush1.bf16.msra.mxu0 %v2647
  %3713 = vmatprep.subr.bf16.mxu0 %v2669
  %3714 = vmatpush1.bf16.msra.mxu0 %v2668
  %3715 = vmatprep.subr.bf16.mxu0 %v2690
  %3716 = vmatpush1.bf16.msra.mxu0 %v2689
  %3717 = vmatprep.subr.bf16.mxu0 %v2711
  %3718 = vmatpush1.bf16.msra.mxu0 %v2710
  %3719 = vmatprep.subr.bf16.mxu0 0
  %3720 = vmatpush1.bf16.msra.mxu0 0
  %3721 = vmatprep.subr.bf16.mxu0 0
  %3722 = vmatpush1.bf16.msra.mxu0 0
  %3723 = vmatprep.subr.bf16.mxu0 0
  %3724 = vmatpush1.bf16.msra.mxu0 0
  %3725 = vmatprep.subr.bf16.mxu0 0
  %3726 = vmatpush1.bf16.msra.mxu0 0
  %3727 = vmatprep.subr.bf16.mxu0 0
  %3728 = vmatpush1.bf16.msra.mxu0 0
  %3729 = vmatprep.subr.bf16.mxu0 0
  %3730 = vmatpush1.bf16.msra.mxu0 0
  %3731 = vmatprep.subr.bf16.mxu0 0
  %3732 = vmatpush1.bf16.msra.mxu0 0
  %3733 = vmatprep.mubr.bf16.mxu0 %v3248
  %3734 = vmatmul.mubr.bf16.gmra.mrb[0].mxu0 %v590
  %v3735 = vpop.f32.mrb[0].mxu0
  %v3736 = vadd.f32 %v3695, %v3735
  %v3737 = vpop.f32.mrb[0].mxu0
  %v3738 = vadd.f32 %v3697, %v3737
  %v3739 = vpop.f32.mrb[0].mxu0
  %v3740 = vpop.f32.mrb[0].mxu0
  %3741 = vdwg.mxu0
  %3742 = vmatprep.subr.bf16.mxu0 %v2209
  %3743 = vmatpush1.bf16.msra.mxu0 %v2208
  %3744 = vmatprep.subr.bf16.mxu0 %v2230
  %3745 = vmatpush1.bf16.msra.mxu0 %v2229
  %3746 = vmatprep.subr.bf16.mxu0 %v2251
  %3747 = vmatpush1.bf16.msra.mxu0 %v2250
  %3748 = vmatprep.subr.bf16.mxu0 %v2272
  %3749 = vmatpush1.bf16.msra.mxu0 %v2271
  %3750 = vmatprep.subr.bf16.mxu0 %v2293
  %3751 = vmatpush1.bf16.msra.mxu0 %v2292
  %3752 = vmatprep.subr.bf16.mxu0 %v2314
  %3753 = vmatpush1.bf16.msra.mxu0 %v2313
  %3754 = vmatprep.subr.bf16.mxu0 %v2335
  %3755 = vmatpush1.bf16.msra.mxu0 %v2334
  %3756 = vmatprep.subr.bf16.mxu0 %v2356
  %3757 = vmatpush1.bf16.msra.mxu0 %v2355
  %3758 = vmatprep.subr.bf16.mxu0 %v2377
  %3759 = vmatpush1.bf16.msra.mxu0 %v2376
  %3760 = vmatprep.subr.bf16.mxu0 %v2398
  %3761 = vmatpush1.bf16.msra.mxu0 %v2397
  %3762 = vmatprep.subr.bf16.mxu0 %v2419
  %3763 = vmatpush1.bf16.msra.mxu0 %v2418
  %3764 = vmatprep.subr.bf16.mxu0 %v2440
  %3765 = vmatpush1.bf16.msra.mxu0 %v2439
  %3766 = vmatprep.subr.bf16.mxu0 %v2461
  %3767 = vmatpush1.bf16.msra.mxu0 %v2460
  %3768 = vmatprep.subr.bf16.mxu0 %v2482
  %3769 = vmatpush1.bf16.msra.mxu0 %v2481
  %3770 = vmatprep.subr.bf16.mxu0 %v2503
  %3771 = vmatpush1.bf16.msra.mxu0 %v2502
  %3772 = vmatprep.subr.bf16.mxu0 %v2524
  %3773 = vmatpush1.bf16.msra.mxu0 %v2523
  %3774 = vmatprep.mubr.bf16.mxu0 %v591
  %3775 = vmatmul.mubr.bf16.gmra.mrb[0].mxu0 %v583
  %v3776 = vpop.f32.mrb[0].mxu0
  %v3777 = vadd.f32 %v573, %v3776
  %v3778 = vpop.f32.mrb[0].mxu0
  %v3779 = vadd.f32 %v573, %v3778
  %v3780 = vpop.f32.mrb[0].mxu0
  %v3781 = vpop.f32.mrb[0].mxu0
  %3782 = vdwg.mxu0
  %3783 = vmatprep.subr.bf16.mxu0 %v2545
  %3784 = vmatpush1.bf16.msra.mxu0 %v2544
  %3785 = vmatprep.subr.bf16.mxu0 %v2566
  %3786 = vmatpush1.bf16.msra.mxu0 %v2565
  %3787 = vmatprep.subr.bf16.mxu0 %v2587
  %3788 = vmatpush1.bf16.msra.mxu0 %v2586
  %3789 = vmatprep.subr.bf16.mxu0 %v2608
  %3790 = vmatpush1.bf16.msra.mxu0 %v2607
  %3791 = vmatprep.subr.bf16.mxu0 %v2629
  %3792 = vmatpush1.bf16.msra.mxu0 %v2628
  %3793 = vmatprep.subr.bf16.mxu0 %v2650
  %3794 = vmatpush1.bf16.msra.mxu0 %v2649
  %3795 = vmatprep.subr.bf16.mxu0 %v2671
  %3796 = vmatpush1.bf16.msra.mxu0 %v2670
  %3797 = vmatprep.subr.bf16.mxu0 %v2692
  %3798 = vmatpush1.bf16.msra.mxu0 %v2691
  %3799 = vmatprep.subr.bf16.mxu0 %v2713
  %3800 = vmatpush1.bf16.msra.mxu0 %v2712
  %3801 = vmatprep.subr.bf16.mxu0 0
  %3802 = vmatpush1.bf16.msra.mxu0 0
  %3803 = vmatprep.subr.bf16.mxu0 0
  %3804 = vmatpush1.bf16.msra.mxu0 0
  %3805 = vmatprep.subr.bf16.mxu0 0
  %3806 = vmatpush1.bf16.msra.mxu0 0
  %3807 = vmatprep.subr.bf16.mxu0 0
  %3808 = vmatpush1.bf16.msra.mxu0 0
  %3809 = vmatprep.subr.bf16.mxu0 0
  %3810 = vmatpush1.bf16.msra.mxu0 0
  %3811 = vmatprep.subr.bf16.mxu0 0
  %3812 = vmatpush1.bf16.msra.mxu0 0
  %3813 = vmatprep.subr.bf16.mxu0 0
  %3814 = vmatpush1.bf16.msra.mxu0 0
  %3815 = vmatprep.mubr.bf16.mxu0 %v3248
  %3816 = vmatmul.mubr.bf16.gmra.mrb[0].mxu0 %v590
  %v3817 = vpop.f32.mrb[0].mxu0
  %v3818 = vadd.f32 %v3777, %v3817
  %v3819 = vpop.f32.mrb[0].mxu0
  %v3820 = vadd.f32 %v3779, %v3819
  %v3821 = vpop.f32.mrb[0].mxu0
  %v3822 = vpop.f32.mrb[0].mxu0
  %3823 = vdwg.mxu0
  %3824 = vmatprep.subr.bf16.mxu0 %v2211
  %3825 = vmatpush1.bf16.msra.mxu0 %v2210
  %3826 = vmatprep.subr.bf16.mxu0 %v2232
  %3827 = vmatpush1.bf16.msra.mxu0 %v2231
  %3828 = vmatprep.subr.bf16.mxu0 %v2253
  %3829 = vmatpush1.bf16.msra.mxu0 %v2252
  %3830 = vmatprep.subr.bf16.mxu0 %v2274
  %3831 = vmatpush1.bf16.msra.mxu0 %v2273
  %3832 = vmatprep.subr.bf16.mxu0 %v2295
  %3833 = vmatpush1.bf16.msra.mxu0 %v2294
  %3834 = vmatprep.subr.bf16.mxu0 %v2316
  %3835 = vmatpush1.bf16.msra.mxu0 %v2315
  %3836 = vmatprep.subr.bf16.mxu0 %v2337
  %3837 = vmatpush1.bf16.msra.mxu0 %v2336
  %3838 = vmatprep.subr.bf16.mxu0 %v2358
  %3839 = vmatpush1.bf16.msra.mxu0 %v2357
  %3840 = vmatprep.subr.bf16.mxu0 %v2379
  %3841 = vmatpush1.bf16.msra.mxu0 %v2378
  %3842 = vmatprep.subr.bf16.mxu0 %v2400
  %3843 = vmatpush1.bf16.msra.mxu0 %v2399
  %3844 = vmatprep.subr.bf16.mxu0 %v2421
  %3845 = vmatpush1.bf16.msra.mxu0 %v2420
  %3846 = vmatprep.subr.bf16.mxu0 %v2442
  %3847 = vmatpush1.bf16.msra.mxu0 %v2441
  %3848 = vmatprep.subr.bf16.mxu0 %v2463
  %3849 = vmatpush1.bf16.msra.mxu0 %v2462
  %3850 = vmatprep.subr.bf16.mxu0 %v2484
  %3851 = vmatpush1.bf16.msra.mxu0 %v2483
  %3852 = vmatprep.subr.bf16.mxu0 %v2505
  %3853 = vmatpush1.bf16.msra.mxu0 %v2504
  %3854 = vmatprep.subr.bf16.mxu0 %v2526
  %3855 = vmatpush1.bf16.msra.mxu0 %v2525
  %3856 = vmatprep.mubr.bf16.mxu0 %v591
  %3857 = vmatmul.mubr.bf16.gmra.mrb[0].mxu0 %v583
  %v3858 = vpop.f32.mrb[0].mxu0
  %v3859 = vadd.f32 %v573, %v3858
  %v3860 = vpop.f32.mrb[0].mxu0
  %v3861 = vadd.f32 %v573, %v3860
  %v3862 = vpop.f32.mrb[0].mxu0
  %v3863 = vpop.f32.mrb[0].mxu0
  %3864 = vdwg.mxu0
  %3865 = vmatprep.subr.bf16.mxu0 %v2547
  %3866 = vmatpush1.bf16.msra.mxu0 %v2546
  %3867 = vmatprep.subr.bf16.mxu0 %v2568
  %3868 = vmatpush1.bf16.msra.mxu0 %v2567
  %3869 = vmatprep.subr.bf16.mxu0 %v2589
  %3870 = vmatpush1.bf16.msra.mxu0 %v2588
  %3871 = vmatprep.subr.bf16.mxu0 %v2610
  %3872 = vmatpush1.bf16.msra.mxu0 %v2609
  %3873 = vmatprep.subr.bf16.mxu0 %v2631
  %3874 = vmatpush1.bf16.msra.mxu0 %v2630
  %3875 = vmatprep.subr.bf16.mxu0 %v2652
  %3876 = vmatpush1.bf16.msra.mxu0 %v2651
  %3877 = vmatprep.subr.bf16.mxu0 %v2673
  %3878 = vmatpush1.bf16.msra.mxu0 %v2672
  %3879 = vmatprep.subr.bf16.mxu0 %v2694
  %3880 = vmatpush1.bf16.msra.mxu0 %v2693
  %3881 = vmatprep.subr.bf16.mxu0 %v2715
  %3882 = vmatpush1.bf16.msra.mxu0 %v2714
  %3883 = vmatprep.subr.bf16.mxu0 0
  %3884 = vmatpush1.bf16.msra.mxu0 0
  %3885 = vmatprep.subr.bf16.mxu0 0
  %3886 = vmatpush1.bf16.msra.mxu0 0
  %3887 = vmatprep.subr.bf16.mxu0 0
  %3888 = vmatpush1.bf16.msra.mxu0 0
  %3889 = vmatprep.subr.bf16.mxu0 0
  %3890 = vmatpush1.bf16.msra.mxu0 0
  %3891 = vmatprep.subr.bf16.mxu0 0
  %3892 = vmatpush1.bf16.msra.mxu0 0
  %3893 = vmatprep.subr.bf16.mxu0 0
  %3894 = vmatpush1.bf16.msra.mxu0 0
  %3895 = vmatprep.subr.bf16.mxu0 0
  %3896 = vmatpush1.bf16.msra.mxu0 0
  %3897 = vmatprep.mubr.bf16.mxu0 %v3248
  %3898 = vmatmul.mubr.bf16.gmra.mrb[0].mxu0 %v590
  %v3899 = vpop.f32.mrb[0].mxu0
  %v3900 = vadd.f32 %v3859, %v3899
  %v3901 = vpop.f32.mrb[0].mxu0
  %v3902 = vadd.f32 %v3861, %v3901
  %v3903 = vpop.f32.mrb[0].mxu0
  %v3904 = vpop.f32.mrb[0].mxu0
  %3905 = vdwg.mxu0
  %3906 = vmatprep.subr.bf16.mxu0 %v2213
  %3907 = vmatpush1.bf16.msra.mxu0 %v2212
  %3908 = vmatprep.subr.bf16.mxu0 %v2234
  %3909 = vmatpush1.bf16.msra.mxu0 %v2233
  %3910 = vmatprep.subr.bf16.mxu0 %v2255
  %3911 = vmatpush1.bf16.msra.mxu0 %v2254
  %3912 = vmatprep.subr.bf16.mxu0 %v2276
  %3913 = vmatpush1.bf16.msra.mxu0 %v2275
  %3914 = vmatprep.subr.bf16.mxu0 %v2297
  %3915 = vmatpush1.bf16.msra.mxu0 %v2296
  %3916 = vmatprep.subr.bf16.mxu0 %v2318
  %3917 = vmatpush1.bf16.msra.mxu0 %v2317
  %3918 = vmatprep.subr.bf16.mxu0 %v2339
  %3919 = vmatpush1.bf16.msra.mxu0 %v2338
  %3920 = vmatprep.subr.bf16.mxu0 %v2360
  %3921 = vmatpush1.bf16.msra.mxu0 %v2359
  %3922 = vmatprep.subr.bf16.mxu0 %v2381
  %3923 = vmatpush1.bf16.msra.mxu0 %v2380
  %3924 = vmatprep.subr.bf16.mxu0 %v2402
  %3925 = vmatpush1.bf16.msra.mxu0 %v2401
  %3926 = vmatprep.subr.bf16.mxu0 %v2423
  %3927 = vmatpush1.bf16.msra.mxu0 %v2422
  %3928 = vmatprep.subr.bf16.mxu0 %v2444
  %3929 = vmatpush1.bf16.msra.mxu0 %v2443
  %3930 = vmatprep.subr.bf16.mxu0 %v2465
  %3931 = vmatpush1.bf16.msra.mxu0 %v2464
  %3932 = vmatprep.subr.bf16.mxu0 %v2486
  %3933 = vmatpush1.bf16.msra.mxu0 %v2485
  %3934 = vmatprep.subr.bf16.mxu0 %v2507
  %3935 = vmatpush1.bf16.msra.mxu0 %v2506
  %3936 = vmatprep.subr.bf16.mxu0 %v2528
  %3937 = vmatpush1.bf16.msra.mxu0 %v2527
  %3938 = vmatprep.mubr.bf16.mxu0 %v591
  %3939 = vmatmul.mubr.bf16.gmra.mrb[0].mxu0 %v583
  %v3940 = vpop.f32.mrb[0].mxu0
  %v3941 = vadd.f32 %v573, %v3940
  %v3942 = vpop.f32.mrb[0].mxu0
  %v3943 = vadd.f32 %v573, %v3942
  %v3944 = vpop.f32.mrb[0].mxu0
  %v3945 = vpop.f32.mrb[0].mxu0
  %3946 = vdwg.mxu0
  %3947 = vmatprep.subr.bf16.mxu0 %v2549
  %3948 = vmatpush1.bf16.msra.mxu0 %v2548
  %3949 = vmatprep.subr.bf16.mxu0 %v2570
  %3950 = vmatpush1.bf16.msra.mxu0 %v2569
  %3951 = vmatprep.subr.bf16.mxu0 %v2591
  %3952 = vmatpush1.bf16.msra.mxu0 %v2590
  %3953 = vmatprep.subr.bf16.mxu0 %v2612
  %3954 = vmatpush1.bf16.msra.mxu0 %v2611
  %3955 = vmatprep.subr.bf16.mxu0 %v2633
  %3956 = vmatpush1.bf16.msra.mxu0 %v2632
  %3957 = vmatprep.subr.bf16.mxu0 %v2654
  %3958 = vmatpush1.bf16.msra.mxu0 %v2653
  %3959 = vmatprep.subr.bf16.mxu0 %v2675
  %3960 = vmatpush1.bf16.msra.mxu0 %v2674
  %3961 = vmatprep.subr.bf16.mxu0 %v2696
  %3962 = vmatpush1.bf16.msra.mxu0 %v2695
  %3963 = vmatprep.subr.bf16.mxu0 %v2717
  %3964 = vmatpush1.bf16.msra.mxu0 %v2716
  %3965 = vmatprep.subr.bf16.mxu0 0
  %3966 = vmatpush1.bf16.msra.mxu0 0
  %3967 = vmatprep.subr.bf16.mxu0 0
  %3968 = vmatpush1.bf16.msra.mxu0 0
  %3969 = vmatprep.subr.bf16.mxu0 0
  %3970 = vmatpush1.bf16.msra.mxu0 0
  %3971 = vmatprep.subr.bf16.mxu0 0
  %3972 = vmatpush1.bf16.msra.mxu0 0
  %3973 = vmatprep.subr.bf16.mxu0 0
  %3974 = vmatpush1.bf16.msra.mxu0 0
  %3975 = vmatprep.subr.bf16.mxu0 0
  %3976 = vmatpush1.bf16.msra.mxu0 0
  %3977 = vmatprep.subr.bf16.mxu0 0
  %3978 = vmatpush1.bf16.msra.mxu0 0
  %3979 = vmatprep.mubr.bf16.mxu0 %v3248
  %3980 = vmatmul.mubr.bf16.gmra.mrb[0].mxu0 %v590
  %v3981 = vpop.f32.mrb[0].mxu0
  %v3982 = vadd.f32 %v3941, %v3981
  %v3983 = vpop.f32.mrb[0].mxu0
  %v3984 = vadd.f32 %v3943, %v3983
  %v3985 = vpop.f32.mrb[0].mxu0
  %v3986 = vpop.f32.mrb[0].mxu0
  %3987 = vdwg.mxu0
  %3988 = vmatprep.subr.bf16.mxu0 %v2215
  %3989 = vmatpush1.bf16.msra.mxu0 %v2214
  %3990 = vmatprep.subr.bf16.mxu0 %v2236
  %3991 = vmatpush1.bf16.msra.mxu0 %v2235
  %3992 = vmatprep.subr.bf16.mxu0 %v2257
  %3993 = vmatpush1.bf16.msra.mxu0 %v2256
  %3994 = vmatprep.subr.bf16.mxu0 %v2278
  %3995 = vmatpush1.bf16.msra.mxu0 %v2277
  %3996 = vmatprep.subr.bf16.mxu0 %v2299
  %3997 = vmatpush1.bf16.msra.mxu0 %v2298
  %3998 = vmatprep.subr.bf16.mxu0 %v2320
  %3999 = vmatpush1.bf16.msra.mxu0 %v2319
  %4000 = vmatprep.subr.bf16.mxu0 %v2341
  %4001 = vmatpush1.bf16.msra.mxu0 %v2340
  %4002 = vmatprep.subr.bf16.mxu0 %v2362
  %4003 = vmatpush1.bf16.msra.mxu0 %v2361
  %4004 = vmatprep.subr.bf16.mxu0 %v2383
  %4005 = vmatpush1.bf16.msra.mxu0 %v2382
  %4006 = vmatprep.subr.bf16.mxu0 %v2404
  %4007 = vmatpush1.bf16.msra.mxu0 %v2403
  %4008 = vmatprep.subr.bf16.mxu0 %v2425
  %4009 = vmatpush1.bf16.msra.mxu0 %v2424
  %4010 = vmatprep.subr.bf16.mxu0 %v2446
  %4011 = vmatpush1.bf16.msra.mxu0 %v2445
  %4012 = vmatprep.subr.bf16.mxu0 %v2467
  %4013 = vmatpush1.bf16.msra.mxu0 %v2466
  %4014 = vmatprep.subr.bf16.mxu0 %v2488
  %4015 = vmatpush1.bf16.msra.mxu0 %v2487
  %4016 = vmatprep.subr.bf16.mxu0 %v2509
  %4017 = vmatpush1.bf16.msra.mxu0 %v2508
  %4018 = vmatprep.subr.bf16.mxu0 %v2530
  %4019 = vmatpush1.bf16.msra.mxu0 %v2529
  %4020 = vmatprep.mubr.bf16.mxu0 %v591
  %4021 = vmatmul.mubr.bf16.gmra.mrb[0].mxu0 %v583
  %v4022 = vpop.f32.mrb[0].mxu0
  %v4023 = vadd.f32 %v573, %v4022
  %v4024 = vpop.f32.mrb[0].mxu0
  %v4025 = vadd.f32 %v573, %v4024
  %v4026 = vpop.f32.mrb[0].mxu0
  %v4027 = vpop.f32.mrb[0].mxu0
  %4028 = vdwg.mxu0
  %4029 = vmatprep.subr.bf16.mxu0 %v2551
  %4030 = vmatpush1.bf16.msra.mxu0 %v2550
  %4031 = vmatprep.subr.bf16.mxu0 %v2572
  %4032 = vmatpush1.bf16.msra.mxu0 %v2571
  %4033 = vmatprep.subr.bf16.mxu0 %v2593
  %4034 = vmatpush1.bf16.msra.mxu0 %v2592
  %4035 = vmatprep.subr.bf16.mxu0 %v2614
  %4036 = vmatpush1.bf16.msra.mxu0 %v2613
  %4037 = vmatprep.subr.bf16.mxu0 %v2635
  %4038 = vmatpush1.bf16.msra.mxu0 %v2634
  %4039 = vmatprep.subr.bf16.mxu0 %v2656
  %4040 = vmatpush1.bf16.msra.mxu0 %v2655
  %4041 = vmatprep.subr.bf16.mxu0 %v2677
  %4042 = vmatpush1.bf16.msra.mxu0 %v2676
  %4043 = vmatprep.subr.bf16.mxu0 %v2698
  %4044 = vmatpush1.bf16.msra.mxu0 %v2697
  %4045 = vmatprep.subr.bf16.mxu0 %v2719
  %4046 = vmatpush1.bf16.msra.mxu0 %v2718
  %4047 = vmatprep.subr.bf16.mxu0 0
  %4048 = vmatpush1.bf16.msra.mxu0 0
  %4049 = vmatprep.subr.bf16.mxu0 0
  %4050 = vmatpush1.bf16.msra.mxu0 0
  %4051 = vmatprep.subr.bf16.mxu0 0
  %4052 = vmatpush1.bf16.msra.mxu0 0
  %4053 = vmatprep.subr.bf16.mxu0 0
  %4054 = vmatpush1.bf16.msra.mxu0 0
  %4055 = vmatprep.subr.bf16.mxu0 0
  %4056 = vmatpush1.bf16.msra.mxu0 0
  %4057 = vmatprep.subr.bf16.mxu0 0
  %4058 = vmatpush1.bf16.msra.mxu0 0
  %4059 = vmatprep.subr.bf16.mxu0 0
  %4060 = vmatpush1.bf16.msra.mxu0 0
  %4061 = vmatprep.mubr.bf16.mxu0 %v3248
  %4062 = vmatmul.mubr.bf16.gmra.mrb[0].mxu0 %v590
  %v4063 = vpop.f32.mrb[0].mxu0
  %v4064 = vadd.f32 %v4023, %v4063
  %v4065 = vpop.f32.mrb[0].mxu0
  %v4066 = vadd.f32 %v4025, %v4065
  %v4067 = vpop.f32.mrb[0].mxu0
  %v4068 = vpop.f32.mrb[0].mxu0
  %4069 = vdwg.mxu0
  %4070 = vmatprep.subr.bf16.mxu0 0
  %4071 = vmatpush1.bf16.msra.mxu0 %v2216
  %4072 = vmatprep.subr.bf16.mxu0 0
  %4073 = vmatpush1.bf16.msra.mxu0 %v2237
  %4074 = vmatprep.subr.bf16.mxu0 0
  %4075 = vmatpush1.bf16.msra.mxu0 %v2258
  %4076 = vmatprep.subr.bf16.mxu0 0
  %4077 = vmatpush1.bf16.msra.mxu0 %v2279
  %4078 = vmatprep.subr.bf16.mxu0 0
  %4079 = vmatpush1.bf16.msra.mxu0 %v2300
  %4080 = vmatprep.subr.bf16.mxu0 0
  %4081 = vmatpush1.bf16.msra.mxu0 %v2321
  %4082 = vmatprep.subr.bf16.mxu0 0
  %4083 = vmatpush1.bf16.msra.mxu0 %v2342
  %4084 = vmatprep.subr.bf16.mxu0 0
  %4085 = vmatpush1.bf16.msra.mxu0 %v2363
  %4086 = vmatprep.subr.bf16.mxu0 0
  %4087 = vmatpush1.bf16.msra.mxu0 %v2384
  %4088 = vmatprep.subr.bf16.mxu0 0
  %4089 = vmatpush1.bf16.msra.mxu0 %v2405
  %4090 = vmatprep.subr.bf16.mxu0 0
  %4091 = vmatpush1.bf16.msra.mxu0 %v2426
  %4092 = vmatprep.subr.bf16.mxu0 0
  %4093 = vmatpush1.bf16.msra.mxu0 %v2447
  %4094 = vmatprep.subr.bf16.mxu0 0
  %4095 = vmatpush1.bf16.msra.mxu0 %v2468
  %4096 = vmatprep.subr.bf16.mxu0 0
  %4097 = vmatpush1.bf16.msra.mxu0 %v2489
  %4098 = vmatprep.subr.bf16.mxu0 0
  %4099 = vmatpush1.bf16.msra.mxu0 %v2510
  %4100 = vmatprep.subr.bf16.mxu0 0
  %4101 = vmatpush1.bf16.msra.mxu0 %v2531
  %4102 = vmatprep.mubr.bf16.mxu0 %v591
  %4103 = vmatmul.mubr.bf16.gmra.mrb[0].mxu0 %v583
  %v4104 = vpop.f32.mrb[0].mxu0
  %v4105 = vadd.f32 %v573, %v4104
  %v4106 = vpop.f32.mrb[0].mxu0
  %v4107 = vpop.f32.mrb[0].mxu0
  %v4108 = vpop.f32.mrb[0].mxu0
  %4109 = vdwg.mxu0
  %4110 = vmatprep.subr.bf16.mxu0 0
  %4111 = vmatpush1.bf16.msra.mxu0 %v2552
  %4112 = vmatprep.subr.bf16.mxu0 0
  %4113 = vmatpush1.bf16.msra.mxu0 %v2573
  %4114 = vmatprep.subr.bf16.mxu0 0
  %4115 = vmatpush1.bf16.msra.mxu0 %v2594
  %4116 = vmatprep.subr.bf16.mxu0 0
  %4117 = vmatpush1.bf16.msra.mxu0 %v2615
  %4118 = vmatprep.subr.bf16.mxu0 0
  %4119 = vmatpush1.bf16.msra.mxu0 %v2636
  %4120 = vmatprep.subr.bf16.mxu0 0
  %4121 = vmatpush1.bf16.msra.mxu0 %v2657
  %4122 = vmatprep.subr.bf16.mxu0 0
  %4123 = vmatpush1.bf16.msra.mxu0 %v2678
  %4124 = vmatprep.subr.bf16.mxu0 0
  %4125 = vmatpush1.bf16.msra.mxu0 %v2699
  %4126 = vmatprep.subr.bf16.mxu0 0
  %4127 = vmatpush1.bf16.msra.mxu0 %v2720
  %4128 = vmatprep.subr.bf16.mxu0 0
  %4129 = vmatpush1.bf16.msra.mxu0 0
  %4130 = vmatprep.subr.bf16.mxu0 0
  %4131 = vmatpush1.bf16.msra.mxu0 0
  %4132 = vmatprep.subr.bf16.mxu0 0
  %4133 = vmatpush1.bf16.msra.mxu0 0
  %4134 = vmatprep.subr.bf16.mxu0 0
  %4135 = vmatpush1.bf16.msra.mxu0 0
  %4136 = vmatprep.subr.bf16.mxu0 0
  %4137 = vmatpush1.bf16.msra.mxu0 0
  %4138 = vmatprep.subr.bf16.mxu0 0
  %4139 = vmatpush1.bf16.msra.mxu0 0
  %4140 = vmatprep.subr.bf16.mxu0 0
  %4141 = vmatpush1.bf16.msra.mxu0 0
  %4142 = vmatprep.mubr.bf16.mxu0 %v3248
  %4143 = vmatmul.mubr.bf16.gmra.mrb[0].mxu0 %v590
  %v4144 = vpop.f32.mrb[0].mxu0
  %v4145 = vadd.f32 %v4105, %v4144
  %v4146 = vpop.f32.mrb[0].mxu0
  %v4147 = vpop.f32.mrb[0].mxu0
  %v4148 = vpop.f32.mrb[0].mxu0
  %4149 = vdwg.mxu0
  %v4150 = vld [vmem:[%s3] sm:$0x77]
  %v4151 = vld [vmem:[%s3 + $0x8] sm:$0x77]
  %v4152 = vld [vmem:[%s3 + $0x10] sm:$0x77]
  %v4153 = vld [vmem:[%s3 + $0x18] sm:$0x77]
  %v4154 = vld [vmem:[%s3 + $0x20] sm:$0x77]
  %v4155 = vld [vmem:[%s3 + $0x28] sm:$0x77]
  %v4156 = vld [vmem:[%s3 + $0x30] sm:$0x77]
  %v4157 = vld [vmem:[%s3 + $0x38] sm:$0x77]
  %v4158 = vld [vmem:[%s3 + $0x40] sm:$0x77]
  %v4159 = vld [vmem:[%s3 + $0x48] sm:$0x77]
  %v4160 = vld [vmem:[%s3 + $0x50] sm:$0x7]
  %v4171 = vcombine.high %v4150, %v4150
  %v4172 = vcombine.high %v4151, %v4151
  %v4173 = vcombine.high %v4152, %v4152
  %v4174 = vcombine.high %v4153, %v4153
  %v4175 = vcombine.high %v4154, %v4154
  %v4176 = vcombine.high %v4155, %v4155
  %v4177 = vcombine.high %v4156, %v4156
  %v4178 = vcombine.high %v4157, %v4157
  %v4179 = vcombine.high %v4158, %v4158
  %v4180 = vcombine.high %v4159, %v4159
  %v4191 = vadd.f32 %v3326, %v4150
  %v4192 = vadd.f32 %v3328, %v4171
  %v4193 = vadd.f32 %v3408, %v4151
  %v4194 = vadd.f32 %v3410, %v4172
  %v4195 = vadd.f32 %v3490, %v4152
  %v4196 = vadd.f32 %v3492, %v4173
  %v4197 = vadd.f32 %v3572, %v4153
  %v4198 = vadd.f32 %v3574, %v4174
  %v4199 = vadd.f32 %v3654, %v4154
  %v4200 = vadd.f32 %v3656, %v4175
  %v4201 = vadd.f32 %v3736, %v4155
  %v4202 = vadd.f32 %v3738, %v4176
  %v4203 = vadd.f32 %v3818, %v4156
  %v4204 = vadd.f32 %v3820, %v4177
  %v4205 = vadd.f32 %v3900, %v4157
  %v4206 = vadd.f32 %v3902, %v4178
  %v4207 = vadd.f32 %v3982, %v4158
  %v4208 = vadd.f32 %v3984, %v4179
  %v4209 = vadd.f32 %v4064, %v4159
  %v4210 = vadd.f32 %v4066, %v4180
  %v4211 = vadd.f32 %v4145, %v4160
  %v4232 = vcombine.low %v4191, %v4192
  %v4233 = vcombine.low %v4193, %v4194
  %v4234 = vcombine.low %v4195, %v4196
  %v4235 = vcombine.low %v4197, %v4198
  %v4236 = vcombine.low %v4199, %v4200
  %v4237 = vcombine.low %v4201, %v4202
  %v4238 = vcombine.low %v4203, %v4204
  %v4239 = vcombine.low %v4205, %v4206
  %v4240 = vcombine.low %v4207, %v4208
  %v4241 = vcombine.low %v4209, %v4210
  %4252 = vst [vmem:[%s4] sm:$0x77] %v4232
  %4253 = vst [vmem:[%s4 + $0x8] sm:$0x77] %v4233
  %4254 = vst [vmem:[%s4 + $0x10] sm:$0x77] %v4234
  %4255 = vst [vmem:[%s4 + $0x18] sm:$0x77] %v4235
  %4256 = vst [vmem:[%s4 + $0x20] sm:$0x77] %v4236
  %4257 = vst [vmem:[%s4 + $0x28] sm:$0x77] %v4237
  %4258 = vst [vmem:[%s4 + $0x30] sm:$0x77] %v4238
  %4259 = vst [vmem:[%s4 + $0x38] sm:$0x77] %v4239
  %4260 = vst [vmem:[%s4 + $0x40] sm:$0x77] %v4240
  %4261 = vst [vmem:[%s4 + $0x48] sm:$0x77] %v4241
  %4262 = vst [vmem:[%s4 + $0x50] sm:$0x7] %v4211
  // Predicated region
  $region18: #{conv_deconv_forward.23} parent=0 // pred_check
    _
  $region19: #{conv_deconv_forward.23} parent=0 // pred_check_branch
    %4264 = sbr.rel (0) target = $region21
  $region20: #{conv_deconv_forward.23} parent=0 // pred_region
    _
  $region21: #{conv_deconv_forward.23} parent=0 // pred_fallthru
    _
  // Predicated region
  $region22: #{conv_deconv_forward.23} parent=0 // pred_check
    _
  $region23: #{conv_deconv_forward.23} parent=0 // pred_check_branch
    %4266 = sbr.rel (0) target = $region25
  $region24: #{conv_deconv_forward.23} parent=0 // pred_region
    _
  $region25: #{conv_deconv_forward.23} parent=0 // pred_fallthru
    _

</llo_original>
